<compile_context>
chip_gen: v7x
topology: tpu7x:2x2x1
jax: 0.10.0
libtpu: 0.0.40
codegen_flags: <defaults>
</compile_context>

<pallas_src>
import jax
import jax.numpy as jnp
from jax.experimental import pallas as pl
from jax.experimental.pallas import tpu as pltpu

LANE = 128

# ---- fixed layer sizes (torch Net) and packed weight-slab layout ------------
D_IN, H1, H2, H3, D_OUT = 2, 50, 20, 10, 1


def _round8(x):
    return ((x + 7) // 8) * 8


W1X_OFF = 0                                  # (50, 1)  column 0 of W1
W1T_OFF = W1X_OFF + _round8(H1)              # (50, 1)  column 1 of W1
B1_OFF = W1T_OFF + _round8(H1)               # (50, 1)
W2_OFF = B1_OFF + _round8(H1)                # (20, 50)
B2_OFF = W2_OFF + _round8(H2)                # (20, 1)
W3_OFF = B2_OFF + _round8(H2)                # (10, 20)
B3_OFF = W3_OFF + _round8(H3)                # (10, 1)
W4_OFF = B3_OFF + _round8(H3)                # (10, 1)  W4 stored transposed
B4_OFF = W4_OFF + _round8(H3)                # (1, 1)
SLAB_ROWS = B4_OFF + 8                       # 272 rows (multiple of 8)
SLAB_LANES = LANE                            # 128 lanes (>= max in_features 50)


def mlp_kernel(x_ref, t_ref, w_ref, o_ref):
    xb = x_ref[...]                                        # (1, TN) batch on lanes
    tb = t_ref[...]                                        # (1, TN)
    hp = jax.lax.Precision.HIGHEST

    # Layer 1 (in_features=2): K=2 matmul replaced by a broadcast FMA on the VPU.
    w1x = w_ref[W1X_OFF:W1X_OFF + H1, 0:1]                 # (50, 1)
    w1t = w_ref[W1T_OFF:W1T_OFF + H1, 0:1]                 # (50, 1)
    b1 = w_ref[B1_OFF:B1_OFF + H1, 0:1]                    # (50, 1)
    h = jnp.tanh(w1x * xb + w1t * tb + b1)                 # (50, TN)

    # Layers 2-3: feature-major MXU matmuls; the lane-dense batch is the N side,
    # tiny feature dims sit on sublanes where padding is cheap.
    w2 = w_ref[W2_OFF:W2_OFF + H2, 0:H1]                   # (20, 50)
    b2 = w_ref[B2_OFF:B2_OFF + H2, 0:1]                    # (20, 1)
    h = jnp.tanh(jnp.dot(w2, h, precision=hp,
                         preferred_element_type=jnp.float32) + b2)   # (20, TN)

    w3 = w_ref[W3_OFF:W3_OFF + H3, 0:H2]                   # (10, 20)
    b3 = w_ref[B3_OFF:B3_OFF + H3, 0:1]                    # (10, 1)
    h = jnp.tanh(jnp.dot(w3, h, precision=hp,
                         preferred_element_type=jnp.float32) + b3)   # (10, TN)

    # Layer 4 (out_features=1): 10 VPU FMAs + sublane reduce (XLU); skip the MXU.
    w4c = w_ref[W4_OFF:W4_OFF + H3, 0:1]                   # (10, 1) = W4.T
    b4 = w_ref[B4_OFF:B4_OFF + 1, 0:1]                     # (1, 1)
    out = jnp.sum(w4c * h, axis=0, keepdims=True) + b4     # (1, TN)

    o_ref[...] = out.astype(o_ref.dtype)                   # lane-dense store


def pack_params(params):
    """Pack the 9 weight/bias tensors into one (SLAB_ROWS, 128) f32 slab.
    Do this once per parameter update, not per forward call."""
    (w1, b1), (w2, b2), (w3, b3), (w4, b4) = params
    slab = jnp.zeros((SLAB_ROWS, SLAB_LANES), jnp.float32)
    slab = slab.at[W1X_OFF:W1X_OFF + H1, 0:1].set(w1[:, 0:1].astype(jnp.float32))
    slab = slab.at[W1T_OFF:W1T_OFF + H1, 0:1].set(w1[:, 1:2].astype(jnp.float32))
    slab = slab.at[B1_OFF:B1_OFF + H1, 0:1].set(b1.reshape(H1, 1).astype(jnp.float32))
    slab = slab.at[W2_OFF:W2_OFF + H2, 0:H1].set(w2.astype(jnp.float32))
    slab = slab.at[B2_OFF:B2_OFF + H2, 0:1].set(b2.reshape(H2, 1).astype(jnp.float32))
    slab = slab.at[W3_OFF:W3_OFF + H3, 0:H2].set(w3.astype(jnp.float32))
    slab = slab.at[B3_OFF:B3_OFF + H3, 0:1].set(b3.reshape(H3, 1).astype(jnp.float32))
    slab = slab.at[W4_OFF:W4_OFF + H3, 0:1].set(w4.T.astype(jnp.float32))
    slab = slab.at[B4_OFF:B4_OFF + 1, 0:1].set(b4.reshape(1, 1).astype(jnp.float32))
    return slab


def _cores_per_chip():
    """2 for chips exposing two TensorCores behind one device (v4/v5p megacore,
    v7x); 1 for v5e/v6e.  Safe fallback: 1."""
    try:
        kind = jax.devices()[0].device_kind.lower()
    except Exception:
        return 1
    return 2 if any(tag in kind for tag in ("v7", "7x", "v4", "v5p")) else 1


def _pick_tile_n(n, cores, max_tile):
    """Lane-tile policy: one grid step on single-TC chips; exactly two
    'parallel' steps on 2-TC chips once the batch reaches 2048 lanes."""
    n_lanes = pl.cdiv(n, LANE) * LANE
    if cores >= 2 and n_lanes >= 2048:
        tile = pl.cdiv(n_lanes, 2 * LANE) * LANE   # 2 steps, each 128-aligned
    else:
        tile = n_lanes                             # single step
    return int(min(tile, max_tile))


def net_forward(wslab, *v, max_tile_n=16384):
    """Equivalent of Net.forward(*v) given `wslab = pack_params(params)`.
    Feature-major internally (batch on the 128-lane axis)."""
    cols = []
    N = None
    for a in v:
        a = jnp.asarray(a, jnp.float32)
        if a.ndim == 1:
            a = a[:, None]
        N = a.shape[0] if N is None else N
        for j in range(a.shape[1]):
            cols.append(a[:, j].reshape(1, -1))    # (1, N) lane-major row
    assert len(cols) == D_IN, "Net expects 2 concatenated input features"
    x_row, t_row = cols

    tile_n = _pick_tile_n(N, _cores_per_chip(), max_tile_n)
    grid = (pl.cdiv(N, tile_n),)

    row_spec = pl.BlockSpec((1, tile_n), lambda i: (0, i))
    slab_spec = pl.BlockSpec((SLAB_ROWS, SLAB_LANES), lambda i: (0, 0))

    flops = 2 * N * (D_IN * H1 + H1 * H2 + H2 * H3 + H3 * D_OUT)
    transcendentals = N * (H1 + H2 + H3)
    bytes_accessed = (D_IN + D_OUT) * N * 4 + SLAB_ROWS * SLAB_LANES * 4

    out = pl.pallas_call(
        mlp_kernel,
        out_shape=jax.ShapeDtypeStruct((1, N), jnp.float32),
        grid_spec=pltpu.PrefetchScalarGridSpec(
            num_scalar_prefetch=0,
            grid=grid,
            in_specs=[row_spec, row_spec, slab_spec],
            out_specs=pl.BlockSpec((1, tile_n), lambda i: (0, i)),
        ),
        compiler_params=pltpu.CompilerParams(
            dimension_semantics=("parallel",)),
        cost_estimate=pl.CostEstimate(
            flops=flops,
            transcendentals=transcendentals,
            bytes_accessed=bytes_accessed),
    )(x_row, t_row, wslab)

    return out.reshape(N, 1)


def init_params(key):
    """Deterministic init matching nn.Linear default U(-1/sqrt(in), 1/sqrt(in)).
    Weights in torch layout (out_features, in_features); biases (out_features, 1)."""
    dims = [(D_IN, H1), (H1, H2), (H2, H3), (H3, D_OUT)]
    params = []
    for (fin, fout) in dims:
        key, kw, kb = jax.random.split(key, 3)
        bound = 1.0 / jnp.sqrt(fin)
        w = jax.random.uniform(kw, (fout, fin), jnp.float32, -bound, bound)
        b = jax.random.uniform(kb, (fout, 1), jnp.float32, -bound, bound)
        params.append((w, b))
    return params


def reference_forward(params, *v):
    x = jnp.concatenate([jnp.asarray(a, jnp.float32) for a in v], axis=1)
    (w1, b1), (w2, b2), (w3, b3), (w4, b4) = params
    hp = jax.lax.Precision.HIGHEST
    h = jnp.tanh(jnp.dot(x, w1.T, precision=hp) + b1.T)
    h = jnp.tanh(jnp.dot(h, w2.T, precision=hp) + b2.T)
    h = jnp.tanh(jnp.dot(h, w3.T, precision=hp) + b3.T)
    return jnp.dot(h, w4.T, precision=hp) + b4.T


if __name__ == "__main__":
    key = jax.random.PRNGKey(0)
    key, kx, kt = jax.random.split(key, 3)

    # PINN collocation batch; deliberately NOT a multiple of 128 to exercise
    # the ragged-block masking path (no wrapper-side pad/slice anymore).
    N = 2000
    x_coord = jax.random.uniform(kx, (N, 1), jnp.float32, -1.0, 1.0)
    t_coord = jax.random.uniform(kt, (N, 1), jnp.float32, 0.0, 1.0)

    params = init_params(key)
    wslab = pack_params(params)      # pack once; reuse across forward calls

    out = net_forward(wslab, x_coord, t_coord)
    out = jax.block_until_ready(out)

    ref = reference_forward(params, x_coord, t_coord)
    assert out.shape == (N, 1)
    assert jnp.allclose(out, ref, atol=1e-5, rtol=1e-5), "mismatch vs reference"

    print("KERNEL_OK")
</pallas_src>

<mosaic_0001>
module attributes {stable_mosaic.version = 11 : i64} {
  func.func @mlp_kernel(%arg0: i32, %arg1: memref<1x2048xf32, #tpu.memory_space<vmem>>, %arg2: memref<1x2048xf32, #tpu.memory_space<vmem>>, %arg3: memref<272x128xf32, #tpu.memory_space<vmem>>, %arg4: memref<1x2048xf32, #tpu.memory_space<vmem>>) attributes {dimension_semantics = [#tpu.dimension_semantics<parallel>], iteration_bounds = array<i64: 1>, scalar_prefetch = 0 : i64, scratch_operands = 0 : i64, tpu.core_type = #tpu.core_type<tc>, window_params = [{transform_indices = @transform_0, window_bounds = array<i64: 1, 2048>}, {transform_indices = @transform_1, window_bounds = array<i64: 1, 2048>}, {pipeline_mode = #tpu.pipeline_mode<synchronous>, transform_indices = @transform_2, window_bounds = array<i64: 272, 128>}, {transform_indices = @transform_3, window_bounds = array<i64: 1, 2048>}]} {
    %c0 = arith.constant 0 : index
    %c0_0 = arith.constant 0 : index
    %0 = vector.load %arg1[%c0, %c0_0] : memref<1x2048xf32, #tpu.memory_space<vmem>>, vector<1x2048xf32>
    %c0_1 = arith.constant 0 : index
    %c0_2 = arith.constant 0 : index
    %1 = vector.load %arg2[%c0_1, %c0_2] : memref<1x2048xf32, #tpu.memory_space<vmem>>, vector<1x2048xf32>
    %c0_3 = arith.constant 0 : index
    %c0_4 = arith.constant 0 : index
    %2 = vector.load %arg3[%c0_3, %c0_4] : memref<272x128xf32, #tpu.memory_space<vmem>>, vector<50x1xf32>
    %c56 = arith.constant 56 : index
    %c0_5 = arith.constant 0 : index
    %3 = vector.load %arg3[%c56, %c0_5] : memref<272x128xf32, #tpu.memory_space<vmem>>, vector<50x1xf32>
    %c112 = arith.constant 112 : index
    %c0_6 = arith.constant 0 : index
    %4 = vector.load %arg3[%c112, %c0_6] : memref<272x128xf32, #tpu.memory_space<vmem>>, vector<50x1xf32>
    %5 = vector.broadcast %2 : vector<50x1xf32> to vector<50x2048xf32>
    %6 = vector.broadcast %0 : vector<1x2048xf32> to vector<50x2048xf32>
    %7 = arith.mulf %5, %6 : vector<50x2048xf32>
    %8 = vector.broadcast %3 : vector<50x1xf32> to vector<50x2048xf32>
    %9 = vector.broadcast %1 : vector<1x2048xf32> to vector<50x2048xf32>
    %10 = arith.mulf %8, %9 : vector<50x2048xf32>
    %11 = arith.addf %7, %10 : vector<50x2048xf32>
    %12 = vector.broadcast %4 : vector<50x1xf32> to vector<50x2048xf32>
    %13 = arith.addf %11, %12 : vector<50x2048xf32>
    %14 = math.tanh %13 : vector<50x2048xf32>
    %c168 = arith.constant 168 : index
    %c0_7 = arith.constant 0 : index
    %15 = vector.load %arg3[%c168, %c0_7] : memref<272x128xf32, #tpu.memory_space<vmem>>, vector<20x50xf32>
    %c192 = arith.constant 192 : index
    %c0_8 = arith.constant 0 : index
    %16 = vector.load %arg3[%c192, %c0_8] : memref<272x128xf32, #tpu.memory_space<vmem>>, vector<20x1xf32>
    %cst = arith.constant dense<0.000000e+00> : vector<20x2048xf32>
    %17 = tpu.matmul %15, %14, %cst {dimension_numbers = #tpu.dot_dimension_numbers<[1], [0], [0], [1], [0, 0, 1, 1], [], []>, precision = #tpu.contract_precision<fp32>} : vector<20x50xf32>, vector<50x2048xf32>, vector<20x2048xf32> -> vector<20x2048xf32>
    %18 = vector.broadcast %16 : vector<20x1xf32> to vector<20x2048xf32>
    %19 = arith.addf %17, %18 : vector<20x2048xf32>
    %20 = math.tanh %19 : vector<20x2048xf32>
    %c216 = arith.constant 216 : index
    %c0_9 = arith.constant 0 : index
    %21 = vector.load %arg3[%c216, %c0_9] : memref<272x128xf32, #tpu.memory_space<vmem>>, vector<10x20xf32>
    %c232 = arith.constant 232 : index
    %c0_10 = arith.constant 0 : index
    %22 = vector.load %arg3[%c232, %c0_10] : memref<272x128xf32, #tpu.memory_space<vmem>>, vector<10x1xf32>
    %cst_11 = arith.constant dense<0.000000e+00> : vector<10x2048xf32>
    %23 = tpu.matmul %21, %20, %cst_11 {dimension_numbers = #tpu.dot_dimension_numbers<[1], [0], [0], [1], [0, 0, 1, 1], [], []>, precision = #tpu.contract_precision<fp32>} : vector<10x20xf32>, vector<20x2048xf32>, vector<10x2048xf32> -> vector<10x2048xf32>
    %24 = vector.broadcast %22 : vector<10x1xf32> to vector<10x2048xf32>
    %25 = arith.addf %23, %24 : vector<10x2048xf32>
    %26 = math.tanh %25 : vector<10x2048xf32>
    %c248 = arith.constant 248 : index
    %c0_12 = arith.constant 0 : index
    %27 = vector.load %arg3[%c248, %c0_12] : memref<272x128xf32, #tpu.memory_space<vmem>>, vector<10x1xf32>
    %c264 = arith.constant 264 : index
    %c0_13 = arith.constant 0 : index
    %28 = vector.load %arg3[%c264, %c0_13] : memref<272x128xf32, #tpu.memory_space<vmem>>, vector<1x1xf32>
    %29 = vector.broadcast %27 : vector<10x1xf32> to vector<10x2048xf32>
    %30 = arith.mulf %29, %26 : vector<10x2048xf32>
    %cst_14 = arith.constant dense<0.000000e+00> : vector<2048xf32>
    %31 = vector.multi_reduction <add>, %30, %cst_14 [0] : vector<10x2048xf32> to vector<2048xf32>
    %32 = vector.shape_cast %31 : vector<2048xf32> to vector<1x2048xf32>
    %33 = vector.broadcast %28 : vector<1x1xf32> to vector<1x2048xf32>
    %34 = arith.addf %32, %33 : vector<1x2048xf32>
    %c0_15 = arith.constant 0 : index
    %c0_16 = arith.constant 0 : index
    %35 = vector.load %arg4[%c0_15, %c0_16] : memref<1x2048xf32, #tpu.memory_space<vmem>>, vector<1x2048xf32>
    tpu.vector_store %arg4[%c0_15, %c0_16], %34 {strides = array<i32>} : memref<1x2048xf32, #tpu.memory_space<vmem>>, vector<1x2048xf32>,
    return
  }
  func.func @transform_0(%arg0: i32) -> (i32, i32) {
    %c0_i32 = arith.constant 0 : i32
    %c0_i32_0 = arith.constant 0 : i32
    return %c0_i32, %arg0 : i32, i32
  }
  func.func @transform_1(%arg0: i32) -> (i32, i32) {
    %c0_i32 = arith.constant 0 : i32
    %c0_i32_0 = arith.constant 0 : i32
    return %c0_i32, %arg0 : i32, i32
  }
  func.func @transform_2(%arg0: i32) -> (i32, i32) {
    %c0_i32 = arith.constant 0 : i32
    %c0_i32_0 = arith.constant 0 : i32
    %c0_i32_1 = arith.constant 0 : i32
    return %c0_i32, %c0_i32_0 : i32, i32
  }
  func.func @transform_3(%arg0: i32) -> (i32, i32) {
    %c0_i32 = arith.constant 0 : i32
    %c0_i32_0 = arith.constant 0 : i32
    return %c0_i32, %arg0 : i32, i32
  }
}

</mosaic_0001>

<llo_original>
// kernel: tpu_custom_call.1
$region0: #{tpu_custom_call.1}
  #allocation0 [shape = 'u32[]', space=smem, size = 0x4, offset = 0x4, fixed_abs, tag = 'smem constant byte address 0x4 - core index']
  #allocation1 [shape = 'u32[144,128]{1,0:T(1,128)}', space=vmem, size = 0x12000, scoped, tag = 'internal scratch']
  %s0 = inlined_call_operand.hbm [shape: f32[1,2000], index: 0, kind: input, shape index: {}]
  %s1 = inlined_call_operand.hbm [shape: f32[1,2000], index: 1, kind: input, shape index: {}]
  %s2 = inlined_call_operand.hbm [shape: f32[272,128], index: 2, kind: input, shape index: {}]
  %s3 = inlined_call_operand.hbm [shape: f32[1,2000], index: 3, kind: output, shape index: {}]
  %s4 = sld [smem:[#allocation0]]
  $region34: #{tpu_custom_call.1} parent=0
    _
  %s6 = ssub.s32 1, %s4
  %s7 = scalar_select 0, %s6, %s4
  $region1: #{tpu_custom_call.1} parent=0
    #allocation2 [shape = 'u8[8192]{0}', space=vmem, size = 0x2000, scoped, tag = 'input window, operand 0, single buffered']
    #allocation3 [shape = 's32[1]{0}', space=sflag, size = 0x4, scoped, tag = 'scoped memory for tpu_custom_call.1']
    #allocation4 [shape = 's32[1]{0}', space=sflag, size = 0x4, scoped, tag = 'scoped memory for tpu_custom_call.1']
    #allocation5 [shape = 'u8[8192]{0}', space=vmem, size = 0x2000, scoped, tag = 'input window, operand 1, single buffered']
    #allocation6 [shape = 's32[1]{0}', space=sflag, size = 0x4, scoped, tag = 'scoped memory for tpu_custom_call.1']
    #allocation7 [shape = 'u8[139264]{0}', space=vmem, size = 0x22000, scoped, tag = 'input window, operand 2, single buffered']
    #allocation8 [shape = 'u8[8192]{0}', space=vmem, size = 0x2000, scoped, tag = 'output window, operand 0, single buffered']
    %8 = vsyncpa [#allocation3], 0
    %9 = vsyncpa [#allocation6], 0
    %10 = vsyncpa [#allocation4], 0
    // Predicated region
    $region2: #{tpu_custom_call.1} parent=1 // pred_check
      _
    $region3: #{tpu_custom_call.1} parent=1 // pred_check_branch
      %12 = sbr.rel (0) target = $region5
    $region4: #{tpu_custom_call.1} parent=1 // pred_region
      %s14 = ssub.s32 256, 256
      %15 = vsyncadd [#allocation3], %s14
      %s17 = sshll.u32 [#allocation2], 4
      %s18 = int_to_ptr.vmem [resolvable:$true] %s17
      %20 = dma.hbm_to_vmem [thread:$0]  %s0, 256, %s18, [#allocation3]
    $region5: #{tpu_custom_call.1} parent=1 // pred_fallthru
      _
    // Predicated region
    $region6: #{tpu_custom_call.1} parent=1 // pred_check
      _
    $region7: #{tpu_custom_call.1} parent=1 // pred_check_branch
      %22 = sbr.rel (0) target = $region9
    $region8: #{tpu_custom_call.1} parent=1 // pred_region
      %s24 = ssub.s32 256, 256
      %25 = vsyncadd [#allocation6], %s24
      %s27 = sshll.u32 [#allocation5], 4
      %s28 = int_to_ptr.vmem [resolvable:$true] %s27
      %30 = dma.hbm_to_vmem [thread:$0]  %s1, 256, %s28, [#allocation6]
    $region9: #{tpu_custom_call.1} parent=1 // pred_fallthru
      _
    // Predicated region
    $region10: #{tpu_custom_call.1} parent=1 // pred_check
      _
    $region11: #{tpu_custom_call.1} parent=1 // pred_check_branch
      %32 = sbr.rel (0) target = $region13
    $region12: #{tpu_custom_call.1} parent=1 // pred_region
      %s34 = ssub.s32 4352, 4352
      %35 = vsyncadd [#allocation6], %s34
      %s36 = sshll.u32 [#allocation7], 4
      %s37 = int_to_ptr.vmem [resolvable:$true] %s36
      %42 = dma.hbm_to_vmem [thread:$0]  %s2, 4352, %s37, [#allocation6], 128, 128, 8
    $region13: #{tpu_custom_call.1} parent=1 // pred_fallthru
      _
    // Predicated region
    $region14: #{tpu_custom_call.1} parent=1 // pred_check
      _
    $region15: #{tpu_custom_call.1} parent=1 // pred_check_branch
      %44 = sbr.rel (0) target = $region17
    $region16: #{tpu_custom_call.1} parent=1 // pred_region
      %45 = dma.done [#allocation3], 256
    $region17: #{tpu_custom_call.1} parent=1 // pred_fallthru
      _
    // Predicated region
    $region18: #{tpu_custom_call.1} parent=1 // pred_check
      _
    $region19: #{tpu_custom_call.1} parent=1 // pred_check_branch
      %47 = sbr.rel (0) target = $region21
    $region20: #{tpu_custom_call.1} parent=1 // pred_region
      %48 = dma.done [#allocation6], 256
    $region21: #{tpu_custom_call.1} parent=1 // pred_fallthru
      _
    // Predicated region
    $region22: #{tpu_custom_call.1} parent=1 // pred_check
      _
    $region23: #{tpu_custom_call.1} parent=1 // pred_check_branch
      %50 = sbr.rel (0) target = $region25
    $region24: #{tpu_custom_call.1} parent=1 // pred_region
      %51 = dma.done [#allocation6], 4352
    $region25: #{tpu_custom_call.1} parent=1 // pred_fallthru
      _
    %v52 = vld [vmem:[#allocation2] sm:$0xff]
    %v53 = vld [vmem:[#allocation2 + $0x8] sm:$0xff]
    %v54 = vld [vmem:[#allocation5] sm:$0xff]
    %v55 = vld [vmem:[#allocation5 + $0x8] sm:$0xff]
    %v56 = vld [vmem:[#allocation7] sm:$0xff]
    %v57 = vld [vmem:[#allocation7 + $0x8] sm:$0xff]
    %v58 = vld [vmem:[#allocation7 + $0x10] sm:$0xff]
    %v59 = vld [vmem:[#allocation7 + $0x18] sm:$0xff]
    %v60 = vld [vmem:[#allocation7 + $0x20] sm:$0xff]
    %v61 = vld [vmem:[#allocation7 + $0x28] sm:$0xff]
    %v62 = vld [vmem:[#allocation7 + $0x30] sm:$0x3]
    %v63 = vld [vmem:[#allocation7 + $0x38] sm:$0xff]
    %v64 = vld [vmem:[#allocation7 + $0x40] sm:$0xff]
    %v65 = vld [vmem:[#allocation7 + $0x48] sm:$0xff]
    %v66 = vld [vmem:[#allocation7 + $0x50] sm:$0xff]
    %v67 = vld [vmem:[#allocation7 + $0x58] sm:$0xff]
    %v68 = vld [vmem:[#allocation7 + $0x60] sm:$0xff]
    %v69 = vld [vmem:[#allocation7 + $0x68] sm:$0x3]
    %v70 = vld [vmem:[#allocation7 + $0x70] sm:$0xff]
    %v71 = vld [vmem:[#allocation7 + $0x78] sm:$0xff]
    %v72 = vld [vmem:[#allocation7 + $0x80] sm:$0xff]
    %v73 = vld [vmem:[#allocation7 + $0x88] sm:$0xff]
    %v74 = vld [vmem:[#allocation7 + $0x90] sm:$0xff]
    %v75 = vld [vmem:[#allocation7 + $0x98] sm:$0xff]
    %v76 = vld [vmem:[#allocation7 + $0xa0] sm:$0x3]
    %78 = vset.pattern.permute.xlu0 0
    %79 = vperm.xlu0 %78, %v56
    %v80 = vpop.permute.xlu0 %79
    %83 = vset.pattern.permute.xlu0 0
    %84 = vperm.xlu0 %83, %v57
    %v85 = vpop.permute.xlu0 %84
    %88 = vset.pattern.permute.xlu0 0
    %89 = vperm.xlu0 %88, %v58
    %v90 = vpop.permute.xlu0 %89
    %93 = vset.pattern.permute.xlu0 0
    %94 = vperm.xlu0 %93, %v59
    %v95 = vpop.permute.xlu0 %94
    %98 = vset.pattern.permute.xlu0 0
    %99 = vperm.xlu0 %98, %v60
    %v100 = vpop.permute.xlu0 %99
    %103 = vset.pattern.permute.xlu0 0
    %104 = vperm.xlu0 %103, %v61
    %v105 = vpop.permute.xlu0 %104
    %108 = vset.pattern.permute.xlu0 0
    %109 = vperm.xlu0 %108, %v62
    %v110 = vpop.permute.xlu0 %109
    %v114 = vlaneseq
    %v115 = vshrl.u32 %v114, 7
    %v116 = vsub.s32 0, %v115
    %v117 = vrot.slane %v52, %v116
    %v118 = vlaneseq
    %v119 = vshrl.u32 %v118, 7
    %v120 = vsub.s32 1, %v119
    %v121 = vrot.slane %v52, %v120
    %v122 = vlaneseq
    %v123 = vshrl.u32 %v122, 7
    %v124 = vsub.s32 2, %v123
    %v125 = vrot.slane %v52, %v124
    %v126 = vlaneseq
    %v127 = vshrl.u32 %v126, 7
    %v128 = vsub.s32 3, %v127
    %v129 = vrot.slane %v52, %v128
    %v130 = vlaneseq
    %v131 = vshrl.u32 %v130, 7
    %v132 = vsub.s32 4, %v131
    %v133 = vrot.slane %v52, %v132
    %v134 = vlaneseq
    %v135 = vshrl.u32 %v134, 7
    %v136 = vsub.s32 5, %v135
    %v137 = vrot.slane %v52, %v136
    %v138 = vlaneseq
    %v139 = vshrl.u32 %v138, 7
    %v140 = vsub.s32 6, %v139
    %v141 = vrot.slane %v52, %v140
    %v142 = vlaneseq
    %v143 = vshrl.u32 %v142, 7
    %v144 = vsub.s32 7, %v143
    %v145 = vrot.slane %v52, %v144
    %v146 = vlaneseq
    %v147 = vshrl.u32 %v146, 7
    %v148 = vsub.s32 0, %v147
    %v149 = vrot.slane %v53, %v148
    %v150 = vlaneseq
    %v151 = vshrl.u32 %v150, 7
    %v152 = vsub.s32 1, %v151
    %v153 = vrot.slane %v53, %v152
    %v154 = vlaneseq
    %v155 = vshrl.u32 %v154, 7
    %v156 = vsub.s32 2, %v155
    %v157 = vrot.slane %v53, %v156
    %v158 = vlaneseq
    %v159 = vshrl.u32 %v158, 7
    %v160 = vsub.s32 3, %v159
    %v161 = vrot.slane %v53, %v160
    %v162 = vlaneseq
    %v163 = vshrl.u32 %v162, 7
    %v164 = vsub.s32 4, %v163
    %v165 = vrot.slane %v53, %v164
    %v166 = vlaneseq
    %v167 = vshrl.u32 %v166, 7
    %v168 = vsub.s32 5, %v167
    %v169 = vrot.slane %v53, %v168
    %v170 = vlaneseq
    %v171 = vshrl.u32 %v170, 7
    %v172 = vsub.s32 6, %v171
    %v173 = vrot.slane %v53, %v172
    %v174 = vlaneseq
    %v175 = vshrl.u32 %v174, 7
    %v176 = vsub.s32 7, %v175
    %v177 = vrot.slane %v53, %v176
    %v194 = vmul.f32 %v80, %v117
    %v195 = vmul.f32 %v80, %v121
    %v196 = vmul.f32 %v80, %v125
    %v197 = vmul.f32 %v80, %v129
    %v198 = vmul.f32 %v80, %v133
    %v199 = vmul.f32 %v80, %v137
    %v200 = vmul.f32 %v80, %v141
    %v201 = vmul.f32 %v80, %v145
    %v202 = vmul.f32 %v80, %v149
    %v203 = vmul.f32 %v80, %v153
    %v204 = vmul.f32 %v80, %v157
    %v205 = vmul.f32 %v80, %v161
    %v206 = vmul.f32 %v80, %v165
    %v207 = vmul.f32 %v80, %v169
    %v208 = vmul.f32 %v80, %v173
    %v209 = vmul.f32 %v80, %v177
    %v210 = vmul.f32 %v85, %v117
    %v211 = vmul.f32 %v85, %v121
    %v212 = vmul.f32 %v85, %v125
    %v213 = vmul.f32 %v85, %v129
    %v214 = vmul.f32 %v85, %v133
    %v215 = vmul.f32 %v85, %v137
    %v216 = vmul.f32 %v85, %v141
    %v217 = vmul.f32 %v85, %v145
    %v218 = vmul.f32 %v85, %v149
    %v219 = vmul.f32 %v85, %v153
    %v220 = vmul.f32 %v85, %v157
    %v221 = vmul.f32 %v85, %v161
    %v222 = vmul.f32 %v85, %v165
    %v223 = vmul.f32 %v85, %v169
    %v224 = vmul.f32 %v85, %v173
    %v225 = vmul.f32 %v85, %v177
    %v226 = vmul.f32 %v90, %v117
    %v227 = vmul.f32 %v90, %v121
    %v228 = vmul.f32 %v90, %v125
    %v229 = vmul.f32 %v90, %v129
    %v230 = vmul.f32 %v90, %v133
    %v231 = vmul.f32 %v90, %v137
    %v232 = vmul.f32 %v90, %v141
    %v233 = vmul.f32 %v90, %v145
    %v234 = vmul.f32 %v90, %v149
    %v235 = vmul.f32 %v90, %v153
    %v236 = vmul.f32 %v90, %v157
    %v237 = vmul.f32 %v90, %v161
    %v238 = vmul.f32 %v90, %v165
    %v239 = vmul.f32 %v90, %v169
    %v240 = vmul.f32 %v90, %v173
    %v241 = vmul.f32 %v90, %v177
    %v242 = vmul.f32 %v95, %v117
    %v243 = vmul.f32 %v95, %v121
    %v244 = vmul.f32 %v95, %v125
    %v245 = vmul.f32 %v95, %v129
    %v246 = vmul.f32 %v95, %v133
    %v247 = vmul.f32 %v95, %v137
    %v248 = vmul.f32 %v95, %v141
    %v249 = vmul.f32 %v95, %v145
    %v250 = vmul.f32 %v95, %v149
    %v251 = vmul.f32 %v95, %v153
    %v252 = vmul.f32 %v95, %v157
    %v253 = vmul.f32 %v95, %v161
    %v254 = vmul.f32 %v95, %v165
    %v255 = vmul.f32 %v95, %v169
    %v256 = vmul.f32 %v95, %v173
    %v257 = vmul.f32 %v95, %v177
    %v258 = vmul.f32 %v100, %v117
    %v259 = vmul.f32 %v100, %v121
    %v260 = vmul.f32 %v100, %v125
    %v261 = vmul.f32 %v100, %v129
    %v262 = vmul.f32 %v100, %v133
    %v263 = vmul.f32 %v100, %v137
    %v264 = vmul.f32 %v100, %v141
    %v265 = vmul.f32 %v100, %v145
    %v266 = vmul.f32 %v100, %v149
    %v267 = vmul.f32 %v100, %v153
    %v268 = vmul.f32 %v100, %v157
    %v269 = vmul.f32 %v100, %v161
    %v270 = vmul.f32 %v100, %v165
    %v271 = vmul.f32 %v100, %v169
    %v272 = vmul.f32 %v100, %v173
    %v273 = vmul.f32 %v100, %v177
    %v274 = vmul.f32 %v105, %v117
    %v275 = vmul.f32 %v105, %v121
    %v276 = vmul.f32 %v105, %v125
    %v277 = vmul.f32 %v105, %v129
    %v278 = vmul.f32 %v105, %v133
    %v279 = vmul.f32 %v105, %v137
    %v280 = vmul.f32 %v105, %v141
    %v281 = vmul.f32 %v105, %v145
    %v282 = vmul.f32 %v105, %v149
    %v283 = vmul.f32 %v105, %v153
    %v284 = vmul.f32 %v105, %v157
    %v285 = vmul.f32 %v105, %v161
    %v286 = vmul.f32 %v105, %v165
    %v287 = vmul.f32 %v105, %v169
    %v288 = vmul.f32 %v105, %v173
    %v289 = vmul.f32 %v105, %v177
    %v290 = vmul.f32 %v110, %v117
    %v291 = vmul.f32 %v110, %v121
    %v292 = vmul.f32 %v110, %v125
    %v293 = vmul.f32 %v110, %v129
    %v294 = vmul.f32 %v110, %v133
    %v295 = vmul.f32 %v110, %v137
    %v296 = vmul.f32 %v110, %v141
    %v297 = vmul.f32 %v110, %v145
    %v298 = vmul.f32 %v110, %v149
    %v299 = vmul.f32 %v110, %v153
    %v300 = vmul.f32 %v110, %v157
    %v301 = vmul.f32 %v110, %v161
    %v302 = vmul.f32 %v110, %v165
    %v303 = vmul.f32 %v110, %v169
    %v304 = vmul.f32 %v110, %v173
    %v305 = vmul.f32 %v110, %v177
    %307 = vset.pattern.permute.xlu0 0
    %308 = vperm.xlu0 %307, %v63
    %v309 = vpop.permute.xlu0 %308
    %312 = vset.pattern.permute.xlu0 0
    %313 = vperm.xlu0 %312, %v64
    %v314 = vpop.permute.xlu0 %313
    %317 = vset.pattern.permute.xlu0 0
    %318 = vperm.xlu0 %317, %v65
    %v319 = vpop.permute.xlu0 %318
    %322 = vset.pattern.permute.xlu0 0
    %323 = vperm.xlu0 %322, %v66
    %v324 = vpop.permute.xlu0 %323
    %327 = vset.pattern.permute.xlu0 0
    %328 = vperm.xlu0 %327, %v67
    %v329 = vpop.permute.xlu0 %328
    %332 = vset.pattern.permute.xlu0 0
    %333 = vperm.xlu0 %332, %v68
    %v334 = vpop.permute.xlu0 %333
    %337 = vset.pattern.permute.xlu0 0
    %338 = vperm.xlu0 %337, %v69
    %v339 = vpop.permute.xlu0 %338
    %v343 = vlaneseq
    %v344 = vshrl.u32 %v343, 7
    %v345 = vsub.s32 0, %v344
    %v346 = vrot.slane %v54, %v345
    %v347 = vlaneseq
    %v348 = vshrl.u32 %v347, 7
    %v349 = vsub.s32 1, %v348
    %v350 = vrot.slane %v54, %v349
    %v351 = vlaneseq
    %v352 = vshrl.u32 %v351, 7
    %v353 = vsub.s32 2, %v352
    %v354 = vrot.slane %v54, %v353
    %v355 = vlaneseq
    %v356 = vshrl.u32 %v355, 7
    %v357 = vsub.s32 3, %v356
    %v358 = vrot.slane %v54, %v357
    %v359 = vlaneseq
    %v360 = vshrl.u32 %v359, 7
    %v361 = vsub.s32 4, %v360
    %v362 = vrot.slane %v54, %v361
    %v363 = vlaneseq
    %v364 = vshrl.u32 %v363, 7
    %v365 = vsub.s32 5, %v364
    %v366 = vrot.slane %v54, %v365
    %v367 = vlaneseq
    %v368 = vshrl.u32 %v367, 7
    %v369 = vsub.s32 6, %v368
    %v370 = vrot.slane %v54, %v369
    %v371 = vlaneseq
    %v372 = vshrl.u32 %v371, 7
    %v373 = vsub.s32 7, %v372
    %v374 = vrot.slane %v54, %v373
    %v375 = vlaneseq
    %v376 = vshrl.u32 %v375, 7
    %v377 = vsub.s32 0, %v376
    %v378 = vrot.slane %v55, %v377
    %v379 = vlaneseq
    %v380 = vshrl.u32 %v379, 7
    %v381 = vsub.s32 1, %v380
    %v382 = vrot.slane %v55, %v381
    %v383 = vlaneseq
    %v384 = vshrl.u32 %v383, 7
    %v385 = vsub.s32 2, %v384
    %v386 = vrot.slane %v55, %v385
    %v387 = vlaneseq
    %v388 = vshrl.u32 %v387, 7
    %v389 = vsub.s32 3, %v388
    %v390 = vrot.slane %v55, %v389
    %v391 = vlaneseq
    %v392 = vshrl.u32 %v391, 7
    %v393 = vsub.s32 4, %v392
    %v394 = vrot.slane %v55, %v393
    %v395 = vlaneseq
    %v396 = vshrl.u32 %v395, 7
    %v397 = vsub.s32 5, %v396
    %v398 = vrot.slane %v55, %v397
    %v399 = vlaneseq
    %v400 = vshrl.u32 %v399, 7
    %v401 = vsub.s32 6, %v400
    %v402 = vrot.slane %v55, %v401
    %v403 = vlaneseq
    %v404 = vshrl.u32 %v403, 7
    %v405 = vsub.s32 7, %v404
    %v406 = vrot.slane %v55, %v405
    %v423 = vmul.f32 %v309, %v346
    %v424 = vmul.f32 %v309, %v350
    %v425 = vmul.f32 %v309, %v354
    %v426 = vmul.f32 %v309, %v358
    %v427 = vmul.f32 %v309, %v362
    %v428 = vmul.f32 %v309, %v366
    %v429 = vmul.f32 %v309, %v370
    %v430 = vmul.f32 %v309, %v374
    %v431 = vmul.f32 %v309, %v378
    %v432 = vmul.f32 %v309, %v382
    %v433 = vmul.f32 %v309, %v386
    %v434 = vmul.f32 %v309, %v390
    %v435 = vmul.f32 %v309, %v394
    %v436 = vmul.f32 %v309, %v398
    %v437 = vmul.f32 %v309, %v402
    %v438 = vmul.f32 %v309, %v406
    %v439 = vmul.f32 %v314, %v346
    %v440 = vmul.f32 %v314, %v350
    %v441 = vmul.f32 %v314, %v354
    %v442 = vmul.f32 %v314, %v358
    %v443 = vmul.f32 %v314, %v362
    %v444 = vmul.f32 %v314, %v366
    %v445 = vmul.f32 %v314, %v370
    %v446 = vmul.f32 %v314, %v374
    %v447 = vmul.f32 %v314, %v378
    %v448 = vmul.f32 %v314, %v382
    %v449 = vmul.f32 %v314, %v386
    %v450 = vmul.f32 %v314, %v390
    %v451 = vmul.f32 %v314, %v394
    %v452 = vmul.f32 %v314, %v398
    %v453 = vmul.f32 %v314, %v402
    %v454 = vmul.f32 %v314, %v406
    %v455 = vmul.f32 %v319, %v346
    %v456 = vmul.f32 %v319, %v350
    %v457 = vmul.f32 %v319, %v354
    %v458 = vmul.f32 %v319, %v358
    %v459 = vmul.f32 %v319, %v362
    %v460 = vmul.f32 %v319, %v366
    %v461 = vmul.f32 %v319, %v370
    %v462 = vmul.f32 %v319, %v374
    %v463 = vmul.f32 %v319, %v378
    %v464 = vmul.f32 %v319, %v382
    %v465 = vmul.f32 %v319, %v386
    %v466 = vmul.f32 %v319, %v390
    %v467 = vmul.f32 %v319, %v394
    %v468 = vmul.f32 %v319, %v398
    %v469 = vmul.f32 %v319, %v402
    %v470 = vmul.f32 %v319, %v406
    %v471 = vmul.f32 %v324, %v346
    %v472 = vmul.f32 %v324, %v350
    %v473 = vmul.f32 %v324, %v354
    %v474 = vmul.f32 %v324, %v358
    %v475 = vmul.f32 %v324, %v362
    %v476 = vmul.f32 %v324, %v366
    %v477 = vmul.f32 %v324, %v370
    %v478 = vmul.f32 %v324, %v374
    %v479 = vmul.f32 %v324, %v378
    %v480 = vmul.f32 %v324, %v382
    %v481 = vmul.f32 %v324, %v386
    %v482 = vmul.f32 %v324, %v390
    %v483 = vmul.f32 %v324, %v394
    %v484 = vmul.f32 %v324, %v398
    %v485 = vmul.f32 %v324, %v402
    %v486 = vmul.f32 %v324, %v406
    %v487 = vmul.f32 %v329, %v346
    %v488 = vmul.f32 %v329, %v350
    %v489 = vmul.f32 %v329, %v354
    %v490 = vmul.f32 %v329, %v358
    %v491 = vmul.f32 %v329, %v362
    %v492 = vmul.f32 %v329, %v366
    %v493 = vmul.f32 %v329, %v370
    %v494 = vmul.f32 %v329, %v374
    %v495 = vmul.f32 %v329, %v378
    %v496 = vmul.f32 %v329, %v382
    %v497 = vmul.f32 %v329, %v386
    %v498 = vmul.f32 %v329, %v390
    %v499 = vmul.f32 %v329, %v394
    %v500 = vmul.f32 %v329, %v398
    %v501 = vmul.f32 %v329, %v402
    %v502 = vmul.f32 %v329, %v406
    %v503 = vmul.f32 %v334, %v346
    %v504 = vmul.f32 %v334, %v350
    %v505 = vmul.f32 %v334, %v354
    %v506 = vmul.f32 %v334, %v358
    %v507 = vmul.f32 %v334, %v362
    %v508 = vmul.f32 %v334, %v366
    %v509 = vmul.f32 %v334, %v370
    %v510 = vmul.f32 %v334, %v374
    %v511 = vmul.f32 %v334, %v378
    %v512 = vmul.f32 %v334, %v382
    %v513 = vmul.f32 %v334, %v386
    %v514 = vmul.f32 %v334, %v390
    %v515 = vmul.f32 %v334, %v394
    %v516 = vmul.f32 %v334, %v398
    %v517 = vmul.f32 %v334, %v402
    %v518 = vmul.f32 %v334, %v406
    %v519 = vmul.f32 %v339, %v346
    %v520 = vmul.f32 %v339, %v350
    %v521 = vmul.f32 %v339, %v354
    %v522 = vmul.f32 %v339, %v358
    %v523 = vmul.f32 %v339, %v362
    %v524 = vmul.f32 %v339, %v366
    %v525 = vmul.f32 %v339, %v370
    %v526 = vmul.f32 %v339, %v374
    %v527 = vmul.f32 %v339, %v378
    %v528 = vmul.f32 %v339, %v382
    %v529 = vmul.f32 %v339, %v386
    %v530 = vmul.f32 %v339, %v390
    %v531 = vmul.f32 %v339, %v394
    %v532 = vmul.f32 %v339, %v398
    %v533 = vmul.f32 %v339, %v402
    %v534 = vmul.f32 %v339, %v406
    %v535 = vadd.f32 %v194, %v423
    %v536 = vadd.f32 %v195, %v424
    %v537 = vadd.f32 %v196, %v425
    %v538 = vadd.f32 %v197, %v426
    %v539 = vadd.f32 %v198, %v427
    %v540 = vadd.f32 %v199, %v428
    %v541 = vadd.f32 %v200, %v429
    %v542 = vadd.f32 %v201, %v430
    %v543 = vadd.f32 %v202, %v431
    %v544 = vadd.f32 %v203, %v432
    %v545 = vadd.f32 %v204, %v433
    %v546 = vadd.f32 %v205, %v434
    %v547 = vadd.f32 %v206, %v435
    %v548 = vadd.f32 %v207, %v436
    %v549 = vadd.f32 %v208, %v437
    %v550 = vadd.f32 %v209, %v438
    %v551 = vadd.f32 %v210, %v439
    %v552 = vadd.f32 %v211, %v440
    %v553 = vadd.f32 %v212, %v441
    %v554 = vadd.f32 %v213, %v442
    %v555 = vadd.f32 %v214, %v443
    %v556 = vadd.f32 %v215, %v444
    %v557 = vadd.f32 %v216, %v445
    %v558 = vadd.f32 %v217, %v446
    %v559 = vadd.f32 %v218, %v447
    %v560 = vadd.f32 %v219, %v448
    %v561 = vadd.f32 %v220, %v449
    %v562 = vadd.f32 %v221, %v450
    %v563 = vadd.f32 %v222, %v451
    %v564 = vadd.f32 %v223, %v452
    %v565 = vadd.f32 %v224, %v453
    %v566 = vadd.f32 %v225, %v454
    %v567 = vadd.f32 %v226, %v455
    %v568 = vadd.f32 %v227, %v456
    %v569 = vadd.f32 %v228, %v457
    %v570 = vadd.f32 %v229, %v458
    %v571 = vadd.f32 %v230, %v459
    %v572 = vadd.f32 %v231, %v460
    %v573 = vadd.f32 %v232, %v461
    %v574 = vadd.f32 %v233, %v462
    %v575 = vadd.f32 %v234, %v463
    %v576 = vadd.f32 %v235, %v464
    %v577 = vadd.f32 %v236, %v465
    %v578 = vadd.f32 %v237, %v466
    %v579 = vadd.f32 %v238, %v467
    %v580 = vadd.f32 %v239, %v468
    %v581 = vadd.f32 %v240, %v469
    %v582 = vadd.f32 %v241, %v470
    %v583 = vadd.f32 %v242, %v471
    %v584 = vadd.f32 %v243, %v472
    %v585 = vadd.f32 %v244, %v473
    %v586 = vadd.f32 %v245, %v474
    %v587 = vadd.f32 %v246, %v475
    %v588 = vadd.f32 %v247, %v476
    %v589 = vadd.f32 %v248, %v477
    %v590 = vadd.f32 %v249, %v478
    %v591 = vadd.f32 %v250, %v479
    %v592 = vadd.f32 %v251, %v480
    %v593 = vadd.f32 %v252, %v481
    %v594 = vadd.f32 %v253, %v482
    %v595 = vadd.f32 %v254, %v483
    %v596 = vadd.f32 %v255, %v484
    %v597 = vadd.f32 %v256, %v485
    %v598 = vadd.f32 %v257, %v486
    %v599 = vadd.f32 %v258, %v487
    %v600 = vadd.f32 %v259, %v488
    %v601 = vadd.f32 %v260, %v489
    %v602 = vadd.f32 %v261, %v490
    %v603 = vadd.f32 %v262, %v491
    %v604 = vadd.f32 %v263, %v492
    %v605 = vadd.f32 %v264, %v493
    %v606 = vadd.f32 %v265, %v494
    %v607 = vadd.f32 %v266, %v495
    %v608 = vadd.f32 %v267, %v496
    %v609 = vadd.f32 %v268, %v497
    %v610 = vadd.f32 %v269, %v498
    %v611 = vadd.f32 %v270, %v499
    %v612 = vadd.f32 %v271, %v500
    %v613 = vadd.f32 %v272, %v501
    %v614 = vadd.f32 %v273, %v502
    %v615 = vadd.f32 %v274, %v503
    %v616 = vadd.f32 %v275, %v504
    %v617 = vadd.f32 %v276, %v505
    %v618 = vadd.f32 %v277, %v506
    %v619 = vadd.f32 %v278, %v507
    %v620 = vadd.f32 %v279, %v508
    %v621 = vadd.f32 %v280, %v509
    %v622 = vadd.f32 %v281, %v510
    %v623 = vadd.f32 %v282, %v511
    %v624 = vadd.f32 %v283, %v512
    %v625 = vadd.f32 %v284, %v513
    %v626 = vadd.f32 %v285, %v514
    %v627 = vadd.f32 %v286, %v515
    %v628 = vadd.f32 %v287, %v516
    %v629 = vadd.f32 %v288, %v517
    %v630 = vadd.f32 %v289, %v518
    %v631 = vadd.f32 %v290, %v519
    %v632 = vadd.f32 %v291, %v520
    %v633 = vadd.f32 %v292, %v521
    %v634 = vadd.f32 %v293, %v522
    %v635 = vadd.f32 %v294, %v523
    %v636 = vadd.f32 %v295, %v524
    %v637 = vadd.f32 %v296, %v525
    %v638 = vadd.f32 %v297, %v526
    %v639 = vadd.f32 %v298, %v527
    %v640 = vadd.f32 %v299, %v528
    %v641 = vadd.f32 %v300, %v529
    %v642 = vadd.f32 %v301, %v530
    %v643 = vadd.f32 %v302, %v531
    %v644 = vadd.f32 %v303, %v532
    %v645 = vadd.f32 %v304, %v533
    %v646 = vadd.f32 %v305, %v534
    %648 = vset.pattern.permute.xlu0 0
    %649 = vperm.xlu0 %648, %v70
    %v650 = vpop.permute.xlu0 %649
    %653 = vset.pattern.permute.xlu0 0
    %654 = vperm.xlu0 %653, %v71
    %v655 = vpop.permute.xlu0 %654
    %658 = vset.pattern.permute.xlu0 0
    %659 = vperm.xlu0 %658, %v72
    %v660 = vpop.permute.xlu0 %659
    %663 = vset.pattern.permute.xlu0 0
    %664 = vperm.xlu0 %663, %v73
    %v665 = vpop.permute.xlu0 %664
    %668 = vset.pattern.permute.xlu0 0
    %669 = vperm.xlu0 %668, %v74
    %v670 = vpop.permute.xlu0 %669
    %673 = vset.pattern.permute.xlu0 0
    %674 = vperm.xlu0 %673, %v75
    %v675 = vpop.permute.xlu0 %674
    %678 = vset.pattern.permute.xlu0 0
    %679 = vperm.xlu0 %678, %v76
    %v680 = vpop.permute.xlu0 %679
    %v682 = vadd.f32 %v535, %v650
    %v683 = vadd.f32 %v536, %v650
    %v684 = vadd.f32 %v537, %v650
    %v685 = vadd.f32 %v538, %v650
    %v686 = vadd.f32 %v539, %v650
    %v687 = vadd.f32 %v540, %v650
    %v688 = vadd.f32 %v541, %v650
    %v689 = vadd.f32 %v542, %v650
    %v690 = vadd.f32 %v543, %v650
    %v691 = vadd.f32 %v544, %v650
    %v692 = vadd.f32 %v545, %v650
    %v693 = vadd.f32 %v546, %v650
    %v694 = vadd.f32 %v547, %v650
    %v695 = vadd.f32 %v548, %v650
    %v696 = vadd.f32 %v549, %v650
    %v697 = vadd.f32 %v550, %v650
    %v698 = vadd.f32 %v551, %v655
    %v699 = vadd.f32 %v552, %v655
    %v700 = vadd.f32 %v553, %v655
    %v701 = vadd.f32 %v554, %v655
    %v702 = vadd.f32 %v555, %v655
    %v703 = vadd.f32 %v556, %v655
    %v704 = vadd.f32 %v557, %v655
    %v705 = vadd.f32 %v558, %v655
    %v706 = vadd.f32 %v559, %v655
    %v707 = vadd.f32 %v560, %v655
    %v708 = vadd.f32 %v561, %v655
    %v709 = vadd.f32 %v562, %v655
    %v710 = vadd.f32 %v563, %v655
    %v711 = vadd.f32 %v564, %v655
    %v712 = vadd.f32 %v565, %v655
    %v713 = vadd.f32 %v566, %v655
    %v714 = vadd.f32 %v567, %v660
    %v715 = vadd.f32 %v568, %v660
    %v716 = vadd.f32 %v569, %v660
    %v717 = vadd.f32 %v570, %v660
    %v718 = vadd.f32 %v571, %v660
    %v719 = vadd.f32 %v572, %v660
    %v720 = vadd.f32 %v573, %v660
    %v721 = vadd.f32 %v574, %v660
    %v722 = vadd.f32 %v575, %v660
    %v723 = vadd.f32 %v576, %v660
    %v724 = vadd.f32 %v577, %v660
    %v725 = vadd.f32 %v578, %v660
    %v726 = vadd.f32 %v579, %v660
    %v727 = vadd.f32 %v580, %v660
    %v728 = vadd.f32 %v581, %v660
    %v729 = vadd.f32 %v582, %v660
    %v730 = vadd.f32 %v583, %v665
    %v731 = vadd.f32 %v584, %v665
    %v732 = vadd.f32 %v585, %v665
    %v733 = vadd.f32 %v586, %v665
    %v734 = vadd.f32 %v587, %v665
    %v735 = vadd.f32 %v588, %v665
    %v736 = vadd.f32 %v589, %v665
    %v737 = vadd.f32 %v590, %v665
    %v738 = vadd.f32 %v591, %v665
    %v739 = vadd.f32 %v592, %v665
    %v740 = vadd.f32 %v593, %v665
    %v741 = vadd.f32 %v594, %v665
    %v742 = vadd.f32 %v595, %v665
    %v743 = vadd.f32 %v596, %v665
    %v744 = vadd.f32 %v597, %v665
    %v745 = vadd.f32 %v598, %v665
    %v746 = vadd.f32 %v599, %v670
    %v747 = vadd.f32 %v600, %v670
    %v748 = vadd.f32 %v601, %v670
    %v749 = vadd.f32 %v602, %v670
    %v750 = vadd.f32 %v603, %v670
    %v751 = vadd.f32 %v604, %v670
    %v752 = vadd.f32 %v605, %v670
    %v753 = vadd.f32 %v606, %v670
    %v754 = vadd.f32 %v607, %v670
    %v755 = vadd.f32 %v608, %v670
    %v756 = vadd.f32 %v609, %v670
    %v757 = vadd.f32 %v610, %v670
    %v758 = vadd.f32 %v611, %v670
    %v759 = vadd.f32 %v612, %v670
    %v760 = vadd.f32 %v613, %v670
    %v761 = vadd.f32 %v614, %v670
    %v762 = vadd.f32 %v615, %v675
    %v763 = vadd.f32 %v616, %v675
    %v764 = vadd.f32 %v617, %v675
    %v765 = vadd.f32 %v618, %v675
    %v766 = vadd.f32 %v619, %v675
    %v767 = vadd.f32 %v620, %v675
    %v768 = vadd.f32 %v621, %v675
    %v769 = vadd.f32 %v622, %v675
    %v770 = vadd.f32 %v623, %v675
    %v771 = vadd.f32 %v624, %v675
    %v772 = vadd.f32 %v625, %v675
    %v773 = vadd.f32 %v626, %v675
    %v774 = vadd.f32 %v627, %v675
    %v775 = vadd.f32 %v628, %v675
    %v776 = vadd.f32 %v629, %v675
    %v777 = vadd.f32 %v630, %v675
    %v778 = vadd.f32 %v631, %v680
    %v779 = vadd.f32 %v632, %v680
    %v780 = vadd.f32 %v633, %v680
    %v781 = vadd.f32 %v634, %v680
    %v782 = vadd.f32 %v635, %v680
    %v783 = vadd.f32 %v636, %v680
    %v784 = vadd.f32 %v637, %v680
    %v785 = vadd.f32 %v638, %v680
    %v786 = vadd.f32 %v639, %v680
    %v787 = vadd.f32 %v640, %v680
    %v788 = vadd.f32 %v641, %v680
    %v789 = vadd.f32 %v642, %v680
    %v790 = vadd.f32 %v643, %v680
    %v791 = vadd.f32 %v644, %v680
    %v792 = vadd.f32 %v645, %v680
    %v793 = vadd.f32 %v646, %v680
    %v794 = vtanh.pop %v682
    %v795 = vtanh.pop %v683
    %v796 = vtanh.pop %v684
    %v797 = vtanh.pop %v685
    %v798 = vtanh.pop %v686
    %v799 = vtanh.pop %v687
    %v800 = vtanh.pop %v688
    %v801 = vtanh.pop %v689
    %v802 = vtanh.pop %v690
    %v803 = vtanh.pop %v691
    %v804 = vtanh.pop %v692
    %v805 = vtanh.pop %v693
    %v806 = vtanh.pop %v694
    %v807 = vtanh.pop %v695
    %v808 = vtanh.pop %v696
    %v809 = vtanh.pop %v697
    %v810 = vtanh.pop %v698
    %v811 = vtanh.pop %v699
    %v812 = vtanh.pop %v700
    %v813 = vtanh.pop %v701
    %v814 = vtanh.pop %v702
    %v815 = vtanh.pop %v703
    %v816 = vtanh.pop %v704
    %v817 = vtanh.pop %v705
    %v818 = vtanh.pop %v706
    %v819 = vtanh.pop %v707
    %v820 = vtanh.pop %v708
    %v821 = vtanh.pop %v709
    %v822 = vtanh.pop %v710
    %v823 = vtanh.pop %v711
    %v824 = vtanh.pop %v712
    %v825 = vtanh.pop %v713
    %v826 = vtanh.pop %v714
    %v827 = vtanh.pop %v715
    %v828 = vtanh.pop %v716
    %v829 = vtanh.pop %v717
    %v830 = vtanh.pop %v718
    %v831 = vtanh.pop %v719
    %v832 = vtanh.pop %v720
    %v833 = vtanh.pop %v721
    %v834 = vtanh.pop %v722
    %v835 = vtanh.pop %v723
    %v836 = vtanh.pop %v724
    %v837 = vtanh.pop %v725
    %v838 = vtanh.pop %v726
    %v839 = vtanh.pop %v727
    %v840 = vtanh.pop %v728
    %v841 = vtanh.pop %v729
    %v842 = vtanh.pop %v730
    %v843 = vtanh.pop %v731
    %v844 = vtanh.pop %v732
    %v845 = vtanh.pop %v733
    %v846 = vtanh.pop %v734
    %v847 = vtanh.pop %v735
    %v848 = vtanh.pop %v736
    %v849 = vtanh.pop %v737
    %v850 = vtanh.pop %v738
    %v851 = vtanh.pop %v739
    %v852 = vtanh.pop %v740
    %v853 = vtanh.pop %v741
    %v854 = vtanh.pop %v742
    %v855 = vtanh.pop %v743
    %v856 = vtanh.pop %v744
    %v857 = vtanh.pop %v745
    %v858 = vtanh.pop %v746
    %v859 = vtanh.pop %v747
    %v860 = vtanh.pop %v748
    %v861 = vtanh.pop %v749
    %v862 = vtanh.pop %v750
    %v863 = vtanh.pop %v751
    %v864 = vtanh.pop %v752
    %v865 = vtanh.pop %v753
    %v866 = vtanh.pop %v754
    %v867 = vtanh.pop %v755
    %v868 = vtanh.pop %v756
    %v869 = vtanh.pop %v757
    %v870 = vtanh.pop %v758
    %v871 = vtanh.pop %v759
    %v872 = vtanh.pop %v760
    %v873 = vtanh.pop %v761
    %v874 = vtanh.pop %v762
    %v875 = vtanh.pop %v763
    %v876 = vtanh.pop %v764
    %v877 = vtanh.pop %v765
    %v878 = vtanh.pop %v766
    %v879 = vtanh.pop %v767
    %v880 = vtanh.pop %v768
    %v881 = vtanh.pop %v769
    %v882 = vtanh.pop %v770
    %v883 = vtanh.pop %v771
    %v884 = vtanh.pop %v772
    %v885 = vtanh.pop %v773
    %v886 = vtanh.pop %v774
    %v887 = vtanh.pop %v775
    %v888 = vtanh.pop %v776
    %v889 = vtanh.pop %v777
    %v890 = vtanh.pop %v778
    %v891 = vtanh.pop %v779
    %v892 = vtanh.pop %v780
    %v893 = vtanh.pop %v781
    %v894 = vtanh.pop %v782
    %v895 = vtanh.pop %v783
    %v896 = vtanh.pop %v784
    %v897 = vtanh.pop %v785
    %v898 = vtanh.pop %v786
    %v899 = vtanh.pop %v787
    %v900 = vtanh.pop %v788
    %v901 = vtanh.pop %v789
    %v902 = vtanh.pop %v790
    %v903 = vtanh.pop %v791
    %v904 = vtanh.pop %v792
    %v905 = vtanh.pop %v793
    %v906 = vld [vmem:[#allocation7 + $0xa8] sm:$0xff]
    %v907 = vld [vmem:[#allocation7 + $0xb0] sm:$0xff]
    %v908 = vld [vmem:[#allocation7 + $0xb8] sm:$0xf]
    %v909 = vld [vmem:[#allocation7 + $0xc0] sm:$0xff]
    %v910 = vld [vmem:[#allocation7 + $0xc8] sm:$0xff]
    %v911 = vld [vmem:[#allocation7 + $0xd0] sm:$0xf]
    %913 = vset.pattern.permute.xlu0 0
    %914 = vperm.xlu0 %913, %v909
    %v915 = vpop.permute.xlu0 %914
    %918 = vset.pattern.permute.xlu0 0
    %919 = vperm.xlu0 %918, %v910
    %v920 = vpop.permute.xlu0 %919
    %923 = vset.pattern.permute.xlu0 0
    %924 = vperm.xlu0 %923, %v911
    %v925 = vpop.permute.xlu0 %924
    %vm927 = vcmask 408576
    %v929 = vsel %vm927, %v906, 0
    %v932 = vsel %vm927, %v907, 0
    %v935 = vsel %vm927, %v908, 0
    %vm937 = vcmask 1041408
    %v939 = vsel %vm937, %v890, 0
    %v942 = vsel %vm937, %v891, 0
    %v945 = vsel %vm937, %v892, 0
    %v948 = vsel %vm937, %v893, 0
    %v951 = vsel %vm937, %v894, 0
    %v954 = vsel %vm937, %v895, 0
    %v957 = vsel %vm937, %v896, 0
    %v960 = vsel %vm937, %v897, 0
    %v963 = vsel %vm937, %v898, 0
    %v966 = vsel %vm937, %v899, 0
    %v969 = vsel %vm937, %v900, 0
    %v972 = vsel %vm937, %v901, 0
    %v975 = vsel %vm937, %v902, 0
    %v978 = vsel %vm937, %v903, 0
    %v981 = vsel %vm937, %v904, 0
    %v984 = vsel %vm937, %v905, 0
    %v986 = vand.u32 %v795, 4294901760
    %987 = vmatprep.subr.mxu0 %v986
    %v988 = vand.u32 %v794, 4294901760
    %989 = vmatpush1.msra.mxu0 %v988
    %v990 = vand.u32 %v811, 4294901760
    %991 = vmatprep.subr.mxu0 %v990
    %v992 = vand.u32 %v810, 4294901760
    %993 = vmatpush1.msra.mxu0 %v992
    %v994 = vand.u32 %v827, 4294901760
    %995 = vmatprep.subr.mxu0 %v994
    %v996 = vand.u32 %v826, 4294901760
    %997 = vmatpush1.msra.mxu0 %v996
    %v998 = vand.u32 %v843, 4294901760
    %999 = vmatprep.subr.mxu0 %v998
    %v1000 = vand.u32 %v842, 4294901760
    %1001 = vmatpush1.msra.mxu0 %v1000
    %v1002 = vand.u32 %v859, 4294901760
    %1003 = vmatprep.subr.mxu0 %v1002
    %v1004 = vand.u32 %v858, 4294901760
    %1005 = vmatpush1.msra.mxu0 %v1004
    %v1006 = vand.u32 %v875, 4294901760
    %1007 = vmatprep.subr.mxu0 %v1006
    %v1008 = vand.u32 %v874, 4294901760
    %1009 = vmatpush1.msra.mxu0 %v1008
    %v1010 = vand.u32 %v942, 4294901760
    %1011 = vmatprep.subr.mxu0 %v1010
    %v1012 = vand.u32 %v939, 4294901760
    %1013 = vmatpush1.msra.mxu0 %v1012
    %1014 = vmatprep.subr.mxu0 0.0
    %1015 = vmatpush1.msra.mxu0 0.0
    %1016 = vmatprep.subr.mxu0 0.0
    %1017 = vmatpush1.msra.mxu0 0.0
    %1018 = vmatprep.subr.mxu0 0.0
    %1019 = vmatpush1.msra.mxu0 0.0
    %1020 = vmatprep.subr.mxu0 0.0
    %1021 = vmatpush1.msra.mxu0 0.0
    %1022 = vmatprep.subr.mxu0 0.0
    %1023 = vmatpush1.msra.mxu0 0.0
    %1024 = vmatprep.subr.mxu0 0.0
    %1025 = vmatpush1.msra.mxu0 0.0
    %1026 = vmatprep.subr.mxu0 0.0
    %1027 = vmatpush1.msra.mxu0 0.0
    %1028 = vmatprep.subr.mxu0 0.0
    %1029 = vmatpush1.msra.mxu0 0.0
    %1030 = vmatprep.subr.mxu0 0.0
    %1031 = vmatpush1.msra.mxu0 0.0
    %1032 = vmatprep.subr.mxu0 0.0
    %1033 = vmatpush1.msra.mxu0 0.0
    %1034 = vmatprep.subr.mxu0 0.0
    %1035 = vmatpush1.msra.mxu0 0.0
    %1036 = vmatprep.subr.mxu0 0.0
    %1037 = vmatpush1.msra.mxu0 0.0
    %1038 = vmatprep.subr.mxu0 0.0
    %1039 = vmatpush1.msra.mxu0 0.0
    %1040 = vmatprep.subr.mxu0 0.0
    %1041 = vmatpush1.msra.mxu0 0.0
    %1042 = vmatprep.subr.mxu0 0.0
    %1043 = vmatpush1.msra.mxu0 0.0
    %1044 = vmatprep.subr.mxu0 0.0
    %1045 = vmatpush1.msra.mxu0 0.0
    %1046 = vmatprep.subr.mxu0 0.0
    %1047 = vmatpush1.msra.mxu0 0.0
    %1048 = vmatprep.subr.mxu0 0.0
    %1049 = vmatpush1.msra.mxu0 0.0
    %1050 = vmatprep.subr.mxu0 0.0
    %1051 = vmatpush1.msra.mxu0 0.0
    %1052 = vmatprep.subr.mxu0 0.0
    %1053 = vmatpush1.msra.mxu0 0.0
    %1054 = vmatprep.subr.mxu0 0.0
    %1055 = vmatpush1.msra.mxu0 0.0
    %1056 = vmatprep.subr.mxu0 0.0
    %1057 = vmatpush1.msra.mxu0 0.0
    %1058 = vmatprep.subr.mxu0 0.0
    %1059 = vmatpush1.msra.mxu0 0.0
    %1060 = vmatprep.subr.mxu0 0.0
    %1061 = vmatpush1.msra.mxu0 0.0
    %1062 = vmatprep.subr.mxu0 0.0
    %1063 = vmatpush1.msra.mxu0 0.0
    %1064 = vmatprep.mubr.f32.mxu0 0.0
    %v1065 = vand.u32 %v929, 4294901760
    %v1066 = vsub.f32 %v929, %v1065
    %v1067 = vand.u32 %v1066, 4294901760
    %v1068 = vsub.f32 %v1066, %v1067
    %v1069 = vand.u32 %v1068, 4294901760
    %1070 = vmatmul.mubr.f32.gmra.mrb[0].mxu0 %v1069
    %v1071 = vpop.f32.mrb[0].mxu0
    %v1072 = vadd.f32 %v915, %v1071
    %v1073 = vpop.f32.mrb[0].mxu0
    %v1074 = vadd.f32 %v915, %v1073
    %1075 = vmatprep.mubr.f32.mxu0 0.0
    %v1076 = vand.u32 %v932, 4294901760
    %v1077 = vsub.f32 %v932, %v1076
    %v1078 = vand.u32 %v1077, 4294901760
    %v1079 = vsub.f32 %v1077, %v1078
    %v1080 = vand.u32 %v1079, 4294901760
    %1081 = vmatmul.mubr.f32.gmra.mrb[0].mxu0 %v1080
    %v1082 = vpop.f32.mrb[0].mxu0
    %v1083 = vadd.f32 %v920, %v1082
    %v1084 = vpop.f32.mrb[0].mxu0
    %v1085 = vadd.f32 %v920, %v1084
    %1086 = vmatprep.mubr.f32.mxu0 0.0
    %v1087 = vand.u32 %v935, 4294901760
    %v1088 = vsub.f32 %v935, %v1087
    %v1089 = vand.u32 %v1088, 4294901760
    %v1090 = vsub.f32 %v1088, %v1089
    %v1091 = vand.u32 %v1090, 4294901760
    %1092 = vmatmul.mubr.f32.gmra.mrb[0].mxu0 %v1091
    %v1093 = vpop.f32.mrb[0].mxu0
    %v1094 = vadd.f32 %v925, %v1093
    %v1095 = vpop.f32.mrb[0].mxu0
    %v1096 = vadd.f32 %v925, %v1095
    %1097 = vdwg.mxu0
    %v1098 = vand.u32 %v795, 4294901760
    %v1099 = vsub.f32 %v795, %v1098
    %v1100 = vand.u32 %v1099, 4294901760
    %v1101 = vsub.f32 %v1099, %v1100
    %v1102 = vand.u32 %v1101, 4294901760
    %1103 = vmatprep.subr.mxu0 %v1102
    %v1104 = vand.u32 %v794, 4294901760
    %v1105 = vsub.f32 %v794, %v1104
    %v1106 = vand.u32 %v1105, 4294901760
    %v1107 = vsub.f32 %v1105, %v1106
    %v1108 = vand.u32 %v1107, 4294901760
    %1109 = vmatpush1.msra.mxu0 %v1108
    %v1110 = vand.u32 %v811, 4294901760
    %v1111 = vsub.f32 %v811, %v1110
    %v1112 = vand.u32 %v1111, 4294901760
    %v1113 = vsub.f32 %v1111, %v1112
    %v1114 = vand.u32 %v1113, 4294901760
    %1115 = vmatprep.subr.mxu0 %v1114
    %v1116 = vand.u32 %v810, 4294901760
    %v1117 = vsub.f32 %v810, %v1116
    %v1118 = vand.u32 %v1117, 4294901760
    %v1119 = vsub.f32 %v1117, %v1118
    %v1120 = vand.u32 %v1119, 4294901760
    %1121 = vmatpush1.msra.mxu0 %v1120
    %v1122 = vand.u32 %v827, 4294901760
    %v1123 = vsub.f32 %v827, %v1122
    %v1124 = vand.u32 %v1123, 4294901760
    %v1125 = vsub.f32 %v1123, %v1124
    %v1126 = vand.u32 %v1125, 4294901760
    %1127 = vmatprep.subr.mxu0 %v1126
    %v1128 = vand.u32 %v826, 4294901760
    %v1129 = vsub.f32 %v826, %v1128
    %v1130 = vand.u32 %v1129, 4294901760
    %v1131 = vsub.f32 %v1129, %v1130
    %v1132 = vand.u32 %v1131, 4294901760
    %1133 = vmatpush1.msra.mxu0 %v1132
    %v1134 = vand.u32 %v843, 4294901760
    %v1135 = vsub.f32 %v843, %v1134
    %v1136 = vand.u32 %v1135, 4294901760
    %v1137 = vsub.f32 %v1135, %v1136
    %v1138 = vand.u32 %v1137, 4294901760
    %1139 = vmatprep.subr.mxu0 %v1138
    %v1140 = vand.u32 %v842, 4294901760
    %v1141 = vsub.f32 %v842, %v1140
    %v1142 = vand.u32 %v1141, 4294901760
    %v1143 = vsub.f32 %v1141, %v1142
    %v1144 = vand.u32 %v1143, 4294901760
    %1145 = vmatpush1.msra.mxu0 %v1144
    %v1146 = vand.u32 %v859, 4294901760
    %v1147 = vsub.f32 %v859, %v1146
    %v1148 = vand.u32 %v1147, 4294901760
    %v1149 = vsub.f32 %v1147, %v1148
    %v1150 = vand.u32 %v1149, 4294901760
    %1151 = vmatprep.subr.mxu0 %v1150
    %v1152 = vand.u32 %v858, 4294901760
    %v1153 = vsub.f32 %v858, %v1152
    %v1154 = vand.u32 %v1153, 4294901760
    %v1155 = vsub.f32 %v1153, %v1154
    %v1156 = vand.u32 %v1155, 4294901760
    %1157 = vmatpush1.msra.mxu0 %v1156
    %v1158 = vand.u32 %v875, 4294901760
    %v1159 = vsub.f32 %v875, %v1158
    %v1160 = vand.u32 %v1159, 4294901760
    %v1161 = vsub.f32 %v1159, %v1160
    %v1162 = vand.u32 %v1161, 4294901760
    %1163 = vmatprep.subr.mxu0 %v1162
    %v1164 = vand.u32 %v874, 4294901760
    %v1165 = vsub.f32 %v874, %v1164
    %v1166 = vand.u32 %v1165, 4294901760
    %v1167 = vsub.f32 %v1165, %v1166
    %v1168 = vand.u32 %v1167, 4294901760
    %1169 = vmatpush1.msra.mxu0 %v1168
    %v1170 = vand.u32 %v942, 4294901760
    %v1171 = vsub.f32 %v942, %v1170
    %v1172 = vand.u32 %v1171, 4294901760
    %v1173 = vsub.f32 %v1171, %v1172
    %v1174 = vand.u32 %v1173, 4294901760
    %1175 = vmatprep.subr.mxu0 %v1174
    %v1176 = vand.u32 %v939, 4294901760
    %v1177 = vsub.f32 %v939, %v1176
    %v1178 = vand.u32 %v1177, 4294901760
    %v1179 = vsub.f32 %v1177, %v1178
    %v1180 = vand.u32 %v1179, 4294901760
    %1181 = vmatpush1.msra.mxu0 %v1180
    %1182 = vmatprep.subr.mxu0 0.0
    %1183 = vmatpush1.msra.mxu0 0.0
    %1184 = vmatprep.subr.mxu0 0.0
    %1185 = vmatpush1.msra.mxu0 0.0
    %1186 = vmatprep.subr.mxu0 0.0
    %1187 = vmatpush1.msra.mxu0 0.0
    %1188 = vmatprep.subr.mxu0 0.0
    %1189 = vmatpush1.msra.mxu0 0.0
    %1190 = vmatprep.subr.mxu0 0.0
    %1191 = vmatpush1.msra.mxu0 0.0
    %1192 = vmatprep.subr.mxu0 0.0
    %1193 = vmatpush1.msra.mxu0 0.0
    %1194 = vmatprep.subr.mxu0 0.0
    %1195 = vmatpush1.msra.mxu0 0.0
    %1196 = vmatprep.subr.mxu0 0.0
    %1197 = vmatpush1.msra.mxu0 0.0
    %1198 = vmatprep.subr.mxu0 0.0
    %1199 = vmatpush1.msra.mxu0 0.0
    %1200 = vmatprep.subr.mxu0 0.0
    %1201 = vmatpush1.msra.mxu0 0.0
    %1202 = vmatprep.subr.mxu0 0.0
    %1203 = vmatpush1.msra.mxu0 0.0
    %1204 = vmatprep.subr.mxu0 0.0
    %1205 = vmatpush1.msra.mxu0 0.0
    %1206 = vmatprep.subr.mxu0 0.0
    %1207 = vmatpush1.msra.mxu0 0.0
    %1208 = vmatprep.subr.mxu0 0.0
    %1209 = vmatpush1.msra.mxu0 0.0
    %1210 = vmatprep.subr.mxu0 0.0
    %1211 = vmatpush1.msra.mxu0 0.0
    %1212 = vmatprep.subr.mxu0 0.0
    %1213 = vmatpush1.msra.mxu0 0.0
    %1214 = vmatprep.subr.mxu0 0.0
    %1215 = vmatpush1.msra.mxu0 0.0
    %1216 = vmatprep.subr.mxu0 0.0
    %1217 = vmatpush1.msra.mxu0 0.0
    %1218 = vmatprep.subr.mxu0 0.0
    %1219 = vmatpush1.msra.mxu0 0.0
    %1220 = vmatprep.subr.mxu0 0.0
    %1221 = vmatpush1.msra.mxu0 0.0
    %1222 = vmatprep.subr.mxu0 0.0
    %1223 = vmatpush1.msra.mxu0 0.0
    %1224 = vmatprep.subr.mxu0 0.0
    %1225 = vmatpush1.msra.mxu0 0.0
    %1226 = vmatprep.subr.mxu0 0.0
    %1227 = vmatpush1.msra.mxu0 0.0
    %1228 = vmatprep.subr.mxu0 0.0
    %1229 = vmatpush1.msra.mxu0 0.0
    %1230 = vmatprep.subr.mxu0 0.0
    %1231 = vmatpush1.msra.mxu0 0.0
    %1232 = vmatprep.mubr.f32.mxu0 0.0
    %v1233 = vand.u32 %v929, 4294901760
    %1234 = vmatmul.mubr.f32.gmra.mrb[0].mxu0 %v1233
    %v1235 = vpop.f32.mrb[0].mxu0
    %v1236 = vadd.f32 %v1072, %v1235
    %v1237 = vpop.f32.mrb[0].mxu0
    %v1238 = vadd.f32 %v1074, %v1237
    %1239 = vmatprep.mubr.f32.mxu0 0.0
    %v1240 = vand.u32 %v932, 4294901760
    %1241 = vmatmul.mubr.f32.gmra.mrb[0].mxu0 %v1240
    %v1242 = vpop.f32.mrb[0].mxu0
    %v1243 = vadd.f32 %v1083, %v1242
    %v1244 = vpop.f32.mrb[0].mxu0
    %v1245 = vadd.f32 %v1085, %v1244
    %1246 = vmatprep.mubr.f32.mxu0 0.0
    %v1247 = vand.u32 %v935, 4294901760
    %1248 = vmatmul.mubr.f32.gmra.mrb[0].mxu0 %v1247
    %v1249 = vpop.f32.mrb[0].mxu0
    %v1250 = vadd.f32 %v1094, %v1249
    %v1251 = vpop.f32.mrb[0].mxu0
    %v1252 = vadd.f32 %v1096, %v1251
    %1253 = vdwg.mxu0
    %v1254 = vand.u32 %v795, 4294901760
    %v1255 = vsub.f32 %v795, %v1254
    %1256 = vmatprep.subr.mxu0 %v1255
    %v1257 = vand.u32 %v794, 4294901760
    %v1258 = vsub.f32 %v794, %v1257
    %1259 = vmatpush1.msra.mxu0 %v1258
    %v1260 = vand.u32 %v811, 4294901760
    %v1261 = vsub.f32 %v811, %v1260
    %1262 = vmatprep.subr.mxu0 %v1261
    %v1263 = vand.u32 %v810, 4294901760
    %v1264 = vsub.f32 %v810, %v1263
    %1265 = vmatpush1.msra.mxu0 %v1264
    %v1266 = vand.u32 %v827, 4294901760
    %v1267 = vsub.f32 %v827, %v1266
    %1268 = vmatprep.subr.mxu0 %v1267
    %v1269 = vand.u32 %v826, 4294901760
    %v1270 = vsub.f32 %v826, %v1269
    %1271 = vmatpush1.msra.mxu0 %v1270
    %v1272 = vand.u32 %v843, 4294901760
    %v1273 = vsub.f32 %v843, %v1272
    %1274 = vmatprep.subr.mxu0 %v1273
    %v1275 = vand.u32 %v842, 4294901760
    %v1276 = vsub.f32 %v842, %v1275
    %1277 = vmatpush1.msra.mxu0 %v1276
    %v1278 = vand.u32 %v859, 4294901760
    %v1279 = vsub.f32 %v859, %v1278
    %1280 = vmatprep.subr.mxu0 %v1279
    %v1281 = vand.u32 %v858, 4294901760
    %v1282 = vsub.f32 %v858, %v1281
    %1283 = vmatpush1.msra.mxu0 %v1282
    %v1284 = vand.u32 %v875, 4294901760
    %v1285 = vsub.f32 %v875, %v1284
    %1286 = vmatprep.subr.mxu0 %v1285
    %v1287 = vand.u32 %v874, 4294901760
    %v1288 = vsub.f32 %v874, %v1287
    %1289 = vmatpush1.msra.mxu0 %v1288
    %v1290 = vand.u32 %v942, 4294901760
    %v1291 = vsub.f32 %v942, %v1290
    %1292 = vmatprep.subr.mxu0 %v1291
    %v1293 = vand.u32 %v939, 4294901760
    %v1294 = vsub.f32 %v939, %v1293
    %1295 = vmatpush1.msra.mxu0 %v1294
    %1296 = vmatprep.subr.mxu0 0.0
    %1297 = vmatpush1.msra.mxu0 0.0
    %1298 = vmatprep.subr.mxu0 0.0
    %1299 = vmatpush1.msra.mxu0 0.0
    %1300 = vmatprep.subr.mxu0 0.0
    %1301 = vmatpush1.msra.mxu0 0.0
    %1302 = vmatprep.subr.mxu0 0.0
    %1303 = vmatpush1.msra.mxu0 0.0
    %1304 = vmatprep.subr.mxu0 0.0
    %1305 = vmatpush1.msra.mxu0 0.0
    %1306 = vmatprep.subr.mxu0 0.0
    %1307 = vmatpush1.msra.mxu0 0.0
    %1308 = vmatprep.subr.mxu0 0.0
    %1309 = vmatpush1.msra.mxu0 0.0
    %1310 = vmatprep.subr.mxu0 0.0
    %1311 = vmatpush1.msra.mxu0 0.0
    %1312 = vmatprep.subr.mxu0 0.0
    %1313 = vmatpush1.msra.mxu0 0.0
    %1314 = vmatprep.subr.mxu0 0.0
    %1315 = vmatpush1.msra.mxu0 0.0
    %1316 = vmatprep.subr.mxu0 0.0
    %1317 = vmatpush1.msra.mxu0 0.0
    %1318 = vmatprep.subr.mxu0 0.0
    %1319 = vmatpush1.msra.mxu0 0.0
    %1320 = vmatprep.subr.mxu0 0.0
    %1321 = vmatpush1.msra.mxu0 0.0
    %1322 = vmatprep.subr.mxu0 0.0
    %1323 = vmatpush1.msra.mxu0 0.0
    %1324 = vmatprep.subr.mxu0 0.0
    %1325 = vmatpush1.msra.mxu0 0.0
    %1326 = vmatprep.subr.mxu0 0.0
    %1327 = vmatpush1.msra.mxu0 0.0
    %1328 = vmatprep.subr.mxu0 0.0
    %1329 = vmatpush1.msra.mxu0 0.0
    %1330 = vmatprep.subr.mxu0 0.0
    %1331 = vmatpush1.msra.mxu0 0.0
    %1332 = vmatprep.subr.mxu0 0.0
    %1333 = vmatpush1.msra.mxu0 0.0
    %1334 = vmatprep.subr.mxu0 0.0
    %1335 = vmatpush1.msra.mxu0 0.0
    %1336 = vmatprep.subr.mxu0 0.0
    %1337 = vmatpush1.msra.mxu0 0.0
    %1338 = vmatprep.subr.mxu0 0.0
    %1339 = vmatpush1.msra.mxu0 0.0
    %1340 = vmatprep.subr.mxu0 0.0
    %1341 = vmatpush1.msra.mxu0 0.0
    %1342 = vmatprep.subr.mxu0 0.0
    %1343 = vmatpush1.msra.mxu0 0.0
    %1344 = vmatprep.subr.mxu0 0.0
    %1345 = vmatpush1.msra.mxu0 0.0
    %1346 = vmatprep.mubr.f32.mxu0 0.0
    %v1347 = vand.u32 %v929, 4294901760
    %v1348 = vsub.f32 %v929, %v1347
    %1349 = vmatmul.mubr.f32.gmra.mrb[0].mxu0 %v1348
    %v1350 = vpop.f32.mrb[0].mxu0
    %v1351 = vadd.f32 %v1236, %v1350
    %v1352 = vpop.f32.mrb[0].mxu0
    %v1353 = vadd.f32 %v1238, %v1352
    %1354 = vmatprep.mubr.f32.mxu0 0.0
    %v1355 = vand.u32 %v932, 4294901760
    %v1356 = vsub.f32 %v932, %v1355
    %1357 = vmatmul.mubr.f32.gmra.mrb[0].mxu0 %v1356
    %v1358 = vpop.f32.mrb[0].mxu0
    %v1359 = vadd.f32 %v1243, %v1358
    %v1360 = vpop.f32.mrb[0].mxu0
    %v1361 = vadd.f32 %v1245, %v1360
    %1362 = vmatprep.mubr.f32.mxu0 0.0
    %v1363 = vand.u32 %v935, 4294901760
    %v1364 = vsub.f32 %v935, %v1363
    %1365 = vmatmul.mubr.f32.gmra.mrb[0].mxu0 %v1364
    %v1366 = vpop.f32.mrb[0].mxu0
    %v1367 = vadd.f32 %v1250, %v1366
    %v1368 = vpop.f32.mrb[0].mxu0
    %v1369 = vadd.f32 %v1252, %v1368
    %1370 = vdwg.mxu0
    %v1371 = vand.u32 %v795, 4294901760
    %1372 = vmatprep.subr.mxu0 %v1371
    %v1373 = vand.u32 %v794, 4294901760
    %1374 = vmatpush1.msra.mxu0 %v1373
    %v1375 = vand.u32 %v811, 4294901760
    %1376 = vmatprep.subr.mxu0 %v1375
    %v1377 = vand.u32 %v810, 4294901760
    %1378 = vmatpush1.msra.mxu0 %v1377
    %v1379 = vand.u32 %v827, 4294901760
    %1380 = vmatprep.subr.mxu0 %v1379
    %v1381 = vand.u32 %v826, 4294901760
    %1382 = vmatpush1.msra.mxu0 %v1381
    %v1383 = vand.u32 %v843, 4294901760
    %1384 = vmatprep.subr.mxu0 %v1383
    %v1385 = vand.u32 %v842, 4294901760
    %1386 = vmatpush1.msra.mxu0 %v1385
    %v1387 = vand.u32 %v859, 4294901760
    %1388 = vmatprep.subr.mxu0 %v1387
    %v1389 = vand.u32 %v858, 4294901760
    %1390 = vmatpush1.msra.mxu0 %v1389
    %v1391 = vand.u32 %v875, 4294901760
    %1392 = vmatprep.subr.mxu0 %v1391
    %v1393 = vand.u32 %v874, 4294901760
    %1394 = vmatpush1.msra.mxu0 %v1393
    %v1395 = vand.u32 %v942, 4294901760
    %1396 = vmatprep.subr.mxu0 %v1395
    %v1397 = vand.u32 %v939, 4294901760
    %1398 = vmatpush1.msra.mxu0 %v1397
    %1399 = vmatprep.subr.mxu0 0.0
    %1400 = vmatpush1.msra.mxu0 0.0
    %1401 = vmatprep.subr.mxu0 0.0
    %1402 = vmatpush1.msra.mxu0 0.0
    %1403 = vmatprep.subr.mxu0 0.0
    %1404 = vmatpush1.msra.mxu0 0.0
    %1405 = vmatprep.subr.mxu0 0.0
    %1406 = vmatpush1.msra.mxu0 0.0
    %1407 = vmatprep.subr.mxu0 0.0
    %1408 = vmatpush1.msra.mxu0 0.0
    %1409 = vmatprep.subr.mxu0 0.0
    %1410 = vmatpush1.msra.mxu0 0.0
    %1411 = vmatprep.subr.mxu0 0.0
    %1412 = vmatpush1.msra.mxu0 0.0
    %1413 = vmatprep.subr.mxu0 0.0
    %1414 = vmatpush1.msra.mxu0 0.0
    %1415 = vmatprep.subr.mxu0 0.0
    %1416 = vmatpush1.msra.mxu0 0.0
    %1417 = vmatprep.subr.mxu0 0.0
    %1418 = vmatpush1.msra.mxu0 0.0
    %1419 = vmatprep.subr.mxu0 0.0
    %1420 = vmatpush1.msra.mxu0 0.0
    %1421 = vmatprep.subr.mxu0 0.0
    %1422 = vmatpush1.msra.mxu0 0.0
    %1423 = vmatprep.subr.mxu0 0.0
    %1424 = vmatpush1.msra.mxu0 0.0
    %1425 = vmatprep.subr.mxu0 0.0
    %1426 = vmatpush1.msra.mxu0 0.0
    %1427 = vmatprep.subr.mxu0 0.0
    %1428 = vmatpush1.msra.mxu0 0.0
    %1429 = vmatprep.subr.mxu0 0.0
    %1430 = vmatpush1.msra.mxu0 0.0
    %1431 = vmatprep.subr.mxu0 0.0
    %1432 = vmatpush1.msra.mxu0 0.0
    %1433 = vmatprep.subr.mxu0 0.0
    %1434 = vmatpush1.msra.mxu0 0.0
    %1435 = vmatprep.subr.mxu0 0.0
    %1436 = vmatpush1.msra.mxu0 0.0
    %1437 = vmatprep.subr.mxu0 0.0
    %1438 = vmatpush1.msra.mxu0 0.0
    %1439 = vmatprep.subr.mxu0 0.0
    %1440 = vmatpush1.msra.mxu0 0.0
    %1441 = vmatprep.subr.mxu0 0.0
    %1442 = vmatpush1.msra.mxu0 0.0
    %1443 = vmatprep.subr.mxu0 0.0
    %1444 = vmatpush1.msra.mxu0 0.0
    %1445 = vmatprep.subr.mxu0 0.0
    %1446 = vmatpush1.msra.mxu0 0.0
    %1447 = vmatprep.subr.mxu0 0.0
    %1448 = vmatpush1.msra.mxu0 0.0
    %1449 = vmatprep.mubr.f32.mxu0 0.0
    %v1450 = vand.u32 %v929, 4294901760
    %v1451 = vsub.f32 %v929, %v1450
    %v1452 = vand.u32 %v1451, 4294901760
    %1453 = vmatmul.mubr.f32.gmra.mrb[0].mxu0 %v1452
    %v1454 = vpop.f32.mrb[0].mxu0
    %v1455 = vadd.f32 %v1351, %v1454
    %v1456 = vpop.f32.mrb[0].mxu0
    %v1457 = vadd.f32 %v1353, %v1456
    %1458 = vmatprep.mubr.f32.mxu0 0.0
    %v1459 = vand.u32 %v932, 4294901760
    %v1460 = vsub.f32 %v932, %v1459
    %v1461 = vand.u32 %v1460, 4294901760
    %1462 = vmatmul.mubr.f32.gmra.mrb[0].mxu0 %v1461
    %v1463 = vpop.f32.mrb[0].mxu0
    %v1464 = vadd.f32 %v1359, %v1463
    %v1465 = vpop.f32.mrb[0].mxu0
    %v1466 = vadd.f32 %v1361, %v1465
    %1467 = vmatprep.mubr.f32.mxu0 0.0
    %v1468 = vand.u32 %v935, 4294901760
    %v1469 = vsub.f32 %v935, %v1468
    %v1470 = vand.u32 %v1469, 4294901760
    %1471 = vmatmul.mubr.f32.gmra.mrb[0].mxu0 %v1470
    %v1472 = vpop.f32.mrb[0].mxu0
    %v1473 = vadd.f32 %v1367, %v1472
    %v1474 = vpop.f32.mrb[0].mxu0
    %v1475 = vadd.f32 %v1369, %v1474
    %1476 = vdwg.mxu0
    %v1477 = vand.u32 %v795, 4294901760
    %v1478 = vsub.f32 %v795, %v1477
    %v1479 = vand.u32 %v1478, 4294901760
    %1480 = vmatprep.subr.mxu0 %v1479
    %v1481 = vand.u32 %v794, 4294901760
    %v1482 = vsub.f32 %v794, %v1481
    %v1483 = vand.u32 %v1482, 4294901760
    %1484 = vmatpush1.msra.mxu0 %v1483
    %v1485 = vand.u32 %v811, 4294901760
    %v1486 = vsub.f32 %v811, %v1485
    %v1487 = vand.u32 %v1486, 4294901760
    %1488 = vmatprep.subr.mxu0 %v1487
    %v1489 = vand.u32 %v810, 4294901760
    %v1490 = vsub.f32 %v810, %v1489
    %v1491 = vand.u32 %v1490, 4294901760
    %1492 = vmatpush1.msra.mxu0 %v1491
    %v1493 = vand.u32 %v827, 4294901760
    %v1494 = vsub.f32 %v827, %v1493
    %v1495 = vand.u32 %v1494, 4294901760
    %1496 = vmatprep.subr.mxu0 %v1495
    %v1497 = vand.u32 %v826, 4294901760
    %v1498 = vsub.f32 %v826, %v1497
    %v1499 = vand.u32 %v1498, 4294901760
    %1500 = vmatpush1.msra.mxu0 %v1499
    %v1501 = vand.u32 %v843, 4294901760
    %v1502 = vsub.f32 %v843, %v1501
    %v1503 = vand.u32 %v1502, 4294901760
    %1504 = vmatprep.subr.mxu0 %v1503
    %v1505 = vand.u32 %v842, 4294901760
    %v1506 = vsub.f32 %v842, %v1505
    %v1507 = vand.u32 %v1506, 4294901760
    %1508 = vmatpush1.msra.mxu0 %v1507
    %v1509 = vand.u32 %v859, 4294901760
    %v1510 = vsub.f32 %v859, %v1509
    %v1511 = vand.u32 %v1510, 4294901760
    %1512 = vmatprep.subr.mxu0 %v1511
    %v1513 = vand.u32 %v858, 4294901760
    %v1514 = vsub.f32 %v858, %v1513
    %v1515 = vand.u32 %v1514, 4294901760
    %1516 = vmatpush1.msra.mxu0 %v1515
    %v1517 = vand.u32 %v875, 4294901760
    %v1518 = vsub.f32 %v875, %v1517
    %v1519 = vand.u32 %v1518, 4294901760
    %1520 = vmatprep.subr.mxu0 %v1519
    %v1521 = vand.u32 %v874, 4294901760
    %v1522 = vsub.f32 %v874, %v1521
    %v1523 = vand.u32 %v1522, 4294901760
    %1524 = vmatpush1.msra.mxu0 %v1523
    %v1525 = vand.u32 %v942, 4294901760
    %v1526 = vsub.f32 %v942, %v1525
    %v1527 = vand.u32 %v1526, 4294901760
    %1528 = vmatprep.subr.mxu0 %v1527
    %v1529 = vand.u32 %v939, 4294901760
    %v1530 = vsub.f32 %v939, %v1529
    %v1531 = vand.u32 %v1530, 4294901760
    %1532 = vmatpush1.msra.mxu0 %v1531
    %1533 = vmatprep.subr.mxu0 0.0
    %1534 = vmatpush1.msra.mxu0 0.0
    %1535 = vmatprep.subr.mxu0 0.0
    %1536 = vmatpush1.msra.mxu0 0.0
    %1537 = vmatprep.subr.mxu0 0.0
    %1538 = vmatpush1.msra.mxu0 0.0
    %1539 = vmatprep.subr.mxu0 0.0
    %1540 = vmatpush1.msra.mxu0 0.0
    %1541 = vmatprep.subr.mxu0 0.0
    %1542 = vmatpush1.msra.mxu0 0.0
    %1543 = vmatprep.subr.mxu0 0.0
    %1544 = vmatpush1.msra.mxu0 0.0
    %1545 = vmatprep.subr.mxu0 0.0
    %1546 = vmatpush1.msra.mxu0 0.0
    %1547 = vmatprep.subr.mxu0 0.0
    %1548 = vmatpush1.msra.mxu0 0.0
    %1549 = vmatprep.subr.mxu0 0.0
    %1550 = vmatpush1.msra.mxu0 0.0
    %1551 = vmatprep.subr.mxu0 0.0
    %1552 = vmatpush1.msra.mxu0 0.0
    %1553 = vmatprep.subr.mxu0 0.0
    %1554 = vmatpush1.msra.mxu0 0.0
    %1555 = vmatprep.subr.mxu0 0.0
    %1556 = vmatpush1.msra.mxu0 0.0
    %1557 = vmatprep.subr.mxu0 0.0
    %1558 = vmatpush1.msra.mxu0 0.0
    %1559 = vmatprep.subr.mxu0 0.0
    %1560 = vmatpush1.msra.mxu0 0.0
    %1561 = vmatprep.subr.mxu0 0.0
    %1562 = vmatpush1.msra.mxu0 0.0
    %1563 = vmatprep.subr.mxu0 0.0
    %1564 = vmatpush1.msra.mxu0 0.0
    %1565 = vmatprep.subr.mxu0 0.0
    %1566 = vmatpush1.msra.mxu0 0.0
    %1567 = vmatprep.subr.mxu0 0.0
    %1568 = vmatpush1.msra.mxu0 0.0
    %1569 = vmatprep.subr.mxu0 0.0
    %1570 = vmatpush1.msra.mxu0 0.0
    %1571 = vmatprep.subr.mxu0 0.0
    %1572 = vmatpush1.msra.mxu0 0.0
    %1573 = vmatprep.subr.mxu0 0.0
    %1574 = vmatpush1.msra.mxu0 0.0
    %1575 = vmatprep.subr.mxu0 0.0
    %1576 = vmatpush1.msra.mxu0 0.0
    %1577 = vmatprep.subr.mxu0 0.0
    %1578 = vmatpush1.msra.mxu0 0.0
    %1579 = vmatprep.subr.mxu0 0.0
    %1580 = vmatpush1.msra.mxu0 0.0
    %1581 = vmatprep.subr.mxu0 0.0
    %1582 = vmatpush1.msra.mxu0 0.0
    %1583 = vmatprep.mubr.f32.mxu0 0.0
    %v1584 = vand.u32 %v929, 4294901760
    %1585 = vmatmul.mubr.f32.gmra.mrb[0].mxu0 %v1584
    %v1586 = vpop.f32.mrb[0].mxu0
    %v1587 = vadd.f32 %v1455, %v1586
    %v1588 = vpop.f32.mrb[0].mxu0
    %v1589 = vadd.f32 %v1457, %v1588
    %1590 = vmatprep.mubr.f32.mxu0 0.0
    %v1591 = vand.u32 %v932, 4294901760
    %1592 = vmatmul.mubr.f32.gmra.mrb[0].mxu0 %v1591
    %v1593 = vpop.f32.mrb[0].mxu0
    %v1594 = vadd.f32 %v1464, %v1593
    %v1595 = vpop.f32.mrb[0].mxu0
    %v1596 = vadd.f32 %v1466, %v1595
    %1597 = vmatprep.mubr.f32.mxu0 0.0
    %v1598 = vand.u32 %v935, 4294901760
    %1599 = vmatmul.mubr.f32.gmra.mrb[0].mxu0 %v1598
    %v1600 = vpop.f32.mrb[0].mxu0
    %v1601 = vadd.f32 %v1473, %v1600
    %v1602 = vpop.f32.mrb[0].mxu0
    %v1603 = vadd.f32 %v1475, %v1602
    %1604 = vdwg.mxu0
    %v1605 = vand.u32 %v795, 4294901760
    %1606 = vmatprep.subr.mxu0 %v1605
    %v1607 = vand.u32 %v794, 4294901760
    %1608 = vmatpush1.msra.mxu0 %v1607
    %v1609 = vand.u32 %v811, 4294901760
    %1610 = vmatprep.subr.mxu0 %v1609
    %v1611 = vand.u32 %v810, 4294901760
    %1612 = vmatpush1.msra.mxu0 %v1611
    %v1613 = vand.u32 %v827, 4294901760
    %1614 = vmatprep.subr.mxu0 %v1613
    %v1615 = vand.u32 %v826, 4294901760
    %1616 = vmatpush1.msra.mxu0 %v1615
    %v1617 = vand.u32 %v843, 4294901760
    %1618 = vmatprep.subr.mxu0 %v1617
    %v1619 = vand.u32 %v842, 4294901760
    %1620 = vmatpush1.msra.mxu0 %v1619
    %v1621 = vand.u32 %v859, 4294901760
    %1622 = vmatprep.subr.mxu0 %v1621
    %v1623 = vand.u32 %v858, 4294901760
    %1624 = vmatpush1.msra.mxu0 %v1623
    %v1625 = vand.u32 %v875, 4294901760
    %1626 = vmatprep.subr.mxu0 %v1625
    %v1627 = vand.u32 %v874, 4294901760
    %1628 = vmatpush1.msra.mxu0 %v1627
    %v1629 = vand.u32 %v942, 4294901760
    %1630 = vmatprep.subr.mxu0 %v1629
    %v1631 = vand.u32 %v939, 4294901760
    %1632 = vmatpush1.msra.mxu0 %v1631
    %1633 = vmatprep.subr.mxu0 0.0
    %1634 = vmatpush1.msra.mxu0 0.0
    %1635 = vmatprep.subr.mxu0 0.0
    %1636 = vmatpush1.msra.mxu0 0.0
    %1637 = vmatprep.subr.mxu0 0.0
    %1638 = vmatpush1.msra.mxu0 0.0
    %1639 = vmatprep.subr.mxu0 0.0
    %1640 = vmatpush1.msra.mxu0 0.0
    %1641 = vmatprep.subr.mxu0 0.0
    %1642 = vmatpush1.msra.mxu0 0.0
    %1643 = vmatprep.subr.mxu0 0.0
    %1644 = vmatpush1.msra.mxu0 0.0
    %1645 = vmatprep.subr.mxu0 0.0
    %1646 = vmatpush1.msra.mxu0 0.0
    %1647 = vmatprep.subr.mxu0 0.0
    %1648 = vmatpush1.msra.mxu0 0.0
    %1649 = vmatprep.subr.mxu0 0.0
    %1650 = vmatpush1.msra.mxu0 0.0
    %1651 = vmatprep.subr.mxu0 0.0
    %1652 = vmatpush1.msra.mxu0 0.0
    %1653 = vmatprep.subr.mxu0 0.0
    %1654 = vmatpush1.msra.mxu0 0.0
    %1655 = vmatprep.subr.mxu0 0.0
    %1656 = vmatpush1.msra.mxu0 0.0
    %1657 = vmatprep.subr.mxu0 0.0
    %1658 = vmatpush1.msra.mxu0 0.0
    %1659 = vmatprep.subr.mxu0 0.0
    %1660 = vmatpush1.msra.mxu0 0.0
    %1661 = vmatprep.subr.mxu0 0.0
    %1662 = vmatpush1.msra.mxu0 0.0
    %1663 = vmatprep.subr.mxu0 0.0
    %1664 = vmatpush1.msra.mxu0 0.0
    %1665 = vmatprep.subr.mxu0 0.0
    %1666 = vmatpush1.msra.mxu0 0.0
    %1667 = vmatprep.subr.mxu0 0.0
    %1668 = vmatpush1.msra.mxu0 0.0
    %1669 = vmatprep.subr.mxu0 0.0
    %1670 = vmatpush1.msra.mxu0 0.0
    %1671 = vmatprep.subr.mxu0 0.0
    %1672 = vmatpush1.msra.mxu0 0.0
    %1673 = vmatprep.subr.mxu0 0.0
    %1674 = vmatpush1.msra.mxu0 0.0
    %1675 = vmatprep.subr.mxu0 0.0
    %1676 = vmatpush1.msra.mxu0 0.0
    %1677 = vmatprep.subr.mxu0 0.0
    %1678 = vmatpush1.msra.mxu0 0.0
    %1679 = vmatprep.subr.mxu0 0.0
    %1680 = vmatpush1.msra.mxu0 0.0
    %1681 = vmatprep.subr.mxu0 0.0
    %1682 = vmatpush1.msra.mxu0 0.0
    %1683 = vmatprep.mubr.f32.mxu0 0.0
    %v1684 = vand.u32 %v929, 4294901760
    %1685 = vmatmul.mubr.f32.gmra.mrb[0].mxu0 %v1684
    %v1686 = vpop.f32.mrb[0].mxu0
    %v1687 = vadd.f32 %v1587, %v1686
    %v1688 = vpop.f32.mrb[0].mxu0
    %v1689 = vadd.f32 %v1589, %v1688
    %1690 = vmatprep.mubr.f32.mxu0 0.0
    %v1691 = vand.u32 %v932, 4294901760
    %1692 = vmatmul.mubr.f32.gmra.mrb[0].mxu0 %v1691
    %v1693 = vpop.f32.mrb[0].mxu0
    %v1694 = vadd.f32 %v1594, %v1693
    %v1695 = vpop.f32.mrb[0].mxu0
    %v1696 = vadd.f32 %v1596, %v1695
    %1697 = vmatprep.mubr.f32.mxu0 0.0
    %v1698 = vand.u32 %v935, 4294901760
    %1699 = vmatmul.mubr.f32.gmra.mrb[0].mxu0 %v1698
    %v1700 = vpop.f32.mrb[0].mxu0
    %v1701 = vadd.f32 %v1601, %v1700
    %v1702 = vpop.f32.mrb[0].mxu0
    %v1703 = vadd.f32 %v1603, %v1702
    %1704 = vdwg.mxu0
    %v1705 = vand.u32 %v797, 4294901760
    %1706 = vmatprep.subr.mxu0 %v1705
    %v1707 = vand.u32 %v796, 4294901760
    %1708 = vmatpush1.msra.mxu0 %v1707
    %v1709 = vand.u32 %v813, 4294901760
    %1710 = vmatprep.subr.mxu0 %v1709
    %v1711 = vand.u32 %v812, 4294901760
    %1712 = vmatpush1.msra.mxu0 %v1711
    %v1713 = vand.u32 %v829, 4294901760
    %1714 = vmatprep.subr.mxu0 %v1713
    %v1715 = vand.u32 %v828, 4294901760
    %1716 = vmatpush1.msra.mxu0 %v1715
    %v1717 = vand.u32 %v845, 4294901760
    %1718 = vmatprep.subr.mxu0 %v1717
    %v1719 = vand.u32 %v844, 4294901760
    %1720 = vmatpush1.msra.mxu0 %v1719
    %v1721 = vand.u32 %v861, 4294901760
    %1722 = vmatprep.subr.mxu0 %v1721
    %v1723 = vand.u32 %v860, 4294901760
    %1724 = vmatpush1.msra.mxu0 %v1723
    %v1725 = vand.u32 %v877, 4294901760
    %1726 = vmatprep.subr.mxu0 %v1725
    %v1727 = vand.u32 %v876, 4294901760
    %1728 = vmatpush1.msra.mxu0 %v1727
    %v1729 = vand.u32 %v948, 4294901760
    %1730 = vmatprep.subr.mxu0 %v1729
    %v1731 = vand.u32 %v945, 4294901760
    %1732 = vmatpush1.msra.mxu0 %v1731
    %1733 = vmatprep.subr.mxu0 0.0
    %1734 = vmatpush1.msra.mxu0 0.0
    %1735 = vmatprep.subr.mxu0 0.0
    %1736 = vmatpush1.msra.mxu0 0.0
    %1737 = vmatprep.subr.mxu0 0.0
    %1738 = vmatpush1.msra.mxu0 0.0
    %1739 = vmatprep.subr.mxu0 0.0
    %1740 = vmatpush1.msra.mxu0 0.0
    %1741 = vmatprep.subr.mxu0 0.0
    %1742 = vmatpush1.msra.mxu0 0.0
    %1743 = vmatprep.subr.mxu0 0.0
    %1744 = vmatpush1.msra.mxu0 0.0
    %1745 = vmatprep.subr.mxu0 0.0
    %1746 = vmatpush1.msra.mxu0 0.0
    %1747 = vmatprep.subr.mxu0 0.0
    %1748 = vmatpush1.msra.mxu0 0.0
    %1749 = vmatprep.subr.mxu0 0.0
    %1750 = vmatpush1.msra.mxu0 0.0
    %1751 = vmatprep.subr.mxu0 0.0
    %1752 = vmatpush1.msra.mxu0 0.0
    %1753 = vmatprep.subr.mxu0 0.0
    %1754 = vmatpush1.msra.mxu0 0.0
    %1755 = vmatprep.subr.mxu0 0.0
    %1756 = vmatpush1.msra.mxu0 0.0
    %1757 = vmatprep.subr.mxu0 0.0
    %1758 = vmatpush1.msra.mxu0 0.0
    %1759 = vmatprep.subr.mxu0 0.0
    %1760 = vmatpush1.msra.mxu0 0.0
    %1761 = vmatprep.subr.mxu0 0.0
    %1762 = vmatpush1.msra.mxu0 0.0
    %1763 = vmatprep.subr.mxu0 0.0
    %1764 = vmatpush1.msra.mxu0 0.0
    %1765 = vmatprep.subr.mxu0 0.0
    %1766 = vmatpush1.msra.mxu0 0.0
    %1767 = vmatprep.subr.mxu0 0.0
    %1768 = vmatpush1.msra.mxu0 0.0
    %1769 = vmatprep.subr.mxu0 0.0
    %1770 = vmatpush1.msra.mxu0 0.0
    %1771 = vmatprep.subr.mxu0 0.0
    %1772 = vmatpush1.msra.mxu0 0.0
    %1773 = vmatprep.subr.mxu0 0.0
    %1774 = vmatpush1.msra.mxu0 0.0
    %1775 = vmatprep.subr.mxu0 0.0
    %1776 = vmatpush1.msra.mxu0 0.0
    %1777 = vmatprep.subr.mxu0 0.0
    %1778 = vmatpush1.msra.mxu0 0.0
    %1779 = vmatprep.subr.mxu0 0.0
    %1780 = vmatpush1.msra.mxu0 0.0
    %1781 = vmatprep.subr.mxu0 0.0
    %1782 = vmatpush1.msra.mxu0 0.0
    %1783 = vmatprep.mubr.f32.mxu0 0.0
    %v1784 = vand.u32 %v929, 4294901760
    %v1785 = vsub.f32 %v929, %v1784
    %v1786 = vand.u32 %v1785, 4294901760
    %v1787 = vsub.f32 %v1785, %v1786
    %v1788 = vand.u32 %v1787, 4294901760
    %1789 = vmatmul.mubr.f32.gmra.mrb[0].mxu0 %v1788
    %v1790 = vpop.f32.mrb[0].mxu0
    %v1791 = vadd.f32 %v915, %v1790
    %v1792 = vpop.f32.mrb[0].mxu0
    %v1793 = vadd.f32 %v915, %v1792
    %1794 = vmatprep.mubr.f32.mxu0 0.0
    %v1795 = vand.u32 %v932, 4294901760
    %v1796 = vsub.f32 %v932, %v1795
    %v1797 = vand.u32 %v1796, 4294901760
    %v1798 = vsub.f32 %v1796, %v1797
    %v1799 = vand.u32 %v1798, 4294901760
    %1800 = vmatmul.mubr.f32.gmra.mrb[0].mxu0 %v1799
    %v1801 = vpop.f32.mrb[0].mxu0
    %v1802 = vadd.f32 %v920, %v1801
    %v1803 = vpop.f32.mrb[0].mxu0
    %v1804 = vadd.f32 %v920, %v1803
    %1805 = vmatprep.mubr.f32.mxu0 0.0
    %v1806 = vand.u32 %v935, 4294901760
    %v1807 = vsub.f32 %v935, %v1806
    %v1808 = vand.u32 %v1807, 4294901760
    %v1809 = vsub.f32 %v1807, %v1808
    %v1810 = vand.u32 %v1809, 4294901760
    %1811 = vmatmul.mubr.f32.gmra.mrb[0].mxu0 %v1810
    %v1812 = vpop.f32.mrb[0].mxu0
    %v1813 = vadd.f32 %v925, %v1812
    %v1814 = vpop.f32.mrb[0].mxu0
    %v1815 = vadd.f32 %v925, %v1814
    %1816 = vdwg.mxu0
    %v1817 = vand.u32 %v797, 4294901760
    %v1818 = vsub.f32 %v797, %v1817
    %v1819 = vand.u32 %v1818, 4294901760
    %v1820 = vsub.f32 %v1818, %v1819
    %v1821 = vand.u32 %v1820, 4294901760
    %1822 = vmatprep.subr.mxu0 %v1821
    %v1823 = vand.u32 %v796, 4294901760
    %v1824 = vsub.f32 %v796, %v1823
    %v1825 = vand.u32 %v1824, 4294901760
    %v1826 = vsub.f32 %v1824, %v1825
    %v1827 = vand.u32 %v1826, 4294901760
    %1828 = vmatpush1.msra.mxu0 %v1827
    %v1829 = vand.u32 %v813, 4294901760
    %v1830 = vsub.f32 %v813, %v1829
    %v1831 = vand.u32 %v1830, 4294901760
    %v1832 = vsub.f32 %v1830, %v1831
    %v1833 = vand.u32 %v1832, 4294901760
    %1834 = vmatprep.subr.mxu0 %v1833
    %v1835 = vand.u32 %v812, 4294901760
    %v1836 = vsub.f32 %v812, %v1835
    %v1837 = vand.u32 %v1836, 4294901760
    %v1838 = vsub.f32 %v1836, %v1837
    %v1839 = vand.u32 %v1838, 4294901760
    %1840 = vmatpush1.msra.mxu0 %v1839
    %v1841 = vand.u32 %v829, 4294901760
    %v1842 = vsub.f32 %v829, %v1841
    %v1843 = vand.u32 %v1842, 4294901760
    %v1844 = vsub.f32 %v1842, %v1843
    %v1845 = vand.u32 %v1844, 4294901760
    %1846 = vmatprep.subr.mxu0 %v1845
    %v1847 = vand.u32 %v828, 4294901760
    %v1848 = vsub.f32 %v828, %v1847
    %v1849 = vand.u32 %v1848, 4294901760
    %v1850 = vsub.f32 %v1848, %v1849
    %v1851 = vand.u32 %v1850, 4294901760
    %1852 = vmatpush1.msra.mxu0 %v1851
    %v1853 = vand.u32 %v845, 4294901760
    %v1854 = vsub.f32 %v845, %v1853
    %v1855 = vand.u32 %v1854, 4294901760
    %v1856 = vsub.f32 %v1854, %v1855
    %v1857 = vand.u32 %v1856, 4294901760
    %1858 = vmatprep.subr.mxu0 %v1857
    %v1859 = vand.u32 %v844, 4294901760
    %v1860 = vsub.f32 %v844, %v1859
    %v1861 = vand.u32 %v1860, 4294901760
    %v1862 = vsub.f32 %v1860, %v1861
    %v1863 = vand.u32 %v1862, 4294901760
    %1864 = vmatpush1.msra.mxu0 %v1863
    %v1865 = vand.u32 %v861, 4294901760
    %v1866 = vsub.f32 %v861, %v1865
    %v1867 = vand.u32 %v1866, 4294901760
    %v1868 = vsub.f32 %v1866, %v1867
    %v1869 = vand.u32 %v1868, 4294901760
    %1870 = vmatprep.subr.mxu0 %v1869
    %v1871 = vand.u32 %v860, 4294901760
    %v1872 = vsub.f32 %v860, %v1871
    %v1873 = vand.u32 %v1872, 4294901760
    %v1874 = vsub.f32 %v1872, %v1873
    %v1875 = vand.u32 %v1874, 4294901760
    %1876 = vmatpush1.msra.mxu0 %v1875
    %v1877 = vand.u32 %v877, 4294901760
    %v1878 = vsub.f32 %v877, %v1877
    %v1879 = vand.u32 %v1878, 4294901760
    %v1880 = vsub.f32 %v1878, %v1879
    %v1881 = vand.u32 %v1880, 4294901760
    %1882 = vmatprep.subr.mxu0 %v1881
    %v1883 = vand.u32 %v876, 4294901760
    %v1884 = vsub.f32 %v876, %v1883
    %v1885 = vand.u32 %v1884, 4294901760
    %v1886 = vsub.f32 %v1884, %v1885
    %v1887 = vand.u32 %v1886, 4294901760
    %1888 = vmatpush1.msra.mxu0 %v1887
    %v1889 = vand.u32 %v948, 4294901760
    %v1890 = vsub.f32 %v948, %v1889
    %v1891 = vand.u32 %v1890, 4294901760
    %v1892 = vsub.f32 %v1890, %v1891
    %v1893 = vand.u32 %v1892, 4294901760
    %1894 = vmatprep.subr.mxu0 %v1893
    %v1895 = vand.u32 %v945, 4294901760
    %v1896 = vsub.f32 %v945, %v1895
    %v1897 = vand.u32 %v1896, 4294901760
    %v1898 = vsub.f32 %v1896, %v1897
    %v1899 = vand.u32 %v1898, 4294901760
    %1900 = vmatpush1.msra.mxu0 %v1899
    %1901 = vmatprep.subr.mxu0 0.0
    %1902 = vmatpush1.msra.mxu0 0.0
    %1903 = vmatprep.subr.mxu0 0.0
    %1904 = vmatpush1.msra.mxu0 0.0
    %1905 = vmatprep.subr.mxu0 0.0
    %1906 = vmatpush1.msra.mxu0 0.0
    %1907 = vmatprep.subr.mxu0 0.0
    %1908 = vmatpush1.msra.mxu0 0.0
    %1909 = vmatprep.subr.mxu0 0.0
    %1910 = vmatpush1.msra.mxu0 0.0
    %1911 = vmatprep.subr.mxu0 0.0
    %1912 = vmatpush1.msra.mxu0 0.0
    %1913 = vmatprep.subr.mxu0 0.0
    %1914 = vmatpush1.msra.mxu0 0.0
    %1915 = vmatprep.subr.mxu0 0.0
    %1916 = vmatpush1.msra.mxu0 0.0
    %1917 = vmatprep.subr.mxu0 0.0
    %1918 = vmatpush1.msra.mxu0 0.0
    %1919 = vmatprep.subr.mxu0 0.0
    %1920 = vmatpush1.msra.mxu0 0.0
    %1921 = vmatprep.subr.mxu0 0.0
    %1922 = vmatpush1.msra.mxu0 0.0
    %1923 = vmatprep.subr.mxu0 0.0
    %1924 = vmatpush1.msra.mxu0 0.0
    %1925 = vmatprep.subr.mxu0 0.0
    %1926 = vmatpush1.msra.mxu0 0.0
    %1927 = vmatprep.subr.mxu0 0.0
    %1928 = vmatpush1.msra.mxu0 0.0
    %1929 = vmatprep.subr.mxu0 0.0
    %1930 = vmatpush1.msra.mxu0 0.0
    %1931 = vmatprep.subr.mxu0 0.0
    %1932 = vmatpush1.msra.mxu0 0.0
    %1933 = vmatprep.subr.mxu0 0.0
    %1934 = vmatpush1.msra.mxu0 0.0
    %1935 = vmatprep.subr.mxu0 0.0
    %1936 = vmatpush1.msra.mxu0 0.0
    %1937 = vmatprep.subr.mxu0 0.0
    %1938 = vmatpush1.msra.mxu0 0.0
    %1939 = vmatprep.subr.mxu0 0.0
    %1940 = vmatpush1.msra.mxu0 0.0
    %1941 = vmatprep.subr.mxu0 0.0
    %1942 = vmatpush1.msra.mxu0 0.0
    %1943 = vmatprep.subr.mxu0 0.0
    %1944 = vmatpush1.msra.mxu0 0.0
    %1945 = vmatprep.subr.mxu0 0.0
    %1946 = vmatpush1.msra.mxu0 0.0
    %1947 = vmatprep.subr.mxu0 0.0
    %1948 = vmatpush1.msra.mxu0 0.0
    %1949 = vmatprep.subr.mxu0 0.0
    %1950 = vmatpush1.msra.mxu0 0.0
    %1951 = vmatprep.mubr.f32.mxu0 0.0
    %v1952 = vand.u32 %v929, 4294901760
    %1953 = vmatmul.mubr.f32.gmra.mrb[0].mxu0 %v1952
    %v1954 = vpop.f32.mrb[0].mxu0
    %v1955 = vadd.f32 %v1791, %v1954
    %v1956 = vpop.f32.mrb[0].mxu0
    %v1957 = vadd.f32 %v1793, %v1956
    %1958 = vmatprep.mubr.f32.mxu0 0.0
    %v1959 = vand.u32 %v932, 4294901760
    %1960 = vmatmul.mubr.f32.gmra.mrb[0].mxu0 %v1959
    %v1961 = vpop.f32.mrb[0].mxu0
    %v1962 = vadd.f32 %v1802, %v1961
    %v1963 = vpop.f32.mrb[0].mxu0
    %v1964 = vadd.f32 %v1804, %v1963
    %1965 = vmatprep.mubr.f32.mxu0 0.0
    %v1966 = vand.u32 %v935, 4294901760
    %1967 = vmatmul.mubr.f32.gmra.mrb[0].mxu0 %v1966
    %v1968 = vpop.f32.mrb[0].mxu0
    %v1969 = vadd.f32 %v1813, %v1968
    %v1970 = vpop.f32.mrb[0].mxu0
    %v1971 = vadd.f32 %v1815, %v1970
    %1972 = vdwg.mxu0
    %v1973 = vand.u32 %v797, 4294901760
    %v1974 = vsub.f32 %v797, %v1973
    %1975 = vmatprep.subr.mxu0 %v1974
    %v1976 = vand.u32 %v796, 4294901760
    %v1977 = vsub.f32 %v796, %v1976
    %1978 = vmatpush1.msra.mxu0 %v1977
    %v1979 = vand.u32 %v813, 4294901760
    %v1980 = vsub.f32 %v813, %v1979
    %1981 = vmatprep.subr.mxu0 %v1980
    %v1982 = vand.u32 %v812, 4294901760
    %v1983 = vsub.f32 %v812, %v1982
    %1984 = vmatpush1.msra.mxu0 %v1983
    %v1985 = vand.u32 %v829, 4294901760
    %v1986 = vsub.f32 %v829, %v1985
    %1987 = vmatprep.subr.mxu0 %v1986
    %v1988 = vand.u32 %v828, 4294901760
    %v1989 = vsub.f32 %v828, %v1988
    %1990 = vmatpush1.msra.mxu0 %v1989
    %v1991 = vand.u32 %v845, 4294901760
    %v1992 = vsub.f32 %v845, %v1991
    %1993 = vmatprep.subr.mxu0 %v1992
    %v1994 = vand.u32 %v844, 4294901760
    %v1995 = vsub.f32 %v844, %v1994
    %1996 = vmatpush1.msra.mxu0 %v1995
    %v1997 = vand.u32 %v861, 4294901760
    %v1998 = vsub.f32 %v861, %v1997
    %1999 = vmatprep.subr.mxu0 %v1998
    %v2000 = vand.u32 %v860, 4294901760
    %v2001 = vsub.f32 %v860, %v2000
    %2002 = vmatpush1.msra.mxu0 %v2001
    %v2003 = vand.u32 %v877, 4294901760
    %v2004 = vsub.f32 %v877, %v2003
    %2005 = vmatprep.subr.mxu0 %v2004
    %v2006 = vand.u32 %v876, 4294901760
    %v2007 = vsub.f32 %v876, %v2006
    %2008 = vmatpush1.msra.mxu0 %v2007
    %v2009 = vand.u32 %v948, 4294901760
    %v2010 = vsub.f32 %v948, %v2009
    %2011 = vmatprep.subr.mxu0 %v2010
    %v2012 = vand.u32 %v945, 4294901760
    %v2013 = vsub.f32 %v945, %v2012
    %2014 = vmatpush1.msra.mxu0 %v2013
    %2015 = vmatprep.subr.mxu0 0.0
    %2016 = vmatpush1.msra.mxu0 0.0
    %2017 = vmatprep.subr.mxu0 0.0
    %2018 = vmatpush1.msra.mxu0 0.0
    %2019 = vmatprep.subr.mxu0 0.0
    %2020 = vmatpush1.msra.mxu0 0.0
    %2021 = vmatprep.subr.mxu0 0.0
    %2022 = vmatpush1.msra.mxu0 0.0
    %2023 = vmatprep.subr.mxu0 0.0
    %2024 = vmatpush1.msra.mxu0 0.0
    %2025 = vmatprep.subr.mxu0 0.0
    %2026 = vmatpush1.msra.mxu0 0.0
    %2027 = vmatprep.subr.mxu0 0.0
    %2028 = vmatpush1.msra.mxu0 0.0
    %2029 = vmatprep.subr.mxu0 0.0
    %2030 = vmatpush1.msra.mxu0 0.0
    %2031 = vmatprep.subr.mxu0 0.0
    %2032 = vmatpush1.msra.mxu0 0.0
    %2033 = vmatprep.subr.mxu0 0.0
    %2034 = vmatpush1.msra.mxu0 0.0
    %2035 = vmatprep.subr.mxu0 0.0
    %2036 = vmatpush1.msra.mxu0 0.0
    %2037 = vmatprep.subr.mxu0 0.0
    %2038 = vmatpush1.msra.mxu0 0.0
    %2039 = vmatprep.subr.mxu0 0.0
    %2040 = vmatpush1.msra.mxu0 0.0
    %2041 = vmatprep.subr.mxu0 0.0
    %2042 = vmatpush1.msra.mxu0 0.0
    %2043 = vmatprep.subr.mxu0 0.0
    %2044 = vmatpush1.msra.mxu0 0.0
    %2045 = vmatprep.subr.mxu0 0.0
    %2046 = vmatpush1.msra.mxu0 0.0
    %2047 = vmatprep.subr.mxu0 0.0
    %2048 = vmatpush1.msra.mxu0 0.0
    %2049 = vmatprep.subr.mxu0 0.0
    %2050 = vmatpush1.msra.mxu0 0.0
    %2051 = vmatprep.subr.mxu0 0.0
    %2052 = vmatpush1.msra.mxu0 0.0
    %2053 = vmatprep.subr.mxu0 0.0
    %2054 = vmatpush1.msra.mxu0 0.0
    %2055 = vmatprep.subr.mxu0 0.0
    %2056 = vmatpush1.msra.mxu0 0.0
    %2057 = vmatprep.subr.mxu0 0.0
    %2058 = vmatpush1.msra.mxu0 0.0
    %2059 = vmatprep.subr.mxu0 0.0
    %2060 = vmatpush1.msra.mxu0 0.0
    %2061 = vmatprep.subr.mxu0 0.0
    %2062 = vmatpush1.msra.mxu0 0.0
    %2063 = vmatprep.subr.mxu0 0.0
    %2064 = vmatpush1.msra.mxu0 0.0
    %2065 = vmatprep.mubr.f32.mxu0 0.0
    %v2066 = vand.u32 %v929, 4294901760
    %v2067 = vsub.f32 %v929, %v2066
    %2068 = vmatmul.mubr.f32.gmra.mrb[0].mxu0 %v2067
    %v2069 = vpop.f32.mrb[0].mxu0
    %v2070 = vadd.f32 %v1955, %v2069
    %v2071 = vpop.f32.mrb[0].mxu0
    %v2072 = vadd.f32 %v1957, %v2071
    %2073 = vmatprep.mubr.f32.mxu0 0.0
    %v2074 = vand.u32 %v932, 4294901760
    %v2075 = vsub.f32 %v932, %v2074
    %2076 = vmatmul.mubr.f32.gmra.mrb[0].mxu0 %v2075
    %v2077 = vpop.f32.mrb[0].mxu0
    %v2078 = vadd.f32 %v1962, %v2077
    %v2079 = vpop.f32.mrb[0].mxu0
    %v2080 = vadd.f32 %v1964, %v2079
    %2081 = vmatprep.mubr.f32.mxu0 0.0
    %v2082 = vand.u32 %v935, 4294901760
    %v2083 = vsub.f32 %v935, %v2082
    %2084 = vmatmul.mubr.f32.gmra.mrb[0].mxu0 %v2083
    %v2085 = vpop.f32.mrb[0].mxu0
    %v2086 = vadd.f32 %v1969, %v2085
    %v2087 = vpop.f32.mrb[0].mxu0
    %v2088 = vadd.f32 %v1971, %v2087
    %2089 = vdwg.mxu0
    %v2090 = vand.u32 %v797, 4294901760
    %2091 = vmatprep.subr.mxu0 %v2090
    %v2092 = vand.u32 %v796, 4294901760
    %2093 = vmatpush1.msra.mxu0 %v2092
    %v2094 = vand.u32 %v813, 4294901760
    %2095 = vmatprep.subr.mxu0 %v2094
    %v2096 = vand.u32 %v812, 4294901760
    %2097 = vmatpush1.msra.mxu0 %v2096
    %v2098 = vand.u32 %v829, 4294901760
    %2099 = vmatprep.subr.mxu0 %v2098
    %v2100 = vand.u32 %v828, 4294901760
    %2101 = vmatpush1.msra.mxu0 %v2100
    %v2102 = vand.u32 %v845, 4294901760
    %2103 = vmatprep.subr.mxu0 %v2102
    %v2104 = vand.u32 %v844, 4294901760
    %2105 = vmatpush1.msra.mxu0 %v2104
    %v2106 = vand.u32 %v861, 4294901760
    %2107 = vmatprep.subr.mxu0 %v2106
    %v2108 = vand.u32 %v860, 4294901760
    %2109 = vmatpush1.msra.mxu0 %v2108
    %v2110 = vand.u32 %v877, 4294901760
    %2111 = vmatprep.subr.mxu0 %v2110
    %v2112 = vand.u32 %v876, 4294901760
    %2113 = vmatpush1.msra.mxu0 %v2112
    %v2114 = vand.u32 %v948, 4294901760
    %2115 = vmatprep.subr.mxu0 %v2114
    %v2116 = vand.u32 %v945, 4294901760
    %2117 = vmatpush1.msra.mxu0 %v2116
    %2118 = vmatprep.subr.mxu0 0.0
    %2119 = vmatpush1.msra.mxu0 0.0
    %2120 = vmatprep.subr.mxu0 0.0
    %2121 = vmatpush1.msra.mxu0 0.0
    %2122 = vmatprep.subr.mxu0 0.0
    %2123 = vmatpush1.msra.mxu0 0.0
    %2124 = vmatprep.subr.mxu0 0.0
    %2125 = vmatpush1.msra.mxu0 0.0
    %2126 = vmatprep.subr.mxu0 0.0
    %2127 = vmatpush1.msra.mxu0 0.0
    %2128 = vmatprep.subr.mxu0 0.0
    %2129 = vmatpush1.msra.mxu0 0.0
    %2130 = vmatprep.subr.mxu0 0.0
    %2131 = vmatpush1.msra.mxu0 0.0
    %2132 = vmatprep.subr.mxu0 0.0
    %2133 = vmatpush1.msra.mxu0 0.0
    %2134 = vmatprep.subr.mxu0 0.0
    %2135 = vmatpush1.msra.mxu0 0.0
    %2136 = vmatprep.subr.mxu0 0.0
    %2137 = vmatpush1.msra.mxu0 0.0
    %2138 = vmatprep.subr.mxu0 0.0
    %2139 = vmatpush1.msra.mxu0 0.0
    %2140 = vmatprep.subr.mxu0 0.0
    %2141 = vmatpush1.msra.mxu0 0.0
    %2142 = vmatprep.subr.mxu0 0.0
    %2143 = vmatpush1.msra.mxu0 0.0
    %2144 = vmatprep.subr.mxu0 0.0
    %2145 = vmatpush1.msra.mxu0 0.0
    %2146 = vmatprep.subr.mxu0 0.0
    %2147 = vmatpush1.msra.mxu0 0.0
    %2148 = vmatprep.subr.mxu0 0.0
    %2149 = vmatpush1.msra.mxu0 0.0
    %2150 = vmatprep.subr.mxu0 0.0
    %2151 = vmatpush1.msra.mxu0 0.0
    %2152 = vmatprep.subr.mxu0 0.0
    %2153 = vmatpush1.msra.mxu0 0.0
    %2154 = vmatprep.subr.mxu0 0.0
    %2155 = vmatpush1.msra.mxu0 0.0
    %2156 = vmatprep.subr.mxu0 0.0
    %2157 = vmatpush1.msra.mxu0 0.0
    %2158 = vmatprep.subr.mxu0 0.0
    %2159 = vmatpush1.msra.mxu0 0.0
    %2160 = vmatprep.subr.mxu0 0.0
    %2161 = vmatpush1.msra.mxu0 0.0
    %2162 = vmatprep.subr.mxu0 0.0
    %2163 = vmatpush1.msra.mxu0 0.0
    %2164 = vmatprep.subr.mxu0 0.0
    %2165 = vmatpush1.msra.mxu0 0.0
    %2166 = vmatprep.subr.mxu0 0.0
    %2167 = vmatpush1.msra.mxu0 0.0
    %2168 = vmatprep.mubr.f32.mxu0 0.0
    %v2169 = vand.u32 %v929, 4294901760
    %v2170 = vsub.f32 %v929, %v2169
    %v2171 = vand.u32 %v2170, 4294901760
    %2172 = vmatmul.mubr.f32.gmra.mrb[0].mxu0 %v2171
    %v2173 = vpop.f32.mrb[0].mxu0
    %v2174 = vadd.f32 %v2070, %v2173
    %v2175 = vpop.f32.mrb[0].mxu0
    %v2176 = vadd.f32 %v2072, %v2175
    %2177 = vmatprep.mubr.f32.mxu0 0.0
    %v2178 = vand.u32 %v932, 4294901760
    %v2179 = vsub.f32 %v932, %v2178
    %v2180 = vand.u32 %v2179, 4294901760
    %2181 = vmatmul.mubr.f32.gmra.mrb[0].mxu0 %v2180
    %v2182 = vpop.f32.mrb[0].mxu0
    %v2183 = vadd.f32 %v2078, %v2182
    %v2184 = vpop.f32.mrb[0].mxu0
    %v2185 = vadd.f32 %v2080, %v2184
    %2186 = vmatprep.mubr.f32.mxu0 0.0
    %v2187 = vand.u32 %v935, 4294901760
    %v2188 = vsub.f32 %v935, %v2187
    %v2189 = vand.u32 %v2188, 4294901760
    %2190 = vmatmul.mubr.f32.gmra.mrb[0].mxu0 %v2189
    %v2191 = vpop.f32.mrb[0].mxu0
    %v2192 = vadd.f32 %v2086, %v2191
    %v2193 = vpop.f32.mrb[0].mxu0
    %v2194 = vadd.f32 %v2088, %v2193
    %2195 = vdwg.mxu0
    %v2196 = vand.u32 %v797, 4294901760
    %v2197 = vsub.f32 %v797, %v2196
    %v2198 = vand.u32 %v2197, 4294901760
    %2199 = vmatprep.subr.mxu0 %v2198
    %v2200 = vand.u32 %v796, 4294901760
    %v2201 = vsub.f32 %v796, %v2200
    %v2202 = vand.u32 %v2201, 4294901760
    %2203 = vmatpush1.msra.mxu0 %v2202
    %v2204 = vand.u32 %v813, 4294901760
    %v2205 = vsub.f32 %v813, %v2204
    %v2206 = vand.u32 %v2205, 4294901760
    %2207 = vmatprep.subr.mxu0 %v2206
    %v2208 = vand.u32 %v812, 4294901760
    %v2209 = vsub.f32 %v812, %v2208
    %v2210 = vand.u32 %v2209, 4294901760
    %2211 = vmatpush1.msra.mxu0 %v2210
    %v2212 = vand.u32 %v829, 4294901760
    %v2213 = vsub.f32 %v829, %v2212
    %v2214 = vand.u32 %v2213, 4294901760
    %2215 = vmatprep.subr.mxu0 %v2214
    %v2216 = vand.u32 %v828, 4294901760
    %v2217 = vsub.f32 %v828, %v2216
    %v2218 = vand.u32 %v2217, 4294901760
    %2219 = vmatpush1.msra.mxu0 %v2218
    %v2220 = vand.u32 %v845, 4294901760
    %v2221 = vsub.f32 %v845, %v2220
    %v2222 = vand.u32 %v2221, 4294901760
    %2223 = vmatprep.subr.mxu0 %v2222
    %v2224 = vand.u32 %v844, 4294901760
    %v2225 = vsub.f32 %v844, %v2224
    %v2226 = vand.u32 %v2225, 4294901760
    %2227 = vmatpush1.msra.mxu0 %v2226
    %v2228 = vand.u32 %v861, 4294901760
    %v2229 = vsub.f32 %v861, %v2228
    %v2230 = vand.u32 %v2229, 4294901760
    %2231 = vmatprep.subr.mxu0 %v2230
    %v2232 = vand.u32 %v860, 4294901760
    %v2233 = vsub.f32 %v860, %v2232
    %v2234 = vand.u32 %v2233, 4294901760
    %2235 = vmatpush1.msra.mxu0 %v2234
    %v2236 = vand.u32 %v877, 4294901760
    %v2237 = vsub.f32 %v877, %v2236
    %v2238 = vand.u32 %v2237, 4294901760
    %2239 = vmatprep.subr.mxu0 %v2238
    %v2240 = vand.u32 %v876, 4294901760
    %v2241 = vsub.f32 %v876, %v2240
    %v2242 = vand.u32 %v2241, 4294901760
    %2243 = vmatpush1.msra.mxu0 %v2242
    %v2244 = vand.u32 %v948, 4294901760
    %v2245 = vsub.f32 %v948, %v2244
    %v2246 = vand.u32 %v2245, 4294901760
    %2247 = vmatprep.subr.mxu0 %v2246
    %v2248 = vand.u32 %v945, 4294901760
    %v2249 = vsub.f32 %v945, %v2248
    %v2250 = vand.u32 %v2249, 4294901760
    %2251 = vmatpush1.msra.mxu0 %v2250
    %2252 = vmatprep.subr.mxu0 0.0
    %2253 = vmatpush1.msra.mxu0 0.0
    %2254 = vmatprep.subr.mxu0 0.0
    %2255 = vmatpush1.msra.mxu0 0.0
    %2256 = vmatprep.subr.mxu0 0.0
    %2257 = vmatpush1.msra.mxu0 0.0
    %2258 = vmatprep.subr.mxu0 0.0
    %2259 = vmatpush1.msra.mxu0 0.0
    %2260 = vmatprep.subr.mxu0 0.0
    %2261 = vmatpush1.msra.mxu0 0.0
    %2262 = vmatprep.subr.mxu0 0.0
    %2263 = vmatpush1.msra.mxu0 0.0
    %2264 = vmatprep.subr.mxu0 0.0
    %2265 = vmatpush1.msra.mxu0 0.0
    %2266 = vmatprep.subr.mxu0 0.0
    %2267 = vmatpush1.msra.mxu0 0.0
    %2268 = vmatprep.subr.mxu0 0.0
    %2269 = vmatpush1.msra.mxu0 0.0
    %2270 = vmatprep.subr.mxu0 0.0
    %2271 = vmatpush1.msra.mxu0 0.0
    %2272 = vmatprep.subr.mxu0 0.0
    %2273 = vmatpush1.msra.mxu0 0.0
    %2274 = vmatprep.subr.mxu0 0.0
    %2275 = vmatpush1.msra.mxu0 0.0
    %2276 = vmatprep.subr.mxu0 0.0
    %2277 = vmatpush1.msra.mxu0 0.0
    %2278 = vmatprep.subr.mxu0 0.0
    %2279 = vmatpush1.msra.mxu0 0.0
    %2280 = vmatprep.subr.mxu0 0.0
    %2281 = vmatpush1.msra.mxu0 0.0
    %2282 = vmatprep.subr.mxu0 0.0
    %2283 = vmatpush1.msra.mxu0 0.0
    %2284 = vmatprep.subr.mxu0 0.0
    %2285 = vmatpush1.msra.mxu0 0.0
    %2286 = vmatprep.subr.mxu0 0.0
    %2287 = vmatpush1.msra.mxu0 0.0
    %2288 = vmatprep.subr.mxu0 0.0
    %2289 = vmatpush1.msra.mxu0 0.0
    %2290 = vmatprep.subr.mxu0 0.0
    %2291 = vmatpush1.msra.mxu0 0.0
    %2292 = vmatprep.subr.mxu0 0.0
    %2293 = vmatpush1.msra.mxu0 0.0
    %2294 = vmatprep.subr.mxu0 0.0
    %2295 = vmatpush1.msra.mxu0 0.0
    %2296 = vmatprep.subr.mxu0 0.0
    %2297 = vmatpush1.msra.mxu0 0.0
    %2298 = vmatprep.subr.mxu0 0.0
    %2299 = vmatpush1.msra.mxu0 0.0
    %2300 = vmatprep.subr.mxu0 0.0
    %2301 = vmatpush1.msra.mxu0 0.0
    %2302 = vmatprep.mubr.f32.mxu0 0.0
    %v2303 = vand.u32 %v929, 4294901760
    %2304 = vmatmul.mubr.f32.gmra.mrb[0].mxu0 %v2303
    %v2305 = vpop.f32.mrb[0].mxu0
    %v2306 = vadd.f32 %v2174, %v2305
    %v2307 = vpop.f32.mrb[0].mxu0
    %v2308 = vadd.f32 %v2176, %v2307
    %2309 = vmatprep.mubr.f32.mxu0 0.0
    %v2310 = vand.u32 %v932, 4294901760
    %2311 = vmatmul.mubr.f32.gmra.mrb[0].mxu0 %v2310
    %v2312 = vpop.f32.mrb[0].mxu0
    %v2313 = vadd.f32 %v2183, %v2312
    %v2314 = vpop.f32.mrb[0].mxu0
    %v2315 = vadd.f32 %v2185, %v2314
    %2316 = vmatprep.mubr.f32.mxu0 0.0
    %v2317 = vand.u32 %v935, 4294901760
    %2318 = vmatmul.mubr.f32.gmra.mrb[0].mxu0 %v2317
    %v2319 = vpop.f32.mrb[0].mxu0
    %v2320 = vadd.f32 %v2192, %v2319
    %v2321 = vpop.f32.mrb[0].mxu0
    %v2322 = vadd.f32 %v2194, %v2321
    %2323 = vdwg.mxu0
    %v2324 = vand.u32 %v797, 4294901760
    %2325 = vmatprep.subr.mxu0 %v2324
    %v2326 = vand.u32 %v796, 4294901760
    %2327 = vmatpush1.msra.mxu0 %v2326
    %v2328 = vand.u32 %v813, 4294901760
    %2329 = vmatprep.subr.mxu0 %v2328
    %v2330 = vand.u32 %v812, 4294901760
    %2331 = vmatpush1.msra.mxu0 %v2330
    %v2332 = vand.u32 %v829, 4294901760
    %2333 = vmatprep.subr.mxu0 %v2332
    %v2334 = vand.u32 %v828, 4294901760
    %2335 = vmatpush1.msra.mxu0 %v2334
    %v2336 = vand.u32 %v845, 4294901760
    %2337 = vmatprep.subr.mxu0 %v2336
    %v2338 = vand.u32 %v844, 4294901760
    %2339 = vmatpush1.msra.mxu0 %v2338
    %v2340 = vand.u32 %v861, 4294901760
    %2341 = vmatprep.subr.mxu0 %v2340
    %v2342 = vand.u32 %v860, 4294901760
    %2343 = vmatpush1.msra.mxu0 %v2342
    %v2344 = vand.u32 %v877, 4294901760
    %2345 = vmatprep.subr.mxu0 %v2344
    %v2346 = vand.u32 %v876, 4294901760
    %2347 = vmatpush1.msra.mxu0 %v2346
    %v2348 = vand.u32 %v948, 4294901760
    %2349 = vmatprep.subr.mxu0 %v2348
    %v2350 = vand.u32 %v945, 4294901760
    %2351 = vmatpush1.msra.mxu0 %v2350
    %2352 = vmatprep.subr.mxu0 0.0
    %2353 = vmatpush1.msra.mxu0 0.0
    %2354 = vmatprep.subr.mxu0 0.0
    %2355 = vmatpush1.msra.mxu0 0.0
    %2356 = vmatprep.subr.mxu0 0.0
    %2357 = vmatpush1.msra.mxu0 0.0
    %2358 = vmatprep.subr.mxu0 0.0
    %2359 = vmatpush1.msra.mxu0 0.0
    %2360 = vmatprep.subr.mxu0 0.0
    %2361 = vmatpush1.msra.mxu0 0.0
    %2362 = vmatprep.subr.mxu0 0.0
    %2363 = vmatpush1.msra.mxu0 0.0
    %2364 = vmatprep.subr.mxu0 0.0
    %2365 = vmatpush1.msra.mxu0 0.0
    %2366 = vmatprep.subr.mxu0 0.0
    %2367 = vmatpush1.msra.mxu0 0.0
    %2368 = vmatprep.subr.mxu0 0.0
    %2369 = vmatpush1.msra.mxu0 0.0
    %2370 = vmatprep.subr.mxu0 0.0
    %2371 = vmatpush1.msra.mxu0 0.0
    %2372 = vmatprep.subr.mxu0 0.0
    %2373 = vmatpush1.msra.mxu0 0.0
    %2374 = vmatprep.subr.mxu0 0.0
    %2375 = vmatpush1.msra.mxu0 0.0
    %2376 = vmatprep.subr.mxu0 0.0
    %2377 = vmatpush1.msra.mxu0 0.0
    %2378 = vmatprep.subr.mxu0 0.0
    %2379 = vmatpush1.msra.mxu0 0.0
    %2380 = vmatprep.subr.mxu0 0.0
    %2381 = vmatpush1.msra.mxu0 0.0
    %2382 = vmatprep.subr.mxu0 0.0
    %2383 = vmatpush1.msra.mxu0 0.0
    %2384 = vmatprep.subr.mxu0 0.0
    %2385 = vmatpush1.msra.mxu0 0.0
    %2386 = vmatprep.subr.mxu0 0.0
    %2387 = vmatpush1.msra.mxu0 0.0
    %2388 = vmatprep.subr.mxu0 0.0
    %2389 = vmatpush1.msra.mxu0 0.0
    %2390 = vmatprep.subr.mxu0 0.0
    %2391 = vmatpush1.msra.mxu0 0.0
    %2392 = vmatprep.subr.mxu0 0.0
    %2393 = vmatpush1.msra.mxu0 0.0
    %2394 = vmatprep.subr.mxu0 0.0
    %2395 = vmatpush1.msra.mxu0 0.0
    %2396 = vmatprep.subr.mxu0 0.0
    %2397 = vmatpush1.msra.mxu0 0.0
    %2398 = vmatprep.subr.mxu0 0.0
    %2399 = vmatpush1.msra.mxu0 0.0
    %2400 = vmatprep.subr.mxu0 0.0
    %2401 = vmatpush1.msra.mxu0 0.0
    %2402 = vmatprep.mubr.f32.mxu0 0.0
    %v2403 = vand.u32 %v929, 4294901760
    %2404 = vmatmul.mubr.f32.gmra.mrb[0].mxu0 %v2403
    %v2405 = vpop.f32.mrb[0].mxu0
    %v2406 = vadd.f32 %v2306, %v2405
    %v2407 = vpop.f32.mrb[0].mxu0
    %v2408 = vadd.f32 %v2308, %v2407
    %2409 = vmatprep.mubr.f32.mxu0 0.0
    %v2410 = vand.u32 %v932, 4294901760
    %2411 = vmatmul.mubr.f32.gmra.mrb[0].mxu0 %v2410
    %v2412 = vpop.f32.mrb[0].mxu0
    %v2413 = vadd.f32 %v2313, %v2412
    %v2414 = vpop.f32.mrb[0].mxu0
    %v2415 = vadd.f32 %v2315, %v2414
    %2416 = vmatprep.mubr.f32.mxu0 0.0
    %v2417 = vand.u32 %v935, 4294901760
    %2418 = vmatmul.mubr.f32.gmra.mrb[0].mxu0 %v2417
    %v2419 = vpop.f32.mrb[0].mxu0
    %v2420 = vadd.f32 %v2320, %v2419
    %v2421 = vpop.f32.mrb[0].mxu0
    %v2422 = vadd.f32 %v2322, %v2421
    %2423 = vdwg.mxu0
    %v2424 = vand.u32 %v799, 4294901760
    %2425 = vmatprep.subr.mxu0 %v2424
    %v2426 = vand.u32 %v798, 4294901760
    %2427 = vmatpush1.msra.mxu0 %v2426
    %v2428 = vand.u32 %v815, 4294901760
    %2429 = vmatprep.subr.mxu0 %v2428
    %v2430 = vand.u32 %v814, 4294901760
    %2431 = vmatpush1.msra.mxu0 %v2430
    %v2432 = vand.u32 %v831, 4294901760
    %2433 = vmatprep.subr.mxu0 %v2432
    %v2434 = vand.u32 %v830, 4294901760
    %2435 = vmatpush1.msra.mxu0 %v2434
    %v2436 = vand.u32 %v847, 4294901760
    %2437 = vmatprep.subr.mxu0 %v2436
    %v2438 = vand.u32 %v846, 4294901760
    %2439 = vmatpush1.msra.mxu0 %v2438
    %v2440 = vand.u32 %v863, 4294901760
    %2441 = vmatprep.subr.mxu0 %v2440
    %v2442 = vand.u32 %v862, 4294901760
    %2443 = vmatpush1.msra.mxu0 %v2442
    %v2444 = vand.u32 %v879, 4294901760
    %2445 = vmatprep.subr.mxu0 %v2444
    %v2446 = vand.u32 %v878, 4294901760
    %2447 = vmatpush1.msra.mxu0 %v2446
    %v2448 = vand.u32 %v954, 4294901760
    %2449 = vmatprep.subr.mxu0 %v2448
    %v2450 = vand.u32 %v951, 4294901760
    %2451 = vmatpush1.msra.mxu0 %v2450
    %2452 = vmatprep.subr.mxu0 0.0
    %2453 = vmatpush1.msra.mxu0 0.0
    %2454 = vmatprep.subr.mxu0 0.0
    %2455 = vmatpush1.msra.mxu0 0.0
    %2456 = vmatprep.subr.mxu0 0.0
    %2457 = vmatpush1.msra.mxu0 0.0
    %2458 = vmatprep.subr.mxu0 0.0
    %2459 = vmatpush1.msra.mxu0 0.0
    %2460 = vmatprep.subr.mxu0 0.0
    %2461 = vmatpush1.msra.mxu0 0.0
    %2462 = vmatprep.subr.mxu0 0.0
    %2463 = vmatpush1.msra.mxu0 0.0
    %2464 = vmatprep.subr.mxu0 0.0
    %2465 = vmatpush1.msra.mxu0 0.0
    %2466 = vmatprep.subr.mxu0 0.0
    %2467 = vmatpush1.msra.mxu0 0.0
    %2468 = vmatprep.subr.mxu0 0.0
    %2469 = vmatpush1.msra.mxu0 0.0
    %2470 = vmatprep.subr.mxu0 0.0
    %2471 = vmatpush1.msra.mxu0 0.0
    %2472 = vmatprep.subr.mxu0 0.0
    %2473 = vmatpush1.msra.mxu0 0.0
    %2474 = vmatprep.subr.mxu0 0.0
    %2475 = vmatpush1.msra.mxu0 0.0
    %2476 = vmatprep.subr.mxu0 0.0
    %2477 = vmatpush1.msra.mxu0 0.0
    %2478 = vmatprep.subr.mxu0 0.0
    %2479 = vmatpush1.msra.mxu0 0.0
    %2480 = vmatprep.subr.mxu0 0.0
    %2481 = vmatpush1.msra.mxu0 0.0
    %2482 = vmatprep.subr.mxu0 0.0
    %2483 = vmatpush1.msra.mxu0 0.0
    %2484 = vmatprep.subr.mxu0 0.0
    %2485 = vmatpush1.msra.mxu0 0.0
    %2486 = vmatprep.subr.mxu0 0.0
    %2487 = vmatpush1.msra.mxu0 0.0
    %2488 = vmatprep.subr.mxu0 0.0
    %2489 = vmatpush1.msra.mxu0 0.0
    %2490 = vmatprep.subr.mxu0 0.0
    %2491 = vmatpush1.msra.mxu0 0.0
    %2492 = vmatprep.subr.mxu0 0.0
    %2493 = vmatpush1.msra.mxu0 0.0
    %2494 = vmatprep.subr.mxu0 0.0
    %2495 = vmatpush1.msra.mxu0 0.0
    %2496 = vmatprep.subr.mxu0 0.0
    %2497 = vmatpush1.msra.mxu0 0.0
    %2498 = vmatprep.subr.mxu0 0.0
    %2499 = vmatpush1.msra.mxu0 0.0
    %2500 = vmatprep.subr.mxu0 0.0
    %2501 = vmatpush1.msra.mxu0 0.0
    %2502 = vmatprep.mubr.f32.mxu0 0.0
    %v2503 = vand.u32 %v929, 4294901760
    %v2504 = vsub.f32 %v929, %v2503
    %v2505 = vand.u32 %v2504, 4294901760
    %v2506 = vsub.f32 %v2504, %v2505
    %v2507 = vand.u32 %v2506, 4294901760
    %2508 = vmatmul.mubr.f32.gmra.mrb[0].mxu0 %v2507
    %v2509 = vpop.f32.mrb[0].mxu0
    %v2510 = vadd.f32 %v915, %v2509
    %v2511 = vpop.f32.mrb[0].mxu0
    %v2512 = vadd.f32 %v915, %v2511
    %2513 = vmatprep.mubr.f32.mxu0 0.0
    %v2514 = vand.u32 %v932, 4294901760
    %v2515 = vsub.f32 %v932, %v2514
    %v2516 = vand.u32 %v2515, 4294901760
    %v2517 = vsub.f32 %v2515, %v2516
    %v2518 = vand.u32 %v2517, 4294901760
    %2519 = vmatmul.mubr.f32.gmra.mrb[0].mxu0 %v2518
    %v2520 = vpop.f32.mrb[0].mxu0
    %v2521 = vadd.f32 %v920, %v2520
    %v2522 = vpop.f32.mrb[0].mxu0
    %v2523 = vadd.f32 %v920, %v2522
    %2524 = vmatprep.mubr.f32.mxu0 0.0
    %v2525 = vand.u32 %v935, 4294901760
    %v2526 = vsub.f32 %v935, %v2525
    %v2527 = vand.u32 %v2526, 4294901760
    %v2528 = vsub.f32 %v2526, %v2527
    %v2529 = vand.u32 %v2528, 4294901760
    %2530 = vmatmul.mubr.f32.gmra.mrb[0].mxu0 %v2529
    %v2531 = vpop.f32.mrb[0].mxu0
    %v2532 = vadd.f32 %v925, %v2531
    %v2533 = vpop.f32.mrb[0].mxu0
    %v2534 = vadd.f32 %v925, %v2533
    %2535 = vdwg.mxu0
    %v2536 = vand.u32 %v799, 4294901760
    %v2537 = vsub.f32 %v799, %v2536
    %v2538 = vand.u32 %v2537, 4294901760
    %v2539 = vsub.f32 %v2537, %v2538
    %v2540 = vand.u32 %v2539, 4294901760
    %2541 = vmatprep.subr.mxu0 %v2540
    %v2542 = vand.u32 %v798, 4294901760
    %v2543 = vsub.f32 %v798, %v2542
    %v2544 = vand.u32 %v2543, 4294901760
    %v2545 = vsub.f32 %v2543, %v2544
    %v2546 = vand.u32 %v2545, 4294901760
    %2547 = vmatpush1.msra.mxu0 %v2546
    %v2548 = vand.u32 %v815, 4294901760
    %v2549 = vsub.f32 %v815, %v2548
    %v2550 = vand.u32 %v2549, 4294901760
    %v2551 = vsub.f32 %v2549, %v2550
    %v2552 = vand.u32 %v2551, 4294901760
    %2553 = vmatprep.subr.mxu0 %v2552
    %v2554 = vand.u32 %v814, 4294901760
    %v2555 = vsub.f32 %v814, %v2554
    %v2556 = vand.u32 %v2555, 4294901760
    %v2557 = vsub.f32 %v2555, %v2556
    %v2558 = vand.u32 %v2557, 4294901760
    %2559 = vmatpush1.msra.mxu0 %v2558
    %v2560 = vand.u32 %v831, 4294901760
    %v2561 = vsub.f32 %v831, %v2560
    %v2562 = vand.u32 %v2561, 4294901760
    %v2563 = vsub.f32 %v2561, %v2562
    %v2564 = vand.u32 %v2563, 4294901760
    %2565 = vmatprep.subr.mxu0 %v2564
    %v2566 = vand.u32 %v830, 4294901760
    %v2567 = vsub.f32 %v830, %v2566
    %v2568 = vand.u32 %v2567, 4294901760
    %v2569 = vsub.f32 %v2567, %v2568
    %v2570 = vand.u32 %v2569, 4294901760
    %2571 = vmatpush1.msra.mxu0 %v2570
    %v2572 = vand.u32 %v847, 4294901760
    %v2573 = vsub.f32 %v847, %v2572
    %v2574 = vand.u32 %v2573, 4294901760
    %v2575 = vsub.f32 %v2573, %v2574
    %v2576 = vand.u32 %v2575, 4294901760
    %2577 = vmatprep.subr.mxu0 %v2576
    %v2578 = vand.u32 %v846, 4294901760
    %v2579 = vsub.f32 %v846, %v2578
    %v2580 = vand.u32 %v2579, 4294901760
    %v2581 = vsub.f32 %v2579, %v2580
    %v2582 = vand.u32 %v2581, 4294901760
    %2583 = vmatpush1.msra.mxu0 %v2582
    %v2584 = vand.u32 %v863, 4294901760
    %v2585 = vsub.f32 %v863, %v2584
    %v2586 = vand.u32 %v2585, 4294901760
    %v2587 = vsub.f32 %v2585, %v2586
    %v2588 = vand.u32 %v2587, 4294901760
    %2589 = vmatprep.subr.mxu0 %v2588
    %v2590 = vand.u32 %v862, 4294901760
    %v2591 = vsub.f32 %v862, %v2590
    %v2592 = vand.u32 %v2591, 4294901760
    %v2593 = vsub.f32 %v2591, %v2592
    %v2594 = vand.u32 %v2593, 4294901760
    %2595 = vmatpush1.msra.mxu0 %v2594
    %v2596 = vand.u32 %v879, 4294901760
    %v2597 = vsub.f32 %v879, %v2596
    %v2598 = vand.u32 %v2597, 4294901760
    %v2599 = vsub.f32 %v2597, %v2598
    %v2600 = vand.u32 %v2599, 4294901760
    %2601 = vmatprep.subr.mxu0 %v2600
    %v2602 = vand.u32 %v878, 4294901760
    %v2603 = vsub.f32 %v878, %v2602
    %v2604 = vand.u32 %v2603, 4294901760
    %v2605 = vsub.f32 %v2603, %v2604
    %v2606 = vand.u32 %v2605, 4294901760
    %2607 = vmatpush1.msra.mxu0 %v2606
    %v2608 = vand.u32 %v954, 4294901760
    %v2609 = vsub.f32 %v954, %v2608
    %v2610 = vand.u32 %v2609, 4294901760
    %v2611 = vsub.f32 %v2609, %v2610
    %v2612 = vand.u32 %v2611, 4294901760
    %2613 = vmatprep.subr.mxu0 %v2612
    %v2614 = vand.u32 %v951, 4294901760
    %v2615 = vsub.f32 %v951, %v2614
    %v2616 = vand.u32 %v2615, 4294901760
    %v2617 = vsub.f32 %v2615, %v2616
    %v2618 = vand.u32 %v2617, 4294901760
    %2619 = vmatpush1.msra.mxu0 %v2618
    %2620 = vmatprep.subr.mxu0 0.0
    %2621 = vmatpush1.msra.mxu0 0.0
    %2622 = vmatprep.subr.mxu0 0.0
    %2623 = vmatpush1.msra.mxu0 0.0
    %2624 = vmatprep.subr.mxu0 0.0
    %2625 = vmatpush1.msra.mxu0 0.0
    %2626 = vmatprep.subr.mxu0 0.0
    %2627 = vmatpush1.msra.mxu0 0.0
    %2628 = vmatprep.subr.mxu0 0.0
    %2629 = vmatpush1.msra.mxu0 0.0
    %2630 = vmatprep.subr.mxu0 0.0
    %2631 = vmatpush1.msra.mxu0 0.0
    %2632 = vmatprep.subr.mxu0 0.0
    %2633 = vmatpush1.msra.mxu0 0.0
    %2634 = vmatprep.subr.mxu0 0.0
    %2635 = vmatpush1.msra.mxu0 0.0
    %2636 = vmatprep.subr.mxu0 0.0
    %2637 = vmatpush1.msra.mxu0 0.0
    %2638 = vmatprep.subr.mxu0 0.0
    %2639 = vmatpush1.msra.mxu0 0.0
    %2640 = vmatprep.subr.mxu0 0.0
    %2641 = vmatpush1.msra.mxu0 0.0
    %2642 = vmatprep.subr.mxu0 0.0
    %2643 = vmatpush1.msra.mxu0 0.0
    %2644 = vmatprep.subr.mxu0 0.0
    %2645 = vmatpush1.msra.mxu0 0.0
    %2646 = vmatprep.subr.mxu0 0.0
    %2647 = vmatpush1.msra.mxu0 0.0
    %2648 = vmatprep.subr.mxu0 0.0
    %2649 = vmatpush1.msra.mxu0 0.0
    %2650 = vmatprep.subr.mxu0 0.0
    %2651 = vmatpush1.msra.mxu0 0.0
    %2652 = vmatprep.subr.mxu0 0.0
    %2653 = vmatpush1.msra.mxu0 0.0
    %2654 = vmatprep.subr.mxu0 0.0
    %2655 = vmatpush1.msra.mxu0 0.0
    %2656 = vmatprep.subr.mxu0 0.0
    %2657 = vmatpush1.msra.mxu0 0.0
    %2658 = vmatprep.subr.mxu0 0.0
    %2659 = vmatpush1.msra.mxu0 0.0
    %2660 = vmatprep.subr.mxu0 0.0
    %2661 = vmatpush1.msra.mxu0 0.0
    %2662 = vmatprep.subr.mxu0 0.0
    %2663 = vmatpush1.msra.mxu0 0.0
    %2664 = vmatprep.subr.mxu0 0.0
    %2665 = vmatpush1.msra.mxu0 0.0
    %2666 = vmatprep.subr.mxu0 0.0
    %2667 = vmatpush1.msra.mxu0 0.0
    %2668 = vmatprep.subr.mxu0 0.0
    %2669 = vmatpush1.msra.mxu0 0.0
    %2670 = vmatprep.mubr.f32.mxu0 0.0
    %v2671 = vand.u32 %v929, 4294901760
    %2672 = vmatmul.mubr.f32.gmra.mrb[0].mxu0 %v2671
    %v2673 = vpop.f32.mrb[0].mxu0
    %v2674 = vadd.f32 %v2510, %v2673
    %v2675 = vpop.f32.mrb[0].mxu0
    %v2676 = vadd.f32 %v2512, %v2675
    %2677 = vmatprep.mubr.f32.mxu0 0.0
    %v2678 = vand.u32 %v932, 4294901760
    %2679 = vmatmul.mubr.f32.gmra.mrb[0].mxu0 %v2678
    %v2680 = vpop.f32.mrb[0].mxu0
    %v2681 = vadd.f32 %v2521, %v2680
    %v2682 = vpop.f32.mrb[0].mxu0
    %v2683 = vadd.f32 %v2523, %v2682
    %2684 = vmatprep.mubr.f32.mxu0 0.0
    %v2685 = vand.u32 %v935, 4294901760
    %2686 = vmatmul.mubr.f32.gmra.mrb[0].mxu0 %v2685
    %v2687 = vpop.f32.mrb[0].mxu0
    %v2688 = vadd.f32 %v2532, %v2687
    %v2689 = vpop.f32.mrb[0].mxu0
    %v2690 = vadd.f32 %v2534, %v2689
    %2691 = vdwg.mxu0
    %v2692 = vand.u32 %v799, 4294901760
    %v2693 = vsub.f32 %v799, %v2692
    %2694 = vmatprep.subr.mxu0 %v2693
    %v2695 = vand.u32 %v798, 4294901760
    %v2696 = vsub.f32 %v798, %v2695
    %2697 = vmatpush1.msra.mxu0 %v2696
    %v2698 = vand.u32 %v815, 4294901760
    %v2699 = vsub.f32 %v815, %v2698
    %2700 = vmatprep.subr.mxu0 %v2699
    %v2701 = vand.u32 %v814, 4294901760
    %v2702 = vsub.f32 %v814, %v2701
    %2703 = vmatpush1.msra.mxu0 %v2702
    %v2704 = vand.u32 %v831, 4294901760
    %v2705 = vsub.f32 %v831, %v2704
    %2706 = vmatprep.subr.mxu0 %v2705
    %v2707 = vand.u32 %v830, 4294901760
    %v2708 = vsub.f32 %v830, %v2707
    %2709 = vmatpush1.msra.mxu0 %v2708
    %v2710 = vand.u32 %v847, 4294901760
    %v2711 = vsub.f32 %v847, %v2710
    %2712 = vmatprep.subr.mxu0 %v2711
    %v2713 = vand.u32 %v846, 4294901760
    %v2714 = vsub.f32 %v846, %v2713
    %2715 = vmatpush1.msra.mxu0 %v2714
    %v2716 = vand.u32 %v863, 4294901760
    %v2717 = vsub.f32 %v863, %v2716
    %2718 = vmatprep.subr.mxu0 %v2717
    %v2719 = vand.u32 %v862, 4294901760
    %v2720 = vsub.f32 %v862, %v2719
    %2721 = vmatpush1.msra.mxu0 %v2720
    %v2722 = vand.u32 %v879, 4294901760
    %v2723 = vsub.f32 %v879, %v2722
    %2724 = vmatprep.subr.mxu0 %v2723
    %v2725 = vand.u32 %v878, 4294901760
    %v2726 = vsub.f32 %v878, %v2725
    %2727 = vmatpush1.msra.mxu0 %v2726
    %v2728 = vand.u32 %v954, 4294901760
    %v2729 = vsub.f32 %v954, %v2728
    %2730 = vmatprep.subr.mxu0 %v2729
    %v2731 = vand.u32 %v951, 4294901760
    %v2732 = vsub.f32 %v951, %v2731
    %2733 = vmatpush1.msra.mxu0 %v2732
    %2734 = vmatprep.subr.mxu0 0.0
    %2735 = vmatpush1.msra.mxu0 0.0
    %2736 = vmatprep.subr.mxu0 0.0
    %2737 = vmatpush1.msra.mxu0 0.0
    %2738 = vmatprep.subr.mxu0 0.0
    %2739 = vmatpush1.msra.mxu0 0.0
    %2740 = vmatprep.subr.mxu0 0.0
    %2741 = vmatpush1.msra.mxu0 0.0
    %2742 = vmatprep.subr.mxu0 0.0
    %2743 = vmatpush1.msra.mxu0 0.0
    %2744 = vmatprep.subr.mxu0 0.0
    %2745 = vmatpush1.msra.mxu0 0.0
    %2746 = vmatprep.subr.mxu0 0.0
    %2747 = vmatpush1.msra.mxu0 0.0
    %2748 = vmatprep.subr.mxu0 0.0
    %2749 = vmatpush1.msra.mxu0 0.0
    %2750 = vmatprep.subr.mxu0 0.0
    %2751 = vmatpush1.msra.mxu0 0.0
    %2752 = vmatprep.subr.mxu0 0.0
    %2753 = vmatpush1.msra.mxu0 0.0
    %2754 = vmatprep.subr.mxu0 0.0
    %2755 = vmatpush1.msra.mxu0 0.0
    %2756 = vmatprep.subr.mxu0 0.0
    %2757 = vmatpush1.msra.mxu0 0.0
    %2758 = vmatprep.subr.mxu0 0.0
    %2759 = vmatpush1.msra.mxu0 0.0
    %2760 = vmatprep.subr.mxu0 0.0
    %2761 = vmatpush1.msra.mxu0 0.0
    %2762 = vmatprep.subr.mxu0 0.0
    %2763 = vmatpush1.msra.mxu0 0.0
    %2764 = vmatprep.subr.mxu0 0.0
    %2765 = vmatpush1.msra.mxu0 0.0
    %2766 = vmatprep.subr.mxu0 0.0
    %2767 = vmatpush1.msra.mxu0 0.0
    %2768 = vmatprep.subr.mxu0 0.0
    %2769 = vmatpush1.msra.mxu0 0.0
    %2770 = vmatprep.subr.mxu0 0.0
    %2771 = vmatpush1.msra.mxu0 0.0
    %2772 = vmatprep.subr.mxu0 0.0
    %2773 = vmatpush1.msra.mxu0 0.0
    %2774 = vmatprep.subr.mxu0 0.0
    %2775 = vmatpush1.msra.mxu0 0.0
    %2776 = vmatprep.subr.mxu0 0.0
    %2777 = vmatpush1.msra.mxu0 0.0
    %2778 = vmatprep.subr.mxu0 0.0
    %2779 = vmatpush1.msra.mxu0 0.0
    %2780 = vmatprep.subr.mxu0 0.0
    %2781 = vmatpush1.msra.mxu0 0.0
    %2782 = vmatprep.subr.mxu0 0.0
    %2783 = vmatpush1.msra.mxu0 0.0
    %2784 = vmatprep.mubr.f32.mxu0 0.0
    %v2785 = vand.u32 %v929, 4294901760
    %v2786 = vsub.f32 %v929, %v2785
    %2787 = vmatmul.mubr.f32.gmra.mrb[0].mxu0 %v2786
    %v2788 = vpop.f32.mrb[0].mxu0
    %v2789 = vadd.f32 %v2674, %v2788
    %v2790 = vpop.f32.mrb[0].mxu0
    %v2791 = vadd.f32 %v2676, %v2790
    %2792 = vmatprep.mubr.f32.mxu0 0.0
    %v2793 = vand.u32 %v932, 4294901760
    %v2794 = vsub.f32 %v932, %v2793
    %2795 = vmatmul.mubr.f32.gmra.mrb[0].mxu0 %v2794
    %v2796 = vpop.f32.mrb[0].mxu0
    %v2797 = vadd.f32 %v2681, %v2796
    %v2798 = vpop.f32.mrb[0].mxu0
    %v2799 = vadd.f32 %v2683, %v2798
    %2800 = vmatprep.mubr.f32.mxu0 0.0
    %v2801 = vand.u32 %v935, 4294901760
    %v2802 = vsub.f32 %v935, %v2801
    %2803 = vmatmul.mubr.f32.gmra.mrb[0].mxu0 %v2802
    %v2804 = vpop.f32.mrb[0].mxu0
    %v2805 = vadd.f32 %v2688, %v2804
    %v2806 = vpop.f32.mrb[0].mxu0
    %v2807 = vadd.f32 %v2690, %v2806
    %2808 = vdwg.mxu0
    %v2809 = vand.u32 %v799, 4294901760
    %2810 = vmatprep.subr.mxu0 %v2809
    %v2811 = vand.u32 %v798, 4294901760
    %2812 = vmatpush1.msra.mxu0 %v2811
    %v2813 = vand.u32 %v815, 4294901760
    %2814 = vmatprep.subr.mxu0 %v2813
    %v2815 = vand.u32 %v814, 4294901760
    %2816 = vmatpush1.msra.mxu0 %v2815
    %v2817 = vand.u32 %v831, 4294901760
    %2818 = vmatprep.subr.mxu0 %v2817
    %v2819 = vand.u32 %v830, 4294901760
    %2820 = vmatpush1.msra.mxu0 %v2819
    %v2821 = vand.u32 %v847, 4294901760
    %2822 = vmatprep.subr.mxu0 %v2821
    %v2823 = vand.u32 %v846, 4294901760
    %2824 = vmatpush1.msra.mxu0 %v2823
    %v2825 = vand.u32 %v863, 4294901760
    %2826 = vmatprep.subr.mxu0 %v2825
    %v2827 = vand.u32 %v862, 4294901760
    %2828 = vmatpush1.msra.mxu0 %v2827
    %v2829 = vand.u32 %v879, 4294901760
    %2830 = vmatprep.subr.mxu0 %v2829
    %v2831 = vand.u32 %v878, 4294901760
    %2832 = vmatpush1.msra.mxu0 %v2831
    %v2833 = vand.u32 %v954, 4294901760
    %2834 = vmatprep.subr.mxu0 %v2833
    %v2835 = vand.u32 %v951, 4294901760
    %2836 = vmatpush1.msra.mxu0 %v2835
    %2837 = vmatprep.subr.mxu0 0.0
    %2838 = vmatpush1.msra.mxu0 0.0
    %2839 = vmatprep.subr.mxu0 0.0
    %2840 = vmatpush1.msra.mxu0 0.0
    %2841 = vmatprep.subr.mxu0 0.0
    %2842 = vmatpush1.msra.mxu0 0.0
    %2843 = vmatprep.subr.mxu0 0.0
    %2844 = vmatpush1.msra.mxu0 0.0
    %2845 = vmatprep.subr.mxu0 0.0
    %2846 = vmatpush1.msra.mxu0 0.0
    %2847 = vmatprep.subr.mxu0 0.0
    %2848 = vmatpush1.msra.mxu0 0.0
    %2849 = vmatprep.subr.mxu0 0.0
    %2850 = vmatpush1.msra.mxu0 0.0
    %2851 = vmatprep.subr.mxu0 0.0
    %2852 = vmatpush1.msra.mxu0 0.0
    %2853 = vmatprep.subr.mxu0 0.0
    %2854 = vmatpush1.msra.mxu0 0.0
    %2855 = vmatprep.subr.mxu0 0.0
    %2856 = vmatpush1.msra.mxu0 0.0
    %2857 = vmatprep.subr.mxu0 0.0
    %2858 = vmatpush1.msra.mxu0 0.0
    %2859 = vmatprep.subr.mxu0 0.0
    %2860 = vmatpush1.msra.mxu0 0.0
    %2861 = vmatprep.subr.mxu0 0.0
    %2862 = vmatpush1.msra.mxu0 0.0
    %2863 = vmatprep.subr.mxu0 0.0
    %2864 = vmatpush1.msra.mxu0 0.0
    %2865 = vmatprep.subr.mxu0 0.0
    %2866 = vmatpush1.msra.mxu0 0.0
    %2867 = vmatprep.subr.mxu0 0.0
    %2868 = vmatpush1.msra.mxu0 0.0
    %2869 = vmatprep.subr.mxu0 0.0
    %2870 = vmatpush1.msra.mxu0 0.0
    %2871 = vmatprep.subr.mxu0 0.0
    %2872 = vmatpush1.msra.mxu0 0.0
    %2873 = vmatprep.subr.mxu0 0.0
    %2874 = vmatpush1.msra.mxu0 0.0
    %2875 = vmatprep.subr.mxu0 0.0
    %2876 = vmatpush1.msra.mxu0 0.0
    %2877 = vmatprep.subr.mxu0 0.0
    %2878 = vmatpush1.msra.mxu0 0.0
    %2879 = vmatprep.subr.mxu0 0.0
    %2880 = vmatpush1.msra.mxu0 0.0
    %2881 = vmatprep.subr.mxu0 0.0
    %2882 = vmatpush1.msra.mxu0 0.0
    %2883 = vmatprep.subr.mxu0 0.0
    %2884 = vmatpush1.msra.mxu0 0.0
    %2885 = vmatprep.subr.mxu0 0.0
    %2886 = vmatpush1.msra.mxu0 0.0
    %2887 = vmatprep.mubr.f32.mxu0 0.0
    %v2888 = vand.u32 %v929, 4294901760
    %v2889 = vsub.f32 %v929, %v2888
    %v2890 = vand.u32 %v2889, 4294901760
    %2891 = vmatmul.mubr.f32.gmra.mrb[0].mxu0 %v2890
    %v2892 = vpop.f32.mrb[0].mxu0
    %v2893 = vadd.f32 %v2789, %v2892
    %v2894 = vpop.f32.mrb[0].mxu0
    %v2895 = vadd.f32 %v2791, %v2894
    %2896 = vmatprep.mubr.f32.mxu0 0.0
    %v2897 = vand.u32 %v932, 4294901760
    %v2898 = vsub.f32 %v932, %v2897
    %v2899 = vand.u32 %v2898, 4294901760
    %2900 = vmatmul.mubr.f32.gmra.mrb[0].mxu0 %v2899
    %v2901 = vpop.f32.mrb[0].mxu0
    %v2902 = vadd.f32 %v2797, %v2901
    %v2903 = vpop.f32.mrb[0].mxu0
    %v2904 = vadd.f32 %v2799, %v2903
    %2905 = vmatprep.mubr.f32.mxu0 0.0
    %v2906 = vand.u32 %v935, 4294901760
    %v2907 = vsub.f32 %v935, %v2906
    %v2908 = vand.u32 %v2907, 4294901760
    %2909 = vmatmul.mubr.f32.gmra.mrb[0].mxu0 %v2908
    %v2910 = vpop.f32.mrb[0].mxu0
    %v2911 = vadd.f32 %v2805, %v2910
    %v2912 = vpop.f32.mrb[0].mxu0
    %v2913 = vadd.f32 %v2807, %v2912
    %2914 = vdwg.mxu0
    %v2915 = vand.u32 %v799, 4294901760
    %v2916 = vsub.f32 %v799, %v2915
    %v2917 = vand.u32 %v2916, 4294901760
    %2918 = vmatprep.subr.mxu0 %v2917
    %v2919 = vand.u32 %v798, 4294901760
    %v2920 = vsub.f32 %v798, %v2919
    %v2921 = vand.u32 %v2920, 4294901760
    %2922 = vmatpush1.msra.mxu0 %v2921
    %v2923 = vand.u32 %v815, 4294901760
    %v2924 = vsub.f32 %v815, %v2923
    %v2925 = vand.u32 %v2924, 4294901760
    %2926 = vmatprep.subr.mxu0 %v2925
    %v2927 = vand.u32 %v814, 4294901760
    %v2928 = vsub.f32 %v814, %v2927
    %v2929 = vand.u32 %v2928, 4294901760
    %2930 = vmatpush1.msra.mxu0 %v2929
    %v2931 = vand.u32 %v831, 4294901760
    %v2932 = vsub.f32 %v831, %v2931
    %v2933 = vand.u32 %v2932, 4294901760
    %2934 = vmatprep.subr.mxu0 %v2933
    %v2935 = vand.u32 %v830, 4294901760
    %v2936 = vsub.f32 %v830, %v2935
    %v2937 = vand.u32 %v2936, 4294901760
    %2938 = vmatpush1.msra.mxu0 %v2937
    %v2939 = vand.u32 %v847, 4294901760
    %v2940 = vsub.f32 %v847, %v2939
    %v2941 = vand.u32 %v2940, 4294901760
    %2942 = vmatprep.subr.mxu0 %v2941
    %v2943 = vand.u32 %v846, 4294901760
    %v2944 = vsub.f32 %v846, %v2943
    %v2945 = vand.u32 %v2944, 4294901760
    %2946 = vmatpush1.msra.mxu0 %v2945
    %v2947 = vand.u32 %v863, 4294901760
    %v2948 = vsub.f32 %v863, %v2947
    %v2949 = vand.u32 %v2948, 4294901760
    %2950 = vmatprep.subr.mxu0 %v2949
    %v2951 = vand.u32 %v862, 4294901760
    %v2952 = vsub.f32 %v862, %v2951
    %v2953 = vand.u32 %v2952, 4294901760
    %2954 = vmatpush1.msra.mxu0 %v2953
    %v2955 = vand.u32 %v879, 4294901760
    %v2956 = vsub.f32 %v879, %v2955
    %v2957 = vand.u32 %v2956, 4294901760
    %2958 = vmatprep.subr.mxu0 %v2957
    %v2959 = vand.u32 %v878, 4294901760
    %v2960 = vsub.f32 %v878, %v2959
    %v2961 = vand.u32 %v2960, 4294901760
    %2962 = vmatpush1.msra.mxu0 %v2961
    %v2963 = vand.u32 %v954, 4294901760
    %v2964 = vsub.f32 %v954, %v2963
    %v2965 = vand.u32 %v2964, 4294901760
    %2966 = vmatprep.subr.mxu0 %v2965
    %v2967 = vand.u32 %v951, 4294901760
    %v2968 = vsub.f32 %v951, %v2967
    %v2969 = vand.u32 %v2968, 4294901760
    %2970 = vmatpush1.msra.mxu0 %v2969
    %2971 = vmatprep.subr.mxu0 0.0
    %2972 = vmatpush1.msra.mxu0 0.0
    %2973 = vmatprep.subr.mxu0 0.0
    %2974 = vmatpush1.msra.mxu0 0.0
    %2975 = vmatprep.subr.mxu0 0.0
    %2976 = vmatpush1.msra.mxu0 0.0
    %2977 = vmatprep.subr.mxu0 0.0
    %2978 = vmatpush1.msra.mxu0 0.0
    %2979 = vmatprep.subr.mxu0 0.0
    %2980 = vmatpush1.msra.mxu0 0.0
    %2981 = vmatprep.subr.mxu0 0.0
    %2982 = vmatpush1.msra.mxu0 0.0
    %2983 = vmatprep.subr.mxu0 0.0
    %2984 = vmatpush1.msra.mxu0 0.0
    %2985 = vmatprep.subr.mxu0 0.0
    %2986 = vmatpush1.msra.mxu0 0.0
    %2987 = vmatprep.subr.mxu0 0.0
    %2988 = vmatpush1.msra.mxu0 0.0
    %2989 = vmatprep.subr.mxu0 0.0
    %2990 = vmatpush1.msra.mxu0 0.0
    %2991 = vmatprep.subr.mxu0 0.0
    %2992 = vmatpush1.msra.mxu0 0.0
    %2993 = vmatprep.subr.mxu0 0.0
    %2994 = vmatpush1.msra.mxu0 0.0
    %2995 = vmatprep.subr.mxu0 0.0
    %2996 = vmatpush1.msra.mxu0 0.0
    %2997 = vmatprep.subr.mxu0 0.0
    %2998 = vmatpush1.msra.mxu0 0.0
    %2999 = vmatprep.subr.mxu0 0.0
    %3000 = vmatpush1.msra.mxu0 0.0
    %3001 = vmatprep.subr.mxu0 0.0
    %3002 = vmatpush1.msra.mxu0 0.0
    %3003 = vmatprep.subr.mxu0 0.0
    %3004 = vmatpush1.msra.mxu0 0.0
    %3005 = vmatprep.subr.mxu0 0.0
    %3006 = vmatpush1.msra.mxu0 0.0
    %3007 = vmatprep.subr.mxu0 0.0
    %3008 = vmatpush1.msra.mxu0 0.0
    %3009 = vmatprep.subr.mxu0 0.0
    %3010 = vmatpush1.msra.mxu0 0.0
    %3011 = vmatprep.subr.mxu0 0.0
    %3012 = vmatpush1.msra.mxu0 0.0
    %3013 = vmatprep.subr.mxu0 0.0
    %3014 = vmatpush1.msra.mxu0 0.0
    %3015 = vmatprep.subr.mxu0 0.0
    %3016 = vmatpush1.msra.mxu0 0.0
    %3017 = vmatprep.subr.mxu0 0.0
    %3018 = vmatpush1.msra.mxu0 0.0
    %3019 = vmatprep.subr.mxu0 0.0
    %3020 = vmatpush1.msra.mxu0 0.0
    %3021 = vmatprep.mubr.f32.mxu0 0.0
    %v3022 = vand.u32 %v929, 4294901760
    %3023 = vmatmul.mubr.f32.gmra.mrb[0].mxu0 %v3022
    %v3024 = vpop.f32.mrb[0].mxu0
    %v3025 = vadd.f32 %v2893, %v3024
    %v3026 = vpop.f32.mrb[0].mxu0
    %v3027 = vadd.f32 %v2895, %v3026
    %3028 = vmatprep.mubr.f32.mxu0 0.0
    %v3029 = vand.u32 %v932, 4294901760
    %3030 = vmatmul.mubr.f32.gmra.mrb[0].mxu0 %v3029
    %v3031 = vpop.f32.mrb[0].mxu0
    %v3032 = vadd.f32 %v2902, %v3031
    %v3033 = vpop.f32.mrb[0].mxu0
    %v3034 = vadd.f32 %v2904, %v3033
    %3035 = vmatprep.mubr.f32.mxu0 0.0
    %v3036 = vand.u32 %v935, 4294901760
    %3037 = vmatmul.mubr.f32.gmra.mrb[0].mxu0 %v3036
    %v3038 = vpop.f32.mrb[0].mxu0
    %v3039 = vadd.f32 %v2911, %v3038
    %v3040 = vpop.f32.mrb[0].mxu0
    %v3041 = vadd.f32 %v2913, %v3040
    %3042 = vdwg.mxu0
    %v3043 = vand.u32 %v799, 4294901760
    %3044 = vmatprep.subr.mxu0 %v3043
    %v3045 = vand.u32 %v798, 4294901760
    %3046 = vmatpush1.msra.mxu0 %v3045
    %v3047 = vand.u32 %v815, 4294901760
    %3048 = vmatprep.subr.mxu0 %v3047
    %v3049 = vand.u32 %v814, 4294901760
    %3050 = vmatpush1.msra.mxu0 %v3049
    %v3051 = vand.u32 %v831, 4294901760
    %3052 = vmatprep.subr.mxu0 %v3051
    %v3053 = vand.u32 %v830, 4294901760
    %3054 = vmatpush1.msra.mxu0 %v3053
    %v3055 = vand.u32 %v847, 4294901760
    %3056 = vmatprep.subr.mxu0 %v3055
    %v3057 = vand.u32 %v846, 4294901760
    %3058 = vmatpush1.msra.mxu0 %v3057
    %v3059 = vand.u32 %v863, 4294901760
    %3060 = vmatprep.subr.mxu0 %v3059
    %v3061 = vand.u32 %v862, 4294901760
    %3062 = vmatpush1.msra.mxu0 %v3061
    %v3063 = vand.u32 %v879, 4294901760
    %3064 = vmatprep.subr.mxu0 %v3063
    %v3065 = vand.u32 %v878, 4294901760
    %3066 = vmatpush1.msra.mxu0 %v3065
    %v3067 = vand.u32 %v954, 4294901760
    %3068 = vmatprep.subr.mxu0 %v3067
    %v3069 = vand.u32 %v951, 4294901760
    %3070 = vmatpush1.msra.mxu0 %v3069
    %3071 = vmatprep.subr.mxu0 0.0
    %3072 = vmatpush1.msra.mxu0 0.0
    %3073 = vmatprep.subr.mxu0 0.0
    %3074 = vmatpush1.msra.mxu0 0.0
    %3075 = vmatprep.subr.mxu0 0.0
    %3076 = vmatpush1.msra.mxu0 0.0
    %3077 = vmatprep.subr.mxu0 0.0
    %3078 = vmatpush1.msra.mxu0 0.0
    %3079 = vmatprep.subr.mxu0 0.0
    %3080 = vmatpush1.msra.mxu0 0.0
    %3081 = vmatprep.subr.mxu0 0.0
    %3082 = vmatpush1.msra.mxu0 0.0
    %3083 = vmatprep.subr.mxu0 0.0
    %3084 = vmatpush1.msra.mxu0 0.0
    %3085 = vmatprep.subr.mxu0 0.0
    %3086 = vmatpush1.msra.mxu0 0.0
    %3087 = vmatprep.subr.mxu0 0.0
    %3088 = vmatpush1.msra.mxu0 0.0
    %3089 = vmatprep.subr.mxu0 0.0
    %3090 = vmatpush1.msra.mxu0 0.0
    %3091 = vmatprep.subr.mxu0 0.0
    %3092 = vmatpush1.msra.mxu0 0.0
    %3093 = vmatprep.subr.mxu0 0.0
    %3094 = vmatpush1.msra.mxu0 0.0
    %3095 = vmatprep.subr.mxu0 0.0
    %3096 = vmatpush1.msra.mxu0 0.0
    %3097 = vmatprep.subr.mxu0 0.0
    %3098 = vmatpush1.msra.mxu0 0.0
    %3099 = vmatprep.subr.mxu0 0.0
    %3100 = vmatpush1.msra.mxu0 0.0
    %3101 = vmatprep.subr.mxu0 0.0
    %3102 = vmatpush1.msra.mxu0 0.0
    %3103 = vmatprep.subr.mxu0 0.0
    %3104 = vmatpush1.msra.mxu0 0.0
    %3105 = vmatprep.subr.mxu0 0.0
    %3106 = vmatpush1.msra.mxu0 0.0
    %3107 = vmatprep.subr.mxu0 0.0
    %3108 = vmatpush1.msra.mxu0 0.0
    %3109 = vmatprep.subr.mxu0 0.0
    %3110 = vmatpush1.msra.mxu0 0.0
    %3111 = vmatprep.subr.mxu0 0.0
    %3112 = vmatpush1.msra.mxu0 0.0
    %3113 = vmatprep.subr.mxu0 0.0
    %3114 = vmatpush1.msra.mxu0 0.0
    %3115 = vmatprep.subr.mxu0 0.0
    %3116 = vmatpush1.msra.mxu0 0.0
    %3117 = vmatprep.subr.mxu0 0.0
    %3118 = vmatpush1.msra.mxu0 0.0
    %3119 = vmatprep.subr.mxu0 0.0
    %3120 = vmatpush1.msra.mxu0 0.0
    %3121 = vmatprep.mubr.f32.mxu0 0.0
    %v3122 = vand.u32 %v929, 4294901760
    %3123 = vmatmul.mubr.f32.gmra.mrb[0].mxu0 %v3122
    %v3124 = vpop.f32.mrb[0].mxu0
    %v3125 = vadd.f32 %v3025, %v3124
    %v3126 = vpop.f32.mrb[0].mxu0
    %v3127 = vadd.f32 %v3027, %v3126
    %3128 = vmatprep.mubr.f32.mxu0 0.0
    %v3129 = vand.u32 %v932, 4294901760
    %3130 = vmatmul.mubr.f32.gmra.mrb[0].mxu0 %v3129
    %v3131 = vpop.f32.mrb[0].mxu0
    %v3132 = vadd.f32 %v3032, %v3131
    %v3133 = vpop.f32.mrb[0].mxu0
    %v3134 = vadd.f32 %v3034, %v3133
    %3135 = vmatprep.mubr.f32.mxu0 0.0
    %v3136 = vand.u32 %v935, 4294901760
    %3137 = vmatmul.mubr.f32.gmra.mrb[0].mxu0 %v3136
    %v3138 = vpop.f32.mrb[0].mxu0
    %v3139 = vadd.f32 %v3039, %v3138
    %v3140 = vpop.f32.mrb[0].mxu0
    %v3141 = vadd.f32 %v3041, %v3140
    %3142 = vdwg.mxu0
    %v3143 = vand.u32 %v801, 4294901760
    %3144 = vmatprep.subr.mxu0 %v3143
    %v3145 = vand.u32 %v800, 4294901760
    %3146 = vmatpush1.msra.mxu0 %v3145
    %v3147 = vand.u32 %v817, 4294901760
    %3148 = vmatprep.subr.mxu0 %v3147
    %v3149 = vand.u32 %v816, 4294901760
    %3150 = vmatpush1.msra.mxu0 %v3149
    %v3151 = vand.u32 %v833, 4294901760
    %3152 = vmatprep.subr.mxu0 %v3151
    %v3153 = vand.u32 %v832, 4294901760
    %3154 = vmatpush1.msra.mxu0 %v3153
    %v3155 = vand.u32 %v849, 4294901760
    %3156 = vmatprep.subr.mxu0 %v3155
    %v3157 = vand.u32 %v848, 4294901760
    %3158 = vmatpush1.msra.mxu0 %v3157
    %v3159 = vand.u32 %v865, 4294901760
    %3160 = vmatprep.subr.mxu0 %v3159
    %v3161 = vand.u32 %v864, 4294901760
    %3162 = vmatpush1.msra.mxu0 %v3161
    %v3163 = vand.u32 %v881, 4294901760
    %3164 = vmatprep.subr.mxu0 %v3163
    %v3165 = vand.u32 %v880, 4294901760
    %3166 = vmatpush1.msra.mxu0 %v3165
    %v3167 = vand.u32 %v960, 4294901760
    %3168 = vmatprep.subr.mxu0 %v3167
    %v3169 = vand.u32 %v957, 4294901760
    %3170 = vmatpush1.msra.mxu0 %v3169
    %3171 = vmatprep.subr.mxu0 0.0
    %3172 = vmatpush1.msra.mxu0 0.0
    %3173 = vmatprep.subr.mxu0 0.0
    %3174 = vmatpush1.msra.mxu0 0.0
    %3175 = vmatprep.subr.mxu0 0.0
    %3176 = vmatpush1.msra.mxu0 0.0
    %3177 = vmatprep.subr.mxu0 0.0
    %3178 = vmatpush1.msra.mxu0 0.0
    %3179 = vmatprep.subr.mxu0 0.0
    %3180 = vmatpush1.msra.mxu0 0.0
    %3181 = vmatprep.subr.mxu0 0.0
    %3182 = vmatpush1.msra.mxu0 0.0
    %3183 = vmatprep.subr.mxu0 0.0
    %3184 = vmatpush1.msra.mxu0 0.0
    %3185 = vmatprep.subr.mxu0 0.0
    %3186 = vmatpush1.msra.mxu0 0.0
    %3187 = vmatprep.subr.mxu0 0.0
    %3188 = vmatpush1.msra.mxu0 0.0
    %3189 = vmatprep.subr.mxu0 0.0
    %3190 = vmatpush1.msra.mxu0 0.0
    %3191 = vmatprep.subr.mxu0 0.0
    %3192 = vmatpush1.msra.mxu0 0.0
    %3193 = vmatprep.subr.mxu0 0.0
    %3194 = vmatpush1.msra.mxu0 0.0
    %3195 = vmatprep.subr.mxu0 0.0
    %3196 = vmatpush1.msra.mxu0 0.0
    %3197 = vmatprep.subr.mxu0 0.0
    %3198 = vmatpush1.msra.mxu0 0.0
    %3199 = vmatprep.subr.mxu0 0.0
    %3200 = vmatpush1.msra.mxu0 0.0
    %3201 = vmatprep.subr.mxu0 0.0
    %3202 = vmatpush1.msra.mxu0 0.0
    %3203 = vmatprep.subr.mxu0 0.0
    %3204 = vmatpush1.msra.mxu0 0.0
    %3205 = vmatprep.subr.mxu0 0.0
    %3206 = vmatpush1.msra.mxu0 0.0
    %3207 = vmatprep.subr.mxu0 0.0
    %3208 = vmatpush1.msra.mxu0 0.0
    %3209 = vmatprep.subr.mxu0 0.0
    %3210 = vmatpush1.msra.mxu0 0.0
    %3211 = vmatprep.subr.mxu0 0.0
    %3212 = vmatpush1.msra.mxu0 0.0
    %3213 = vmatprep.subr.mxu0 0.0
    %3214 = vmatpush1.msra.mxu0 0.0
    %3215 = vmatprep.subr.mxu0 0.0
    %3216 = vmatpush1.msra.mxu0 0.0
    %3217 = vmatprep.subr.mxu0 0.0
    %3218 = vmatpush1.msra.mxu0 0.0
    %3219 = vmatprep.subr.mxu0 0.0
    %3220 = vmatpush1.msra.mxu0 0.0
    %3221 = vmatprep.mubr.f32.mxu0 0.0
    %v3222 = vand.u32 %v929, 4294901760
    %v3223 = vsub.f32 %v929, %v3222
    %v3224 = vand.u32 %v3223, 4294901760
    %v3225 = vsub.f32 %v3223, %v3224
    %v3226 = vand.u32 %v3225, 4294901760
    %3227 = vmatmul.mubr.f32.gmra.mrb[0].mxu0 %v3226
    %v3228 = vpop.f32.mrb[0].mxu0
    %v3229 = vadd.f32 %v915, %v3228
    %v3230 = vpop.f32.mrb[0].mxu0
    %v3231 = vadd.f32 %v915, %v3230
    %3232 = vmatprep.mubr.f32.mxu0 0.0
    %v3233 = vand.u32 %v932, 4294901760
    %v3234 = vsub.f32 %v932, %v3233
    %v3235 = vand.u32 %v3234, 4294901760
    %v3236 = vsub.f32 %v3234, %v3235
    %v3237 = vand.u32 %v3236, 4294901760
    %3238 = vmatmul.mubr.f32.gmra.mrb[0].mxu0 %v3237
    %v3239 = vpop.f32.mrb[0].mxu0
    %v3240 = vadd.f32 %v920, %v3239
    %v3241 = vpop.f32.mrb[0].mxu0
    %v3242 = vadd.f32 %v920, %v3241
    %3243 = vmatprep.mubr.f32.mxu0 0.0
    %v3244 = vand.u32 %v935, 4294901760
    %v3245 = vsub.f32 %v935, %v3244
    %v3246 = vand.u32 %v3245, 4294901760
    %v3247 = vsub.f32 %v3245, %v3246
    %v3248 = vand.u32 %v3247, 4294901760
    %3249 = vmatmul.mubr.f32.gmra.mrb[0].mxu0 %v3248
    %v3250 = vpop.f32.mrb[0].mxu0
    %v3251 = vadd.f32 %v925, %v3250
    %v3252 = vpop.f32.mrb[0].mxu0
    %v3253 = vadd.f32 %v925, %v3252
    %3254 = vdwg.mxu0
    %v3255 = vand.u32 %v801, 4294901760
    %v3256 = vsub.f32 %v801, %v3255
    %v3257 = vand.u32 %v3256, 4294901760
    %v3258 = vsub.f32 %v3256, %v3257
    %v3259 = vand.u32 %v3258, 4294901760
    %3260 = vmatprep.subr.mxu0 %v3259
    %v3261 = vand.u32 %v800, 4294901760
    %v3262 = vsub.f32 %v800, %v3261
    %v3263 = vand.u32 %v3262, 4294901760
    %v3264 = vsub.f32 %v3262, %v3263
    %v3265 = vand.u32 %v3264, 4294901760
    %3266 = vmatpush1.msra.mxu0 %v3265
    %v3267 = vand.u32 %v817, 4294901760
    %v3268 = vsub.f32 %v817, %v3267
    %v3269 = vand.u32 %v3268, 4294901760
    %v3270 = vsub.f32 %v3268, %v3269
    %v3271 = vand.u32 %v3270, 4294901760
    %3272 = vmatprep.subr.mxu0 %v3271
    %v3273 = vand.u32 %v816, 4294901760
    %v3274 = vsub.f32 %v816, %v3273
    %v3275 = vand.u32 %v3274, 4294901760
    %v3276 = vsub.f32 %v3274, %v3275
    %v3277 = vand.u32 %v3276, 4294901760
    %3278 = vmatpush1.msra.mxu0 %v3277
    %v3279 = vand.u32 %v833, 4294901760
    %v3280 = vsub.f32 %v833, %v3279
    %v3281 = vand.u32 %v3280, 4294901760
    %v3282 = vsub.f32 %v3280, %v3281
    %v3283 = vand.u32 %v3282, 4294901760
    %3284 = vmatprep.subr.mxu0 %v3283
    %v3285 = vand.u32 %v832, 4294901760
    %v3286 = vsub.f32 %v832, %v3285
    %v3287 = vand.u32 %v3286, 4294901760
    %v3288 = vsub.f32 %v3286, %v3287
    %v3289 = vand.u32 %v3288, 4294901760
    %3290 = vmatpush1.msra.mxu0 %v3289
    %v3291 = vand.u32 %v849, 4294901760
    %v3292 = vsub.f32 %v849, %v3291
    %v3293 = vand.u32 %v3292, 4294901760
    %v3294 = vsub.f32 %v3292, %v3293
    %v3295 = vand.u32 %v3294, 4294901760
    %3296 = vmatprep.subr.mxu0 %v3295
    %v3297 = vand.u32 %v848, 4294901760
    %v3298 = vsub.f32 %v848, %v3297
    %v3299 = vand.u32 %v3298, 4294901760
    %v3300 = vsub.f32 %v3298, %v3299
    %v3301 = vand.u32 %v3300, 4294901760
    %3302 = vmatpush1.msra.mxu0 %v3301
    %v3303 = vand.u32 %v865, 4294901760
    %v3304 = vsub.f32 %v865, %v3303
    %v3305 = vand.u32 %v3304, 4294901760
    %v3306 = vsub.f32 %v3304, %v3305
    %v3307 = vand.u32 %v3306, 4294901760
    %3308 = vmatprep.subr.mxu0 %v3307
    %v3309 = vand.u32 %v864, 4294901760
    %v3310 = vsub.f32 %v864, %v3309
    %v3311 = vand.u32 %v3310, 4294901760
    %v3312 = vsub.f32 %v3310, %v3311
    %v3313 = vand.u32 %v3312, 4294901760
    %3314 = vmatpush1.msra.mxu0 %v3313
    %v3315 = vand.u32 %v881, 4294901760
    %v3316 = vsub.f32 %v881, %v3315
    %v3317 = vand.u32 %v3316, 4294901760
    %v3318 = vsub.f32 %v3316, %v3317
    %v3319 = vand.u32 %v3318, 4294901760
    %3320 = vmatprep.subr.mxu0 %v3319
    %v3321 = vand.u32 %v880, 4294901760
    %v3322 = vsub.f32 %v880, %v3321
    %v3323 = vand.u32 %v3322, 4294901760
    %v3324 = vsub.f32 %v3322, %v3323
    %v3325 = vand.u32 %v3324, 4294901760
    %3326 = vmatpush1.msra.mxu0 %v3325
    %v3327 = vand.u32 %v960, 4294901760
    %v3328 = vsub.f32 %v960, %v3327
    %v3329 = vand.u32 %v3328, 4294901760
    %v3330 = vsub.f32 %v3328, %v3329
    %v3331 = vand.u32 %v3330, 4294901760
    %3332 = vmatprep.subr.mxu0 %v3331
    %v3333 = vand.u32 %v957, 4294901760
    %v3334 = vsub.f32 %v957, %v3333
    %v3335 = vand.u32 %v3334, 4294901760
    %v3336 = vsub.f32 %v3334, %v3335
    %v3337 = vand.u32 %v3336, 4294901760
    %3338 = vmatpush1.msra.mxu0 %v3337
    %3339 = vmatprep.subr.mxu0 0.0
    %3340 = vmatpush1.msra.mxu0 0.0
    %3341 = vmatprep.subr.mxu0 0.0
    %3342 = vmatpush1.msra.mxu0 0.0
    %3343 = vmatprep.subr.mxu0 0.0
    %3344 = vmatpush1.msra.mxu0 0.0
    %3345 = vmatprep.subr.mxu0 0.0
    %3346 = vmatpush1.msra.mxu0 0.0
    %3347 = vmatprep.subr.mxu0 0.0
    %3348 = vmatpush1.msra.mxu0 0.0
    %3349 = vmatprep.subr.mxu0 0.0
    %3350 = vmatpush1.msra.mxu0 0.0
    %3351 = vmatprep.subr.mxu0 0.0
    %3352 = vmatpush1.msra.mxu0 0.0
    %3353 = vmatprep.subr.mxu0 0.0
    %3354 = vmatpush1.msra.mxu0 0.0
    %3355 = vmatprep.subr.mxu0 0.0
    %3356 = vmatpush1.msra.mxu0 0.0
    %3357 = vmatprep.subr.mxu0 0.0
    %3358 = vmatpush1.msra.mxu0 0.0
    %3359 = vmatprep.subr.mxu0 0.0
    %3360 = vmatpush1.msra.mxu0 0.0
    %3361 = vmatprep.subr.mxu0 0.0
    %3362 = vmatpush1.msra.mxu0 0.0
    %3363 = vmatprep.subr.mxu0 0.0
    %3364 = vmatpush1.msra.mxu0 0.0
    %3365 = vmatprep.subr.mxu0 0.0
    %3366 = vmatpush1.msra.mxu0 0.0
    %3367 = vmatprep.subr.mxu0 0.0
    %3368 = vmatpush1.msra.mxu0 0.0
    %3369 = vmatprep.subr.mxu0 0.0
    %3370 = vmatpush1.msra.mxu0 0.0
    %3371 = vmatprep.subr.mxu0 0.0
    %3372 = vmatpush1.msra.mxu0 0.0
    %3373 = vmatprep.subr.mxu0 0.0
    %3374 = vmatpush1.msra.mxu0 0.0
    %3375 = vmatprep.subr.mxu0 0.0
    %3376 = vmatpush1.msra.mxu0 0.0
    %3377 = vmatprep.subr.mxu0 0.0
    %3378 = vmatpush1.msra.mxu0 0.0
    %3379 = vmatprep.subr.mxu0 0.0
    %3380 = vmatpush1.msra.mxu0 0.0
    %3381 = vmatprep.subr.mxu0 0.0
    %3382 = vmatpush1.msra.mxu0 0.0
    %3383 = vmatprep.subr.mxu0 0.0
    %3384 = vmatpush1.msra.mxu0 0.0
    %3385 = vmatprep.subr.mxu0 0.0
    %3386 = vmatpush1.msra.mxu0 0.0
    %3387 = vmatprep.subr.mxu0 0.0
    %3388 = vmatpush1.msra.mxu0 0.0
    %3389 = vmatprep.mubr.f32.mxu0 0.0
    %v3390 = vand.u32 %v929, 4294901760
    %3391 = vmatmul.mubr.f32.gmra.mrb[0].mxu0 %v3390
    %v3392 = vpop.f32.mrb[0].mxu0
    %v3393 = vadd.f32 %v3229, %v3392
    %v3394 = vpop.f32.mrb[0].mxu0
    %v3395 = vadd.f32 %v3231, %v3394
    %3396 = vmatprep.mubr.f32.mxu0 0.0
    %v3397 = vand.u32 %v932, 4294901760
    %3398 = vmatmul.mubr.f32.gmra.mrb[0].mxu0 %v3397
    %v3399 = vpop.f32.mrb[0].mxu0
    %v3400 = vadd.f32 %v3240, %v3399
    %v3401 = vpop.f32.mrb[0].mxu0
    %v3402 = vadd.f32 %v3242, %v3401
    %3403 = vmatprep.mubr.f32.mxu0 0.0
    %v3404 = vand.u32 %v935, 4294901760
    %3405 = vmatmul.mubr.f32.gmra.mrb[0].mxu0 %v3404
    %v3406 = vpop.f32.mrb[0].mxu0
    %v3407 = vadd.f32 %v3251, %v3406
    %v3408 = vpop.f32.mrb[0].mxu0
    %v3409 = vadd.f32 %v3253, %v3408
    %3410 = vdwg.mxu0
    %v3411 = vand.u32 %v801, 4294901760
    %v3412 = vsub.f32 %v801, %v3411
    %3413 = vmatprep.subr.mxu0 %v3412
    %v3414 = vand.u32 %v800, 4294901760
    %v3415 = vsub.f32 %v800, %v3414
    %3416 = vmatpush1.msra.mxu0 %v3415
    %v3417 = vand.u32 %v817, 4294901760
    %v3418 = vsub.f32 %v817, %v3417
    %3419 = vmatprep.subr.mxu0 %v3418
    %v3420 = vand.u32 %v816, 4294901760
    %v3421 = vsub.f32 %v816, %v3420
    %3422 = vmatpush1.msra.mxu0 %v3421
    %v3423 = vand.u32 %v833, 4294901760
    %v3424 = vsub.f32 %v833, %v3423
    %3425 = vmatprep.subr.mxu0 %v3424
    %v3426 = vand.u32 %v832, 4294901760
    %v3427 = vsub.f32 %v832, %v3426
    %3428 = vmatpush1.msra.mxu0 %v3427
    %v3429 = vand.u32 %v849, 4294901760
    %v3430 = vsub.f32 %v849, %v3429
    %3431 = vmatprep.subr.mxu0 %v3430
    %v3432 = vand.u32 %v848, 4294901760
    %v3433 = vsub.f32 %v848, %v3432
    %3434 = vmatpush1.msra.mxu0 %v3433
    %v3435 = vand.u32 %v865, 4294901760
    %v3436 = vsub.f32 %v865, %v3435
    %3437 = vmatprep.subr.mxu0 %v3436
    %v3438 = vand.u32 %v864, 4294901760
    %v3439 = vsub.f32 %v864, %v3438
    %3440 = vmatpush1.msra.mxu0 %v3439
    %v3441 = vand.u32 %v881, 4294901760
    %v3442 = vsub.f32 %v881, %v3441
    %3443 = vmatprep.subr.mxu0 %v3442
    %v3444 = vand.u32 %v880, 4294901760
    %v3445 = vsub.f32 %v880, %v3444
    %3446 = vmatpush1.msra.mxu0 %v3445
    %v3447 = vand.u32 %v960, 4294901760
    %v3448 = vsub.f32 %v960, %v3447
    %3449 = vmatprep.subr.mxu0 %v3448
    %v3450 = vand.u32 %v957, 4294901760
    %v3451 = vsub.f32 %v957, %v3450
    %3452 = vmatpush1.msra.mxu0 %v3451
    %3453 = vmatprep.subr.mxu0 0.0
    %3454 = vmatpush1.msra.mxu0 0.0
    %3455 = vmatprep.subr.mxu0 0.0
    %3456 = vmatpush1.msra.mxu0 0.0
    %3457 = vmatprep.subr.mxu0 0.0
    %3458 = vmatpush1.msra.mxu0 0.0
    %3459 = vmatprep.subr.mxu0 0.0
    %3460 = vmatpush1.msra.mxu0 0.0
    %3461 = vmatprep.subr.mxu0 0.0
    %3462 = vmatpush1.msra.mxu0 0.0
    %3463 = vmatprep.subr.mxu0 0.0
    %3464 = vmatpush1.msra.mxu0 0.0
    %3465 = vmatprep.subr.mxu0 0.0
    %3466 = vmatpush1.msra.mxu0 0.0
    %3467 = vmatprep.subr.mxu0 0.0
    %3468 = vmatpush1.msra.mxu0 0.0
    %3469 = vmatprep.subr.mxu0 0.0
    %3470 = vmatpush1.msra.mxu0 0.0
    %3471 = vmatprep.subr.mxu0 0.0
    %3472 = vmatpush1.msra.mxu0 0.0
    %3473 = vmatprep.subr.mxu0 0.0
    %3474 = vmatpush1.msra.mxu0 0.0
    %3475 = vmatprep.subr.mxu0 0.0
    %3476 = vmatpush1.msra.mxu0 0.0
    %3477 = vmatprep.subr.mxu0 0.0
    %3478 = vmatpush1.msra.mxu0 0.0
    %3479 = vmatprep.subr.mxu0 0.0
    %3480 = vmatpush1.msra.mxu0 0.0
    %3481 = vmatprep.subr.mxu0 0.0
    %3482 = vmatpush1.msra.mxu0 0.0
    %3483 = vmatprep.subr.mxu0 0.0
    %3484 = vmatpush1.msra.mxu0 0.0
    %3485 = vmatprep.subr.mxu0 0.0
    %3486 = vmatpush1.msra.mxu0 0.0
    %3487 = vmatprep.subr.mxu0 0.0
    %3488 = vmatpush1.msra.mxu0 0.0
    %3489 = vmatprep.subr.mxu0 0.0
    %3490 = vmatpush1.msra.mxu0 0.0
    %3491 = vmatprep.subr.mxu0 0.0
    %3492 = vmatpush1.msra.mxu0 0.0
    %3493 = vmatprep.subr.mxu0 0.0
    %3494 = vmatpush1.msra.mxu0 0.0
    %3495 = vmatprep.subr.mxu0 0.0
    %3496 = vmatpush1.msra.mxu0 0.0
    %3497 = vmatprep.subr.mxu0 0.0
    %3498 = vmatpush1.msra.mxu0 0.0
    %3499 = vmatprep.subr.mxu0 0.0
    %3500 = vmatpush1.msra.mxu0 0.0
    %3501 = vmatprep.subr.mxu0 0.0
    %3502 = vmatpush1.msra.mxu0 0.0
    %3503 = vmatprep.mubr.f32.mxu0 0.0
    %v3504 = vand.u32 %v929, 4294901760
    %v3505 = vsub.f32 %v929, %v3504
    %3506 = vmatmul.mubr.f32.gmra.mrb[0].mxu0 %v3505
    %v3507 = vpop.f32.mrb[0].mxu0
    %v3508 = vadd.f32 %v3393, %v3507
    %v3509 = vpop.f32.mrb[0].mxu0
    %v3510 = vadd.f32 %v3395, %v3509
    %3511 = vmatprep.mubr.f32.mxu0 0.0
    %v3512 = vand.u32 %v932, 4294901760
    %v3513 = vsub.f32 %v932, %v3512
    %3514 = vmatmul.mubr.f32.gmra.mrb[0].mxu0 %v3513
    %v3515 = vpop.f32.mrb[0].mxu0
    %v3516 = vadd.f32 %v3400, %v3515
    %v3517 = vpop.f32.mrb[0].mxu0
    %v3518 = vadd.f32 %v3402, %v3517
    %3519 = vmatprep.mubr.f32.mxu0 0.0
    %v3520 = vand.u32 %v935, 4294901760
    %v3521 = vsub.f32 %v935, %v3520
    %3522 = vmatmul.mubr.f32.gmra.mrb[0].mxu0 %v3521
    %v3523 = vpop.f32.mrb[0].mxu0
    %v3524 = vadd.f32 %v3407, %v3523
    %v3525 = vpop.f32.mrb[0].mxu0
    %v3526 = vadd.f32 %v3409, %v3525
    %3527 = vdwg.mxu0
    %v3528 = vand.u32 %v801, 4294901760
    %3529 = vmatprep.subr.mxu0 %v3528
    %v3530 = vand.u32 %v800, 4294901760
    %3531 = vmatpush1.msra.mxu0 %v3530
    %v3532 = vand.u32 %v817, 4294901760
    %3533 = vmatprep.subr.mxu0 %v3532
    %v3534 = vand.u32 %v816, 4294901760
    %3535 = vmatpush1.msra.mxu0 %v3534
    %v3536 = vand.u32 %v833, 4294901760
    %3537 = vmatprep.subr.mxu0 %v3536
    %v3538 = vand.u32 %v832, 4294901760
    %3539 = vmatpush1.msra.mxu0 %v3538
    %v3540 = vand.u32 %v849, 4294901760
    %3541 = vmatprep.subr.mxu0 %v3540
    %v3542 = vand.u32 %v848, 4294901760
    %3543 = vmatpush1.msra.mxu0 %v3542
    %v3544 = vand.u32 %v865, 4294901760
    %3545 = vmatprep.subr.mxu0 %v3544
    %v3546 = vand.u32 %v864, 4294901760
    %3547 = vmatpush1.msra.mxu0 %v3546
    %v3548 = vand.u32 %v881, 4294901760
    %3549 = vmatprep.subr.mxu0 %v3548
    %v3550 = vand.u32 %v880, 4294901760
    %3551 = vmatpush1.msra.mxu0 %v3550
    %v3552 = vand.u32 %v960, 4294901760
    %3553 = vmatprep.subr.mxu0 %v3552
    %v3554 = vand.u32 %v957, 4294901760
    %3555 = vmatpush1.msra.mxu0 %v3554
    %3556 = vmatprep.subr.mxu0 0.0
    %3557 = vmatpush1.msra.mxu0 0.0
    %3558 = vmatprep.subr.mxu0 0.0
    %3559 = vmatpush1.msra.mxu0 0.0
    %3560 = vmatprep.subr.mxu0 0.0
    %3561 = vmatpush1.msra.mxu0 0.0
    %3562 = vmatprep.subr.mxu0 0.0
    %3563 = vmatpush1.msra.mxu0 0.0
    %3564 = vmatprep.subr.mxu0 0.0
    %3565 = vmatpush1.msra.mxu0 0.0
    %3566 = vmatprep.subr.mxu0 0.0
    %3567 = vmatpush1.msra.mxu0 0.0
    %3568 = vmatprep.subr.mxu0 0.0
    %3569 = vmatpush1.msra.mxu0 0.0
    %3570 = vmatprep.subr.mxu0 0.0
    %3571 = vmatpush1.msra.mxu0 0.0
    %3572 = vmatprep.subr.mxu0 0.0
    %3573 = vmatpush1.msra.mxu0 0.0
    %3574 = vmatprep.subr.mxu0 0.0
    %3575 = vmatpush1.msra.mxu0 0.0
    %3576 = vmatprep.subr.mxu0 0.0
    %3577 = vmatpush1.msra.mxu0 0.0
    %3578 = vmatprep.subr.mxu0 0.0
    %3579 = vmatpush1.msra.mxu0 0.0
    %3580 = vmatprep.subr.mxu0 0.0
    %3581 = vmatpush1.msra.mxu0 0.0
    %3582 = vmatprep.subr.mxu0 0.0
    %3583 = vmatpush1.msra.mxu0 0.0
    %3584 = vmatprep.subr.mxu0 0.0
    %3585 = vmatpush1.msra.mxu0 0.0
    %3586 = vmatprep.subr.mxu0 0.0
    %3587 = vmatpush1.msra.mxu0 0.0
    %3588 = vmatprep.subr.mxu0 0.0
    %3589 = vmatpush1.msra.mxu0 0.0
    %3590 = vmatprep.subr.mxu0 0.0
    %3591 = vmatpush1.msra.mxu0 0.0
    %3592 = vmatprep.subr.mxu0 0.0
    %3593 = vmatpush1.msra.mxu0 0.0
    %3594 = vmatprep.subr.mxu0 0.0
    %3595 = vmatpush1.msra.mxu0 0.0
    %3596 = vmatprep.subr.mxu0 0.0
    %3597 = vmatpush1.msra.mxu0 0.0
    %3598 = vmatprep.subr.mxu0 0.0
    %3599 = vmatpush1.msra.mxu0 0.0
    %3600 = vmatprep.subr.mxu0 0.0
    %3601 = vmatpush1.msra.mxu0 0.0
    %3602 = vmatprep.subr.mxu0 0.0
    %3603 = vmatpush1.msra.mxu0 0.0
    %3604 = vmatprep.subr.mxu0 0.0
    %3605 = vmatpush1.msra.mxu0 0.0
    %3606 = vmatprep.mubr.f32.mxu0 0.0
    %v3607 = vand.u32 %v929, 4294901760
    %v3608 = vsub.f32 %v929, %v3607
    %v3609 = vand.u32 %v3608, 4294901760
    %3610 = vmatmul.mubr.f32.gmra.mrb[0].mxu0 %v3609
    %v3611 = vpop.f32.mrb[0].mxu0
    %v3612 = vadd.f32 %v3508, %v3611
    %v3613 = vpop.f32.mrb[0].mxu0
    %v3614 = vadd.f32 %v3510, %v3613
    %3615 = vmatprep.mubr.f32.mxu0 0.0
    %v3616 = vand.u32 %v932, 4294901760
    %v3617 = vsub.f32 %v932, %v3616
    %v3618 = vand.u32 %v3617, 4294901760
    %3619 = vmatmul.mubr.f32.gmra.mrb[0].mxu0 %v3618
    %v3620 = vpop.f32.mrb[0].mxu0
    %v3621 = vadd.f32 %v3516, %v3620
    %v3622 = vpop.f32.mrb[0].mxu0
    %v3623 = vadd.f32 %v3518, %v3622
    %3624 = vmatprep.mubr.f32.mxu0 0.0
    %v3625 = vand.u32 %v935, 4294901760
    %v3626 = vsub.f32 %v935, %v3625
    %v3627 = vand.u32 %v3626, 4294901760
    %3628 = vmatmul.mubr.f32.gmra.mrb[0].mxu0 %v3627
    %v3629 = vpop.f32.mrb[0].mxu0
    %v3630 = vadd.f32 %v3524, %v3629
    %v3631 = vpop.f32.mrb[0].mxu0
    %v3632 = vadd.f32 %v3526, %v3631
    %3633 = vdwg.mxu0
    %v3634 = vand.u32 %v801, 4294901760
    %v3635 = vsub.f32 %v801, %v3634
    %v3636 = vand.u32 %v3635, 4294901760
    %3637 = vmatprep.subr.mxu0 %v3636
    %v3638 = vand.u32 %v800, 4294901760
    %v3639 = vsub.f32 %v800, %v3638
    %v3640 = vand.u32 %v3639, 4294901760
    %3641 = vmatpush1.msra.mxu0 %v3640
    %v3642 = vand.u32 %v817, 4294901760
    %v3643 = vsub.f32 %v817, %v3642
    %v3644 = vand.u32 %v3643, 4294901760
    %3645 = vmatprep.subr.mxu0 %v3644
    %v3646 = vand.u32 %v816, 4294901760
    %v3647 = vsub.f32 %v816, %v3646
    %v3648 = vand.u32 %v3647, 4294901760
    %3649 = vmatpush1.msra.mxu0 %v3648
    %v3650 = vand.u32 %v833, 4294901760
    %v3651 = vsub.f32 %v833, %v3650
    %v3652 = vand.u32 %v3651, 4294901760
    %3653 = vmatprep.subr.mxu0 %v3652
    %v3654 = vand.u32 %v832, 4294901760
    %v3655 = vsub.f32 %v832, %v3654
    %v3656 = vand.u32 %v3655, 4294901760
    %3657 = vmatpush1.msra.mxu0 %v3656
    %v3658 = vand.u32 %v849, 4294901760
    %v3659 = vsub.f32 %v849, %v3658
    %v3660 = vand.u32 %v3659, 4294901760
    %3661 = vmatprep.subr.mxu0 %v3660
    %v3662 = vand.u32 %v848, 4294901760
    %v3663 = vsub.f32 %v848, %v3662
    %v3664 = vand.u32 %v3663, 4294901760
    %3665 = vmatpush1.msra.mxu0 %v3664
    %v3666 = vand.u32 %v865, 4294901760
    %v3667 = vsub.f32 %v865, %v3666
    %v3668 = vand.u32 %v3667, 4294901760
    %3669 = vmatprep.subr.mxu0 %v3668
    %v3670 = vand.u32 %v864, 4294901760
    %v3671 = vsub.f32 %v864, %v3670
    %v3672 = vand.u32 %v3671, 4294901760
    %3673 = vmatpush1.msra.mxu0 %v3672
    %v3674 = vand.u32 %v881, 4294901760
    %v3675 = vsub.f32 %v881, %v3674
    %v3676 = vand.u32 %v3675, 4294901760
    %3677 = vmatprep.subr.mxu0 %v3676
    %v3678 = vand.u32 %v880, 4294901760
    %v3679 = vsub.f32 %v880, %v3678
    %v3680 = vand.u32 %v3679, 4294901760
    %3681 = vmatpush1.msra.mxu0 %v3680
    %v3682 = vand.u32 %v960, 4294901760
    %v3683 = vsub.f32 %v960, %v3682
    %v3684 = vand.u32 %v3683, 4294901760
    %3685 = vmatprep.subr.mxu0 %v3684
    %v3686 = vand.u32 %v957, 4294901760
    %v3687 = vsub.f32 %v957, %v3686
    %v3688 = vand.u32 %v3687, 4294901760
    %3689 = vmatpush1.msra.mxu0 %v3688
    %3690 = vmatprep.subr.mxu0 0.0
    %3691 = vmatpush1.msra.mxu0 0.0
    %3692 = vmatprep.subr.mxu0 0.0
    %3693 = vmatpush1.msra.mxu0 0.0
    %3694 = vmatprep.subr.mxu0 0.0
    %3695 = vmatpush1.msra.mxu0 0.0
    %3696 = vmatprep.subr.mxu0 0.0
    %3697 = vmatpush1.msra.mxu0 0.0
    %3698 = vmatprep.subr.mxu0 0.0
    %3699 = vmatpush1.msra.mxu0 0.0
    %3700 = vmatprep.subr.mxu0 0.0
    %3701 = vmatpush1.msra.mxu0 0.0
    %3702 = vmatprep.subr.mxu0 0.0
    %3703 = vmatpush1.msra.mxu0 0.0
    %3704 = vmatprep.subr.mxu0 0.0
    %3705 = vmatpush1.msra.mxu0 0.0
    %3706 = vmatprep.subr.mxu0 0.0
    %3707 = vmatpush1.msra.mxu0 0.0
    %3708 = vmatprep.subr.mxu0 0.0
    %3709 = vmatpush1.msra.mxu0 0.0
    %3710 = vmatprep.subr.mxu0 0.0
    %3711 = vmatpush1.msra.mxu0 0.0
    %3712 = vmatprep.subr.mxu0 0.0
    %3713 = vmatpush1.msra.mxu0 0.0
    %3714 = vmatprep.subr.mxu0 0.0
    %3715 = vmatpush1.msra.mxu0 0.0
    %3716 = vmatprep.subr.mxu0 0.0
    %3717 = vmatpush1.msra.mxu0 0.0
    %3718 = vmatprep.subr.mxu0 0.0
    %3719 = vmatpush1.msra.mxu0 0.0
    %3720 = vmatprep.subr.mxu0 0.0
    %3721 = vmatpush1.msra.mxu0 0.0
    %3722 = vmatprep.subr.mxu0 0.0
    %3723 = vmatpush1.msra.mxu0 0.0
    %3724 = vmatprep.subr.mxu0 0.0
    %3725 = vmatpush1.msra.mxu0 0.0
    %3726 = vmatprep.subr.mxu0 0.0
    %3727 = vmatpush1.msra.mxu0 0.0
    %3728 = vmatprep.subr.mxu0 0.0
    %3729 = vmatpush1.msra.mxu0 0.0
    %3730 = vmatprep.subr.mxu0 0.0
    %3731 = vmatpush1.msra.mxu0 0.0
    %3732 = vmatprep.subr.mxu0 0.0
    %3733 = vmatpush1.msra.mxu0 0.0
    %3734 = vmatprep.subr.mxu0 0.0
    %3735 = vmatpush1.msra.mxu0 0.0
    %3736 = vmatprep.subr.mxu0 0.0
    %3737 = vmatpush1.msra.mxu0 0.0
    %3738 = vmatprep.subr.mxu0 0.0
    %3739 = vmatpush1.msra.mxu0 0.0
    %3740 = vmatprep.mubr.f32.mxu0 0.0
    %v3741 = vand.u32 %v929, 4294901760
    %3742 = vmatmul.mubr.f32.gmra.mrb[0].mxu0 %v3741
    %v3743 = vpop.f32.mrb[0].mxu0
    %v3744 = vadd.f32 %v3612, %v3743
    %v3745 = vpop.f32.mrb[0].mxu0
    %v3746 = vadd.f32 %v3614, %v3745
    %3747 = vmatprep.mubr.f32.mxu0 0.0
    %v3748 = vand.u32 %v932, 4294901760
    %3749 = vmatmul.mubr.f32.gmra.mrb[0].mxu0 %v3748
    %v3750 = vpop.f32.mrb[0].mxu0
    %v3751 = vadd.f32 %v3621, %v3750
    %v3752 = vpop.f32.mrb[0].mxu0
    %v3753 = vadd.f32 %v3623, %v3752
    %3754 = vmatprep.mubr.f32.mxu0 0.0
    %v3755 = vand.u32 %v935, 4294901760
    %3756 = vmatmul.mubr.f32.gmra.mrb[0].mxu0 %v3755
    %v3757 = vpop.f32.mrb[0].mxu0
    %v3758 = vadd.f32 %v3630, %v3757
    %v3759 = vpop.f32.mrb[0].mxu0
    %v3760 = vadd.f32 %v3632, %v3759
    %3761 = vdwg.mxu0
    %v3762 = vand.u32 %v801, 4294901760
    %3763 = vmatprep.subr.mxu0 %v3762
    %v3764 = vand.u32 %v800, 4294901760
    %3765 = vmatpush1.msra.mxu0 %v3764
    %v3766 = vand.u32 %v817, 4294901760
    %3767 = vmatprep.subr.mxu0 %v3766
    %v3768 = vand.u32 %v816, 4294901760
    %3769 = vmatpush1.msra.mxu0 %v3768
    %v3770 = vand.u32 %v833, 4294901760
    %3771 = vmatprep.subr.mxu0 %v3770
    %v3772 = vand.u32 %v832, 4294901760
    %3773 = vmatpush1.msra.mxu0 %v3772
    %v3774 = vand.u32 %v849, 4294901760
    %3775 = vmatprep.subr.mxu0 %v3774
    %v3776 = vand.u32 %v848, 4294901760
    %3777 = vmatpush1.msra.mxu0 %v3776
    %v3778 = vand.u32 %v865, 4294901760
    %3779 = vmatprep.subr.mxu0 %v3778
    %v3780 = vand.u32 %v864, 4294901760
    %3781 = vmatpush1.msra.mxu0 %v3780
    %v3782 = vand.u32 %v881, 4294901760
    %3783 = vmatprep.subr.mxu0 %v3782
    %v3784 = vand.u32 %v880, 4294901760
    %3785 = vmatpush1.msra.mxu0 %v3784
    %v3786 = vand.u32 %v960, 4294901760
    %3787 = vmatprep.subr.mxu0 %v3786
    %v3788 = vand.u32 %v957, 4294901760
    %3789 = vmatpush1.msra.mxu0 %v3788
    %3790 = vmatprep.subr.mxu0 0.0
    %3791 = vmatpush1.msra.mxu0 0.0
    %3792 = vmatprep.subr.mxu0 0.0
    %3793 = vmatpush1.msra.mxu0 0.0
    %3794 = vmatprep.subr.mxu0 0.0
    %3795 = vmatpush1.msra.mxu0 0.0
    %3796 = vmatprep.subr.mxu0 0.0
    %3797 = vmatpush1.msra.mxu0 0.0
    %3798 = vmatprep.subr.mxu0 0.0
    %3799 = vmatpush1.msra.mxu0 0.0
    %3800 = vmatprep.subr.mxu0 0.0
    %3801 = vmatpush1.msra.mxu0 0.0
    %3802 = vmatprep.subr.mxu0 0.0
    %3803 = vmatpush1.msra.mxu0 0.0
    %3804 = vmatprep.subr.mxu0 0.0
    %3805 = vmatpush1.msra.mxu0 0.0
    %3806 = vmatprep.subr.mxu0 0.0
    %3807 = vmatpush1.msra.mxu0 0.0
    %3808 = vmatprep.subr.mxu0 0.0
    %3809 = vmatpush1.msra.mxu0 0.0
    %3810 = vmatprep.subr.mxu0 0.0
    %3811 = vmatpush1.msra.mxu0 0.0
    %3812 = vmatprep.subr.mxu0 0.0
    %3813 = vmatpush1.msra.mxu0 0.0
    %3814 = vmatprep.subr.mxu0 0.0
    %3815 = vmatpush1.msra.mxu0 0.0
    %3816 = vmatprep.subr.mxu0 0.0
    %3817 = vmatpush1.msra.mxu0 0.0
    %3818 = vmatprep.subr.mxu0 0.0
    %3819 = vmatpush1.msra.mxu0 0.0
    %3820 = vmatprep.subr.mxu0 0.0
    %3821 = vmatpush1.msra.mxu0 0.0
    %3822 = vmatprep.subr.mxu0 0.0
    %3823 = vmatpush1.msra.mxu0 0.0
    %3824 = vmatprep.subr.mxu0 0.0
    %3825 = vmatpush1.msra.mxu0 0.0
    %3826 = vmatprep.subr.mxu0 0.0
    %3827 = vmatpush1.msra.mxu0 0.0
    %3828 = vmatprep.subr.mxu0 0.0
    %3829 = vmatpush1.msra.mxu0 0.0
    %3830 = vmatprep.subr.mxu0 0.0
    %3831 = vmatpush1.msra.mxu0 0.0
    %3832 = vmatprep.subr.mxu0 0.0
    %3833 = vmatpush1.msra.mxu0 0.0
    %3834 = vmatprep.subr.mxu0 0.0
    %3835 = vmatpush1.msra.mxu0 0.0
    %3836 = vmatprep.subr.mxu0 0.0
    %3837 = vmatpush1.msra.mxu0 0.0
    %3838 = vmatprep.subr.mxu0 0.0
    %3839 = vmatpush1.msra.mxu0 0.0
    %3840 = vmatprep.mubr.f32.mxu0 0.0
    %v3841 = vand.u32 %v929, 4294901760
    %3842 = vmatmul.mubr.f32.gmra.mrb[0].mxu0 %v3841
    %v3843 = vpop.f32.mrb[0].mxu0
    %v3844 = vadd.f32 %v3744, %v3843
    %v3845 = vpop.f32.mrb[0].mxu0
    %v3846 = vadd.f32 %v3746, %v3845
    %3847 = vmatprep.mubr.f32.mxu0 0.0
    %v3848 = vand.u32 %v932, 4294901760
    %3849 = vmatmul.mubr.f32.gmra.mrb[0].mxu0 %v3848
    %v3850 = vpop.f32.mrb[0].mxu0
    %v3851 = vadd.f32 %v3751, %v3850
    %v3852 = vpop.f32.mrb[0].mxu0
    %v3853 = vadd.f32 %v3753, %v3852
    %3854 = vmatprep.mubr.f32.mxu0 0.0
    %v3855 = vand.u32 %v935, 4294901760
    %3856 = vmatmul.mubr.f32.gmra.mrb[0].mxu0 %v3855
    %v3857 = vpop.f32.mrb[0].mxu0
    %v3858 = vadd.f32 %v3758, %v3857
    %v3859 = vpop.f32.mrb[0].mxu0
    %v3860 = vadd.f32 %v3760, %v3859
    %3861 = vdwg.mxu0
    %v3862 = vand.u32 %v803, 4294901760
    %3863 = vmatprep.subr.mxu0 %v3862
    %v3864 = vand.u32 %v802, 4294901760
    %3865 = vmatpush1.msra.mxu0 %v3864
    %v3866 = vand.u32 %v819, 4294901760
    %3867 = vmatprep.subr.mxu0 %v3866
    %v3868 = vand.u32 %v818, 4294901760
    %3869 = vmatpush1.msra.mxu0 %v3868
    %v3870 = vand.u32 %v835, 4294901760
    %3871 = vmatprep.subr.mxu0 %v3870
    %v3872 = vand.u32 %v834, 4294901760
    %3873 = vmatpush1.msra.mxu0 %v3872
    %v3874 = vand.u32 %v851, 4294901760
    %3875 = vmatprep.subr.mxu0 %v3874
    %v3876 = vand.u32 %v850, 4294901760
    %3877 = vmatpush1.msra.mxu0 %v3876
    %v3878 = vand.u32 %v867, 4294901760
    %3879 = vmatprep.subr.mxu0 %v3878
    %v3880 = vand.u32 %v866, 4294901760
    %3881 = vmatpush1.msra.mxu0 %v3880
    %v3882 = vand.u32 %v883, 4294901760
    %3883 = vmatprep.subr.mxu0 %v3882
    %v3884 = vand.u32 %v882, 4294901760
    %3885 = vmatpush1.msra.mxu0 %v3884
    %v3886 = vand.u32 %v966, 4294901760
    %3887 = vmatprep.subr.mxu0 %v3886
    %v3888 = vand.u32 %v963, 4294901760
    %3889 = vmatpush1.msra.mxu0 %v3888
    %3890 = vmatprep.subr.mxu0 0.0
    %3891 = vmatpush1.msra.mxu0 0.0
    %3892 = vmatprep.subr.mxu0 0.0
    %3893 = vmatpush1.msra.mxu0 0.0
    %3894 = vmatprep.subr.mxu0 0.0
    %3895 = vmatpush1.msra.mxu0 0.0
    %3896 = vmatprep.subr.mxu0 0.0
    %3897 = vmatpush1.msra.mxu0 0.0
    %3898 = vmatprep.subr.mxu0 0.0
    %3899 = vmatpush1.msra.mxu0 0.0
    %3900 = vmatprep.subr.mxu0 0.0
    %3901 = vmatpush1.msra.mxu0 0.0
    %3902 = vmatprep.subr.mxu0 0.0
    %3903 = vmatpush1.msra.mxu0 0.0
    %3904 = vmatprep.subr.mxu0 0.0
    %3905 = vmatpush1.msra.mxu0 0.0
    %3906 = vmatprep.subr.mxu0 0.0
    %3907 = vmatpush1.msra.mxu0 0.0
    %3908 = vmatprep.subr.mxu0 0.0
    %3909 = vmatpush1.msra.mxu0 0.0
    %3910 = vmatprep.subr.mxu0 0.0
    %3911 = vmatpush1.msra.mxu0 0.0
    %3912 = vmatprep.subr.mxu0 0.0
    %3913 = vmatpush1.msra.mxu0 0.0
    %3914 = vmatprep.subr.mxu0 0.0
    %3915 = vmatpush1.msra.mxu0 0.0
    %3916 = vmatprep.subr.mxu0 0.0
    %3917 = vmatpush1.msra.mxu0 0.0
    %3918 = vmatprep.subr.mxu0 0.0
    %3919 = vmatpush1.msra.mxu0 0.0
    %3920 = vmatprep.subr.mxu0 0.0
    %3921 = vmatpush1.msra.mxu0 0.0
    %3922 = vmatprep.subr.mxu0 0.0
    %3923 = vmatpush1.msra.mxu0 0.0
    %3924 = vmatprep.subr.mxu0 0.0
    %3925 = vmatpush1.msra.mxu0 0.0
    %3926 = vmatprep.subr.mxu0 0.0
    %3927 = vmatpush1.msra.mxu0 0.0
    %3928 = vmatprep.subr.mxu0 0.0
    %3929 = vmatpush1.msra.mxu0 0.0
    %3930 = vmatprep.subr.mxu0 0.0
    %3931 = vmatpush1.msra.mxu0 0.0
    %3932 = vmatprep.subr.mxu0 0.0
    %3933 = vmatpush1.msra.mxu0 0.0
    %3934 = vmatprep.subr.mxu0 0.0
    %3935 = vmatpush1.msra.mxu0 0.0
    %3936 = vmatprep.subr.mxu0 0.0
    %3937 = vmatpush1.msra.mxu0 0.0
    %3938 = vmatprep.subr.mxu0 0.0
    %3939 = vmatpush1.msra.mxu0 0.0
    %3940 = vmatprep.mubr.f32.mxu0 0.0
    %v3941 = vand.u32 %v929, 4294901760
    %v3942 = vsub.f32 %v929, %v3941
    %v3943 = vand.u32 %v3942, 4294901760
    %v3944 = vsub.f32 %v3942, %v3943
    %v3945 = vand.u32 %v3944, 4294901760
    %3946 = vmatmul.mubr.f32.gmra.mrb[0].mxu0 %v3945
    %v3947 = vpop.f32.mrb[0].mxu0
    %v3948 = vadd.f32 %v915, %v3947
    %v3949 = vpop.f32.mrb[0].mxu0
    %v3950 = vadd.f32 %v915, %v3949
    %3951 = vmatprep.mubr.f32.mxu0 0.0
    %v3952 = vand.u32 %v932, 4294901760
    %v3953 = vsub.f32 %v932, %v3952
    %v3954 = vand.u32 %v3953, 4294901760
    %v3955 = vsub.f32 %v3953, %v3954
    %v3956 = vand.u32 %v3955, 4294901760
    %3957 = vmatmul.mubr.f32.gmra.mrb[0].mxu0 %v3956
    %v3958 = vpop.f32.mrb[0].mxu0
    %v3959 = vadd.f32 %v920, %v3958
    %v3960 = vpop.f32.mrb[0].mxu0
    %v3961 = vadd.f32 %v920, %v3960
    %3962 = vmatprep.mubr.f32.mxu0 0.0
    %v3963 = vand.u32 %v935, 4294901760
    %v3964 = vsub.f32 %v935, %v3963
    %v3965 = vand.u32 %v3964, 4294901760
    %v3966 = vsub.f32 %v3964, %v3965
    %v3967 = vand.u32 %v3966, 4294901760
    %3968 = vmatmul.mubr.f32.gmra.mrb[0].mxu0 %v3967
    %v3969 = vpop.f32.mrb[0].mxu0
    %v3970 = vadd.f32 %v925, %v3969
    %v3971 = vpop.f32.mrb[0].mxu0
    %v3972 = vadd.f32 %v925, %v3971
    %3973 = vdwg.mxu0
    %v3974 = vand.u32 %v803, 4294901760
    %v3975 = vsub.f32 %v803, %v3974
    %v3976 = vand.u32 %v3975, 4294901760
    %v3977 = vsub.f32 %v3975, %v3976
    %v3978 = vand.u32 %v3977, 4294901760
    %3979 = vmatprep.subr.mxu0 %v3978
    %v3980 = vand.u32 %v802, 4294901760
    %v3981 = vsub.f32 %v802, %v3980
    %v3982 = vand.u32 %v3981, 4294901760
    %v3983 = vsub.f32 %v3981, %v3982
    %v3984 = vand.u32 %v3983, 4294901760
    %3985 = vmatpush1.msra.mxu0 %v3984
    %v3986 = vand.u32 %v819, 4294901760
    %v3987 = vsub.f32 %v819, %v3986
    %v3988 = vand.u32 %v3987, 4294901760
    %v3989 = vsub.f32 %v3987, %v3988
    %v3990 = vand.u32 %v3989, 4294901760
    %3991 = vmatprep.subr.mxu0 %v3990
    %v3992 = vand.u32 %v818, 4294901760
    %v3993 = vsub.f32 %v818, %v3992
    %v3994 = vand.u32 %v3993, 4294901760
    %v3995 = vsub.f32 %v3993, %v3994
    %v3996 = vand.u32 %v3995, 4294901760
    %3997 = vmatpush1.msra.mxu0 %v3996
    %v3998 = vand.u32 %v835, 4294901760
    %v3999 = vsub.f32 %v835, %v3998
    %v4000 = vand.u32 %v3999, 4294901760
    %v4001 = vsub.f32 %v3999, %v4000
    %v4002 = vand.u32 %v4001, 4294901760
    %4003 = vmatprep.subr.mxu0 %v4002
    %v4004 = vand.u32 %v834, 4294901760
    %v4005 = vsub.f32 %v834, %v4004
    %v4006 = vand.u32 %v4005, 4294901760
    %v4007 = vsub.f32 %v4005, %v4006
    %v4008 = vand.u32 %v4007, 4294901760
    %4009 = vmatpush1.msra.mxu0 %v4008
    %v4010 = vand.u32 %v851, 4294901760
    %v4011 = vsub.f32 %v851, %v4010
    %v4012 = vand.u32 %v4011, 4294901760
    %v4013 = vsub.f32 %v4011, %v4012
    %v4014 = vand.u32 %v4013, 4294901760
    %4015 = vmatprep.subr.mxu0 %v4014
    %v4016 = vand.u32 %v850, 4294901760
    %v4017 = vsub.f32 %v850, %v4016
    %v4018 = vand.u32 %v4017, 4294901760
    %v4019 = vsub.f32 %v4017, %v4018
    %v4020 = vand.u32 %v4019, 4294901760
    %4021 = vmatpush1.msra.mxu0 %v4020
    %v4022 = vand.u32 %v867, 4294901760
    %v4023 = vsub.f32 %v867, %v4022
    %v4024 = vand.u32 %v4023, 4294901760
    %v4025 = vsub.f32 %v4023, %v4024
    %v4026 = vand.u32 %v4025, 4294901760
    %4027 = vmatprep.subr.mxu0 %v4026
    %v4028 = vand.u32 %v866, 4294901760
    %v4029 = vsub.f32 %v866, %v4028
    %v4030 = vand.u32 %v4029, 4294901760
    %v4031 = vsub.f32 %v4029, %v4030
    %v4032 = vand.u32 %v4031, 4294901760
    %4033 = vmatpush1.msra.mxu0 %v4032
    %v4034 = vand.u32 %v883, 4294901760
    %v4035 = vsub.f32 %v883, %v4034
    %v4036 = vand.u32 %v4035, 4294901760
    %v4037 = vsub.f32 %v4035, %v4036
    %v4038 = vand.u32 %v4037, 4294901760
    %4039 = vmatprep.subr.mxu0 %v4038
    %v4040 = vand.u32 %v882, 4294901760
    %v4041 = vsub.f32 %v882, %v4040
    %v4042 = vand.u32 %v4041, 4294901760
    %v4043 = vsub.f32 %v4041, %v4042
    %v4044 = vand.u32 %v4043, 4294901760
    %4045 = vmatpush1.msra.mxu0 %v4044
    %v4046 = vand.u32 %v966, 4294901760
    %v4047 = vsub.f32 %v966, %v4046
    %v4048 = vand.u32 %v4047, 4294901760
    %v4049 = vsub.f32 %v4047, %v4048
    %v4050 = vand.u32 %v4049, 4294901760
    %4051 = vmatprep.subr.mxu0 %v4050
    %v4052 = vand.u32 %v963, 4294901760
    %v4053 = vsub.f32 %v963, %v4052
    %v4054 = vand.u32 %v4053, 4294901760
    %v4055 = vsub.f32 %v4053, %v4054
    %v4056 = vand.u32 %v4055, 4294901760
    %4057 = vmatpush1.msra.mxu0 %v4056
    %4058 = vmatprep.subr.mxu0 0.0
    %4059 = vmatpush1.msra.mxu0 0.0
    %4060 = vmatprep.subr.mxu0 0.0
    %4061 = vmatpush1.msra.mxu0 0.0
    %4062 = vmatprep.subr.mxu0 0.0
    %4063 = vmatpush1.msra.mxu0 0.0
    %4064 = vmatprep.subr.mxu0 0.0
    %4065 = vmatpush1.msra.mxu0 0.0
    %4066 = vmatprep.subr.mxu0 0.0
    %4067 = vmatpush1.msra.mxu0 0.0
    %4068 = vmatprep.subr.mxu0 0.0
    %4069 = vmatpush1.msra.mxu0 0.0
    %4070 = vmatprep.subr.mxu0 0.0
    %4071 = vmatpush1.msra.mxu0 0.0
    %4072 = vmatprep.subr.mxu0 0.0
    %4073 = vmatpush1.msra.mxu0 0.0
    %4074 = vmatprep.subr.mxu0 0.0
    %4075 = vmatpush1.msra.mxu0 0.0
    %4076 = vmatprep.subr.mxu0 0.0
    %4077 = vmatpush1.msra.mxu0 0.0
    %4078 = vmatprep.subr.mxu0 0.0
    %4079 = vmatpush1.msra.mxu0 0.0
    %4080 = vmatprep.subr.mxu0 0.0
    %4081 = vmatpush1.msra.mxu0 0.0
    %4082 = vmatprep.subr.mxu0 0.0
    %4083 = vmatpush1.msra.mxu0 0.0
    %4084 = vmatprep.subr.mxu0 0.0
    %4085 = vmatpush1.msra.mxu0 0.0
    %4086 = vmatprep.subr.mxu0 0.0
    %4087 = vmatpush1.msra.mxu0 0.0
    %4088 = vmatprep.subr.mxu0 0.0
    %4089 = vmatpush1.msra.mxu0 0.0
    %4090 = vmatprep.subr.mxu0 0.0
    %4091 = vmatpush1.msra.mxu0 0.0
    %4092 = vmatprep.subr.mxu0 0.0
    %4093 = vmatpush1.msra.mxu0 0.0
    %4094 = vmatprep.subr.mxu0 0.0
    %4095 = vmatpush1.msra.mxu0 0.0
    %4096 = vmatprep.subr.mxu0 0.0
    %4097 = vmatpush1.msra.mxu0 0.0
    %4098 = vmatprep.subr.mxu0 0.0
    %4099 = vmatpush1.msra.mxu0 0.0
    %4100 = vmatprep.subr.mxu0 0.0
    %4101 = vmatpush1.msra.mxu0 0.0
    %4102 = vmatprep.subr.mxu0 0.0
    %4103 = vmatpush1.msra.mxu0 0.0
    %4104 = vmatprep.subr.mxu0 0.0
    %4105 = vmatpush1.msra.mxu0 0.0
    %4106 = vmatprep.subr.mxu0 0.0
    %4107 = vmatpush1.msra.mxu0 0.0
    %4108 = vmatprep.mubr.f32.mxu0 0.0
    %v4109 = vand.u32 %v929, 4294901760
    %4110 = vmatmul.mubr.f32.gmra.mrb[0].mxu0 %v4109
    %v4111 = vpop.f32.mrb[0].mxu0
    %v4112 = vadd.f32 %v3948, %v4111
    %v4113 = vpop.f32.mrb[0].mxu0
    %v4114 = vadd.f32 %v3950, %v4113
    %4115 = vmatprep.mubr.f32.mxu0 0.0
    %v4116 = vand.u32 %v932, 4294901760
    %4117 = vmatmul.mubr.f32.gmra.mrb[0].mxu0 %v4116
    %v4118 = vpop.f32.mrb[0].mxu0
    %v4119 = vadd.f32 %v3959, %v4118
    %v4120 = vpop.f32.mrb[0].mxu0
    %v4121 = vadd.f32 %v3961, %v4120
    %4122 = vmatprep.mubr.f32.mxu0 0.0
    %v4123 = vand.u32 %v935, 4294901760
    %4124 = vmatmul.mubr.f32.gmra.mrb[0].mxu0 %v4123
    %v4125 = vpop.f32.mrb[0].mxu0
    %v4126 = vadd.f32 %v3970, %v4125
    %v4127 = vpop.f32.mrb[0].mxu0
    %v4128 = vadd.f32 %v3972, %v4127
    %4129 = vdwg.mxu0
    %v4130 = vand.u32 %v803, 4294901760
    %v4131 = vsub.f32 %v803, %v4130
    %4132 = vmatprep.subr.mxu0 %v4131
    %v4133 = vand.u32 %v802, 4294901760
    %v4134 = vsub.f32 %v802, %v4133
    %4135 = vmatpush1.msra.mxu0 %v4134
    %v4136 = vand.u32 %v819, 4294901760
    %v4137 = vsub.f32 %v819, %v4136
    %4138 = vmatprep.subr.mxu0 %v4137
    %v4139 = vand.u32 %v818, 4294901760
    %v4140 = vsub.f32 %v818, %v4139
    %4141 = vmatpush1.msra.mxu0 %v4140
    %v4142 = vand.u32 %v835, 4294901760
    %v4143 = vsub.f32 %v835, %v4142
    %4144 = vmatprep.subr.mxu0 %v4143
    %v4145 = vand.u32 %v834, 4294901760
    %v4146 = vsub.f32 %v834, %v4145
    %4147 = vmatpush1.msra.mxu0 %v4146
    %v4148 = vand.u32 %v851, 4294901760
    %v4149 = vsub.f32 %v851, %v4148
    %4150 = vmatprep.subr.mxu0 %v4149
    %v4151 = vand.u32 %v850, 4294901760
    %v4152 = vsub.f32 %v850, %v4151
    %4153 = vmatpush1.msra.mxu0 %v4152
    %v4154 = vand.u32 %v867, 4294901760
    %v4155 = vsub.f32 %v867, %v4154
    %4156 = vmatprep.subr.mxu0 %v4155
    %v4157 = vand.u32 %v866, 4294901760
    %v4158 = vsub.f32 %v866, %v4157
    %4159 = vmatpush1.msra.mxu0 %v4158
    %v4160 = vand.u32 %v883, 4294901760
    %v4161 = vsub.f32 %v883, %v4160
    %4162 = vmatprep.subr.mxu0 %v4161
    %v4163 = vand.u32 %v882, 4294901760
    %v4164 = vsub.f32 %v882, %v4163
    %4165 = vmatpush1.msra.mxu0 %v4164
    %v4166 = vand.u32 %v966, 4294901760
    %v4167 = vsub.f32 %v966, %v4166
    %4168 = vmatprep.subr.mxu0 %v4167
    %v4169 = vand.u32 %v963, 4294901760
    %v4170 = vsub.f32 %v963, %v4169
    %4171 = vmatpush1.msra.mxu0 %v4170
    %4172 = vmatprep.subr.mxu0 0.0
    %4173 = vmatpush1.msra.mxu0 0.0
    %4174 = vmatprep.subr.mxu0 0.0
    %4175 = vmatpush1.msra.mxu0 0.0
    %4176 = vmatprep.subr.mxu0 0.0
    %4177 = vmatpush1.msra.mxu0 0.0
    %4178 = vmatprep.subr.mxu0 0.0
    %4179 = vmatpush1.msra.mxu0 0.0
    %4180 = vmatprep.subr.mxu0 0.0
    %4181 = vmatpush1.msra.mxu0 0.0
    %4182 = vmatprep.subr.mxu0 0.0
    %4183 = vmatpush1.msra.mxu0 0.0
    %4184 = vmatprep.subr.mxu0 0.0
    %4185 = vmatpush1.msra.mxu0 0.0
    %4186 = vmatprep.subr.mxu0 0.0
    %4187 = vmatpush1.msra.mxu0 0.0
    %4188 = vmatprep.subr.mxu0 0.0
    %4189 = vmatpush1.msra.mxu0 0.0
    %4190 = vmatprep.subr.mxu0 0.0
    %4191 = vmatpush1.msra.mxu0 0.0
    %4192 = vmatprep.subr.mxu0 0.0
    %4193 = vmatpush1.msra.mxu0 0.0
    %4194 = vmatprep.subr.mxu0 0.0
    %4195 = vmatpush1.msra.mxu0 0.0
    %4196 = vmatprep.subr.mxu0 0.0
    %4197 = vmatpush1.msra.mxu0 0.0
    %4198 = vmatprep.subr.mxu0 0.0
    %4199 = vmatpush1.msra.mxu0 0.0
    %4200 = vmatprep.subr.mxu0 0.0
    %4201 = vmatpush1.msra.mxu0 0.0
    %4202 = vmatprep.subr.mxu0 0.0
    %4203 = vmatpush1.msra.mxu0 0.0
    %4204 = vmatprep.subr.mxu0 0.0
    %4205 = vmatpush1.msra.mxu0 0.0
    %4206 = vmatprep.subr.mxu0 0.0
    %4207 = vmatpush1.msra.mxu0 0.0
    %4208 = vmatprep.subr.mxu0 0.0
    %4209 = vmatpush1.msra.mxu0 0.0
    %4210 = vmatprep.subr.mxu0 0.0
    %4211 = vmatpush1.msra.mxu0 0.0
    %4212 = vmatprep.subr.mxu0 0.0
    %4213 = vmatpush1.msra.mxu0 0.0
    %4214 = vmatprep.subr.mxu0 0.0
    %4215 = vmatpush1.msra.mxu0 0.0
    %4216 = vmatprep.subr.mxu0 0.0
    %4217 = vmatpush1.msra.mxu0 0.0
    %4218 = vmatprep.subr.mxu0 0.0
    %4219 = vmatpush1.msra.mxu0 0.0
    %4220 = vmatprep.subr.mxu0 0.0
    %4221 = vmatpush1.msra.mxu0 0.0
    %4222 = vmatprep.mubr.f32.mxu0 0.0
    %v4223 = vand.u32 %v929, 4294901760
    %v4224 = vsub.f32 %v929, %v4223
    %4225 = vmatmul.mubr.f32.gmra.mrb[0].mxu0 %v4224
    %v4226 = vpop.f32.mrb[0].mxu0
    %v4227 = vadd.f32 %v4112, %v4226
    %v4228 = vpop.f32.mrb[0].mxu0
    %v4229 = vadd.f32 %v4114, %v4228
    %4230 = vmatprep.mubr.f32.mxu0 0.0
    %v4231 = vand.u32 %v932, 4294901760
    %v4232 = vsub.f32 %v932, %v4231
    %4233 = vmatmul.mubr.f32.gmra.mrb[0].mxu0 %v4232
    %v4234 = vpop.f32.mrb[0].mxu0
    %v4235 = vadd.f32 %v4119, %v4234
    %v4236 = vpop.f32.mrb[0].mxu0
    %v4237 = vadd.f32 %v4121, %v4236
    %4238 = vmatprep.mubr.f32.mxu0 0.0
    %v4239 = vand.u32 %v935, 4294901760
    %v4240 = vsub.f32 %v935, %v4239
    %4241 = vmatmul.mubr.f32.gmra.mrb[0].mxu0 %v4240
    %v4242 = vpop.f32.mrb[0].mxu0
    %v4243 = vadd.f32 %v4126, %v4242
    %v4244 = vpop.f32.mrb[0].mxu0
    %v4245 = vadd.f32 %v4128, %v4244
    %4246 = vdwg.mxu0
    %v4247 = vand.u32 %v803, 4294901760
    %4248 = vmatprep.subr.mxu0 %v4247
    %v4249 = vand.u32 %v802, 4294901760
    %4250 = vmatpush1.msra.mxu0 %v4249
    %v4251 = vand.u32 %v819, 4294901760
    %4252 = vmatprep.subr.mxu0 %v4251
    %v4253 = vand.u32 %v818, 4294901760
    %4254 = vmatpush1.msra.mxu0 %v4253
    %v4255 = vand.u32 %v835, 4294901760
    %4256 = vmatprep.subr.mxu0 %v4255
    %v4257 = vand.u32 %v834, 4294901760
    %4258 = vmatpush1.msra.mxu0 %v4257
    %v4259 = vand.u32 %v851, 4294901760
    %4260 = vmatprep.subr.mxu0 %v4259
    %v4261 = vand.u32 %v850, 4294901760
    %4262 = vmatpush1.msra.mxu0 %v4261
    %v4263 = vand.u32 %v867, 4294901760
    %4264 = vmatprep.subr.mxu0 %v4263
    %v4265 = vand.u32 %v866, 4294901760
    %4266 = vmatpush1.msra.mxu0 %v4265
    %v4267 = vand.u32 %v883, 4294901760
    %4268 = vmatprep.subr.mxu0 %v4267
    %v4269 = vand.u32 %v882, 4294901760
    %4270 = vmatpush1.msra.mxu0 %v4269
    %v4271 = vand.u32 %v966, 4294901760
    %4272 = vmatprep.subr.mxu0 %v4271
    %v4273 = vand.u32 %v963, 4294901760
    %4274 = vmatpush1.msra.mxu0 %v4273
    %4275 = vmatprep.subr.mxu0 0.0
    %4276 = vmatpush1.msra.mxu0 0.0
    %4277 = vmatprep.subr.mxu0 0.0
    %4278 = vmatpush1.msra.mxu0 0.0
    %4279 = vmatprep.subr.mxu0 0.0
    %4280 = vmatpush1.msra.mxu0 0.0
    %4281 = vmatprep.subr.mxu0 0.0
    %4282 = vmatpush1.msra.mxu0 0.0
    %4283 = vmatprep.subr.mxu0 0.0
    %4284 = vmatpush1.msra.mxu0 0.0
    %4285 = vmatprep.subr.mxu0 0.0
    %4286 = vmatpush1.msra.mxu0 0.0
    %4287 = vmatprep.subr.mxu0 0.0
    %4288 = vmatpush1.msra.mxu0 0.0
    %4289 = vmatprep.subr.mxu0 0.0
    %4290 = vmatpush1.msra.mxu0 0.0
    %4291 = vmatprep.subr.mxu0 0.0
    %4292 = vmatpush1.msra.mxu0 0.0
    %4293 = vmatprep.subr.mxu0 0.0
    %4294 = vmatpush1.msra.mxu0 0.0
    %4295 = vmatprep.subr.mxu0 0.0
    %4296 = vmatpush1.msra.mxu0 0.0
    %4297 = vmatprep.subr.mxu0 0.0
    %4298 = vmatpush1.msra.mxu0 0.0
    %4299 = vmatprep.subr.mxu0 0.0
    %4300 = vmatpush1.msra.mxu0 0.0
    %4301 = vmatprep.subr.mxu0 0.0
    %4302 = vmatpush1.msra.mxu0 0.0
    %4303 = vmatprep.subr.mxu0 0.0
    %4304 = vmatpush1.msra.mxu0 0.0
    %4305 = vmatprep.subr.mxu0 0.0
    %4306 = vmatpush1.msra.mxu0 0.0
    %4307 = vmatprep.subr.mxu0 0.0
    %4308 = vmatpush1.msra.mxu0 0.0
    %4309 = vmatprep.subr.mxu0 0.0
    %4310 = vmatpush1.msra.mxu0 0.0
    %4311 = vmatprep.subr.mxu0 0.0
    %4312 = vmatpush1.msra.mxu0 0.0
    %4313 = vmatprep.subr.mxu0 0.0
    %4314 = vmatpush1.msra.mxu0 0.0
    %4315 = vmatprep.subr.mxu0 0.0
    %4316 = vmatpush1.msra.mxu0 0.0
    %4317 = vmatprep.subr.mxu0 0.0
    %4318 = vmatpush1.msra.mxu0 0.0
    %4319 = vmatprep.subr.mxu0 0.0
    %4320 = vmatpush1.msra.mxu0 0.0
    %4321 = vmatprep.subr.mxu0 0.0
    %4322 = vmatpush1.msra.mxu0 0.0
    %4323 = vmatprep.subr.mxu0 0.0
    %4324 = vmatpush1.msra.mxu0 0.0
    %4325 = vmatprep.mubr.f32.mxu0 0.0
    %v4326 = vand.u32 %v929, 4294901760
    %v4327 = vsub.f32 %v929, %v4326
    %v4328 = vand.u32 %v4327, 4294901760
    %4329 = vmatmul.mubr.f32.gmra.mrb[0].mxu0 %v4328
    %v4330 = vpop.f32.mrb[0].mxu0
    %v4331 = vadd.f32 %v4227, %v4330
    %v4332 = vpop.f32.mrb[0].mxu0
    %v4333 = vadd.f32 %v4229, %v4332
    %4334 = vmatprep.mubr.f32.mxu0 0.0
    %v4335 = vand.u32 %v932, 4294901760
    %v4336 = vsub.f32 %v932, %v4335
    %v4337 = vand.u32 %v4336, 4294901760
    %4338 = vmatmul.mubr.f32.gmra.mrb[0].mxu0 %v4337
    %v4339 = vpop.f32.mrb[0].mxu0
    %v4340 = vadd.f32 %v4235, %v4339
    %v4341 = vpop.f32.mrb[0].mxu0
    %v4342 = vadd.f32 %v4237, %v4341
    %4343 = vmatprep.mubr.f32.mxu0 0.0
    %v4344 = vand.u32 %v935, 4294901760
    %v4345 = vsub.f32 %v935, %v4344
    %v4346 = vand.u32 %v4345, 4294901760
    %4347 = vmatmul.mubr.f32.gmra.mrb[0].mxu0 %v4346
    %v4348 = vpop.f32.mrb[0].mxu0
    %v4349 = vadd.f32 %v4243, %v4348
    %v4350 = vpop.f32.mrb[0].mxu0
    %v4351 = vadd.f32 %v4245, %v4350
    %4352 = vdwg.mxu0
    %v4353 = vand.u32 %v803, 4294901760
    %v4354 = vsub.f32 %v803, %v4353
    %v4355 = vand.u32 %v4354, 4294901760
    %4356 = vmatprep.subr.mxu0 %v4355
    %v4357 = vand.u32 %v802, 4294901760
    %v4358 = vsub.f32 %v802, %v4357
    %v4359 = vand.u32 %v4358, 4294901760
    %4360 = vmatpush1.msra.mxu0 %v4359
    %v4361 = vand.u32 %v819, 4294901760
    %v4362 = vsub.f32 %v819, %v4361
    %v4363 = vand.u32 %v4362, 4294901760
    %4364 = vmatprep.subr.mxu0 %v4363
    %v4365 = vand.u32 %v818, 4294901760
    %v4366 = vsub.f32 %v818, %v4365
    %v4367 = vand.u32 %v4366, 4294901760
    %4368 = vmatpush1.msra.mxu0 %v4367
    %v4369 = vand.u32 %v835, 4294901760
    %v4370 = vsub.f32 %v835, %v4369
    %v4371 = vand.u32 %v4370, 4294901760
    %4372 = vmatprep.subr.mxu0 %v4371
    %v4373 = vand.u32 %v834, 4294901760
    %v4374 = vsub.f32 %v834, %v4373
    %v4375 = vand.u32 %v4374, 4294901760
    %4376 = vmatpush1.msra.mxu0 %v4375
    %v4377 = vand.u32 %v851, 4294901760
    %v4378 = vsub.f32 %v851, %v4377
    %v4379 = vand.u32 %v4378, 4294901760
    %4380 = vmatprep.subr.mxu0 %v4379
    %v4381 = vand.u32 %v850, 4294901760
    %v4382 = vsub.f32 %v850, %v4381
    %v4383 = vand.u32 %v4382, 4294901760
    %4384 = vmatpush1.msra.mxu0 %v4383
    %v4385 = vand.u32 %v867, 4294901760
    %v4386 = vsub.f32 %v867, %v4385
    %v4387 = vand.u32 %v4386, 4294901760
    %4388 = vmatprep.subr.mxu0 %v4387
    %v4389 = vand.u32 %v866, 4294901760
    %v4390 = vsub.f32 %v866, %v4389
    %v4391 = vand.u32 %v4390, 4294901760
    %4392 = vmatpush1.msra.mxu0 %v4391
    %v4393 = vand.u32 %v883, 4294901760
    %v4394 = vsub.f32 %v883, %v4393
    %v4395 = vand.u32 %v4394, 4294901760
    %4396 = vmatprep.subr.mxu0 %v4395
    %v4397 = vand.u32 %v882, 4294901760
    %v4398 = vsub.f32 %v882, %v4397
    %v4399 = vand.u32 %v4398, 4294901760
    %4400 = vmatpush1.msra.mxu0 %v4399
    %v4401 = vand.u32 %v966, 4294901760
    %v4402 = vsub.f32 %v966, %v4401
    %v4403 = vand.u32 %v4402, 4294901760
    %4404 = vmatprep.subr.mxu0 %v4403
    %v4405 = vand.u32 %v963, 4294901760
    %v4406 = vsub.f32 %v963, %v4405
    %v4407 = vand.u32 %v4406, 4294901760
    %4408 = vmatpush1.msra.mxu0 %v4407
    %4409 = vmatprep.subr.mxu0 0.0
    %4410 = vmatpush1.msra.mxu0 0.0
    %4411 = vmatprep.subr.mxu0 0.0
    %4412 = vmatpush1.msra.mxu0 0.0
    %4413 = vmatprep.subr.mxu0 0.0
    %4414 = vmatpush1.msra.mxu0 0.0
    %4415 = vmatprep.subr.mxu0 0.0
    %4416 = vmatpush1.msra.mxu0 0.0
    %4417 = vmatprep.subr.mxu0 0.0
    %4418 = vmatpush1.msra.mxu0 0.0
    %4419 = vmatprep.subr.mxu0 0.0
    %4420 = vmatpush1.msra.mxu0 0.0
    %4421 = vmatprep.subr.mxu0 0.0
    %4422 = vmatpush1.msra.mxu0 0.0
    %4423 = vmatprep.subr.mxu0 0.0
    %4424 = vmatpush1.msra.mxu0 0.0
    %4425 = vmatprep.subr.mxu0 0.0
    %4426 = vmatpush1.msra.mxu0 0.0
    %4427 = vmatprep.subr.mxu0 0.0
    %4428 = vmatpush1.msra.mxu0 0.0
    %4429 = vmatprep.subr.mxu0 0.0
    %4430 = vmatpush1.msra.mxu0 0.0
    %4431 = vmatprep.subr.mxu0 0.0
    %4432 = vmatpush1.msra.mxu0 0.0
    %4433 = vmatprep.subr.mxu0 0.0
    %4434 = vmatpush1.msra.mxu0 0.0
    %4435 = vmatprep.subr.mxu0 0.0
    %4436 = vmatpush1.msra.mxu0 0.0
    %4437 = vmatprep.subr.mxu0 0.0
    %4438 = vmatpush1.msra.mxu0 0.0
    %4439 = vmatprep.subr.mxu0 0.0
    %4440 = vmatpush1.msra.mxu0 0.0
    %4441 = vmatprep.subr.mxu0 0.0
    %4442 = vmatpush1.msra.mxu0 0.0
    %4443 = vmatprep.subr.mxu0 0.0
    %4444 = vmatpush1.msra.mxu0 0.0
    %4445 = vmatprep.subr.mxu0 0.0
    %4446 = vmatpush1.msra.mxu0 0.0
    %4447 = vmatprep.subr.mxu0 0.0
    %4448 = vmatpush1.msra.mxu0 0.0
    %4449 = vmatprep.subr.mxu0 0.0
    %4450 = vmatpush1.msra.mxu0 0.0
    %4451 = vmatprep.subr.mxu0 0.0
    %4452 = vmatpush1.msra.mxu0 0.0
    %4453 = vmatprep.subr.mxu0 0.0
    %4454 = vmatpush1.msra.mxu0 0.0
    %4455 = vmatprep.subr.mxu0 0.0
    %4456 = vmatpush1.msra.mxu0 0.0
    %4457 = vmatprep.subr.mxu0 0.0
    %4458 = vmatpush1.msra.mxu0 0.0
    %4459 = vmatprep.mubr.f32.mxu0 0.0
    %v4460 = vand.u32 %v929, 4294901760
    %4461 = vmatmul.mubr.f32.gmra.mrb[0].mxu0 %v4460
    %v4462 = vpop.f32.mrb[0].mxu0
    %v4463 = vadd.f32 %v4331, %v4462
    %v4464 = vpop.f32.mrb[0].mxu0
    %v4465 = vadd.f32 %v4333, %v4464
    %4466 = vmatprep.mubr.f32.mxu0 0.0
    %v4467 = vand.u32 %v932, 4294901760
    %4468 = vmatmul.mubr.f32.gmra.mrb[0].mxu0 %v4467
    %v4469 = vpop.f32.mrb[0].mxu0
    %v4470 = vadd.f32 %v4340, %v4469
    %v4471 = vpop.f32.mrb[0].mxu0
    %v4472 = vadd.f32 %v4342, %v4471
    %4473 = vmatprep.mubr.f32.mxu0 0.0
    %v4474 = vand.u32 %v935, 4294901760
    %4475 = vmatmul.mubr.f32.gmra.mrb[0].mxu0 %v4474
    %v4476 = vpop.f32.mrb[0].mxu0
    %v4477 = vadd.f32 %v4349, %v4476
    %v4478 = vpop.f32.mrb[0].mxu0
    %v4479 = vadd.f32 %v4351, %v4478
    %4480 = vdwg.mxu0
    %v4481 = vand.u32 %v803, 4294901760
    %4482 = vmatprep.subr.mxu0 %v4481
    %v4483 = vand.u32 %v802, 4294901760
    %4484 = vmatpush1.msra.mxu0 %v4483
    %v4485 = vand.u32 %v819, 4294901760
    %4486 = vmatprep.subr.mxu0 %v4485
    %v4487 = vand.u32 %v818, 4294901760
    %4488 = vmatpush1.msra.mxu0 %v4487
    %v4489 = vand.u32 %v835, 4294901760
    %4490 = vmatprep.subr.mxu0 %v4489
    %v4491 = vand.u32 %v834, 4294901760
    %4492 = vmatpush1.msra.mxu0 %v4491
    %v4493 = vand.u32 %v851, 4294901760
    %4494 = vmatprep.subr.mxu0 %v4493
    %v4495 = vand.u32 %v850, 4294901760
    %4496 = vmatpush1.msra.mxu0 %v4495
    %v4497 = vand.u32 %v867, 4294901760
    %4498 = vmatprep.subr.mxu0 %v4497
    %v4499 = vand.u32 %v866, 4294901760
    %4500 = vmatpush1.msra.mxu0 %v4499
    %v4501 = vand.u32 %v883, 4294901760
    %4502 = vmatprep.subr.mxu0 %v4501
    %v4503 = vand.u32 %v882, 4294901760
    %4504 = vmatpush1.msra.mxu0 %v4503
    %v4505 = vand.u32 %v966, 4294901760
    %4506 = vmatprep.subr.mxu0 %v4505
    %v4507 = vand.u32 %v963, 4294901760
    %4508 = vmatpush1.msra.mxu0 %v4507
    %4509 = vmatprep.subr.mxu0 0.0
    %4510 = vmatpush1.msra.mxu0 0.0
    %4511 = vmatprep.subr.mxu0 0.0
    %4512 = vmatpush1.msra.mxu0 0.0
    %4513 = vmatprep.subr.mxu0 0.0
    %4514 = vmatpush1.msra.mxu0 0.0
    %4515 = vmatprep.subr.mxu0 0.0
    %4516 = vmatpush1.msra.mxu0 0.0
    %4517 = vmatprep.subr.mxu0 0.0
    %4518 = vmatpush1.msra.mxu0 0.0
    %4519 = vmatprep.subr.mxu0 0.0
    %4520 = vmatpush1.msra.mxu0 0.0
    %4521 = vmatprep.subr.mxu0 0.0
    %4522 = vmatpush1.msra.mxu0 0.0
    %4523 = vmatprep.subr.mxu0 0.0
    %4524 = vmatpush1.msra.mxu0 0.0
    %4525 = vmatprep.subr.mxu0 0.0
    %4526 = vmatpush1.msra.mxu0 0.0
    %4527 = vmatprep.subr.mxu0 0.0
    %4528 = vmatpush1.msra.mxu0 0.0
    %4529 = vmatprep.subr.mxu0 0.0
    %4530 = vmatpush1.msra.mxu0 0.0
    %4531 = vmatprep.subr.mxu0 0.0
    %4532 = vmatpush1.msra.mxu0 0.0
    %4533 = vmatprep.subr.mxu0 0.0
    %4534 = vmatpush1.msra.mxu0 0.0
    %4535 = vmatprep.subr.mxu0 0.0
    %4536 = vmatpush1.msra.mxu0 0.0
    %4537 = vmatprep.subr.mxu0 0.0
    %4538 = vmatpush1.msra.mxu0 0.0
    %4539 = vmatprep.subr.mxu0 0.0
    %4540 = vmatpush1.msra.mxu0 0.0
    %4541 = vmatprep.subr.mxu0 0.0
    %4542 = vmatpush1.msra.mxu0 0.0
    %4543 = vmatprep.subr.mxu0 0.0
    %4544 = vmatpush1.msra.mxu0 0.0
    %4545 = vmatprep.subr.mxu0 0.0
    %4546 = vmatpush1.msra.mxu0 0.0
    %4547 = vmatprep.subr.mxu0 0.0
    %4548 = vmatpush1.msra.mxu0 0.0
    %4549 = vmatprep.subr.mxu0 0.0
    %4550 = vmatpush1.msra.mxu0 0.0
    %4551 = vmatprep.subr.mxu0 0.0
    %4552 = vmatpush1.msra.mxu0 0.0
    %4553 = vmatprep.subr.mxu0 0.0
    %4554 = vmatpush1.msra.mxu0 0.0
    %4555 = vmatprep.subr.mxu0 0.0
    %4556 = vmatpush1.msra.mxu0 0.0
    %4557 = vmatprep.subr.mxu0 0.0
    %4558 = vmatpush1.msra.mxu0 0.0
    %4559 = vmatprep.mubr.f32.mxu0 0.0
    %v4560 = vand.u32 %v929, 4294901760
    %4561 = vmatmul.mubr.f32.gmra.mrb[0].mxu0 %v4560
    %v4562 = vpop.f32.mrb[0].mxu0
    %v4563 = vadd.f32 %v4463, %v4562
    %v4564 = vpop.f32.mrb[0].mxu0
    %v4565 = vadd.f32 %v4465, %v4564
    %4566 = vmatprep.mubr.f32.mxu0 0.0
    %v4567 = vand.u32 %v932, 4294901760
    %4568 = vmatmul.mubr.f32.gmra.mrb[0].mxu0 %v4567
    %v4569 = vpop.f32.mrb[0].mxu0
    %v4570 = vadd.f32 %v4470, %v4569
    %v4571 = vpop.f32.mrb[0].mxu0
    %v4572 = vadd.f32 %v4472, %v4571
    %4573 = vmatprep.mubr.f32.mxu0 0.0
    %v4574 = vand.u32 %v935, 4294901760
    %4575 = vmatmul.mubr.f32.gmra.mrb[0].mxu0 %v4574
    %v4576 = vpop.f32.mrb[0].mxu0
    %v4577 = vadd.f32 %v4477, %v4576
    %v4578 = vpop.f32.mrb[0].mxu0
    %v4579 = vadd.f32 %v4479, %v4578
    %4580 = vdwg.mxu0
    %v4581 = vand.u32 %v805, 4294901760
    %4582 = vmatprep.subr.mxu0 %v4581
    %v4583 = vand.u32 %v804, 4294901760
    %4584 = vmatpush1.msra.mxu0 %v4583
    %v4585 = vand.u32 %v821, 4294901760
    %4586 = vmatprep.subr.mxu0 %v4585
    %v4587 = vand.u32 %v820, 4294901760
    %4588 = vmatpush1.msra.mxu0 %v4587
    %v4589 = vand.u32 %v837, 4294901760
    %4590 = vmatprep.subr.mxu0 %v4589
    %v4591 = vand.u32 %v836, 4294901760
    %4592 = vmatpush1.msra.mxu0 %v4591
    %v4593 = vand.u32 %v853, 4294901760
    %4594 = vmatprep.subr.mxu0 %v4593
    %v4595 = vand.u32 %v852, 4294901760
    %4596 = vmatpush1.msra.mxu0 %v4595
    %v4597 = vand.u32 %v869, 4294901760
    %4598 = vmatprep.subr.mxu0 %v4597
    %v4599 = vand.u32 %v868, 4294901760
    %4600 = vmatpush1.msra.mxu0 %v4599
    %v4601 = vand.u32 %v885, 4294901760
    %4602 = vmatprep.subr.mxu0 %v4601
    %v4603 = vand.u32 %v884, 4294901760
    %4604 = vmatpush1.msra.mxu0 %v4603
    %v4605 = vand.u32 %v972, 4294901760
    %4606 = vmatprep.subr.mxu0 %v4605
    %v4607 = vand.u32 %v969, 4294901760
    %4608 = vmatpush1.msra.mxu0 %v4607
    %4609 = vmatprep.subr.mxu0 0.0
    %4610 = vmatpush1.msra.mxu0 0.0
    %4611 = vmatprep.subr.mxu0 0.0
    %4612 = vmatpush1.msra.mxu0 0.0
    %4613 = vmatprep.subr.mxu0 0.0
    %4614 = vmatpush1.msra.mxu0 0.0
    %4615 = vmatprep.subr.mxu0 0.0
    %4616 = vmatpush1.msra.mxu0 0.0
    %4617 = vmatprep.subr.mxu0 0.0
    %4618 = vmatpush1.msra.mxu0 0.0
    %4619 = vmatprep.subr.mxu0 0.0
    %4620 = vmatpush1.msra.mxu0 0.0
    %4621 = vmatprep.subr.mxu0 0.0
    %4622 = vmatpush1.msra.mxu0 0.0
    %4623 = vmatprep.subr.mxu0 0.0
    %4624 = vmatpush1.msra.mxu0 0.0
    %4625 = vmatprep.subr.mxu0 0.0
    %4626 = vmatpush1.msra.mxu0 0.0
    %4627 = vmatprep.subr.mxu0 0.0
    %4628 = vmatpush1.msra.mxu0 0.0
    %4629 = vmatprep.subr.mxu0 0.0
    %4630 = vmatpush1.msra.mxu0 0.0
    %4631 = vmatprep.subr.mxu0 0.0
    %4632 = vmatpush1.msra.mxu0 0.0
    %4633 = vmatprep.subr.mxu0 0.0
    %4634 = vmatpush1.msra.mxu0 0.0
    %4635 = vmatprep.subr.mxu0 0.0
    %4636 = vmatpush1.msra.mxu0 0.0
    %4637 = vmatprep.subr.mxu0 0.0
    %4638 = vmatpush1.msra.mxu0 0.0
    %4639 = vmatprep.subr.mxu0 0.0
    %4640 = vmatpush1.msra.mxu0 0.0
    %4641 = vmatprep.subr.mxu0 0.0
    %4642 = vmatpush1.msra.mxu0 0.0
    %4643 = vmatprep.subr.mxu0 0.0
    %4644 = vmatpush1.msra.mxu0 0.0
    %4645 = vmatprep.subr.mxu0 0.0
    %4646 = vmatpush1.msra.mxu0 0.0
    %4647 = vmatprep.subr.mxu0 0.0
    %4648 = vmatpush1.msra.mxu0 0.0
    %4649 = vmatprep.subr.mxu0 0.0
    %4650 = vmatpush1.msra.mxu0 0.0
    %4651 = vmatprep.subr.mxu0 0.0
    %4652 = vmatpush1.msra.mxu0 0.0
    %4653 = vmatprep.subr.mxu0 0.0
    %4654 = vmatpush1.msra.mxu0 0.0
    %4655 = vmatprep.subr.mxu0 0.0
    %4656 = vmatpush1.msra.mxu0 0.0
    %4657 = vmatprep.subr.mxu0 0.0
    %4658 = vmatpush1.msra.mxu0 0.0
    %4659 = vmatprep.mubr.f32.mxu0 0.0
    %v4660 = vand.u32 %v929, 4294901760
    %v4661 = vsub.f32 %v929, %v4660
    %v4662 = vand.u32 %v4661, 4294901760
    %v4663 = vsub.f32 %v4661, %v4662
    %v4664 = vand.u32 %v4663, 4294901760
    %4665 = vmatmul.mubr.f32.gmra.mrb[0].mxu0 %v4664
    %v4666 = vpop.f32.mrb[0].mxu0
    %v4667 = vadd.f32 %v915, %v4666
    %v4668 = vpop.f32.mrb[0].mxu0
    %v4669 = vadd.f32 %v915, %v4668
    %4670 = vmatprep.mubr.f32.mxu0 0.0
    %v4671 = vand.u32 %v932, 4294901760
    %v4672 = vsub.f32 %v932, %v4671
    %v4673 = vand.u32 %v4672, 4294901760
    %v4674 = vsub.f32 %v4672, %v4673
    %v4675 = vand.u32 %v4674, 4294901760
    %4676 = vmatmul.mubr.f32.gmra.mrb[0].mxu0 %v4675
    %v4677 = vpop.f32.mrb[0].mxu0
    %v4678 = vadd.f32 %v920, %v4677
    %v4679 = vpop.f32.mrb[0].mxu0
    %v4680 = vadd.f32 %v920, %v4679
    %4681 = vmatprep.mubr.f32.mxu0 0.0
    %v4682 = vand.u32 %v935, 4294901760
    %v4683 = vsub.f32 %v935, %v4682
    %v4684 = vand.u32 %v4683, 4294901760
    %v4685 = vsub.f32 %v4683, %v4684
    %v4686 = vand.u32 %v4685, 4294901760
    %4687 = vmatmul.mubr.f32.gmra.mrb[0].mxu0 %v4686
    %v4688 = vpop.f32.mrb[0].mxu0
    %v4689 = vadd.f32 %v925, %v4688
    %v4690 = vpop.f32.mrb[0].mxu0
    %v4691 = vadd.f32 %v925, %v4690
    %4692 = vdwg.mxu0
    %v4693 = vand.u32 %v805, 4294901760
    %v4694 = vsub.f32 %v805, %v4693
    %v4695 = vand.u32 %v4694, 4294901760
    %v4696 = vsub.f32 %v4694, %v4695
    %v4697 = vand.u32 %v4696, 4294901760
    %4698 = vmatprep.subr.mxu0 %v4697
    %v4699 = vand.u32 %v804, 4294901760
    %v4700 = vsub.f32 %v804, %v4699
    %v4701 = vand.u32 %v4700, 4294901760
    %v4702 = vsub.f32 %v4700, %v4701
    %v4703 = vand.u32 %v4702, 4294901760
    %4704 = vmatpush1.msra.mxu0 %v4703
    %v4705 = vand.u32 %v821, 4294901760
    %v4706 = vsub.f32 %v821, %v4705
    %v4707 = vand.u32 %v4706, 4294901760
    %v4708 = vsub.f32 %v4706, %v4707
    %v4709 = vand.u32 %v4708, 4294901760
    %4710 = vmatprep.subr.mxu0 %v4709
    %v4711 = vand.u32 %v820, 4294901760
    %v4712 = vsub.f32 %v820, %v4711
    %v4713 = vand.u32 %v4712, 4294901760
    %v4714 = vsub.f32 %v4712, %v4713
    %v4715 = vand.u32 %v4714, 4294901760
    %4716 = vmatpush1.msra.mxu0 %v4715
    %v4717 = vand.u32 %v837, 4294901760
    %v4718 = vsub.f32 %v837, %v4717
    %v4719 = vand.u32 %v4718, 4294901760
    %v4720 = vsub.f32 %v4718, %v4719
    %v4721 = vand.u32 %v4720, 4294901760
    %4722 = vmatprep.subr.mxu0 %v4721
    %v4723 = vand.u32 %v836, 4294901760
    %v4724 = vsub.f32 %v836, %v4723
    %v4725 = vand.u32 %v4724, 4294901760
    %v4726 = vsub.f32 %v4724, %v4725
    %v4727 = vand.u32 %v4726, 4294901760
    %4728 = vmatpush1.msra.mxu0 %v4727
    %v4729 = vand.u32 %v853, 4294901760
    %v4730 = vsub.f32 %v853, %v4729
    %v4731 = vand.u32 %v4730, 4294901760
    %v4732 = vsub.f32 %v4730, %v4731
    %v4733 = vand.u32 %v4732, 4294901760
    %4734 = vmatprep.subr.mxu0 %v4733
    %v4735 = vand.u32 %v852, 4294901760
    %v4736 = vsub.f32 %v852, %v4735
    %v4737 = vand.u32 %v4736, 4294901760
    %v4738 = vsub.f32 %v4736, %v4737
    %v4739 = vand.u32 %v4738, 4294901760
    %4740 = vmatpush1.msra.mxu0 %v4739
    %v4741 = vand.u32 %v869, 4294901760
    %v4742 = vsub.f32 %v869, %v4741
    %v4743 = vand.u32 %v4742, 4294901760
    %v4744 = vsub.f32 %v4742, %v4743
    %v4745 = vand.u32 %v4744, 4294901760
    %4746 = vmatprep.subr.mxu0 %v4745
    %v4747 = vand.u32 %v868, 4294901760
    %v4748 = vsub.f32 %v868, %v4747
    %v4749 = vand.u32 %v4748, 4294901760
    %v4750 = vsub.f32 %v4748, %v4749
    %v4751 = vand.u32 %v4750, 4294901760
    %4752 = vmatpush1.msra.mxu0 %v4751
    %v4753 = vand.u32 %v885, 4294901760
    %v4754 = vsub.f32 %v885, %v4753
    %v4755 = vand.u32 %v4754, 4294901760
    %v4756 = vsub.f32 %v4754, %v4755
    %v4757 = vand.u32 %v4756, 4294901760
    %4758 = vmatprep.subr.mxu0 %v4757
    %v4759 = vand.u32 %v884, 4294901760
    %v4760 = vsub.f32 %v884, %v4759
    %v4761 = vand.u32 %v4760, 4294901760
    %v4762 = vsub.f32 %v4760, %v4761
    %v4763 = vand.u32 %v4762, 4294901760
    %4764 = vmatpush1.msra.mxu0 %v4763
    %v4765 = vand.u32 %v972, 4294901760
    %v4766 = vsub.f32 %v972, %v4765
    %v4767 = vand.u32 %v4766, 4294901760
    %v4768 = vsub.f32 %v4766, %v4767
    %v4769 = vand.u32 %v4768, 4294901760
    %4770 = vmatprep.subr.mxu0 %v4769
    %v4771 = vand.u32 %v969, 4294901760
    %v4772 = vsub.f32 %v969, %v4771
    %v4773 = vand.u32 %v4772, 4294901760
    %v4774 = vsub.f32 %v4772, %v4773
    %v4775 = vand.u32 %v4774, 4294901760
    %4776 = vmatpush1.msra.mxu0 %v4775
    %4777 = vmatprep.subr.mxu0 0.0
    %4778 = vmatpush1.msra.mxu0 0.0
    %4779 = vmatprep.subr.mxu0 0.0
    %4780 = vmatpush1.msra.mxu0 0.0
    %4781 = vmatprep.subr.mxu0 0.0
    %4782 = vmatpush1.msra.mxu0 0.0
    %4783 = vmatprep.subr.mxu0 0.0
    %4784 = vmatpush1.msra.mxu0 0.0
    %4785 = vmatprep.subr.mxu0 0.0
    %4786 = vmatpush1.msra.mxu0 0.0
    %4787 = vmatprep.subr.mxu0 0.0
    %4788 = vmatpush1.msra.mxu0 0.0
    %4789 = vmatprep.subr.mxu0 0.0
    %4790 = vmatpush1.msra.mxu0 0.0
    %4791 = vmatprep.subr.mxu0 0.0
    %4792 = vmatpush1.msra.mxu0 0.0
    %4793 = vmatprep.subr.mxu0 0.0
    %4794 = vmatpush1.msra.mxu0 0.0
    %4795 = vmatprep.subr.mxu0 0.0
    %4796 = vmatpush1.msra.mxu0 0.0
    %4797 = vmatprep.subr.mxu0 0.0
    %4798 = vmatpush1.msra.mxu0 0.0
    %4799 = vmatprep.subr.mxu0 0.0
    %4800 = vmatpush1.msra.mxu0 0.0
    %4801 = vmatprep.subr.mxu0 0.0
    %4802 = vmatpush1.msra.mxu0 0.0
    %4803 = vmatprep.subr.mxu0 0.0
    %4804 = vmatpush1.msra.mxu0 0.0
    %4805 = vmatprep.subr.mxu0 0.0
    %4806 = vmatpush1.msra.mxu0 0.0
    %4807 = vmatprep.subr.mxu0 0.0
    %4808 = vmatpush1.msra.mxu0 0.0
    %4809 = vmatprep.subr.mxu0 0.0
    %4810 = vmatpush1.msra.mxu0 0.0
    %4811 = vmatprep.subr.mxu0 0.0
    %4812 = vmatpush1.msra.mxu0 0.0
    %4813 = vmatprep.subr.mxu0 0.0
    %4814 = vmatpush1.msra.mxu0 0.0
    %4815 = vmatprep.subr.mxu0 0.0
    %4816 = vmatpush1.msra.mxu0 0.0
    %4817 = vmatprep.subr.mxu0 0.0
    %4818 = vmatpush1.msra.mxu0 0.0
    %4819 = vmatprep.subr.mxu0 0.0
    %4820 = vmatpush1.msra.mxu0 0.0
    %4821 = vmatprep.subr.mxu0 0.0
    %4822 = vmatpush1.msra.mxu0 0.0
    %4823 = vmatprep.subr.mxu0 0.0
    %4824 = vmatpush1.msra.mxu0 0.0
    %4825 = vmatprep.subr.mxu0 0.0
    %4826 = vmatpush1.msra.mxu0 0.0
    %4827 = vmatprep.mubr.f32.mxu0 0.0
    %v4828 = vand.u32 %v929, 4294901760
    %4829 = vmatmul.mubr.f32.gmra.mrb[0].mxu0 %v4828
    %v4830 = vpop.f32.mrb[0].mxu0
    %v4831 = vadd.f32 %v4667, %v4830
    %v4832 = vpop.f32.mrb[0].mxu0
    %v4833 = vadd.f32 %v4669, %v4832
    %4834 = vmatprep.mubr.f32.mxu0 0.0
    %v4835 = vand.u32 %v932, 4294901760
    %4836 = vmatmul.mubr.f32.gmra.mrb[0].mxu0 %v4835
    %v4837 = vpop.f32.mrb[0].mxu0
    %v4838 = vadd.f32 %v4678, %v4837
    %v4839 = vpop.f32.mrb[0].mxu0
    %v4840 = vadd.f32 %v4680, %v4839
    %4841 = vmatprep.mubr.f32.mxu0 0.0
    %v4842 = vand.u32 %v935, 4294901760
    %4843 = vmatmul.mubr.f32.gmra.mrb[0].mxu0 %v4842
    %v4844 = vpop.f32.mrb[0].mxu0
    %v4845 = vadd.f32 %v4689, %v4844
    %v4846 = vpop.f32.mrb[0].mxu0
    %v4847 = vadd.f32 %v4691, %v4846
    %4848 = vdwg.mxu0
    %v4849 = vand.u32 %v805, 4294901760
    %v4850 = vsub.f32 %v805, %v4849
    %4851 = vmatprep.subr.mxu0 %v4850
    %v4852 = vand.u32 %v804, 4294901760
    %v4853 = vsub.f32 %v804, %v4852
    %4854 = vmatpush1.msra.mxu0 %v4853
    %v4855 = vand.u32 %v821, 4294901760
    %v4856 = vsub.f32 %v821, %v4855
    %4857 = vmatprep.subr.mxu0 %v4856
    %v4858 = vand.u32 %v820, 4294901760
    %v4859 = vsub.f32 %v820, %v4858
    %4860 = vmatpush1.msra.mxu0 %v4859
    %v4861 = vand.u32 %v837, 4294901760
    %v4862 = vsub.f32 %v837, %v4861
    %4863 = vmatprep.subr.mxu0 %v4862
    %v4864 = vand.u32 %v836, 4294901760
    %v4865 = vsub.f32 %v836, %v4864
    %4866 = vmatpush1.msra.mxu0 %v4865
    %v4867 = vand.u32 %v853, 4294901760
    %v4868 = vsub.f32 %v853, %v4867
    %4869 = vmatprep.subr.mxu0 %v4868
    %v4870 = vand.u32 %v852, 4294901760
    %v4871 = vsub.f32 %v852, %v4870
    %4872 = vmatpush1.msra.mxu0 %v4871
    %v4873 = vand.u32 %v869, 4294901760
    %v4874 = vsub.f32 %v869, %v4873
    %4875 = vmatprep.subr.mxu0 %v4874
    %v4876 = vand.u32 %v868, 4294901760
    %v4877 = vsub.f32 %v868, %v4876
    %4878 = vmatpush1.msra.mxu0 %v4877
    %v4879 = vand.u32 %v885, 4294901760
    %v4880 = vsub.f32 %v885, %v4879
    %4881 = vmatprep.subr.mxu0 %v4880
    %v4882 = vand.u32 %v884, 4294901760
    %v4883 = vsub.f32 %v884, %v4882
    %4884 = vmatpush1.msra.mxu0 %v4883
    %v4885 = vand.u32 %v972, 4294901760
    %v4886 = vsub.f32 %v972, %v4885
    %4887 = vmatprep.subr.mxu0 %v4886
    %v4888 = vand.u32 %v969, 4294901760
    %v4889 = vsub.f32 %v969, %v4888
    %4890 = vmatpush1.msra.mxu0 %v4889
    %4891 = vmatprep.subr.mxu0 0.0
    %4892 = vmatpush1.msra.mxu0 0.0
    %4893 = vmatprep.subr.mxu0 0.0
    %4894 = vmatpush1.msra.mxu0 0.0
    %4895 = vmatprep.subr.mxu0 0.0
    %4896 = vmatpush1.msra.mxu0 0.0
    %4897 = vmatprep.subr.mxu0 0.0
    %4898 = vmatpush1.msra.mxu0 0.0
    %4899 = vmatprep.subr.mxu0 0.0
    %4900 = vmatpush1.msra.mxu0 0.0
    %4901 = vmatprep.subr.mxu0 0.0
    %4902 = vmatpush1.msra.mxu0 0.0
    %4903 = vmatprep.subr.mxu0 0.0
    %4904 = vmatpush1.msra.mxu0 0.0
    %4905 = vmatprep.subr.mxu0 0.0
    %4906 = vmatpush1.msra.mxu0 0.0
    %4907 = vmatprep.subr.mxu0 0.0
    %4908 = vmatpush1.msra.mxu0 0.0
    %4909 = vmatprep.subr.mxu0 0.0
    %4910 = vmatpush1.msra.mxu0 0.0
    %4911 = vmatprep.subr.mxu0 0.0
    %4912 = vmatpush1.msra.mxu0 0.0
    %4913 = vmatprep.subr.mxu0 0.0
    %4914 = vmatpush1.msra.mxu0 0.0
    %4915 = vmatprep.subr.mxu0 0.0
    %4916 = vmatpush1.msra.mxu0 0.0
    %4917 = vmatprep.subr.mxu0 0.0
    %4918 = vmatpush1.msra.mxu0 0.0
    %4919 = vmatprep.subr.mxu0 0.0
    %4920 = vmatpush1.msra.mxu0 0.0
    %4921 = vmatprep.subr.mxu0 0.0
    %4922 = vmatpush1.msra.mxu0 0.0
    %4923 = vmatprep.subr.mxu0 0.0
    %4924 = vmatpush1.msra.mxu0 0.0
    %4925 = vmatprep.subr.mxu0 0.0
    %4926 = vmatpush1.msra.mxu0 0.0
    %4927 = vmatprep.subr.mxu0 0.0
    %4928 = vmatpush1.msra.mxu0 0.0
    %4929 = vmatprep.subr.mxu0 0.0
    %4930 = vmatpush1.msra.mxu0 0.0
    %4931 = vmatprep.subr.mxu0 0.0
    %4932 = vmatpush1.msra.mxu0 0.0
    %4933 = vmatprep.subr.mxu0 0.0
    %4934 = vmatpush1.msra.mxu0 0.0
    %4935 = vmatprep.subr.mxu0 0.0
    %4936 = vmatpush1.msra.mxu0 0.0
    %4937 = vmatprep.subr.mxu0 0.0
    %4938 = vmatpush1.msra.mxu0 0.0
    %4939 = vmatprep.subr.mxu0 0.0
    %4940 = vmatpush1.msra.mxu0 0.0
    %4941 = vmatprep.mubr.f32.mxu0 0.0
    %v4942 = vand.u32 %v929, 4294901760
    %v4943 = vsub.f32 %v929, %v4942
    %4944 = vmatmul.mubr.f32.gmra.mrb[0].mxu0 %v4943
    %v4945 = vpop.f32.mrb[0].mxu0
    %v4946 = vadd.f32 %v4831, %v4945
    %v4947 = vpop.f32.mrb[0].mxu0
    %v4948 = vadd.f32 %v4833, %v4947
    %4949 = vmatprep.mubr.f32.mxu0 0.0
    %v4950 = vand.u32 %v932, 4294901760
    %v4951 = vsub.f32 %v932, %v4950
    %4952 = vmatmul.mubr.f32.gmra.mrb[0].mxu0 %v4951
    %v4953 = vpop.f32.mrb[0].mxu0
    %v4954 = vadd.f32 %v4838, %v4953
    %v4955 = vpop.f32.mrb[0].mxu0
    %v4956 = vadd.f32 %v4840, %v4955
    %4957 = vmatprep.mubr.f32.mxu0 0.0
    %v4958 = vand.u32 %v935, 4294901760
    %v4959 = vsub.f32 %v935, %v4958
    %4960 = vmatmul.mubr.f32.gmra.mrb[0].mxu0 %v4959
    %v4961 = vpop.f32.mrb[0].mxu0
    %v4962 = vadd.f32 %v4845, %v4961
    %v4963 = vpop.f32.mrb[0].mxu0
    %v4964 = vadd.f32 %v4847, %v4963
    %4965 = vdwg.mxu0
    %v4966 = vand.u32 %v805, 4294901760
    %4967 = vmatprep.subr.mxu0 %v4966
    %v4968 = vand.u32 %v804, 4294901760
    %4969 = vmatpush1.msra.mxu0 %v4968
    %v4970 = vand.u32 %v821, 4294901760
    %4971 = vmatprep.subr.mxu0 %v4970
    %v4972 = vand.u32 %v820, 4294901760
    %4973 = vmatpush1.msra.mxu0 %v4972
    %v4974 = vand.u32 %v837, 4294901760
    %4975 = vmatprep.subr.mxu0 %v4974
    %v4976 = vand.u32 %v836, 4294901760
    %4977 = vmatpush1.msra.mxu0 %v4976
    %v4978 = vand.u32 %v853, 4294901760
    %4979 = vmatprep.subr.mxu0 %v4978
    %v4980 = vand.u32 %v852, 4294901760
    %4981 = vmatpush1.msra.mxu0 %v4980
    %v4982 = vand.u32 %v869, 4294901760
    %4983 = vmatprep.subr.mxu0 %v4982
    %v4984 = vand.u32 %v868, 4294901760
    %4985 = vmatpush1.msra.mxu0 %v4984
    %v4986 = vand.u32 %v885, 4294901760
    %4987 = vmatprep.subr.mxu0 %v4986
    %v4988 = vand.u32 %v884, 4294901760
    %4989 = vmatpush1.msra.mxu0 %v4988
    %v4990 = vand.u32 %v972, 4294901760
    %4991 = vmatprep.subr.mxu0 %v4990
    %v4992 = vand.u32 %v969, 4294901760
    %4993 = vmatpush1.msra.mxu0 %v4992
    %4994 = vmatprep.subr.mxu0 0.0
    %4995 = vmatpush1.msra.mxu0 0.0
    %4996 = vmatprep.subr.mxu0 0.0
    %4997 = vmatpush1.msra.mxu0 0.0
    %4998 = vmatprep.subr.mxu0 0.0
    %4999 = vmatpush1.msra.mxu0 0.0
    %5000 = vmatprep.subr.mxu0 0.0
    %5001 = vmatpush1.msra.mxu0 0.0
    %5002 = vmatprep.subr.mxu0 0.0
    %5003 = vmatpush1.msra.mxu0 0.0
    %5004 = vmatprep.subr.mxu0 0.0
    %5005 = vmatpush1.msra.mxu0 0.0
    %5006 = vmatprep.subr.mxu0 0.0
    %5007 = vmatpush1.msra.mxu0 0.0
    %5008 = vmatprep.subr.mxu0 0.0
    %5009 = vmatpush1.msra.mxu0 0.0
    %5010 = vmatprep.subr.mxu0 0.0
    %5011 = vmatpush1.msra.mxu0 0.0
    %5012 = vmatprep.subr.mxu0 0.0
    %5013 = vmatpush1.msra.mxu0 0.0
    %5014 = vmatprep.subr.mxu0 0.0
    %5015 = vmatpush1.msra.mxu0 0.0
    %5016 = vmatprep.subr.mxu0 0.0
    %5017 = vmatpush1.msra.mxu0 0.0
    %5018 = vmatprep.subr.mxu0 0.0
    %5019 = vmatpush1.msra.mxu0 0.0
    %5020 = vmatprep.subr.mxu0 0.0
    %5021 = vmatpush1.msra.mxu0 0.0
    %5022 = vmatprep.subr.mxu0 0.0
    %5023 = vmatpush1.msra.mxu0 0.0
    %5024 = vmatprep.subr.mxu0 0.0
    %5025 = vmatpush1.msra.mxu0 0.0
    %5026 = vmatprep.subr.mxu0 0.0
    %5027 = vmatpush1.msra.mxu0 0.0
    %5028 = vmatprep.subr.mxu0 0.0
    %5029 = vmatpush1.msra.mxu0 0.0
    %5030 = vmatprep.subr.mxu0 0.0
    %5031 = vmatpush1.msra.mxu0 0.0
    %5032 = vmatprep.subr.mxu0 0.0
    %5033 = vmatpush1.msra.mxu0 0.0
    %5034 = vmatprep.subr.mxu0 0.0
    %5035 = vmatpush1.msra.mxu0 0.0
    %5036 = vmatprep.subr.mxu0 0.0
    %5037 = vmatpush1.msra.mxu0 0.0
    %5038 = vmatprep.subr.mxu0 0.0
    %5039 = vmatpush1.msra.mxu0 0.0
    %5040 = vmatprep.subr.mxu0 0.0
    %5041 = vmatpush1.msra.mxu0 0.0
    %5042 = vmatprep.subr.mxu0 0.0
    %5043 = vmatpush1.msra.mxu0 0.0
    %5044 = vmatprep.mubr.f32.mxu0 0.0
    %v5045 = vand.u32 %v929, 4294901760
    %v5046 = vsub.f32 %v929, %v5045
    %v5047 = vand.u32 %v5046, 4294901760
    %5048 = vmatmul.mubr.f32.gmra.mrb[0].mxu0 %v5047
    %v5049 = vpop.f32.mrb[0].mxu0
    %v5050 = vadd.f32 %v4946, %v5049
    %v5051 = vpop.f32.mrb[0].mxu0
    %v5052 = vadd.f32 %v4948, %v5051
    %5053 = vmatprep.mubr.f32.mxu0 0.0
    %v5054 = vand.u32 %v932, 4294901760
    %v5055 = vsub.f32 %v932, %v5054
    %v5056 = vand.u32 %v5055, 4294901760
    %5057 = vmatmul.mubr.f32.gmra.mrb[0].mxu0 %v5056
    %v5058 = vpop.f32.mrb[0].mxu0
    %v5059 = vadd.f32 %v4954, %v5058
    %v5060 = vpop.f32.mrb[0].mxu0
    %v5061 = vadd.f32 %v4956, %v5060
    %5062 = vmatprep.mubr.f32.mxu0 0.0
    %v5063 = vand.u32 %v935, 4294901760
    %v5064 = vsub.f32 %v935, %v5063
    %v5065 = vand.u32 %v5064, 4294901760
    %5066 = vmatmul.mubr.f32.gmra.mrb[0].mxu0 %v5065
    %v5067 = vpop.f32.mrb[0].mxu0
    %v5068 = vadd.f32 %v4962, %v5067
    %v5069 = vpop.f32.mrb[0].mxu0
    %v5070 = vadd.f32 %v4964, %v5069
    %5071 = vdwg.mxu0
    %v5072 = vand.u32 %v805, 4294901760
    %v5073 = vsub.f32 %v805, %v5072
    %v5074 = vand.u32 %v5073, 4294901760
    %5075 = vmatprep.subr.mxu0 %v5074
    %v5076 = vand.u32 %v804, 4294901760
    %v5077 = vsub.f32 %v804, %v5076
    %v5078 = vand.u32 %v5077, 4294901760
    %5079 = vmatpush1.msra.mxu0 %v5078
    %v5080 = vand.u32 %v821, 4294901760
    %v5081 = vsub.f32 %v821, %v5080
    %v5082 = vand.u32 %v5081, 4294901760
    %5083 = vmatprep.subr.mxu0 %v5082
    %v5084 = vand.u32 %v820, 4294901760
    %v5085 = vsub.f32 %v820, %v5084
    %v5086 = vand.u32 %v5085, 4294901760
    %5087 = vmatpush1.msra.mxu0 %v5086
    %v5088 = vand.u32 %v837, 4294901760
    %v5089 = vsub.f32 %v837, %v5088
    %v5090 = vand.u32 %v5089, 4294901760
    %5091 = vmatprep.subr.mxu0 %v5090
    %v5092 = vand.u32 %v836, 4294901760
    %v5093 = vsub.f32 %v836, %v5092
    %v5094 = vand.u32 %v5093, 4294901760
    %5095 = vmatpush1.msra.mxu0 %v5094
    %v5096 = vand.u32 %v853, 4294901760
    %v5097 = vsub.f32 %v853, %v5096
    %v5098 = vand.u32 %v5097, 4294901760
    %5099 = vmatprep.subr.mxu0 %v5098
    %v5100 = vand.u32 %v852, 4294901760
    %v5101 = vsub.f32 %v852, %v5100
    %v5102 = vand.u32 %v5101, 4294901760
    %5103 = vmatpush1.msra.mxu0 %v5102
    %v5104 = vand.u32 %v869, 4294901760
    %v5105 = vsub.f32 %v869, %v5104
    %v5106 = vand.u32 %v5105, 4294901760
    %5107 = vmatprep.subr.mxu0 %v5106
    %v5108 = vand.u32 %v868, 4294901760
    %v5109 = vsub.f32 %v868, %v5108
    %v5110 = vand.u32 %v5109, 4294901760
    %5111 = vmatpush1.msra.mxu0 %v5110
    %v5112 = vand.u32 %v885, 4294901760
    %v5113 = vsub.f32 %v885, %v5112
    %v5114 = vand.u32 %v5113, 4294901760
    %5115 = vmatprep.subr.mxu0 %v5114
    %v5116 = vand.u32 %v884, 4294901760
    %v5117 = vsub.f32 %v884, %v5116
    %v5118 = vand.u32 %v5117, 4294901760
    %5119 = vmatpush1.msra.mxu0 %v5118
    %v5120 = vand.u32 %v972, 4294901760
    %v5121 = vsub.f32 %v972, %v5120
    %v5122 = vand.u32 %v5121, 4294901760
    %5123 = vmatprep.subr.mxu0 %v5122
    %v5124 = vand.u32 %v969, 4294901760
    %v5125 = vsub.f32 %v969, %v5124
    %v5126 = vand.u32 %v5125, 4294901760
    %5127 = vmatpush1.msra.mxu0 %v5126
    %5128 = vmatprep.subr.mxu0 0.0
    %5129 = vmatpush1.msra.mxu0 0.0
    %5130 = vmatprep.subr.mxu0 0.0
    %5131 = vmatpush1.msra.mxu0 0.0
    %5132 = vmatprep.subr.mxu0 0.0
    %5133 = vmatpush1.msra.mxu0 0.0
    %5134 = vmatprep.subr.mxu0 0.0
    %5135 = vmatpush1.msra.mxu0 0.0
    %5136 = vmatprep.subr.mxu0 0.0
    %5137 = vmatpush1.msra.mxu0 0.0
    %5138 = vmatprep.subr.mxu0 0.0
    %5139 = vmatpush1.msra.mxu0 0.0
    %5140 = vmatprep.subr.mxu0 0.0
    %5141 = vmatpush1.msra.mxu0 0.0
    %5142 = vmatprep.subr.mxu0 0.0
    %5143 = vmatpush1.msra.mxu0 0.0
    %5144 = vmatprep.subr.mxu0 0.0
    %5145 = vmatpush1.msra.mxu0 0.0
    %5146 = vmatprep.subr.mxu0 0.0
    %5147 = vmatpush1.msra.mxu0 0.0
    %5148 = vmatprep.subr.mxu0 0.0
    %5149 = vmatpush1.msra.mxu0 0.0
    %5150 = vmatprep.subr.mxu0 0.0
    %5151 = vmatpush1.msra.mxu0 0.0
    %5152 = vmatprep.subr.mxu0 0.0
    %5153 = vmatpush1.msra.mxu0 0.0
    %5154 = vmatprep.subr.mxu0 0.0
    %5155 = vmatpush1.msra.mxu0 0.0
    %5156 = vmatprep.subr.mxu0 0.0
    %5157 = vmatpush1.msra.mxu0 0.0
    %5158 = vmatprep.subr.mxu0 0.0
    %5159 = vmatpush1.msra.mxu0 0.0
    %5160 = vmatprep.subr.mxu0 0.0
    %5161 = vmatpush1.msra.mxu0 0.0
    %5162 = vmatprep.subr.mxu0 0.0
    %5163 = vmatpush1.msra.mxu0 0.0
    %5164 = vmatprep.subr.mxu0 0.0
    %5165 = vmatpush1.msra.mxu0 0.0
    %5166 = vmatprep.subr.mxu0 0.0
    %5167 = vmatpush1.msra.mxu0 0.0
    %5168 = vmatprep.subr.mxu0 0.0
    %5169 = vmatpush1.msra.mxu0 0.0
    %5170 = vmatprep.subr.mxu0 0.0
    %5171 = vmatpush1.msra.mxu0 0.0
    %5172 = vmatprep.subr.mxu0 0.0
    %5173 = vmatpush1.msra.mxu0 0.0
    %5174 = vmatprep.subr.mxu0 0.0
    %5175 = vmatpush1.msra.mxu0 0.0
    %5176 = vmatprep.subr.mxu0 0.0
    %5177 = vmatpush1.msra.mxu0 0.0
    %5178 = vmatprep.mubr.f32.mxu0 0.0
    %v5179 = vand.u32 %v929, 4294901760
    %5180 = vmatmul.mubr.f32.gmra.mrb[0].mxu0 %v5179
    %v5181 = vpop.f32.mrb[0].mxu0
    %v5182 = vadd.f32 %v5050, %v5181
    %v5183 = vpop.f32.mrb[0].mxu0
    %v5184 = vadd.f32 %v5052, %v5183
    %5185 = vmatprep.mubr.f32.mxu0 0.0
    %v5186 = vand.u32 %v932, 4294901760
    %5187 = vmatmul.mubr.f32.gmra.mrb[0].mxu0 %v5186
    %v5188 = vpop.f32.mrb[0].mxu0
    %v5189 = vadd.f32 %v5059, %v5188
    %v5190 = vpop.f32.mrb[0].mxu0
    %v5191 = vadd.f32 %v5061, %v5190
    %5192 = vmatprep.mubr.f32.mxu0 0.0
    %v5193 = vand.u32 %v935, 4294901760
    %5194 = vmatmul.mubr.f32.gmra.mrb[0].mxu0 %v5193
    %v5195 = vpop.f32.mrb[0].mxu0
    %v5196 = vadd.f32 %v5068, %v5195
    %v5197 = vpop.f32.mrb[0].mxu0
    %v5198 = vadd.f32 %v5070, %v5197
    %5199 = vdwg.mxu0
    %v5200 = vand.u32 %v805, 4294901760
    %5201 = vmatprep.subr.mxu0 %v5200
    %v5202 = vand.u32 %v804, 4294901760
    %5203 = vmatpush1.msra.mxu0 %v5202
    %v5204 = vand.u32 %v821, 4294901760
    %5205 = vmatprep.subr.mxu0 %v5204
    %v5206 = vand.u32 %v820, 4294901760
    %5207 = vmatpush1.msra.mxu0 %v5206
    %v5208 = vand.u32 %v837, 4294901760
    %5209 = vmatprep.subr.mxu0 %v5208
    %v5210 = vand.u32 %v836, 4294901760
    %5211 = vmatpush1.msra.mxu0 %v5210
    %v5212 = vand.u32 %v853, 4294901760
    %5213 = vmatprep.subr.mxu0 %v5212
    %v5214 = vand.u32 %v852, 4294901760
    %5215 = vmatpush1.msra.mxu0 %v5214
    %v5216 = vand.u32 %v869, 4294901760
    %5217 = vmatprep.subr.mxu0 %v5216
    %v5218 = vand.u32 %v868, 4294901760
    %5219 = vmatpush1.msra.mxu0 %v5218
    %v5220 = vand.u32 %v885, 4294901760
    %5221 = vmatprep.subr.mxu0 %v5220
    %v5222 = vand.u32 %v884, 4294901760
    %5223 = vmatpush1.msra.mxu0 %v5222
    %v5224 = vand.u32 %v972, 4294901760
    %5225 = vmatprep.subr.mxu0 %v5224
    %v5226 = vand.u32 %v969, 4294901760
    %5227 = vmatpush1.msra.mxu0 %v5226
    %5228 = vmatprep.subr.mxu0 0.0
    %5229 = vmatpush1.msra.mxu0 0.0
    %5230 = vmatprep.subr.mxu0 0.0
    %5231 = vmatpush1.msra.mxu0 0.0
    %5232 = vmatprep.subr.mxu0 0.0
    %5233 = vmatpush1.msra.mxu0 0.0
    %5234 = vmatprep.subr.mxu0 0.0
    %5235 = vmatpush1.msra.mxu0 0.0
    %5236 = vmatprep.subr.mxu0 0.0
    %5237 = vmatpush1.msra.mxu0 0.0
    %5238 = vmatprep.subr.mxu0 0.0
    %5239 = vmatpush1.msra.mxu0 0.0
    %5240 = vmatprep.subr.mxu0 0.0
    %5241 = vmatpush1.msra.mxu0 0.0
    %5242 = vmatprep.subr.mxu0 0.0
    %5243 = vmatpush1.msra.mxu0 0.0
    %5244 = vmatprep.subr.mxu0 0.0
    %5245 = vmatpush1.msra.mxu0 0.0
    %5246 = vmatprep.subr.mxu0 0.0
    %5247 = vmatpush1.msra.mxu0 0.0
    %5248 = vmatprep.subr.mxu0 0.0
    %5249 = vmatpush1.msra.mxu0 0.0
    %5250 = vmatprep.subr.mxu0 0.0
    %5251 = vmatpush1.msra.mxu0 0.0
    %5252 = vmatprep.subr.mxu0 0.0
    %5253 = vmatpush1.msra.mxu0 0.0
    %5254 = vmatprep.subr.mxu0 0.0
    %5255 = vmatpush1.msra.mxu0 0.0
    %5256 = vmatprep.subr.mxu0 0.0
    %5257 = vmatpush1.msra.mxu0 0.0
    %5258 = vmatprep.subr.mxu0 0.0
    %5259 = vmatpush1.msra.mxu0 0.0
    %5260 = vmatprep.subr.mxu0 0.0
    %5261 = vmatpush1.msra.mxu0 0.0
    %5262 = vmatprep.subr.mxu0 0.0
    %5263 = vmatpush1.msra.mxu0 0.0
    %5264 = vmatprep.subr.mxu0 0.0
    %5265 = vmatpush1.msra.mxu0 0.0
    %5266 = vmatprep.subr.mxu0 0.0
    %5267 = vmatpush1.msra.mxu0 0.0
    %5268 = vmatprep.subr.mxu0 0.0
    %5269 = vmatpush1.msra.mxu0 0.0
    %5270 = vmatprep.subr.mxu0 0.0
    %5271 = vmatpush1.msra.mxu0 0.0
    %5272 = vmatprep.subr.mxu0 0.0
    %5273 = vmatpush1.msra.mxu0 0.0
    %5274 = vmatprep.subr.mxu0 0.0
    %5275 = vmatpush1.msra.mxu0 0.0
    %5276 = vmatprep.subr.mxu0 0.0
    %5277 = vmatpush1.msra.mxu0 0.0
    %5278 = vmatprep.mubr.f32.mxu0 0.0
    %v5279 = vand.u32 %v929, 4294901760
    %5280 = vmatmul.mubr.f32.gmra.mrb[0].mxu0 %v5279
    %v5281 = vpop.f32.mrb[0].mxu0
    %v5282 = vadd.f32 %v5182, %v5281
    %v5283 = vpop.f32.mrb[0].mxu0
    %v5284 = vadd.f32 %v5184, %v5283
    %5285 = vmatprep.mubr.f32.mxu0 0.0
    %v5286 = vand.u32 %v932, 4294901760
    %5287 = vmatmul.mubr.f32.gmra.mrb[0].mxu0 %v5286
    %v5288 = vpop.f32.mrb[0].mxu0
    %v5289 = vadd.f32 %v5189, %v5288
    %v5290 = vpop.f32.mrb[0].mxu0
    %v5291 = vadd.f32 %v5191, %v5290
    %5292 = vmatprep.mubr.f32.mxu0 0.0
    %v5293 = vand.u32 %v935, 4294901760
    %5294 = vmatmul.mubr.f32.gmra.mrb[0].mxu0 %v5293
    %v5295 = vpop.f32.mrb[0].mxu0
    %v5296 = vadd.f32 %v5196, %v5295
    %v5297 = vpop.f32.mrb[0].mxu0
    %v5298 = vadd.f32 %v5198, %v5297
    %5299 = vdwg.mxu0
    %v5300 = vand.u32 %v807, 4294901760
    %5301 = vmatprep.subr.mxu0 %v5300
    %v5302 = vand.u32 %v806, 4294901760
    %5303 = vmatpush1.msra.mxu0 %v5302
    %v5304 = vand.u32 %v823, 4294901760
    %5305 = vmatprep.subr.mxu0 %v5304
    %v5306 = vand.u32 %v822, 4294901760
    %5307 = vmatpush1.msra.mxu0 %v5306
    %v5308 = vand.u32 %v839, 4294901760
    %5309 = vmatprep.subr.mxu0 %v5308
    %v5310 = vand.u32 %v838, 4294901760
    %5311 = vmatpush1.msra.mxu0 %v5310
    %v5312 = vand.u32 %v855, 4294901760
    %5313 = vmatprep.subr.mxu0 %v5312
    %v5314 = vand.u32 %v854, 4294901760
    %5315 = vmatpush1.msra.mxu0 %v5314
    %v5316 = vand.u32 %v871, 4294901760
    %5317 = vmatprep.subr.mxu0 %v5316
    %v5318 = vand.u32 %v870, 4294901760
    %5319 = vmatpush1.msra.mxu0 %v5318
    %v5320 = vand.u32 %v887, 4294901760
    %5321 = vmatprep.subr.mxu0 %v5320
    %v5322 = vand.u32 %v886, 4294901760
    %5323 = vmatpush1.msra.mxu0 %v5322
    %v5324 = vand.u32 %v978, 4294901760
    %5325 = vmatprep.subr.mxu0 %v5324
    %v5326 = vand.u32 %v975, 4294901760
    %5327 = vmatpush1.msra.mxu0 %v5326
    %5328 = vmatprep.subr.mxu0 0.0
    %5329 = vmatpush1.msra.mxu0 0.0
    %5330 = vmatprep.subr.mxu0 0.0
    %5331 = vmatpush1.msra.mxu0 0.0
    %5332 = vmatprep.subr.mxu0 0.0
    %5333 = vmatpush1.msra.mxu0 0.0
    %5334 = vmatprep.subr.mxu0 0.0
    %5335 = vmatpush1.msra.mxu0 0.0
    %5336 = vmatprep.subr.mxu0 0.0
    %5337 = vmatpush1.msra.mxu0 0.0
    %5338 = vmatprep.subr.mxu0 0.0
    %5339 = vmatpush1.msra.mxu0 0.0
    %5340 = vmatprep.subr.mxu0 0.0
    %5341 = vmatpush1.msra.mxu0 0.0
    %5342 = vmatprep.subr.mxu0 0.0
    %5343 = vmatpush1.msra.mxu0 0.0
    %5344 = vmatprep.subr.mxu0 0.0
    %5345 = vmatpush1.msra.mxu0 0.0
    %5346 = vmatprep.subr.mxu0 0.0
    %5347 = vmatpush1.msra.mxu0 0.0
    %5348 = vmatprep.subr.mxu0 0.0
    %5349 = vmatpush1.msra.mxu0 0.0
    %5350 = vmatprep.subr.mxu0 0.0
    %5351 = vmatpush1.msra.mxu0 0.0
    %5352 = vmatprep.subr.mxu0 0.0
    %5353 = vmatpush1.msra.mxu0 0.0
    %5354 = vmatprep.subr.mxu0 0.0
    %5355 = vmatpush1.msra.mxu0 0.0
    %5356 = vmatprep.subr.mxu0 0.0
    %5357 = vmatpush1.msra.mxu0 0.0
    %5358 = vmatprep.subr.mxu0 0.0
    %5359 = vmatpush1.msra.mxu0 0.0
    %5360 = vmatprep.subr.mxu0 0.0
    %5361 = vmatpush1.msra.mxu0 0.0
    %5362 = vmatprep.subr.mxu0 0.0
    %5363 = vmatpush1.msra.mxu0 0.0
    %5364 = vmatprep.subr.mxu0 0.0
    %5365 = vmatpush1.msra.mxu0 0.0
    %5366 = vmatprep.subr.mxu0 0.0
    %5367 = vmatpush1.msra.mxu0 0.0
    %5368 = vmatprep.subr.mxu0 0.0
    %5369 = vmatpush1.msra.mxu0 0.0
    %5370 = vmatprep.subr.mxu0 0.0
    %5371 = vmatpush1.msra.mxu0 0.0
    %5372 = vmatprep.subr.mxu0 0.0
    %5373 = vmatpush1.msra.mxu0 0.0
    %5374 = vmatprep.subr.mxu0 0.0
    %5375 = vmatpush1.msra.mxu0 0.0
    %5376 = vmatprep.subr.mxu0 0.0
    %5377 = vmatpush1.msra.mxu0 0.0
    %5378 = vmatprep.mubr.f32.mxu0 0.0
    %v5379 = vand.u32 %v929, 4294901760
    %v5380 = vsub.f32 %v929, %v5379
    %v5381 = vand.u32 %v5380, 4294901760
    %v5382 = vsub.f32 %v5380, %v5381
    %v5383 = vand.u32 %v5382, 4294901760
    %5384 = vmatmul.mubr.f32.gmra.mrb[0].mxu0 %v5383
    %v5385 = vpop.f32.mrb[0].mxu0
    %v5386 = vadd.f32 %v915, %v5385
    %v5387 = vpop.f32.mrb[0].mxu0
    %v5388 = vadd.f32 %v915, %v5387
    %5389 = vmatprep.mubr.f32.mxu0 0.0
    %v5390 = vand.u32 %v932, 4294901760
    %v5391 = vsub.f32 %v932, %v5390
    %v5392 = vand.u32 %v5391, 4294901760
    %v5393 = vsub.f32 %v5391, %v5392
    %v5394 = vand.u32 %v5393, 4294901760
    %5395 = vmatmul.mubr.f32.gmra.mrb[0].mxu0 %v5394
    %v5396 = vpop.f32.mrb[0].mxu0
    %v5397 = vadd.f32 %v920, %v5396
    %v5398 = vpop.f32.mrb[0].mxu0
    %v5399 = vadd.f32 %v920, %v5398
    %5400 = vmatprep.mubr.f32.mxu0 0.0
    %v5401 = vand.u32 %v935, 4294901760
    %v5402 = vsub.f32 %v935, %v5401
    %v5403 = vand.u32 %v5402, 4294901760
    %v5404 = vsub.f32 %v5402, %v5403
    %v5405 = vand.u32 %v5404, 4294901760
    %5406 = vmatmul.mubr.f32.gmra.mrb[0].mxu0 %v5405
    %v5407 = vpop.f32.mrb[0].mxu0
    %v5408 = vadd.f32 %v925, %v5407
    %v5409 = vpop.f32.mrb[0].mxu0
    %v5410 = vadd.f32 %v925, %v5409
    %5411 = vdwg.mxu0
    %v5412 = vand.u32 %v807, 4294901760
    %v5413 = vsub.f32 %v807, %v5412
    %v5414 = vand.u32 %v5413, 4294901760
    %v5415 = vsub.f32 %v5413, %v5414
    %v5416 = vand.u32 %v5415, 4294901760
    %5417 = vmatprep.subr.mxu0 %v5416
    %v5418 = vand.u32 %v806, 4294901760
    %v5419 = vsub.f32 %v806, %v5418
    %v5420 = vand.u32 %v5419, 4294901760
    %v5421 = vsub.f32 %v5419, %v5420
    %v5422 = vand.u32 %v5421, 4294901760
    %5423 = vmatpush1.msra.mxu0 %v5422
    %v5424 = vand.u32 %v823, 4294901760
    %v5425 = vsub.f32 %v823, %v5424
    %v5426 = vand.u32 %v5425, 4294901760
    %v5427 = vsub.f32 %v5425, %v5426
    %v5428 = vand.u32 %v5427, 4294901760
    %5429 = vmatprep.subr.mxu0 %v5428
    %v5430 = vand.u32 %v822, 4294901760
    %v5431 = vsub.f32 %v822, %v5430
    %v5432 = vand.u32 %v5431, 4294901760
    %v5433 = vsub.f32 %v5431, %v5432
    %v5434 = vand.u32 %v5433, 4294901760
    %5435 = vmatpush1.msra.mxu0 %v5434
    %v5436 = vand.u32 %v839, 4294901760
    %v5437 = vsub.f32 %v839, %v5436
    %v5438 = vand.u32 %v5437, 4294901760
    %v5439 = vsub.f32 %v5437, %v5438
    %v5440 = vand.u32 %v5439, 4294901760
    %5441 = vmatprep.subr.mxu0 %v5440
    %v5442 = vand.u32 %v838, 4294901760
    %v5443 = vsub.f32 %v838, %v5442
    %v5444 = vand.u32 %v5443, 4294901760
    %v5445 = vsub.f32 %v5443, %v5444
    %v5446 = vand.u32 %v5445, 4294901760
    %5447 = vmatpush1.msra.mxu0 %v5446
    %v5448 = vand.u32 %v855, 4294901760
    %v5449 = vsub.f32 %v855, %v5448
    %v5450 = vand.u32 %v5449, 4294901760
    %v5451 = vsub.f32 %v5449, %v5450
    %v5452 = vand.u32 %v5451, 4294901760
    %5453 = vmatprep.subr.mxu0 %v5452
    %v5454 = vand.u32 %v854, 4294901760
    %v5455 = vsub.f32 %v854, %v5454
    %v5456 = vand.u32 %v5455, 4294901760
    %v5457 = vsub.f32 %v5455, %v5456
    %v5458 = vand.u32 %v5457, 4294901760
    %5459 = vmatpush1.msra.mxu0 %v5458
    %v5460 = vand.u32 %v871, 4294901760
    %v5461 = vsub.f32 %v871, %v5460
    %v5462 = vand.u32 %v5461, 4294901760
    %v5463 = vsub.f32 %v5461, %v5462
    %v5464 = vand.u32 %v5463, 4294901760
    %5465 = vmatprep.subr.mxu0 %v5464
    %v5466 = vand.u32 %v870, 4294901760
    %v5467 = vsub.f32 %v870, %v5466
    %v5468 = vand.u32 %v5467, 4294901760
    %v5469 = vsub.f32 %v5467, %v5468
    %v5470 = vand.u32 %v5469, 4294901760
    %5471 = vmatpush1.msra.mxu0 %v5470
    %v5472 = vand.u32 %v887, 4294901760
    %v5473 = vsub.f32 %v887, %v5472
    %v5474 = vand.u32 %v5473, 4294901760
    %v5475 = vsub.f32 %v5473, %v5474
    %v5476 = vand.u32 %v5475, 4294901760
    %5477 = vmatprep.subr.mxu0 %v5476
    %v5478 = vand.u32 %v886, 4294901760
    %v5479 = vsub.f32 %v886, %v5478
    %v5480 = vand.u32 %v5479, 4294901760
    %v5481 = vsub.f32 %v5479, %v5480
    %v5482 = vand.u32 %v5481, 4294901760
    %5483 = vmatpush1.msra.mxu0 %v5482
    %v5484 = vand.u32 %v978, 4294901760
    %v5485 = vsub.f32 %v978, %v5484
    %v5486 = vand.u32 %v5485, 4294901760
    %v5487 = vsub.f32 %v5485, %v5486
    %v5488 = vand.u32 %v5487, 4294901760
    %5489 = vmatprep.subr.mxu0 %v5488
    %v5490 = vand.u32 %v975, 4294901760
    %v5491 = vsub.f32 %v975, %v5490
    %v5492 = vand.u32 %v5491, 4294901760
    %v5493 = vsub.f32 %v5491, %v5492
    %v5494 = vand.u32 %v5493, 4294901760
    %5495 = vmatpush1.msra.mxu0 %v5494
    %5496 = vmatprep.subr.mxu0 0.0
    %5497 = vmatpush1.msra.mxu0 0.0
    %5498 = vmatprep.subr.mxu0 0.0
    %5499 = vmatpush1.msra.mxu0 0.0
    %5500 = vmatprep.subr.mxu0 0.0
    %5501 = vmatpush1.msra.mxu0 0.0
    %5502 = vmatprep.subr.mxu0 0.0
    %5503 = vmatpush1.msra.mxu0 0.0
    %5504 = vmatprep.subr.mxu0 0.0
    %5505 = vmatpush1.msra.mxu0 0.0
    %5506 = vmatprep.subr.mxu0 0.0
    %5507 = vmatpush1.msra.mxu0 0.0
    %5508 = vmatprep.subr.mxu0 0.0
    %5509 = vmatpush1.msra.mxu0 0.0
    %5510 = vmatprep.subr.mxu0 0.0
    %5511 = vmatpush1.msra.mxu0 0.0
    %5512 = vmatprep.subr.mxu0 0.0
    %5513 = vmatpush1.msra.mxu0 0.0
    %5514 = vmatprep.subr.mxu0 0.0
    %5515 = vmatpush1.msra.mxu0 0.0
    %5516 = vmatprep.subr.mxu0 0.0
    %5517 = vmatpush1.msra.mxu0 0.0
    %5518 = vmatprep.subr.mxu0 0.0
    %5519 = vmatpush1.msra.mxu0 0.0
    %5520 = vmatprep.subr.mxu0 0.0
    %5521 = vmatpush1.msra.mxu0 0.0
    %5522 = vmatprep.subr.mxu0 0.0
    %5523 = vmatpush1.msra.mxu0 0.0
    %5524 = vmatprep.subr.mxu0 0.0
    %5525 = vmatpush1.msra.mxu0 0.0
    %5526 = vmatprep.subr.mxu0 0.0
    %5527 = vmatpush1.msra.mxu0 0.0
    %5528 = vmatprep.subr.mxu0 0.0
    %5529 = vmatpush1.msra.mxu0 0.0
    %5530 = vmatprep.subr.mxu0 0.0
    %5531 = vmatpush1.msra.mxu0 0.0
    %5532 = vmatprep.subr.mxu0 0.0
    %5533 = vmatpush1.msra.mxu0 0.0
    %5534 = vmatprep.subr.mxu0 0.0
    %5535 = vmatpush1.msra.mxu0 0.0
    %5536 = vmatprep.subr.mxu0 0.0
    %5537 = vmatpush1.msra.mxu0 0.0
    %5538 = vmatprep.subr.mxu0 0.0
    %5539 = vmatpush1.msra.mxu0 0.0
    %5540 = vmatprep.subr.mxu0 0.0
    %5541 = vmatpush1.msra.mxu0 0.0
    %5542 = vmatprep.subr.mxu0 0.0
    %5543 = vmatpush1.msra.mxu0 0.0
    %5544 = vmatprep.subr.mxu0 0.0
    %5545 = vmatpush1.msra.mxu0 0.0
    %5546 = vmatprep.mubr.f32.mxu0 0.0
    %v5547 = vand.u32 %v929, 4294901760
    %5548 = vmatmul.mubr.f32.gmra.mrb[0].mxu0 %v5547
    %v5549 = vpop.f32.mrb[0].mxu0
    %v5550 = vadd.f32 %v5386, %v5549
    %v5551 = vpop.f32.mrb[0].mxu0
    %v5552 = vadd.f32 %v5388, %v5551
    %5553 = vmatprep.mubr.f32.mxu0 0.0
    %v5554 = vand.u32 %v932, 4294901760
    %5555 = vmatmul.mubr.f32.gmra.mrb[0].mxu0 %v5554
    %v5556 = vpop.f32.mrb[0].mxu0
    %v5557 = vadd.f32 %v5397, %v5556
    %v5558 = vpop.f32.mrb[0].mxu0
    %v5559 = vadd.f32 %v5399, %v5558
    %5560 = vmatprep.mubr.f32.mxu0 0.0
    %v5561 = vand.u32 %v935, 4294901760
    %5562 = vmatmul.mubr.f32.gmra.mrb[0].mxu0 %v5561
    %v5563 = vpop.f32.mrb[0].mxu0
    %v5564 = vadd.f32 %v5408, %v5563
    %v5565 = vpop.f32.mrb[0].mxu0
    %v5566 = vadd.f32 %v5410, %v5565
    %5567 = vdwg.mxu0
    %v5568 = vand.u32 %v807, 4294901760
    %v5569 = vsub.f32 %v807, %v5568
    %5570 = vmatprep.subr.mxu0 %v5569
    %v5571 = vand.u32 %v806, 4294901760
    %v5572 = vsub.f32 %v806, %v5571
    %5573 = vmatpush1.msra.mxu0 %v5572
    %v5574 = vand.u32 %v823, 4294901760
    %v5575 = vsub.f32 %v823, %v5574
    %5576 = vmatprep.subr.mxu0 %v5575
    %v5577 = vand.u32 %v822, 4294901760
    %v5578 = vsub.f32 %v822, %v5577
    %5579 = vmatpush1.msra.mxu0 %v5578
    %v5580 = vand.u32 %v839, 4294901760
    %v5581 = vsub.f32 %v839, %v5580
    %5582 = vmatprep.subr.mxu0 %v5581
    %v5583 = vand.u32 %v838, 4294901760
    %v5584 = vsub.f32 %v838, %v5583
    %5585 = vmatpush1.msra.mxu0 %v5584
    %v5586 = vand.u32 %v855, 4294901760
    %v5587 = vsub.f32 %v855, %v5586
    %5588 = vmatprep.subr.mxu0 %v5587
    %v5589 = vand.u32 %v854, 4294901760
    %v5590 = vsub.f32 %v854, %v5589
    %5591 = vmatpush1.msra.mxu0 %v5590
    %v5592 = vand.u32 %v871, 4294901760
    %v5593 = vsub.f32 %v871, %v5592
    %5594 = vmatprep.subr.mxu0 %v5593
    %v5595 = vand.u32 %v870, 4294901760
    %v5596 = vsub.f32 %v870, %v5595
    %5597 = vmatpush1.msra.mxu0 %v5596
    %v5598 = vand.u32 %v887, 4294901760
    %v5599 = vsub.f32 %v887, %v5598
    %5600 = vmatprep.subr.mxu0 %v5599
    %v5601 = vand.u32 %v886, 4294901760
    %v5602 = vsub.f32 %v886, %v5601
    %5603 = vmatpush1.msra.mxu0 %v5602
    %v5604 = vand.u32 %v978, 4294901760
    %v5605 = vsub.f32 %v978, %v5604
    %5606 = vmatprep.subr.mxu0 %v5605
    %v5607 = vand.u32 %v975, 4294901760
    %v5608 = vsub.f32 %v975, %v5607
    %5609 = vmatpush1.msra.mxu0 %v5608
    %5610 = vmatprep.subr.mxu0 0.0
    %5611 = vmatpush1.msra.mxu0 0.0
    %5612 = vmatprep.subr.mxu0 0.0
    %5613 = vmatpush1.msra.mxu0 0.0
    %5614 = vmatprep.subr.mxu0 0.0
    %5615 = vmatpush1.msra.mxu0 0.0
    %5616 = vmatprep.subr.mxu0 0.0
    %5617 = vmatpush1.msra.mxu0 0.0
    %5618 = vmatprep.subr.mxu0 0.0
    %5619 = vmatpush1.msra.mxu0 0.0
    %5620 = vmatprep.subr.mxu0 0.0
    %5621 = vmatpush1.msra.mxu0 0.0
    %5622 = vmatprep.subr.mxu0 0.0
    %5623 = vmatpush1.msra.mxu0 0.0
    %5624 = vmatprep.subr.mxu0 0.0
    %5625 = vmatpush1.msra.mxu0 0.0
    %5626 = vmatprep.subr.mxu0 0.0
    %5627 = vmatpush1.msra.mxu0 0.0
    %5628 = vmatprep.subr.mxu0 0.0
    %5629 = vmatpush1.msra.mxu0 0.0
    %5630 = vmatprep.subr.mxu0 0.0
    %5631 = vmatpush1.msra.mxu0 0.0
    %5632 = vmatprep.subr.mxu0 0.0
    %5633 = vmatpush1.msra.mxu0 0.0
    %5634 = vmatprep.subr.mxu0 0.0
    %5635 = vmatpush1.msra.mxu0 0.0
    %5636 = vmatprep.subr.mxu0 0.0
    %5637 = vmatpush1.msra.mxu0 0.0
    %5638 = vmatprep.subr.mxu0 0.0
    %5639 = vmatpush1.msra.mxu0 0.0
    %5640 = vmatprep.subr.mxu0 0.0
    %5641 = vmatpush1.msra.mxu0 0.0
    %5642 = vmatprep.subr.mxu0 0.0
    %5643 = vmatpush1.msra.mxu0 0.0
    %5644 = vmatprep.subr.mxu0 0.0
    %5645 = vmatpush1.msra.mxu0 0.0
    %5646 = vmatprep.subr.mxu0 0.0
    %5647 = vmatpush1.msra.mxu0 0.0
    %5648 = vmatprep.subr.mxu0 0.0
    %5649 = vmatpush1.msra.mxu0 0.0
    %5650 = vmatprep.subr.mxu0 0.0
    %5651 = vmatpush1.msra.mxu0 0.0
    %5652 = vmatprep.subr.mxu0 0.0
    %5653 = vmatpush1.msra.mxu0 0.0
    %5654 = vmatprep.subr.mxu0 0.0
    %5655 = vmatpush1.msra.mxu0 0.0
    %5656 = vmatprep.subr.mxu0 0.0
    %5657 = vmatpush1.msra.mxu0 0.0
    %5658 = vmatprep.subr.mxu0 0.0
    %5659 = vmatpush1.msra.mxu0 0.0
    %5660 = vmatprep.mubr.f32.mxu0 0.0
    %v5661 = vand.u32 %v929, 4294901760
    %v5662 = vsub.f32 %v929, %v5661
    %5663 = vmatmul.mubr.f32.gmra.mrb[0].mxu0 %v5662
    %v5664 = vpop.f32.mrb[0].mxu0
    %v5665 = vadd.f32 %v5550, %v5664
    %v5666 = vpop.f32.mrb[0].mxu0
    %v5667 = vadd.f32 %v5552, %v5666
    %5668 = vmatprep.mubr.f32.mxu0 0.0
    %v5669 = vand.u32 %v932, 4294901760
    %v5670 = vsub.f32 %v932, %v5669
    %5671 = vmatmul.mubr.f32.gmra.mrb[0].mxu0 %v5670
    %v5672 = vpop.f32.mrb[0].mxu0
    %v5673 = vadd.f32 %v5557, %v5672
    %v5674 = vpop.f32.mrb[0].mxu0
    %v5675 = vadd.f32 %v5559, %v5674
    %5676 = vmatprep.mubr.f32.mxu0 0.0
    %v5677 = vand.u32 %v935, 4294901760
    %v5678 = vsub.f32 %v935, %v5677
    %5679 = vmatmul.mubr.f32.gmra.mrb[0].mxu0 %v5678
    %v5680 = vpop.f32.mrb[0].mxu0
    %v5681 = vadd.f32 %v5564, %v5680
    %v5682 = vpop.f32.mrb[0].mxu0
    %v5683 = vadd.f32 %v5566, %v5682
    %5684 = vdwg.mxu0
    %v5685 = vand.u32 %v807, 4294901760
    %5686 = vmatprep.subr.mxu0 %v5685
    %v5687 = vand.u32 %v806, 4294901760
    %5688 = vmatpush1.msra.mxu0 %v5687
    %v5689 = vand.u32 %v823, 4294901760
    %5690 = vmatprep.subr.mxu0 %v5689
    %v5691 = vand.u32 %v822, 4294901760
    %5692 = vmatpush1.msra.mxu0 %v5691
    %v5693 = vand.u32 %v839, 4294901760
    %5694 = vmatprep.subr.mxu0 %v5693
    %v5695 = vand.u32 %v838, 4294901760
    %5696 = vmatpush1.msra.mxu0 %v5695
    %v5697 = vand.u32 %v855, 4294901760
    %5698 = vmatprep.subr.mxu0 %v5697
    %v5699 = vand.u32 %v854, 4294901760
    %5700 = vmatpush1.msra.mxu0 %v5699
    %v5701 = vand.u32 %v871, 4294901760
    %5702 = vmatprep.subr.mxu0 %v5701
    %v5703 = vand.u32 %v870, 4294901760
    %5704 = vmatpush1.msra.mxu0 %v5703
    %v5705 = vand.u32 %v887, 4294901760
    %5706 = vmatprep.subr.mxu0 %v5705
    %v5707 = vand.u32 %v886, 4294901760
    %5708 = vmatpush1.msra.mxu0 %v5707
    %v5709 = vand.u32 %v978, 4294901760
    %5710 = vmatprep.subr.mxu0 %v5709
    %v5711 = vand.u32 %v975, 4294901760
    %5712 = vmatpush1.msra.mxu0 %v5711
    %5713 = vmatprep.subr.mxu0 0.0
    %5714 = vmatpush1.msra.mxu0 0.0
    %5715 = vmatprep.subr.mxu0 0.0
    %5716 = vmatpush1.msra.mxu0 0.0
    %5717 = vmatprep.subr.mxu0 0.0
    %5718 = vmatpush1.msra.mxu0 0.0
    %5719 = vmatprep.subr.mxu0 0.0
    %5720 = vmatpush1.msra.mxu0 0.0
    %5721 = vmatprep.subr.mxu0 0.0
    %5722 = vmatpush1.msra.mxu0 0.0
    %5723 = vmatprep.subr.mxu0 0.0
    %5724 = vmatpush1.msra.mxu0 0.0
    %5725 = vmatprep.subr.mxu0 0.0
    %5726 = vmatpush1.msra.mxu0 0.0
    %5727 = vmatprep.subr.mxu0 0.0
    %5728 = vmatpush1.msra.mxu0 0.0
    %5729 = vmatprep.subr.mxu0 0.0
    %5730 = vmatpush1.msra.mxu0 0.0
    %5731 = vmatprep.subr.mxu0 0.0
    %5732 = vmatpush1.msra.mxu0 0.0
    %5733 = vmatprep.subr.mxu0 0.0
    %5734 = vmatpush1.msra.mxu0 0.0
    %5735 = vmatprep.subr.mxu0 0.0
    %5736 = vmatpush1.msra.mxu0 0.0
    %5737 = vmatprep.subr.mxu0 0.0
    %5738 = vmatpush1.msra.mxu0 0.0
    %5739 = vmatprep.subr.mxu0 0.0
    %5740 = vmatpush1.msra.mxu0 0.0
    %5741 = vmatprep.subr.mxu0 0.0
    %5742 = vmatpush1.msra.mxu0 0.0
    %5743 = vmatprep.subr.mxu0 0.0
    %5744 = vmatpush1.msra.mxu0 0.0
    %5745 = vmatprep.subr.mxu0 0.0
    %5746 = vmatpush1.msra.mxu0 0.0
    %5747 = vmatprep.subr.mxu0 0.0
    %5748 = vmatpush1.msra.mxu0 0.0
    %5749 = vmatprep.subr.mxu0 0.0
    %5750 = vmatpush1.msra.mxu0 0.0
    %5751 = vmatprep.subr.mxu0 0.0
    %5752 = vmatpush1.msra.mxu0 0.0
    %5753 = vmatprep.subr.mxu0 0.0
    %5754 = vmatpush1.msra.mxu0 0.0
    %5755 = vmatprep.subr.mxu0 0.0
    %5756 = vmatpush1.msra.mxu0 0.0
    %5757 = vmatprep.subr.mxu0 0.0
    %5758 = vmatpush1.msra.mxu0 0.0
    %5759 = vmatprep.subr.mxu0 0.0
    %5760 = vmatpush1.msra.mxu0 0.0
    %5761 = vmatprep.subr.mxu0 0.0
    %5762 = vmatpush1.msra.mxu0 0.0
    %5763 = vmatprep.mubr.f32.mxu0 0.0
    %v5764 = vand.u32 %v929, 4294901760
    %v5765 = vsub.f32 %v929, %v5764
    %v5766 = vand.u32 %v5765, 4294901760
    %5767 = vmatmul.mubr.f32.gmra.mrb[0].mxu0 %v5766
    %v5768 = vpop.f32.mrb[0].mxu0
    %v5769 = vadd.f32 %v5665, %v5768
    %v5770 = vpop.f32.mrb[0].mxu0
    %v5771 = vadd.f32 %v5667, %v5770
    %5772 = vmatprep.mubr.f32.mxu0 0.0
    %v5773 = vand.u32 %v932, 4294901760
    %v5774 = vsub.f32 %v932, %v5773
    %v5775 = vand.u32 %v5774, 4294901760
    %5776 = vmatmul.mubr.f32.gmra.mrb[0].mxu0 %v5775
    %v5777 = vpop.f32.mrb[0].mxu0
    %v5778 = vadd.f32 %v5673, %v5777
    %v5779 = vpop.f32.mrb[0].mxu0
    %v5780 = vadd.f32 %v5675, %v5779
    %5781 = vmatprep.mubr.f32.mxu0 0.0
    %v5782 = vand.u32 %v935, 4294901760
    %v5783 = vsub.f32 %v935, %v5782
    %v5784 = vand.u32 %v5783, 4294901760
    %5785 = vmatmul.mubr.f32.gmra.mrb[0].mxu0 %v5784
    %v5786 = vpop.f32.mrb[0].mxu0
    %v5787 = vadd.f32 %v5681, %v5786
    %v5788 = vpop.f32.mrb[0].mxu0
    %v5789 = vadd.f32 %v5683, %v5788
    %5790 = vdwg.mxu0
    %v5791 = vand.u32 %v807, 4294901760
    %v5792 = vsub.f32 %v807, %v5791
    %v5793 = vand.u32 %v5792, 4294901760
    %5794 = vmatprep.subr.mxu0 %v5793
    %v5795 = vand.u32 %v806, 4294901760
    %v5796 = vsub.f32 %v806, %v5795
    %v5797 = vand.u32 %v5796, 4294901760
    %5798 = vmatpush1.msra.mxu0 %v5797
    %v5799 = vand.u32 %v823, 4294901760
    %v5800 = vsub.f32 %v823, %v5799
    %v5801 = vand.u32 %v5800, 4294901760
    %5802 = vmatprep.subr.mxu0 %v5801
    %v5803 = vand.u32 %v822, 4294901760
    %v5804 = vsub.f32 %v822, %v5803
    %v5805 = vand.u32 %v5804, 4294901760
    %5806 = vmatpush1.msra.mxu0 %v5805
    %v5807 = vand.u32 %v839, 4294901760
    %v5808 = vsub.f32 %v839, %v5807
    %v5809 = vand.u32 %v5808, 4294901760
    %5810 = vmatprep.subr.mxu0 %v5809
    %v5811 = vand.u32 %v838, 4294901760
    %v5812 = vsub.f32 %v838, %v5811
    %v5813 = vand.u32 %v5812, 4294901760
    %5814 = vmatpush1.msra.mxu0 %v5813
    %v5815 = vand.u32 %v855, 4294901760
    %v5816 = vsub.f32 %v855, %v5815
    %v5817 = vand.u32 %v5816, 4294901760
    %5818 = vmatprep.subr.mxu0 %v5817
    %v5819 = vand.u32 %v854, 4294901760
    %v5820 = vsub.f32 %v854, %v5819
    %v5821 = vand.u32 %v5820, 4294901760
    %5822 = vmatpush1.msra.mxu0 %v5821
    %v5823 = vand.u32 %v871, 4294901760
    %v5824 = vsub.f32 %v871, %v5823
    %v5825 = vand.u32 %v5824, 4294901760
    %5826 = vmatprep.subr.mxu0 %v5825
    %v5827 = vand.u32 %v870, 4294901760
    %v5828 = vsub.f32 %v870, %v5827
    %v5829 = vand.u32 %v5828, 4294901760
    %5830 = vmatpush1.msra.mxu0 %v5829
    %v5831 = vand.u32 %v887, 4294901760
    %v5832 = vsub.f32 %v887, %v5831
    %v5833 = vand.u32 %v5832, 4294901760
    %5834 = vmatprep.subr.mxu0 %v5833
    %v5835 = vand.u32 %v886, 4294901760
    %v5836 = vsub.f32 %v886, %v5835
    %v5837 = vand.u32 %v5836, 4294901760
    %5838 = vmatpush1.msra.mxu0 %v5837
    %v5839 = vand.u32 %v978, 4294901760
    %v5840 = vsub.f32 %v978, %v5839
    %v5841 = vand.u32 %v5840, 4294901760
    %5842 = vmatprep.subr.mxu0 %v5841
    %v5843 = vand.u32 %v975, 4294901760
    %v5844 = vsub.f32 %v975, %v5843
    %v5845 = vand.u32 %v5844, 4294901760
    %5846 = vmatpush1.msra.mxu0 %v5845
    %5847 = vmatprep.subr.mxu0 0.0
    %5848 = vmatpush1.msra.mxu0 0.0
    %5849 = vmatprep.subr.mxu0 0.0
    %5850 = vmatpush1.msra.mxu0 0.0
    %5851 = vmatprep.subr.mxu0 0.0
    %5852 = vmatpush1.msra.mxu0 0.0
    %5853 = vmatprep.subr.mxu0 0.0
    %5854 = vmatpush1.msra.mxu0 0.0
    %5855 = vmatprep.subr.mxu0 0.0
    %5856 = vmatpush1.msra.mxu0 0.0
    %5857 = vmatprep.subr.mxu0 0.0
    %5858 = vmatpush1.msra.mxu0 0.0
    %5859 = vmatprep.subr.mxu0 0.0
    %5860 = vmatpush1.msra.mxu0 0.0
    %5861 = vmatprep.subr.mxu0 0.0
    %5862 = vmatpush1.msra.mxu0 0.0
    %5863 = vmatprep.subr.mxu0 0.0
    %5864 = vmatpush1.msra.mxu0 0.0
    %5865 = vmatprep.subr.mxu0 0.0
    %5866 = vmatpush1.msra.mxu0 0.0
    %5867 = vmatprep.subr.mxu0 0.0
    %5868 = vmatpush1.msra.mxu0 0.0
    %5869 = vmatprep.subr.mxu0 0.0
    %5870 = vmatpush1.msra.mxu0 0.0
    %5871 = vmatprep.subr.mxu0 0.0
    %5872 = vmatpush1.msra.mxu0 0.0
    %5873 = vmatprep.subr.mxu0 0.0
    %5874 = vmatpush1.msra.mxu0 0.0
    %5875 = vmatprep.subr.mxu0 0.0
    %5876 = vmatpush1.msra.mxu0 0.0
    %5877 = vmatprep.subr.mxu0 0.0
    %5878 = vmatpush1.msra.mxu0 0.0
    %5879 = vmatprep.subr.mxu0 0.0
    %5880 = vmatpush1.msra.mxu0 0.0
    %5881 = vmatprep.subr.mxu0 0.0
    %5882 = vmatpush1.msra.mxu0 0.0
    %5883 = vmatprep.subr.mxu0 0.0
    %5884 = vmatpush1.msra.mxu0 0.0
    %5885 = vmatprep.subr.mxu0 0.0
    %5886 = vmatpush1.msra.mxu0 0.0
    %5887 = vmatprep.subr.mxu0 0.0
    %5888 = vmatpush1.msra.mxu0 0.0
    %5889 = vmatprep.subr.mxu0 0.0
    %5890 = vmatpush1.msra.mxu0 0.0
    %5891 = vmatprep.subr.mxu0 0.0
    %5892 = vmatpush1.msra.mxu0 0.0
    %5893 = vmatprep.subr.mxu0 0.0
    %5894 = vmatpush1.msra.mxu0 0.0
    %5895 = vmatprep.subr.mxu0 0.0
    %5896 = vmatpush1.msra.mxu0 0.0
    %5897 = vmatprep.mubr.f32.mxu0 0.0
    %v5898 = vand.u32 %v929, 4294901760
    %5899 = vmatmul.mubr.f32.gmra.mrb[0].mxu0 %v5898
    %v5900 = vpop.f32.mrb[0].mxu0
    %v5901 = vadd.f32 %v5769, %v5900
    %v5902 = vpop.f32.mrb[0].mxu0
    %v5903 = vadd.f32 %v5771, %v5902
    %5904 = vmatprep.mubr.f32.mxu0 0.0
    %v5905 = vand.u32 %v932, 4294901760
    %5906 = vmatmul.mubr.f32.gmra.mrb[0].mxu0 %v5905
    %v5907 = vpop.f32.mrb[0].mxu0
    %v5908 = vadd.f32 %v5778, %v5907
    %v5909 = vpop.f32.mrb[0].mxu0
    %v5910 = vadd.f32 %v5780, %v5909
    %5911 = vmatprep.mubr.f32.mxu0 0.0
    %v5912 = vand.u32 %v935, 4294901760
    %5913 = vmatmul.mubr.f32.gmra.mrb[0].mxu0 %v5912
    %v5914 = vpop.f32.mrb[0].mxu0
    %v5915 = vadd.f32 %v5787, %v5914
    %v5916 = vpop.f32.mrb[0].mxu0
    %v5917 = vadd.f32 %v5789, %v5916
    %5918 = vdwg.mxu0
    %v5919 = vand.u32 %v807, 4294901760
    %5920 = vmatprep.subr.mxu0 %v5919
    %v5921 = vand.u32 %v806, 4294901760
    %5922 = vmatpush1.msra.mxu0 %v5921
    %v5923 = vand.u32 %v823, 4294901760
    %5924 = vmatprep.subr.mxu0 %v5923
    %v5925 = vand.u32 %v822, 4294901760
    %5926 = vmatpush1.msra.mxu0 %v5925
    %v5927 = vand.u32 %v839, 4294901760
    %5928 = vmatprep.subr.mxu0 %v5927
    %v5929 = vand.u32 %v838, 4294901760
    %5930 = vmatpush1.msra.mxu0 %v5929
    %v5931 = vand.u32 %v855, 4294901760
    %5932 = vmatprep.subr.mxu0 %v5931
    %v5933 = vand.u32 %v854, 4294901760
    %5934 = vmatpush1.msra.mxu0 %v5933
    %v5935 = vand.u32 %v871, 4294901760
    %5936 = vmatprep.subr.mxu0 %v5935
    %v5937 = vand.u32 %v870, 4294901760
    %5938 = vmatpush1.msra.mxu0 %v5937
    %v5939 = vand.u32 %v887, 4294901760
    %5940 = vmatprep.subr.mxu0 %v5939
    %v5941 = vand.u32 %v886, 4294901760
    %5942 = vmatpush1.msra.mxu0 %v5941
    %v5943 = vand.u32 %v978, 4294901760
    %5944 = vmatprep.subr.mxu0 %v5943
    %v5945 = vand.u32 %v975, 4294901760
    %5946 = vmatpush1.msra.mxu0 %v5945
    %5947 = vmatprep.subr.mxu0 0.0
    %5948 = vmatpush1.msra.mxu0 0.0
    %5949 = vmatprep.subr.mxu0 0.0
    %5950 = vmatpush1.msra.mxu0 0.0
    %5951 = vmatprep.subr.mxu0 0.0
    %5952 = vmatpush1.msra.mxu0 0.0
    %5953 = vmatprep.subr.mxu0 0.0
    %5954 = vmatpush1.msra.mxu0 0.0
    %5955 = vmatprep.subr.mxu0 0.0
    %5956 = vmatpush1.msra.mxu0 0.0
    %5957 = vmatprep.subr.mxu0 0.0
    %5958 = vmatpush1.msra.mxu0 0.0
    %5959 = vmatprep.subr.mxu0 0.0
    %5960 = vmatpush1.msra.mxu0 0.0
    %5961 = vmatprep.subr.mxu0 0.0
    %5962 = vmatpush1.msra.mxu0 0.0
    %5963 = vmatprep.subr.mxu0 0.0
    %5964 = vmatpush1.msra.mxu0 0.0
    %5965 = vmatprep.subr.mxu0 0.0
    %5966 = vmatpush1.msra.mxu0 0.0
    %5967 = vmatprep.subr.mxu0 0.0
    %5968 = vmatpush1.msra.mxu0 0.0
    %5969 = vmatprep.subr.mxu0 0.0
    %5970 = vmatpush1.msra.mxu0 0.0
    %5971 = vmatprep.subr.mxu0 0.0
    %5972 = vmatpush1.msra.mxu0 0.0
    %5973 = vmatprep.subr.mxu0 0.0
    %5974 = vmatpush1.msra.mxu0 0.0
    %5975 = vmatprep.subr.mxu0 0.0
    %5976 = vmatpush1.msra.mxu0 0.0
    %5977 = vmatprep.subr.mxu0 0.0
    %5978 = vmatpush1.msra.mxu0 0.0
    %5979 = vmatprep.subr.mxu0 0.0
    %5980 = vmatpush1.msra.mxu0 0.0
    %5981 = vmatprep.subr.mxu0 0.0
    %5982 = vmatpush1.msra.mxu0 0.0
    %5983 = vmatprep.subr.mxu0 0.0
    %5984 = vmatpush1.msra.mxu0 0.0
    %5985 = vmatprep.subr.mxu0 0.0
    %5986 = vmatpush1.msra.mxu0 0.0
    %5987 = vmatprep.subr.mxu0 0.0
    %5988 = vmatpush1.msra.mxu0 0.0
    %5989 = vmatprep.subr.mxu0 0.0
    %5990 = vmatpush1.msra.mxu0 0.0
    %5991 = vmatprep.subr.mxu0 0.0
    %5992 = vmatpush1.msra.mxu0 0.0
    %5993 = vmatprep.subr.mxu0 0.0
    %5994 = vmatpush1.msra.mxu0 0.0
    %5995 = vmatprep.subr.mxu0 0.0
    %5996 = vmatpush1.msra.mxu0 0.0
    %5997 = vmatprep.mubr.f32.mxu0 0.0
    %v5998 = vand.u32 %v929, 4294901760
    %5999 = vmatmul.mubr.f32.gmra.mrb[0].mxu0 %v5998
    %v6000 = vpop.f32.mrb[0].mxu0
    %v6001 = vadd.f32 %v5901, %v6000
    %v6002 = vpop.f32.mrb[0].mxu0
    %v6003 = vadd.f32 %v5903, %v6002
    %6004 = vmatprep.mubr.f32.mxu0 0.0
    %v6005 = vand.u32 %v932, 4294901760
    %6006 = vmatmul.mubr.f32.gmra.mrb[0].mxu0 %v6005
    %v6007 = vpop.f32.mrb[0].mxu0
    %v6008 = vadd.f32 %v5908, %v6007
    %v6009 = vpop.f32.mrb[0].mxu0
    %v6010 = vadd.f32 %v5910, %v6009
    %6011 = vmatprep.mubr.f32.mxu0 0.0
    %v6012 = vand.u32 %v935, 4294901760
    %6013 = vmatmul.mubr.f32.gmra.mrb[0].mxu0 %v6012
    %v6014 = vpop.f32.mrb[0].mxu0
    %v6015 = vadd.f32 %v5915, %v6014
    %v6016 = vpop.f32.mrb[0].mxu0
    %v6017 = vadd.f32 %v5917, %v6016
    %6018 = vdwg.mxu0
    %v6019 = vand.u32 %v809, 4294901760
    %6020 = vmatprep.subr.mxu0 %v6019
    %v6021 = vand.u32 %v808, 4294901760
    %6022 = vmatpush1.msra.mxu0 %v6021
    %v6023 = vand.u32 %v825, 4294901760
    %6024 = vmatprep.subr.mxu0 %v6023
    %v6025 = vand.u32 %v824, 4294901760
    %6026 = vmatpush1.msra.mxu0 %v6025
    %v6027 = vand.u32 %v841, 4294901760
    %6028 = vmatprep.subr.mxu0 %v6027
    %v6029 = vand.u32 %v840, 4294901760
    %6030 = vmatpush1.msra.mxu0 %v6029
    %v6031 = vand.u32 %v857, 4294901760
    %6032 = vmatprep.subr.mxu0 %v6031
    %v6033 = vand.u32 %v856, 4294901760
    %6034 = vmatpush1.msra.mxu0 %v6033
    %v6035 = vand.u32 %v873, 4294901760
    %6036 = vmatprep.subr.mxu0 %v6035
    %v6037 = vand.u32 %v872, 4294901760
    %6038 = vmatpush1.msra.mxu0 %v6037
    %v6039 = vand.u32 %v889, 4294901760
    %6040 = vmatprep.subr.mxu0 %v6039
    %v6041 = vand.u32 %v888, 4294901760
    %6042 = vmatpush1.msra.mxu0 %v6041
    %v6043 = vand.u32 %v984, 4294901760
    %6044 = vmatprep.subr.mxu0 %v6043
    %v6045 = vand.u32 %v981, 4294901760
    %6046 = vmatpush1.msra.mxu0 %v6045
    %6047 = vmatprep.subr.mxu0 0.0
    %6048 = vmatpush1.msra.mxu0 0.0
    %6049 = vmatprep.subr.mxu0 0.0
    %6050 = vmatpush1.msra.mxu0 0.0
    %6051 = vmatprep.subr.mxu0 0.0
    %6052 = vmatpush1.msra.mxu0 0.0
    %6053 = vmatprep.subr.mxu0 0.0
    %6054 = vmatpush1.msra.mxu0 0.0
    %6055 = vmatprep.subr.mxu0 0.0
    %6056 = vmatpush1.msra.mxu0 0.0
    %6057 = vmatprep.subr.mxu0 0.0
    %6058 = vmatpush1.msra.mxu0 0.0
    %6059 = vmatprep.subr.mxu0 0.0
    %6060 = vmatpush1.msra.mxu0 0.0
    %6061 = vmatprep.subr.mxu0 0.0
    %6062 = vmatpush1.msra.mxu0 0.0
    %6063 = vmatprep.subr.mxu0 0.0
    %6064 = vmatpush1.msra.mxu0 0.0
    %6065 = vmatprep.subr.mxu0 0.0
    %6066 = vmatpush1.msra.mxu0 0.0
    %6067 = vmatprep.subr.mxu0 0.0
    %6068 = vmatpush1.msra.mxu0 0.0
    %6069 = vmatprep.subr.mxu0 0.0
    %6070 = vmatpush1.msra.mxu0 0.0
    %6071 = vmatprep.subr.mxu0 0.0
    %6072 = vmatpush1.msra.mxu0 0.0
    %6073 = vmatprep.subr.mxu0 0.0
    %6074 = vmatpush1.msra.mxu0 0.0
    %6075 = vmatprep.subr.mxu0 0.0
    %6076 = vmatpush1.msra.mxu0 0.0
    %6077 = vmatprep.subr.mxu0 0.0
    %6078 = vmatpush1.msra.mxu0 0.0
    %6079 = vmatprep.subr.mxu0 0.0
    %6080 = vmatpush1.msra.mxu0 0.0
    %6081 = vmatprep.subr.mxu0 0.0
    %6082 = vmatpush1.msra.mxu0 0.0
    %6083 = vmatprep.subr.mxu0 0.0
    %6084 = vmatpush1.msra.mxu0 0.0
    %6085 = vmatprep.subr.mxu0 0.0
    %6086 = vmatpush1.msra.mxu0 0.0
    %6087 = vmatprep.subr.mxu0 0.0
    %6088 = vmatpush1.msra.mxu0 0.0
    %6089 = vmatprep.subr.mxu0 0.0
    %6090 = vmatpush1.msra.mxu0 0.0
    %6091 = vmatprep.subr.mxu0 0.0
    %6092 = vmatpush1.msra.mxu0 0.0
    %6093 = vmatprep.subr.mxu0 0.0
    %6094 = vmatpush1.msra.mxu0 0.0
    %6095 = vmatprep.subr.mxu0 0.0
    %6096 = vmatpush1.msra.mxu0 0.0
    %6097 = vmatprep.mubr.f32.mxu0 0.0
    %v6098 = vand.u32 %v929, 4294901760
    %v6099 = vsub.f32 %v929, %v6098
    %v6100 = vand.u32 %v6099, 4294901760
    %v6101 = vsub.f32 %v6099, %v6100
    %v6102 = vand.u32 %v6101, 4294901760
    %6103 = vmatmul.mubr.f32.gmra.mrb[0].mxu0 %v6102
    %v6104 = vpop.f32.mrb[0].mxu0
    %v6105 = vadd.f32 %v915, %v6104
    %v6106 = vpop.f32.mrb[0].mxu0
    %v6107 = vadd.f32 %v915, %v6106
    %6108 = vmatprep.mubr.f32.mxu0 0.0
    %v6109 = vand.u32 %v932, 4294901760
    %v6110 = vsub.f32 %v932, %v6109
    %v6111 = vand.u32 %v6110, 4294901760
    %v6112 = vsub.f32 %v6110, %v6111
    %v6113 = vand.u32 %v6112, 4294901760
    %6114 = vmatmul.mubr.f32.gmra.mrb[0].mxu0 %v6113
    %v6115 = vpop.f32.mrb[0].mxu0
    %v6116 = vadd.f32 %v920, %v6115
    %v6117 = vpop.f32.mrb[0].mxu0
    %v6118 = vadd.f32 %v920, %v6117
    %6119 = vmatprep.mubr.f32.mxu0 0.0
    %v6120 = vand.u32 %v935, 4294901760
    %v6121 = vsub.f32 %v935, %v6120
    %v6122 = vand.u32 %v6121, 4294901760
    %v6123 = vsub.f32 %v6121, %v6122
    %v6124 = vand.u32 %v6123, 4294901760
    %6125 = vmatmul.mubr.f32.gmra.mrb[0].mxu0 %v6124
    %v6126 = vpop.f32.mrb[0].mxu0
    %v6127 = vadd.f32 %v925, %v6126
    %v6128 = vpop.f32.mrb[0].mxu0
    %v6129 = vadd.f32 %v925, %v6128
    %6130 = vdwg.mxu0
    %v6131 = vand.u32 %v809, 4294901760
    %v6132 = vsub.f32 %v809, %v6131
    %v6133 = vand.u32 %v6132, 4294901760
    %v6134 = vsub.f32 %v6132, %v6133
    %v6135 = vand.u32 %v6134, 4294901760
    %6136 = vmatprep.subr.mxu0 %v6135
    %v6137 = vand.u32 %v808, 4294901760
    %v6138 = vsub.f32 %v808, %v6137
    %v6139 = vand.u32 %v6138, 4294901760
    %v6140 = vsub.f32 %v6138, %v6139
    %v6141 = vand.u32 %v6140, 4294901760
    %6142 = vmatpush1.msra.mxu0 %v6141
    %v6143 = vand.u32 %v825, 4294901760
    %v6144 = vsub.f32 %v825, %v6143
    %v6145 = vand.u32 %v6144, 4294901760
    %v6146 = vsub.f32 %v6144, %v6145
    %v6147 = vand.u32 %v6146, 4294901760
    %6148 = vmatprep.subr.mxu0 %v6147
    %v6149 = vand.u32 %v824, 4294901760
    %v6150 = vsub.f32 %v824, %v6149
    %v6151 = vand.u32 %v6150, 4294901760
    %v6152 = vsub.f32 %v6150, %v6151
    %v6153 = vand.u32 %v6152, 4294901760
    %6154 = vmatpush1.msra.mxu0 %v6153
    %v6155 = vand.u32 %v841, 4294901760
    %v6156 = vsub.f32 %v841, %v6155
    %v6157 = vand.u32 %v6156, 4294901760
    %v6158 = vsub.f32 %v6156, %v6157
    %v6159 = vand.u32 %v6158, 4294901760
    %6160 = vmatprep.subr.mxu0 %v6159
    %v6161 = vand.u32 %v840, 4294901760
    %v6162 = vsub.f32 %v840, %v6161
    %v6163 = vand.u32 %v6162, 4294901760
    %v6164 = vsub.f32 %v6162, %v6163
    %v6165 = vand.u32 %v6164, 4294901760
    %6166 = vmatpush1.msra.mxu0 %v6165
    %v6167 = vand.u32 %v857, 4294901760
    %v6168 = vsub.f32 %v857, %v6167
    %v6169 = vand.u32 %v6168, 4294901760
    %v6170 = vsub.f32 %v6168, %v6169
    %v6171 = vand.u32 %v6170, 4294901760
    %6172 = vmatprep.subr.mxu0 %v6171
    %v6173 = vand.u32 %v856, 4294901760
    %v6174 = vsub.f32 %v856, %v6173
    %v6175 = vand.u32 %v6174, 4294901760
    %v6176 = vsub.f32 %v6174, %v6175
    %v6177 = vand.u32 %v6176, 4294901760
    %6178 = vmatpush1.msra.mxu0 %v6177
    %v6179 = vand.u32 %v873, 4294901760
    %v6180 = vsub.f32 %v873, %v6179
    %v6181 = vand.u32 %v6180, 4294901760
    %v6182 = vsub.f32 %v6180, %v6181
    %v6183 = vand.u32 %v6182, 4294901760
    %6184 = vmatprep.subr.mxu0 %v6183
    %v6185 = vand.u32 %v872, 4294901760
    %v6186 = vsub.f32 %v872, %v6185
    %v6187 = vand.u32 %v6186, 4294901760
    %v6188 = vsub.f32 %v6186, %v6187
    %v6189 = vand.u32 %v6188, 4294901760
    %6190 = vmatpush1.msra.mxu0 %v6189
    %v6191 = vand.u32 %v889, 4294901760
    %v6192 = vsub.f32 %v889, %v6191
    %v6193 = vand.u32 %v6192, 4294901760
    %v6194 = vsub.f32 %v6192, %v6193
    %v6195 = vand.u32 %v6194, 4294901760
    %6196 = vmatprep.subr.mxu0 %v6195
    %v6197 = vand.u32 %v888, 4294901760
    %v6198 = vsub.f32 %v888, %v6197
    %v6199 = vand.u32 %v6198, 4294901760
    %v6200 = vsub.f32 %v6198, %v6199
    %v6201 = vand.u32 %v6200, 4294901760
    %6202 = vmatpush1.msra.mxu0 %v6201
    %v6203 = vand.u32 %v984, 4294901760
    %v6204 = vsub.f32 %v984, %v6203
    %v6205 = vand.u32 %v6204, 4294901760
    %v6206 = vsub.f32 %v6204, %v6205
    %v6207 = vand.u32 %v6206, 4294901760
    %6208 = vmatprep.subr.mxu0 %v6207
    %v6209 = vand.u32 %v981, 4294901760
    %v6210 = vsub.f32 %v981, %v6209
    %v6211 = vand.u32 %v6210, 4294901760
    %v6212 = vsub.f32 %v6210, %v6211
    %v6213 = vand.u32 %v6212, 4294901760
    %6214 = vmatpush1.msra.mxu0 %v6213
    %6215 = vmatprep.subr.mxu0 0.0
    %6216 = vmatpush1.msra.mxu0 0.0
    %6217 = vmatprep.subr.mxu0 0.0
    %6218 = vmatpush1.msra.mxu0 0.0
    %6219 = vmatprep.subr.mxu0 0.0
    %6220 = vmatpush1.msra.mxu0 0.0
    %6221 = vmatprep.subr.mxu0 0.0
    %6222 = vmatpush1.msra.mxu0 0.0
    %6223 = vmatprep.subr.mxu0 0.0
    %6224 = vmatpush1.msra.mxu0 0.0
    %6225 = vmatprep.subr.mxu0 0.0
    %6226 = vmatpush1.msra.mxu0 0.0
    %6227 = vmatprep.subr.mxu0 0.0
    %6228 = vmatpush1.msra.mxu0 0.0
    %6229 = vmatprep.subr.mxu0 0.0
    %6230 = vmatpush1.msra.mxu0 0.0
    %6231 = vmatprep.subr.mxu0 0.0
    %6232 = vmatpush1.msra.mxu0 0.0
    %6233 = vmatprep.subr.mxu0 0.0
    %6234 = vmatpush1.msra.mxu0 0.0
    %6235 = vmatprep.subr.mxu0 0.0
    %6236 = vmatpush1.msra.mxu0 0.0
    %6237 = vmatprep.subr.mxu0 0.0
    %6238 = vmatpush1.msra.mxu0 0.0
    %6239 = vmatprep.subr.mxu0 0.0
    %6240 = vmatpush1.msra.mxu0 0.0
    %6241 = vmatprep.subr.mxu0 0.0
    %6242 = vmatpush1.msra.mxu0 0.0
    %6243 = vmatprep.subr.mxu0 0.0
    %6244 = vmatpush1.msra.mxu0 0.0
    %6245 = vmatprep.subr.mxu0 0.0
    %6246 = vmatpush1.msra.mxu0 0.0
    %6247 = vmatprep.subr.mxu0 0.0
    %6248 = vmatpush1.msra.mxu0 0.0
    %6249 = vmatprep.subr.mxu0 0.0
    %6250 = vmatpush1.msra.mxu0 0.0
    %6251 = vmatprep.subr.mxu0 0.0
    %6252 = vmatpush1.msra.mxu0 0.0
    %6253 = vmatprep.subr.mxu0 0.0
    %6254 = vmatpush1.msra.mxu0 0.0
    %6255 = vmatprep.subr.mxu0 0.0
    %6256 = vmatpush1.msra.mxu0 0.0
    %6257 = vmatprep.subr.mxu0 0.0
    %6258 = vmatpush1.msra.mxu0 0.0
    %6259 = vmatprep.subr.mxu0 0.0
    %6260 = vmatpush1.msra.mxu0 0.0
    %6261 = vmatprep.subr.mxu0 0.0
    %6262 = vmatpush1.msra.mxu0 0.0
    %6263 = vmatprep.subr.mxu0 0.0
    %6264 = vmatpush1.msra.mxu0 0.0
    %6265 = vmatprep.mubr.f32.mxu0 0.0
    %v6266 = vand.u32 %v929, 4294901760
    %6267 = vmatmul.mubr.f32.gmra.mrb[0].mxu0 %v6266
    %v6268 = vpop.f32.mrb[0].mxu0
    %v6269 = vadd.f32 %v6105, %v6268
    %v6270 = vpop.f32.mrb[0].mxu0
    %v6271 = vadd.f32 %v6107, %v6270
    %6272 = vmatprep.mubr.f32.mxu0 0.0
    %v6273 = vand.u32 %v932, 4294901760
    %6274 = vmatmul.mubr.f32.gmra.mrb[0].mxu0 %v6273
    %v6275 = vpop.f32.mrb[0].mxu0
    %v6276 = vadd.f32 %v6116, %v6275
    %v6277 = vpop.f32.mrb[0].mxu0
    %v6278 = vadd.f32 %v6118, %v6277
    %6279 = vmatprep.mubr.f32.mxu0 0.0
    %v6280 = vand.u32 %v935, 4294901760
    %6281 = vmatmul.mubr.f32.gmra.mrb[0].mxu0 %v6280
    %v6282 = vpop.f32.mrb[0].mxu0
    %v6283 = vadd.f32 %v6127, %v6282
    %v6284 = vpop.f32.mrb[0].mxu0
    %v6285 = vadd.f32 %v6129, %v6284
    %6286 = vdwg.mxu0
    %v6287 = vand.u32 %v809, 4294901760
    %v6288 = vsub.f32 %v809, %v6287
    %6289 = vmatprep.subr.mxu0 %v6288
    %v6290 = vand.u32 %v808, 4294901760
    %v6291 = vsub.f32 %v808, %v6290
    %6292 = vmatpush1.msra.mxu0 %v6291
    %v6293 = vand.u32 %v825, 4294901760
    %v6294 = vsub.f32 %v825, %v6293
    %6295 = vmatprep.subr.mxu0 %v6294
    %v6296 = vand.u32 %v824, 4294901760
    %v6297 = vsub.f32 %v824, %v6296
    %6298 = vmatpush1.msra.mxu0 %v6297
    %v6299 = vand.u32 %v841, 4294901760
    %v6300 = vsub.f32 %v841, %v6299
    %6301 = vmatprep.subr.mxu0 %v6300
    %v6302 = vand.u32 %v840, 4294901760
    %v6303 = vsub.f32 %v840, %v6302
    %6304 = vmatpush1.msra.mxu0 %v6303
    %v6305 = vand.u32 %v857, 4294901760
    %v6306 = vsub.f32 %v857, %v6305
    %6307 = vmatprep.subr.mxu0 %v6306
    %v6308 = vand.u32 %v856, 4294901760
    %v6309 = vsub.f32 %v856, %v6308
    %6310 = vmatpush1.msra.mxu0 %v6309
    %v6311 = vand.u32 %v873, 4294901760
    %v6312 = vsub.f32 %v873, %v6311
    %6313 = vmatprep.subr.mxu0 %v6312
    %v6314 = vand.u32 %v872, 4294901760
    %v6315 = vsub.f32 %v872, %v6314
    %6316 = vmatpush1.msra.mxu0 %v6315
    %v6317 = vand.u32 %v889, 4294901760
    %v6318 = vsub.f32 %v889, %v6317
    %6319 = vmatprep.subr.mxu0 %v6318
    %v6320 = vand.u32 %v888, 4294901760
    %v6321 = vsub.f32 %v888, %v6320
    %6322 = vmatpush1.msra.mxu0 %v6321
    %v6323 = vand.u32 %v984, 4294901760
    %v6324 = vsub.f32 %v984, %v6323
    %6325 = vmatprep.subr.mxu0 %v6324
    %v6326 = vand.u32 %v981, 4294901760
    %v6327 = vsub.f32 %v981, %v6326
    %6328 = vmatpush1.msra.mxu0 %v6327
    %6329 = vmatprep.subr.mxu0 0.0
    %6330 = vmatpush1.msra.mxu0 0.0
    %6331 = vmatprep.subr.mxu0 0.0
    %6332 = vmatpush1.msra.mxu0 0.0
    %6333 = vmatprep.subr.mxu0 0.0
    %6334 = vmatpush1.msra.mxu0 0.0
    %6335 = vmatprep.subr.mxu0 0.0
    %6336 = vmatpush1.msra.mxu0 0.0
    %6337 = vmatprep.subr.mxu0 0.0
    %6338 = vmatpush1.msra.mxu0 0.0
    %6339 = vmatprep.subr.mxu0 0.0
    %6340 = vmatpush1.msra.mxu0 0.0
    %6341 = vmatprep.subr.mxu0 0.0
    %6342 = vmatpush1.msra.mxu0 0.0
    %6343 = vmatprep.subr.mxu0 0.0
    %6344 = vmatpush1.msra.mxu0 0.0
    %6345 = vmatprep.subr.mxu0 0.0
    %6346 = vmatpush1.msra.mxu0 0.0
    %6347 = vmatprep.subr.mxu0 0.0
    %6348 = vmatpush1.msra.mxu0 0.0
    %6349 = vmatprep.subr.mxu0 0.0
    %6350 = vmatpush1.msra.mxu0 0.0
    %6351 = vmatprep.subr.mxu0 0.0
    %6352 = vmatpush1.msra.mxu0 0.0
    %6353 = vmatprep.subr.mxu0 0.0
    %6354 = vmatpush1.msra.mxu0 0.0
    %6355 = vmatprep.subr.mxu0 0.0
    %6356 = vmatpush1.msra.mxu0 0.0
    %6357 = vmatprep.subr.mxu0 0.0
    %6358 = vmatpush1.msra.mxu0 0.0
    %6359 = vmatprep.subr.mxu0 0.0
    %6360 = vmatpush1.msra.mxu0 0.0
    %6361 = vmatprep.subr.mxu0 0.0
    %6362 = vmatpush1.msra.mxu0 0.0
    %6363 = vmatprep.subr.mxu0 0.0
    %6364 = vmatpush1.msra.mxu0 0.0
    %6365 = vmatprep.subr.mxu0 0.0
    %6366 = vmatpush1.msra.mxu0 0.0
    %6367 = vmatprep.subr.mxu0 0.0
    %6368 = vmatpush1.msra.mxu0 0.0
    %6369 = vmatprep.subr.mxu0 0.0
    %6370 = vmatpush1.msra.mxu0 0.0
    %6371 = vmatprep.subr.mxu0 0.0
    %6372 = vmatpush1.msra.mxu0 0.0
    %6373 = vmatprep.subr.mxu0 0.0
    %6374 = vmatpush1.msra.mxu0 0.0
    %6375 = vmatprep.subr.mxu0 0.0
    %6376 = vmatpush1.msra.mxu0 0.0
    %6377 = vmatprep.subr.mxu0 0.0
    %6378 = vmatpush1.msra.mxu0 0.0
    %6379 = vmatprep.mubr.f32.mxu0 0.0
    %v6380 = vand.u32 %v929, 4294901760
    %v6381 = vsub.f32 %v929, %v6380
    %6382 = vmatmul.mubr.f32.gmra.mrb[0].mxu0 %v6381
    %v6383 = vpop.f32.mrb[0].mxu0
    %v6384 = vadd.f32 %v6269, %v6383
    %v6385 = vpop.f32.mrb[0].mxu0
    %v6386 = vadd.f32 %v6271, %v6385
    %6387 = vmatprep.mubr.f32.mxu0 0.0
    %v6388 = vand.u32 %v932, 4294901760
    %v6389 = vsub.f32 %v932, %v6388
    %6390 = vmatmul.mubr.f32.gmra.mrb[0].mxu0 %v6389
    %v6391 = vpop.f32.mrb[0].mxu0
    %v6392 = vadd.f32 %v6276, %v6391
    %v6393 = vpop.f32.mrb[0].mxu0
    %v6394 = vadd.f32 %v6278, %v6393
    %6395 = vmatprep.mubr.f32.mxu0 0.0
    %v6396 = vand.u32 %v935, 4294901760
    %v6397 = vsub.f32 %v935, %v6396
    %6398 = vmatmul.mubr.f32.gmra.mrb[0].mxu0 %v6397
    %v6399 = vpop.f32.mrb[0].mxu0
    %v6400 = vadd.f32 %v6283, %v6399
    %v6401 = vpop.f32.mrb[0].mxu0
    %v6402 = vadd.f32 %v6285, %v6401
    %6403 = vdwg.mxu0
    %v6404 = vand.u32 %v809, 4294901760
    %6405 = vmatprep.subr.mxu0 %v6404
    %v6406 = vand.u32 %v808, 4294901760
    %6407 = vmatpush1.msra.mxu0 %v6406
    %v6408 = vand.u32 %v825, 4294901760
    %6409 = vmatprep.subr.mxu0 %v6408
    %v6410 = vand.u32 %v824, 4294901760
    %6411 = vmatpush1.msra.mxu0 %v6410
    %v6412 = vand.u32 %v841, 4294901760
    %6413 = vmatprep.subr.mxu0 %v6412
    %v6414 = vand.u32 %v840, 4294901760
    %6415 = vmatpush1.msra.mxu0 %v6414
    %v6416 = vand.u32 %v857, 4294901760
    %6417 = vmatprep.subr.mxu0 %v6416
    %v6418 = vand.u32 %v856, 4294901760
    %6419 = vmatpush1.msra.mxu0 %v6418
    %v6420 = vand.u32 %v873, 4294901760
    %6421 = vmatprep.subr.mxu0 %v6420
    %v6422 = vand.u32 %v872, 4294901760
    %6423 = vmatpush1.msra.mxu0 %v6422
    %v6424 = vand.u32 %v889, 4294901760
    %6425 = vmatprep.subr.mxu0 %v6424
    %v6426 = vand.u32 %v888, 4294901760
    %6427 = vmatpush1.msra.mxu0 %v6426
    %v6428 = vand.u32 %v984, 4294901760
    %6429 = vmatprep.subr.mxu0 %v6428
    %v6430 = vand.u32 %v981, 4294901760
    %6431 = vmatpush1.msra.mxu0 %v6430
    %6432 = vmatprep.subr.mxu0 0.0
    %6433 = vmatpush1.msra.mxu0 0.0
    %6434 = vmatprep.subr.mxu0 0.0
    %6435 = vmatpush1.msra.mxu0 0.0
    %6436 = vmatprep.subr.mxu0 0.0
    %6437 = vmatpush1.msra.mxu0 0.0
    %6438 = vmatprep.subr.mxu0 0.0
    %6439 = vmatpush1.msra.mxu0 0.0
    %6440 = vmatprep.subr.mxu0 0.0
    %6441 = vmatpush1.msra.mxu0 0.0
    %6442 = vmatprep.subr.mxu0 0.0
    %6443 = vmatpush1.msra.mxu0 0.0
    %6444 = vmatprep.subr.mxu0 0.0
    %6445 = vmatpush1.msra.mxu0 0.0
    %6446 = vmatprep.subr.mxu0 0.0
    %6447 = vmatpush1.msra.mxu0 0.0
    %6448 = vmatprep.subr.mxu0 0.0
    %6449 = vmatpush1.msra.mxu0 0.0
    %6450 = vmatprep.subr.mxu0 0.0
    %6451 = vmatpush1.msra.mxu0 0.0
    %6452 = vmatprep.subr.mxu0 0.0
    %6453 = vmatpush1.msra.mxu0 0.0
    %6454 = vmatprep.subr.mxu0 0.0
    %6455 = vmatpush1.msra.mxu0 0.0
    %6456 = vmatprep.subr.mxu0 0.0
    %6457 = vmatpush1.msra.mxu0 0.0
    %6458 = vmatprep.subr.mxu0 0.0
    %6459 = vmatpush1.msra.mxu0 0.0
    %6460 = vmatprep.subr.mxu0 0.0
    %6461 = vmatpush1.msra.mxu0 0.0
    %6462 = vmatprep.subr.mxu0 0.0
    %6463 = vmatpush1.msra.mxu0 0.0
    %6464 = vmatprep.subr.mxu0 0.0
    %6465 = vmatpush1.msra.mxu0 0.0
    %6466 = vmatprep.subr.mxu0 0.0
    %6467 = vmatpush1.msra.mxu0 0.0
    %6468 = vmatprep.subr.mxu0 0.0
    %6469 = vmatpush1.msra.mxu0 0.0
    %6470 = vmatprep.subr.mxu0 0.0
    %6471 = vmatpush1.msra.mxu0 0.0
    %6472 = vmatprep.subr.mxu0 0.0
    %6473 = vmatpush1.msra.mxu0 0.0
    %6474 = vmatprep.subr.mxu0 0.0
    %6475 = vmatpush1.msra.mxu0 0.0
    %6476 = vmatprep.subr.mxu0 0.0
    %6477 = vmatpush1.msra.mxu0 0.0
    %6478 = vmatprep.subr.mxu0 0.0
    %6479 = vmatpush1.msra.mxu0 0.0
    %6480 = vmatprep.subr.mxu0 0.0
    %6481 = vmatpush1.msra.mxu0 0.0
    %6482 = vmatprep.mubr.f32.mxu0 0.0
    %v6483 = vand.u32 %v929, 4294901760
    %v6484 = vsub.f32 %v929, %v6483
    %v6485 = vand.u32 %v6484, 4294901760
    %6486 = vmatmul.mubr.f32.gmra.mrb[0].mxu0 %v6485
    %v6487 = vpop.f32.mrb[0].mxu0
    %v6488 = vadd.f32 %v6384, %v6487
    %v6489 = vpop.f32.mrb[0].mxu0
    %v6490 = vadd.f32 %v6386, %v6489
    %6491 = vmatprep.mubr.f32.mxu0 0.0
    %v6492 = vand.u32 %v932, 4294901760
    %v6493 = vsub.f32 %v932, %v6492
    %v6494 = vand.u32 %v6493, 4294901760
    %6495 = vmatmul.mubr.f32.gmra.mrb[0].mxu0 %v6494
    %v6496 = vpop.f32.mrb[0].mxu0
    %v6497 = vadd.f32 %v6392, %v6496
    %v6498 = vpop.f32.mrb[0].mxu0
    %v6499 = vadd.f32 %v6394, %v6498
    %6500 = vmatprep.mubr.f32.mxu0 0.0
    %v6501 = vand.u32 %v935, 4294901760
    %v6502 = vsub.f32 %v935, %v6501
    %v6503 = vand.u32 %v6502, 4294901760
    %6504 = vmatmul.mubr.f32.gmra.mrb[0].mxu0 %v6503
    %v6505 = vpop.f32.mrb[0].mxu0
    %v6506 = vadd.f32 %v6400, %v6505
    %v6507 = vpop.f32.mrb[0].mxu0
    %v6508 = vadd.f32 %v6402, %v6507
    %6509 = vdwg.mxu0
    %v6510 = vand.u32 %v809, 4294901760
    %v6511 = vsub.f32 %v809, %v6510
    %v6512 = vand.u32 %v6511, 4294901760
    %6513 = vmatprep.subr.mxu0 %v6512
    %v6514 = vand.u32 %v808, 4294901760
    %v6515 = vsub.f32 %v808, %v6514
    %v6516 = vand.u32 %v6515, 4294901760
    %6517 = vmatpush1.msra.mxu0 %v6516
    %v6518 = vand.u32 %v825, 4294901760
    %v6519 = vsub.f32 %v825, %v6518
    %v6520 = vand.u32 %v6519, 4294901760
    %6521 = vmatprep.subr.mxu0 %v6520
    %v6522 = vand.u32 %v824, 4294901760
    %v6523 = vsub.f32 %v824, %v6522
    %v6524 = vand.u32 %v6523, 4294901760
    %6525 = vmatpush1.msra.mxu0 %v6524
    %v6526 = vand.u32 %v841, 4294901760
    %v6527 = vsub.f32 %v841, %v6526
    %v6528 = vand.u32 %v6527, 4294901760
    %6529 = vmatprep.subr.mxu0 %v6528
    %v6530 = vand.u32 %v840, 4294901760
    %v6531 = vsub.f32 %v840, %v6530
    %v6532 = vand.u32 %v6531, 4294901760
    %6533 = vmatpush1.msra.mxu0 %v6532
    %v6534 = vand.u32 %v857, 4294901760
    %v6535 = vsub.f32 %v857, %v6534
    %v6536 = vand.u32 %v6535, 4294901760
    %6537 = vmatprep.subr.mxu0 %v6536
    %v6538 = vand.u32 %v856, 4294901760
    %v6539 = vsub.f32 %v856, %v6538
    %v6540 = vand.u32 %v6539, 4294901760
    %6541 = vmatpush1.msra.mxu0 %v6540
    %v6542 = vand.u32 %v873, 4294901760
    %v6543 = vsub.f32 %v873, %v6542
    %v6544 = vand.u32 %v6543, 4294901760
    %6545 = vmatprep.subr.mxu0 %v6544
    %v6546 = vand.u32 %v872, 4294901760
    %v6547 = vsub.f32 %v872, %v6546
    %v6548 = vand.u32 %v6547, 4294901760
    %6549 = vmatpush1.msra.mxu0 %v6548
    %v6550 = vand.u32 %v889, 4294901760
    %v6551 = vsub.f32 %v889, %v6550
    %v6552 = vand.u32 %v6551, 4294901760
    %6553 = vmatprep.subr.mxu0 %v6552
    %v6554 = vand.u32 %v888, 4294901760
    %v6555 = vsub.f32 %v888, %v6554
    %v6556 = vand.u32 %v6555, 4294901760
    %6557 = vmatpush1.msra.mxu0 %v6556
    %v6558 = vand.u32 %v984, 4294901760
    %v6559 = vsub.f32 %v984, %v6558
    %v6560 = vand.u32 %v6559, 4294901760
    %6561 = vmatprep.subr.mxu0 %v6560
    %v6562 = vand.u32 %v981, 4294901760
    %v6563 = vsub.f32 %v981, %v6562
    %v6564 = vand.u32 %v6563, 4294901760
    %6565 = vmatpush1.msra.mxu0 %v6564
    %6566 = vmatprep.subr.mxu0 0.0
    %6567 = vmatpush1.msra.mxu0 0.0
    %6568 = vmatprep.subr.mxu0 0.0
    %6569 = vmatpush1.msra.mxu0 0.0
    %6570 = vmatprep.subr.mxu0 0.0
    %6571 = vmatpush1.msra.mxu0 0.0
    %6572 = vmatprep.subr.mxu0 0.0
    %6573 = vmatpush1.msra.mxu0 0.0
    %6574 = vmatprep.subr.mxu0 0.0
    %6575 = vmatpush1.msra.mxu0 0.0
    %6576 = vmatprep.subr.mxu0 0.0
    %6577 = vmatpush1.msra.mxu0 0.0
    %6578 = vmatprep.subr.mxu0 0.0
    %6579 = vmatpush1.msra.mxu0 0.0
    %6580 = vmatprep.subr.mxu0 0.0
    %6581 = vmatpush1.msra.mxu0 0.0
    %6582 = vmatprep.subr.mxu0 0.0
    %6583 = vmatpush1.msra.mxu0 0.0
    %6584 = vmatprep.subr.mxu0 0.0
    %6585 = vmatpush1.msra.mxu0 0.0
    %6586 = vmatprep.subr.mxu0 0.0
    %6587 = vmatpush1.msra.mxu0 0.0
    %6588 = vmatprep.subr.mxu0 0.0
    %6589 = vmatpush1.msra.mxu0 0.0
    %6590 = vmatprep.subr.mxu0 0.0
    %6591 = vmatpush1.msra.mxu0 0.0
    %6592 = vmatprep.subr.mxu0 0.0
    %6593 = vmatpush1.msra.mxu0 0.0
    %6594 = vmatprep.subr.mxu0 0.0
    %6595 = vmatpush1.msra.mxu0 0.0
    %6596 = vmatprep.subr.mxu0 0.0
    %6597 = vmatpush1.msra.mxu0 0.0
    %6598 = vmatprep.subr.mxu0 0.0
    %6599 = vmatpush1.msra.mxu0 0.0
    %6600 = vmatprep.subr.mxu0 0.0
    %6601 = vmatpush1.msra.mxu0 0.0
    %6602 = vmatprep.subr.mxu0 0.0
    %6603 = vmatpush1.msra.mxu0 0.0
    %6604 = vmatprep.subr.mxu0 0.0
    %6605 = vmatpush1.msra.mxu0 0.0
    %6606 = vmatprep.subr.mxu0 0.0
    %6607 = vmatpush1.msra.mxu0 0.0
    %6608 = vmatprep.subr.mxu0 0.0
    %6609 = vmatpush1.msra.mxu0 0.0
    %6610 = vmatprep.subr.mxu0 0.0
    %6611 = vmatpush1.msra.mxu0 0.0
    %6612 = vmatprep.subr.mxu0 0.0
    %6613 = vmatpush1.msra.mxu0 0.0
    %6614 = vmatprep.subr.mxu0 0.0
    %6615 = vmatpush1.msra.mxu0 0.0
    %6616 = vmatprep.mubr.f32.mxu0 0.0
    %v6617 = vand.u32 %v929, 4294901760
    %6618 = vmatmul.mubr.f32.gmra.mrb[0].mxu0 %v6617
    %v6619 = vpop.f32.mrb[0].mxu0
    %v6620 = vadd.f32 %v6488, %v6619
    %v6621 = vpop.f32.mrb[0].mxu0
    %v6622 = vadd.f32 %v6490, %v6621
    %6623 = vmatprep.mubr.f32.mxu0 0.0
    %v6624 = vand.u32 %v932, 4294901760
    %6625 = vmatmul.mubr.f32.gmra.mrb[0].mxu0 %v6624
    %v6626 = vpop.f32.mrb[0].mxu0
    %v6627 = vadd.f32 %v6497, %v6626
    %v6628 = vpop.f32.mrb[0].mxu0
    %v6629 = vadd.f32 %v6499, %v6628
    %6630 = vmatprep.mubr.f32.mxu0 0.0
    %v6631 = vand.u32 %v935, 4294901760
    %6632 = vmatmul.mubr.f32.gmra.mrb[0].mxu0 %v6631
    %v6633 = vpop.f32.mrb[0].mxu0
    %v6634 = vadd.f32 %v6506, %v6633
    %v6635 = vpop.f32.mrb[0].mxu0
    %v6636 = vadd.f32 %v6508, %v6635
    %6637 = vdwg.mxu0
    %v6638 = vand.u32 %v809, 4294901760
    %6639 = vmatprep.subr.mxu0 %v6638
    %v6640 = vand.u32 %v808, 4294901760
    %6641 = vmatpush1.msra.mxu0 %v6640
    %v6642 = vand.u32 %v825, 4294901760
    %6643 = vmatprep.subr.mxu0 %v6642
    %v6644 = vand.u32 %v824, 4294901760
    %6645 = vmatpush1.msra.mxu0 %v6644
    %v6646 = vand.u32 %v841, 4294901760
    %6647 = vmatprep.subr.mxu0 %v6646
    %v6648 = vand.u32 %v840, 4294901760
    %6649 = vmatpush1.msra.mxu0 %v6648
    %v6650 = vand.u32 %v857, 4294901760
    %6651 = vmatprep.subr.mxu0 %v6650
    %v6652 = vand.u32 %v856, 4294901760
    %6653 = vmatpush1.msra.mxu0 %v6652
    %v6654 = vand.u32 %v873, 4294901760
    %6655 = vmatprep.subr.mxu0 %v6654
    %v6656 = vand.u32 %v872, 4294901760
    %6657 = vmatpush1.msra.mxu0 %v6656
    %v6658 = vand.u32 %v889, 4294901760
    %6659 = vmatprep.subr.mxu0 %v6658
    %v6660 = vand.u32 %v888, 4294901760
    %6661 = vmatpush1.msra.mxu0 %v6660
    %v6662 = vand.u32 %v984, 4294901760
    %6663 = vmatprep.subr.mxu0 %v6662
    %v6664 = vand.u32 %v981, 4294901760
    %6665 = vmatpush1.msra.mxu0 %v6664
    %6666 = vmatprep.subr.mxu0 0.0
    %6667 = vmatpush1.msra.mxu0 0.0
    %6668 = vmatprep.subr.mxu0 0.0
    %6669 = vmatpush1.msra.mxu0 0.0
    %6670 = vmatprep.subr.mxu0 0.0
    %6671 = vmatpush1.msra.mxu0 0.0
    %6672 = vmatprep.subr.mxu0 0.0
    %6673 = vmatpush1.msra.mxu0 0.0
    %6674 = vmatprep.subr.mxu0 0.0
    %6675 = vmatpush1.msra.mxu0 0.0
    %6676 = vmatprep.subr.mxu0 0.0
    %6677 = vmatpush1.msra.mxu0 0.0
    %6678 = vmatprep.subr.mxu0 0.0
    %6679 = vmatpush1.msra.mxu0 0.0
    %6680 = vmatprep.subr.mxu0 0.0
    %6681 = vmatpush1.msra.mxu0 0.0
    %6682 = vmatprep.subr.mxu0 0.0
    %6683 = vmatpush1.msra.mxu0 0.0
    %6684 = vmatprep.subr.mxu0 0.0
    %6685 = vmatpush1.msra.mxu0 0.0
    %6686 = vmatprep.subr.mxu0 0.0
    %6687 = vmatpush1.msra.mxu0 0.0
    %6688 = vmatprep.subr.mxu0 0.0
    %6689 = vmatpush1.msra.mxu0 0.0
    %6690 = vmatprep.subr.mxu0 0.0
    %6691 = vmatpush1.msra.mxu0 0.0
    %6692 = vmatprep.subr.mxu0 0.0
    %6693 = vmatpush1.msra.mxu0 0.0
    %6694 = vmatprep.subr.mxu0 0.0
    %6695 = vmatpush1.msra.mxu0 0.0
    %6696 = vmatprep.subr.mxu0 0.0
    %6697 = vmatpush1.msra.mxu0 0.0
    %6698 = vmatprep.subr.mxu0 0.0
    %6699 = vmatpush1.msra.mxu0 0.0
    %6700 = vmatprep.subr.mxu0 0.0
    %6701 = vmatpush1.msra.mxu0 0.0
    %6702 = vmatprep.subr.mxu0 0.0
    %6703 = vmatpush1.msra.mxu0 0.0
    %6704 = vmatprep.subr.mxu0 0.0
    %6705 = vmatpush1.msra.mxu0 0.0
    %6706 = vmatprep.subr.mxu0 0.0
    %6707 = vmatpush1.msra.mxu0 0.0
    %6708 = vmatprep.subr.mxu0 0.0
    %6709 = vmatpush1.msra.mxu0 0.0
    %6710 = vmatprep.subr.mxu0 0.0
    %6711 = vmatpush1.msra.mxu0 0.0
    %6712 = vmatprep.subr.mxu0 0.0
    %6713 = vmatpush1.msra.mxu0 0.0
    %6714 = vmatprep.subr.mxu0 0.0
    %6715 = vmatpush1.msra.mxu0 0.0
    %6716 = vmatprep.mubr.f32.mxu0 0.0
    %v6717 = vand.u32 %v929, 4294901760
    %6718 = vmatmul.mubr.f32.gmra.mrb[0].mxu0 %v6717
    %v6719 = vpop.f32.mrb[0].mxu0
    %v6720 = vadd.f32 %v6620, %v6719
    %v6721 = vpop.f32.mrb[0].mxu0
    %v6722 = vadd.f32 %v6622, %v6721
    %6723 = vmatprep.mubr.f32.mxu0 0.0
    %v6724 = vand.u32 %v932, 4294901760
    %6725 = vmatmul.mubr.f32.gmra.mrb[0].mxu0 %v6724
    %v6726 = vpop.f32.mrb[0].mxu0
    %v6727 = vadd.f32 %v6627, %v6726
    %v6728 = vpop.f32.mrb[0].mxu0
    %v6729 = vadd.f32 %v6629, %v6728
    %6730 = vmatprep.mubr.f32.mxu0 0.0
    %v6731 = vand.u32 %v935, 4294901760
    %6732 = vmatmul.mubr.f32.gmra.mrb[0].mxu0 %v6731
    %v6733 = vpop.f32.mrb[0].mxu0
    %v6734 = vadd.f32 %v6634, %v6733
    %v6735 = vpop.f32.mrb[0].mxu0
    %v6736 = vadd.f32 %v6636, %v6735
    %6737 = vdwg.mxu0
    %v6738 = vtanh.pop %v1687
    %v6739 = vtanh.pop %v1689
    %v6740 = vtanh.pop %v2406
    %v6741 = vtanh.pop %v2408
    %v6742 = vtanh.pop %v3125
    %v6743 = vtanh.pop %v3127
    %v6744 = vtanh.pop %v3844
    %v6745 = vtanh.pop %v3846
    %v6746 = vtanh.pop %v4563
    %v6747 = vtanh.pop %v4565
    %v6748 = vtanh.pop %v5282
    %v6749 = vtanh.pop %v5284
    %v6750 = vtanh.pop %v6001
    %v6751 = vtanh.pop %v6003
    %v6752 = vtanh.pop %v6720
    %v6753 = vtanh.pop %v6722
    %v6754 = vtanh.pop %v1694
    %v6755 = vtanh.pop %v1696
    %v6756 = vtanh.pop %v2413
    %v6757 = vtanh.pop %v2415
    %v6758 = vtanh.pop %v3132
    %v6759 = vtanh.pop %v3134
    %v6760 = vtanh.pop %v3851
    %v6761 = vtanh.pop %v3853
    %v6762 = vtanh.pop %v4570
    %v6763 = vtanh.pop %v4572
    %v6764 = vtanh.pop %v5289
    %v6765 = vtanh.pop %v5291
    %v6766 = vtanh.pop %v6008
    %v6767 = vtanh.pop %v6010
    %v6768 = vtanh.pop %v6727
    %v6769 = vtanh.pop %v6729
    %v6770 = vtanh.pop %v1701
    %v6771 = vtanh.pop %v1703
    %v6772 = vtanh.pop %v2420
    %v6773 = vtanh.pop %v2422
    %v6774 = vtanh.pop %v3139
    %v6775 = vtanh.pop %v3141
    %v6776 = vtanh.pop %v3858
    %v6777 = vtanh.pop %v3860
    %v6778 = vtanh.pop %v4577
    %v6779 = vtanh.pop %v4579
    %v6780 = vtanh.pop %v5296
    %v6781 = vtanh.pop %v5298
    %v6782 = vtanh.pop %v6015
    %v6783 = vtanh.pop %v6017
    %v6784 = vtanh.pop %v6734
    %v6785 = vtanh.pop %v6736
    %v6786 = vld [vmem:[#allocation7 + $0xd8] sm:$0xff]
    %v6787 = vld [vmem:[#allocation7 + $0xe0] sm:$0x3]
    %v6788 = vld [vmem:[#allocation7 + $0xe8] sm:$0xff]
    %v6789 = vld [vmem:[#allocation7 + $0xf0] sm:$0x3]
    %6791 = vset.pattern.permute.xlu0 0
    %6792 = vperm.xlu0 %6791, %v6788
    %v6793 = vpop.permute.xlu0 %6792
    %6796 = vset.pattern.permute.xlu0 0
    %6797 = vperm.xlu0 %6796, %v6789
    %v6798 = vpop.permute.xlu0 %6797
    %vm6800 = vcmask 162816
    %v6802 = vsel %vm6800, %v6786, 0
    %v6805 = vsel %vm6800, %v6787, 0
    %vm6807 = vcmask 1043456
    %v6809 = vsel %vm6807, %v6770, 0
    %v6812 = vsel %vm6807, %v6771, 0
    %v6815 = vsel %vm6807, %v6772, 0
    %v6818 = vsel %vm6807, %v6773, 0
    %v6821 = vsel %vm6807, %v6774, 0
    %v6824 = vsel %vm6807, %v6775, 0
    %v6827 = vsel %vm6807, %v6776, 0
    %v6830 = vsel %vm6807, %v6777, 0
    %v6833 = vsel %vm6807, %v6778, 0
    %v6836 = vsel %vm6807, %v6779, 0
    %v6839 = vsel %vm6807, %v6780, 0
    %v6842 = vsel %vm6807, %v6781, 0
    %v6845 = vsel %vm6807, %v6782, 0
    %v6848 = vsel %vm6807, %v6783, 0
    %v6851 = vsel %vm6807, %v6784, 0
    %v6854 = vsel %vm6807, %v6785, 0
    %v6856 = vand.u32 %v6739, 4294901760
    %6857 = vmatprep.subr.mxu0 %v6856
    %v6858 = vand.u32 %v6738, 4294901760
    %6859 = vmatpush1.msra.mxu0 %v6858
    %v6860 = vand.u32 %v6755, 4294901760
    %6861 = vmatprep.subr.mxu0 %v6860
    %v6862 = vand.u32 %v6754, 4294901760
    %6863 = vmatpush1.msra.mxu0 %v6862
    %v6864 = vand.u32 %v6812, 4294901760
    %6865 = vmatprep.subr.mxu0 %v6864
    %v6866 = vand.u32 %v6809, 4294901760
    %6867 = vmatpush1.msra.mxu0 %v6866
    %6868 = vmatprep.subr.mxu0 0.0
    %6869 = vmatpush1.msra.mxu0 0.0
    %6870 = vmatprep.subr.mxu0 0.0
    %6871 = vmatpush1.msra.mxu0 0.0
    %6872 = vmatprep.subr.mxu0 0.0
    %6873 = vmatpush1.msra.mxu0 0.0
    %6874 = vmatprep.subr.mxu0 0.0
    %6875 = vmatpush1.msra.mxu0 0.0
    %6876 = vmatprep.subr.mxu0 0.0
    %6877 = vmatpush1.msra.mxu0 0.0
    %6878 = vmatprep.subr.mxu0 0.0
    %6879 = vmatpush1.msra.mxu0 0.0
    %6880 = vmatprep.subr.mxu0 0.0
    %6881 = vmatpush1.msra.mxu0 0.0
    %6882 = vmatprep.subr.mxu0 0.0
    %6883 = vmatpush1.msra.mxu0 0.0
    %6884 = vmatprep.subr.mxu0 0.0
    %6885 = vmatpush1.msra.mxu0 0.0
    %6886 = vmatprep.subr.mxu0 0.0
    %6887 = vmatpush1.msra.mxu0 0.0
    %6888 = vmatprep.subr.mxu0 0.0
    %6889 = vmatpush1.msra.mxu0 0.0
    %6890 = vmatprep.subr.mxu0 0.0
    %6891 = vmatpush1.msra.mxu0 0.0
    %6892 = vmatprep.subr.mxu0 0.0
    %6893 = vmatpush1.msra.mxu0 0.0
    %6894 = vmatprep.subr.mxu0 0.0
    %6895 = vmatpush1.msra.mxu0 0.0
    %6896 = vmatprep.subr.mxu0 0.0
    %6897 = vmatpush1.msra.mxu0 0.0
    %6898 = vmatprep.subr.mxu0 0.0
    %6899 = vmatpush1.msra.mxu0 0.0
    %6900 = vmatprep.subr.mxu0 0.0
    %6901 = vmatpush1.msra.mxu0 0.0
    %6902 = vmatprep.subr.mxu0 0.0
    %6903 = vmatpush1.msra.mxu0 0.0
    %6904 = vmatprep.subr.mxu0 0.0
    %6905 = vmatpush1.msra.mxu0 0.0
    %6906 = vmatprep.subr.mxu0 0.0
    %6907 = vmatpush1.msra.mxu0 0.0
    %6908 = vmatprep.subr.mxu0 0.0
    %6909 = vmatpush1.msra.mxu0 0.0
    %6910 = vmatprep.subr.mxu0 0.0
    %6911 = vmatpush1.msra.mxu0 0.0
    %6912 = vmatprep.subr.mxu0 0.0
    %6913 = vmatpush1.msra.mxu0 0.0
    %6914 = vmatprep.subr.mxu0 0.0
    %6915 = vmatpush1.msra.mxu0 0.0
    %6916 = vmatprep.subr.mxu0 0.0
    %6917 = vmatpush1.msra.mxu0 0.0
    %6918 = vmatprep.subr.mxu0 0.0
    %6919 = vmatpush1.msra.mxu0 0.0
    %6920 = vmatprep.subr.mxu0 0.0
    %6921 = vmatpush1.msra.mxu0 0.0
    %6922 = vmatprep.subr.mxu0 0.0
    %6923 = vmatpush1.msra.mxu0 0.0
    %6924 = vmatprep.subr.mxu0 0.0
    %6925 = vmatpush1.msra.mxu0 0.0
    %6926 = vmatprep.mubr.f32.mxu0 0.0
    %v6927 = vand.u32 %v6802, 4294901760
    %v6928 = vsub.f32 %v6802, %v6927
    %v6929 = vand.u32 %v6928, 4294901760
    %v6930 = vsub.f32 %v6928, %v6929
    %v6931 = vand.u32 %v6930, 4294901760
    %6932 = vmatmul.mubr.f32.gmra.mrb[0].mxu0 %v6931
    %v6933 = vpop.f32.mrb[0].mxu0
    %v6934 = vadd.f32 %v6793, %v6933
    %v6935 = vpop.f32.mrb[0].mxu0
    %v6936 = vadd.f32 %v6793, %v6935
    %6937 = vmatprep.mubr.f32.mxu0 0.0
    %v6938 = vand.u32 %v6805, 4294901760
    %v6939 = vsub.f32 %v6805, %v6938
    %v6940 = vand.u32 %v6939, 4294901760
    %v6941 = vsub.f32 %v6939, %v6940
    %v6942 = vand.u32 %v6941, 4294901760
    %6943 = vmatmul.mubr.f32.gmra.mrb[0].mxu0 %v6942
    %v6944 = vpop.f32.mrb[0].mxu0
    %v6945 = vadd.f32 %v6798, %v6944
    %v6946 = vpop.f32.mrb[0].mxu0
    %v6947 = vadd.f32 %v6798, %v6946
    %6948 = vdwg.mxu0
    %v6949 = vand.u32 %v6739, 4294901760
    %v6950 = vsub.f32 %v6739, %v6949
    %v6951 = vand.u32 %v6950, 4294901760
    %v6952 = vsub.f32 %v6950, %v6951
    %v6953 = vand.u32 %v6952, 4294901760
    %6954 = vmatprep.subr.mxu0 %v6953
    %v6955 = vand.u32 %v6738, 4294901760
    %v6956 = vsub.f32 %v6738, %v6955
    %v6957 = vand.u32 %v6956, 4294901760
    %v6958 = vsub.f32 %v6956, %v6957
    %v6959 = vand.u32 %v6958, 4294901760
    %6960 = vmatpush1.msra.mxu0 %v6959
    %v6961 = vand.u32 %v6755, 4294901760
    %v6962 = vsub.f32 %v6755, %v6961
    %v6963 = vand.u32 %v6962, 4294901760
    %v6964 = vsub.f32 %v6962, %v6963
    %v6965 = vand.u32 %v6964, 4294901760
    %6966 = vmatprep.subr.mxu0 %v6965
    %v6967 = vand.u32 %v6754, 4294901760
    %v6968 = vsub.f32 %v6754, %v6967
    %v6969 = vand.u32 %v6968, 4294901760
    %v6970 = vsub.f32 %v6968, %v6969
    %v6971 = vand.u32 %v6970, 4294901760
    %6972 = vmatpush1.msra.mxu0 %v6971
    %v6973 = vand.u32 %v6812, 4294901760
    %v6974 = vsub.f32 %v6812, %v6973
    %v6975 = vand.u32 %v6974, 4294901760
    %v6976 = vsub.f32 %v6974, %v6975
    %v6977 = vand.u32 %v6976, 4294901760
    %6978 = vmatprep.subr.mxu0 %v6977
    %v6979 = vand.u32 %v6809, 4294901760
    %v6980 = vsub.f32 %v6809, %v6979
    %v6981 = vand.u32 %v6980, 4294901760
    %v6982 = vsub.f32 %v6980, %v6981
    %v6983 = vand.u32 %v6982, 4294901760
    %6984 = vmatpush1.msra.mxu0 %v6983
    %6985 = vmatprep.subr.mxu0 0.0
    %6986 = vmatpush1.msra.mxu0 0.0
    %6987 = vmatprep.subr.mxu0 0.0
    %6988 = vmatpush1.msra.mxu0 0.0
    %6989 = vmatprep.subr.mxu0 0.0
    %6990 = vmatpush1.msra.mxu0 0.0
    %6991 = vmatprep.subr.mxu0 0.0
    %6992 = vmatpush1.msra.mxu0 0.0
    %6993 = vmatprep.subr.mxu0 0.0
    %6994 = vmatpush1.msra.mxu0 0.0
    %6995 = vmatprep.subr.mxu0 0.0
    %6996 = vmatpush1.msra.mxu0 0.0
    %6997 = vmatprep.subr.mxu0 0.0
    %6998 = vmatpush1.msra.mxu0 0.0
    %6999 = vmatprep.subr.mxu0 0.0
    %7000 = vmatpush1.msra.mxu0 0.0
    %7001 = vmatprep.subr.mxu0 0.0
    %7002 = vmatpush1.msra.mxu0 0.0
    %7003 = vmatprep.subr.mxu0 0.0
    %7004 = vmatpush1.msra.mxu0 0.0
    %7005 = vmatprep.subr.mxu0 0.0
    %7006 = vmatpush1.msra.mxu0 0.0
    %7007 = vmatprep.subr.mxu0 0.0
    %7008 = vmatpush1.msra.mxu0 0.0
    %7009 = vmatprep.subr.mxu0 0.0
    %7010 = vmatpush1.msra.mxu0 0.0
    %7011 = vmatprep.subr.mxu0 0.0
    %7012 = vmatpush1.msra.mxu0 0.0
    %7013 = vmatprep.subr.mxu0 0.0
    %7014 = vmatpush1.msra.mxu0 0.0
    %7015 = vmatprep.subr.mxu0 0.0
    %7016 = vmatpush1.msra.mxu0 0.0
    %7017 = vmatprep.subr.mxu0 0.0
    %7018 = vmatpush1.msra.mxu0 0.0
    %7019 = vmatprep.subr.mxu0 0.0
    %7020 = vmatpush1.msra.mxu0 0.0
    %7021 = vmatprep.subr.mxu0 0.0
    %7022 = vmatpush1.msra.mxu0 0.0
    %7023 = vmatprep.subr.mxu0 0.0
    %7024 = vmatpush1.msra.mxu0 0.0
    %7025 = vmatprep.subr.mxu0 0.0
    %7026 = vmatpush1.msra.mxu0 0.0
    %7027 = vmatprep.subr.mxu0 0.0
    %7028 = vmatpush1.msra.mxu0 0.0
    %7029 = vmatprep.subr.mxu0 0.0
    %7030 = vmatpush1.msra.mxu0 0.0
    %7031 = vmatprep.subr.mxu0 0.0
    %7032 = vmatpush1.msra.mxu0 0.0
    %7033 = vmatprep.subr.mxu0 0.0
    %7034 = vmatpush1.msra.mxu0 0.0
    %7035 = vmatprep.subr.mxu0 0.0
    %7036 = vmatpush1.msra.mxu0 0.0
    %7037 = vmatprep.subr.mxu0 0.0
    %7038 = vmatpush1.msra.mxu0 0.0
    %7039 = vmatprep.subr.mxu0 0.0
    %7040 = vmatpush1.msra.mxu0 0.0
    %7041 = vmatprep.subr.mxu0 0.0
    %7042 = vmatpush1.msra.mxu0 0.0
    %7043 = vmatprep.mubr.f32.mxu0 0.0
    %v7044 = vand.u32 %v6802, 4294901760
    %7045 = vmatmul.mubr.f32.gmra.mrb[0].mxu0 %v7044
    %v7046 = vpop.f32.mrb[0].mxu0
    %v7047 = vadd.f32 %v6934, %v7046
    %v7048 = vpop.f32.mrb[0].mxu0
    %v7049 = vadd.f32 %v6936, %v7048
    %7050 = vmatprep.mubr.f32.mxu0 0.0
    %v7051 = vand.u32 %v6805, 4294901760
    %7052 = vmatmul.mubr.f32.gmra.mrb[0].mxu0 %v7051
    %v7053 = vpop.f32.mrb[0].mxu0
    %v7054 = vadd.f32 %v6945, %v7053
    %v7055 = vpop.f32.mrb[0].mxu0
    %v7056 = vadd.f32 %v6947, %v7055
    %7057 = vdwg.mxu0
    %v7058 = vand.u32 %v6739, 4294901760
    %v7059 = vsub.f32 %v6739, %v7058
    %7060 = vmatprep.subr.mxu0 %v7059
    %v7061 = vand.u32 %v6738, 4294901760
    %v7062 = vsub.f32 %v6738, %v7061
    %7063 = vmatpush1.msra.mxu0 %v7062
    %v7064 = vand.u32 %v6755, 4294901760
    %v7065 = vsub.f32 %v6755, %v7064
    %7066 = vmatprep.subr.mxu0 %v7065
    %v7067 = vand.u32 %v6754, 4294901760
    %v7068 = vsub.f32 %v6754, %v7067
    %7069 = vmatpush1.msra.mxu0 %v7068
    %v7070 = vand.u32 %v6812, 4294901760
    %v7071 = vsub.f32 %v6812, %v7070
    %7072 = vmatprep.subr.mxu0 %v7071
    %v7073 = vand.u32 %v6809, 4294901760
    %v7074 = vsub.f32 %v6809, %v7073
    %7075 = vmatpush1.msra.mxu0 %v7074
    %7076 = vmatprep.subr.mxu0 0.0
    %7077 = vmatpush1.msra.mxu0 0.0
    %7078 = vmatprep.subr.mxu0 0.0
    %7079 = vmatpush1.msra.mxu0 0.0
    %7080 = vmatprep.subr.mxu0 0.0
    %7081 = vmatpush1.msra.mxu0 0.0
    %7082 = vmatprep.subr.mxu0 0.0
    %7083 = vmatpush1.msra.mxu0 0.0
    %7084 = vmatprep.subr.mxu0 0.0
    %7085 = vmatpush1.msra.mxu0 0.0
    %7086 = vmatprep.subr.mxu0 0.0
    %7087 = vmatpush1.msra.mxu0 0.0
    %7088 = vmatprep.subr.mxu0 0.0
    %7089 = vmatpush1.msra.mxu0 0.0
    %7090 = vmatprep.subr.mxu0 0.0
    %7091 = vmatpush1.msra.mxu0 0.0
    %7092 = vmatprep.subr.mxu0 0.0
    %7093 = vmatpush1.msra.mxu0 0.0
    %7094 = vmatprep.subr.mxu0 0.0
    %7095 = vmatpush1.msra.mxu0 0.0
    %7096 = vmatprep.subr.mxu0 0.0
    %7097 = vmatpush1.msra.mxu0 0.0
    %7098 = vmatprep.subr.mxu0 0.0
    %7099 = vmatpush1.msra.mxu0 0.0
    %7100 = vmatprep.subr.mxu0 0.0
    %7101 = vmatpush1.msra.mxu0 0.0
    %7102 = vmatprep.subr.mxu0 0.0
    %7103 = vmatpush1.msra.mxu0 0.0
    %7104 = vmatprep.subr.mxu0 0.0
    %7105 = vmatpush1.msra.mxu0 0.0
    %7106 = vmatprep.subr.mxu0 0.0
    %7107 = vmatpush1.msra.mxu0 0.0
    %7108 = vmatprep.subr.mxu0 0.0
    %7109 = vmatpush1.msra.mxu0 0.0
    %7110 = vmatprep.subr.mxu0 0.0
    %7111 = vmatpush1.msra.mxu0 0.0
    %7112 = vmatprep.subr.mxu0 0.0
    %7113 = vmatpush1.msra.mxu0 0.0
    %7114 = vmatprep.subr.mxu0 0.0
    %7115 = vmatpush1.msra.mxu0 0.0
    %7116 = vmatprep.subr.mxu0 0.0
    %7117 = vmatpush1.msra.mxu0 0.0
    %7118 = vmatprep.subr.mxu0 0.0
    %7119 = vmatpush1.msra.mxu0 0.0
    %7120 = vmatprep.subr.mxu0 0.0
    %7121 = vmatpush1.msra.mxu0 0.0
    %7122 = vmatprep.subr.mxu0 0.0
    %7123 = vmatpush1.msra.mxu0 0.0
    %7124 = vmatprep.subr.mxu0 0.0
    %7125 = vmatpush1.msra.mxu0 0.0
    %7126 = vmatprep.subr.mxu0 0.0
    %7127 = vmatpush1.msra.mxu0 0.0
    %7128 = vmatprep.subr.mxu0 0.0
    %7129 = vmatpush1.msra.mxu0 0.0
    %7130 = vmatprep.subr.mxu0 0.0
    %7131 = vmatpush1.msra.mxu0 0.0
    %7132 = vmatprep.subr.mxu0 0.0
    %7133 = vmatpush1.msra.mxu0 0.0
    %7134 = vmatprep.mubr.f32.mxu0 0.0
    %v7135 = vand.u32 %v6802, 4294901760
    %v7136 = vsub.f32 %v6802, %v7135
    %7137 = vmatmul.mubr.f32.gmra.mrb[0].mxu0 %v7136
    %v7138 = vpop.f32.mrb[0].mxu0
    %v7139 = vadd.f32 %v7047, %v7138
    %v7140 = vpop.f32.mrb[0].mxu0
    %v7141 = vadd.f32 %v7049, %v7140
    %7142 = vmatprep.mubr.f32.mxu0 0.0
    %v7143 = vand.u32 %v6805, 4294901760
    %v7144 = vsub.f32 %v6805, %v7143
    %7145 = vmatmul.mubr.f32.gmra.mrb[0].mxu0 %v7144
    %v7146 = vpop.f32.mrb[0].mxu0
    %v7147 = vadd.f32 %v7054, %v7146
    %v7148 = vpop.f32.mrb[0].mxu0
    %v7149 = vadd.f32 %v7056, %v7148
    %7150 = vdwg.mxu0
    %v7151 = vand.u32 %v6739, 4294901760
    %7152 = vmatprep.subr.mxu0 %v7151
    %v7153 = vand.u32 %v6738, 4294901760
    %7154 = vmatpush1.msra.mxu0 %v7153
    %v7155 = vand.u32 %v6755, 4294901760
    %7156 = vmatprep.subr.mxu0 %v7155
    %v7157 = vand.u32 %v6754, 4294901760
    %7158 = vmatpush1.msra.mxu0 %v7157
    %v7159 = vand.u32 %v6812, 4294901760
    %7160 = vmatprep.subr.mxu0 %v7159
    %v7161 = vand.u32 %v6809, 4294901760
    %7162 = vmatpush1.msra.mxu0 %v7161
    %7163 = vmatprep.subr.mxu0 0.0
    %7164 = vmatpush1.msra.mxu0 0.0
    %7165 = vmatprep.subr.mxu0 0.0
    %7166 = vmatpush1.msra.mxu0 0.0
    %7167 = vmatprep.subr.mxu0 0.0
    %7168 = vmatpush1.msra.mxu0 0.0
    %7169 = vmatprep.subr.mxu0 0.0
    %7170 = vmatpush1.msra.mxu0 0.0
    %7171 = vmatprep.subr.mxu0 0.0
    %7172 = vmatpush1.msra.mxu0 0.0
    %7173 = vmatprep.subr.mxu0 0.0
    %7174 = vmatpush1.msra.mxu0 0.0
    %7175 = vmatprep.subr.mxu0 0.0
    %7176 = vmatpush1.msra.mxu0 0.0
    %7177 = vmatprep.subr.mxu0 0.0
    %7178 = vmatpush1.msra.mxu0 0.0
    %7179 = vmatprep.subr.mxu0 0.0
    %7180 = vmatpush1.msra.mxu0 0.0
    %7181 = vmatprep.subr.mxu0 0.0
    %7182 = vmatpush1.msra.mxu0 0.0
    %7183 = vmatprep.subr.mxu0 0.0
    %7184 = vmatpush1.msra.mxu0 0.0
    %7185 = vmatprep.subr.mxu0 0.0
    %7186 = vmatpush1.msra.mxu0 0.0
    %7187 = vmatprep.subr.mxu0 0.0
    %7188 = vmatpush1.msra.mxu0 0.0
    %7189 = vmatprep.subr.mxu0 0.0
    %7190 = vmatpush1.msra.mxu0 0.0
    %7191 = vmatprep.subr.mxu0 0.0
    %7192 = vmatpush1.msra.mxu0 0.0
    %7193 = vmatprep.subr.mxu0 0.0
    %7194 = vmatpush1.msra.mxu0 0.0
    %7195 = vmatprep.subr.mxu0 0.0
    %7196 = vmatpush1.msra.mxu0 0.0
    %7197 = vmatprep.subr.mxu0 0.0
    %7198 = vmatpush1.msra.mxu0 0.0
    %7199 = vmatprep.subr.mxu0 0.0
    %7200 = vmatpush1.msra.mxu0 0.0
    %7201 = vmatprep.subr.mxu0 0.0
    %7202 = vmatpush1.msra.mxu0 0.0
    %7203 = vmatprep.subr.mxu0 0.0
    %7204 = vmatpush1.msra.mxu0 0.0
    %7205 = vmatprep.subr.mxu0 0.0
    %7206 = vmatpush1.msra.mxu0 0.0
    %7207 = vmatprep.subr.mxu0 0.0
    %7208 = vmatpush1.msra.mxu0 0.0
    %7209 = vmatprep.subr.mxu0 0.0
    %7210 = vmatpush1.msra.mxu0 0.0
    %7211 = vmatprep.subr.mxu0 0.0
    %7212 = vmatpush1.msra.mxu0 0.0
    %7213 = vmatprep.subr.mxu0 0.0
    %7214 = vmatpush1.msra.mxu0 0.0
    %7215 = vmatprep.subr.mxu0 0.0
    %7216 = vmatpush1.msra.mxu0 0.0
    %7217 = vmatprep.subr.mxu0 0.0
    %7218 = vmatpush1.msra.mxu0 0.0
    %7219 = vmatprep.subr.mxu0 0.0
    %7220 = vmatpush1.msra.mxu0 0.0
    %7221 = vmatprep.mubr.f32.mxu0 0.0
    %v7222 = vand.u32 %v6802, 4294901760
    %v7223 = vsub.f32 %v6802, %v7222
    %v7224 = vand.u32 %v7223, 4294901760
    %7225 = vmatmul.mubr.f32.gmra.mrb[0].mxu0 %v7224
    %v7226 = vpop.f32.mrb[0].mxu0
    %v7227 = vadd.f32 %v7139, %v7226
    %v7228 = vpop.f32.mrb[0].mxu0
    %v7229 = vadd.f32 %v7141, %v7228
    %7230 = vmatprep.mubr.f32.mxu0 0.0
    %v7231 = vand.u32 %v6805, 4294901760
    %v7232 = vsub.f32 %v6805, %v7231
    %v7233 = vand.u32 %v7232, 4294901760
    %7234 = vmatmul.mubr.f32.gmra.mrb[0].mxu0 %v7233
    %v7235 = vpop.f32.mrb[0].mxu0
    %v7236 = vadd.f32 %v7147, %v7235
    %v7237 = vpop.f32.mrb[0].mxu0
    %v7238 = vadd.f32 %v7149, %v7237
    %7239 = vdwg.mxu0
    %v7240 = vand.u32 %v6739, 4294901760
    %v7241 = vsub.f32 %v6739, %v7240
    %v7242 = vand.u32 %v7241, 4294901760
    %7243 = vmatprep.subr.mxu0 %v7242
    %v7244 = vand.u32 %v6738, 4294901760
    %v7245 = vsub.f32 %v6738, %v7244
    %v7246 = vand.u32 %v7245, 4294901760
    %7247 = vmatpush1.msra.mxu0 %v7246
    %v7248 = vand.u32 %v6755, 4294901760
    %v7249 = vsub.f32 %v6755, %v7248
    %v7250 = vand.u32 %v7249, 4294901760
    %7251 = vmatprep.subr.mxu0 %v7250
    %v7252 = vand.u32 %v6754, 4294901760
    %v7253 = vsub.f32 %v6754, %v7252
    %v7254 = vand.u32 %v7253, 4294901760
    %7255 = vmatpush1.msra.mxu0 %v7254
    %v7256 = vand.u32 %v6812, 4294901760
    %v7257 = vsub.f32 %v6812, %v7256
    %v7258 = vand.u32 %v7257, 4294901760
    %7259 = vmatprep.subr.mxu0 %v7258
    %v7260 = vand.u32 %v6809, 4294901760
    %v7261 = vsub.f32 %v6809, %v7260
    %v7262 = vand.u32 %v7261, 4294901760
    %7263 = vmatpush1.msra.mxu0 %v7262
    %7264 = vmatprep.subr.mxu0 0.0
    %7265 = vmatpush1.msra.mxu0 0.0
    %7266 = vmatprep.subr.mxu0 0.0
    %7267 = vmatpush1.msra.mxu0 0.0
    %7268 = vmatprep.subr.mxu0 0.0
    %7269 = vmatpush1.msra.mxu0 0.0
    %7270 = vmatprep.subr.mxu0 0.0
    %7271 = vmatpush1.msra.mxu0 0.0
    %7272 = vmatprep.subr.mxu0 0.0
    %7273 = vmatpush1.msra.mxu0 0.0
    %7274 = vmatprep.subr.mxu0 0.0
    %7275 = vmatpush1.msra.mxu0 0.0
    %7276 = vmatprep.subr.mxu0 0.0
    %7277 = vmatpush1.msra.mxu0 0.0
    %7278 = vmatprep.subr.mxu0 0.0
    %7279 = vmatpush1.msra.mxu0 0.0
    %7280 = vmatprep.subr.mxu0 0.0
    %7281 = vmatpush1.msra.mxu0 0.0
    %7282 = vmatprep.subr.mxu0 0.0
    %7283 = vmatpush1.msra.mxu0 0.0
    %7284 = vmatprep.subr.mxu0 0.0
    %7285 = vmatpush1.msra.mxu0 0.0
    %7286 = vmatprep.subr.mxu0 0.0
    %7287 = vmatpush1.msra.mxu0 0.0
    %7288 = vmatprep.subr.mxu0 0.0
    %7289 = vmatpush1.msra.mxu0 0.0
    %7290 = vmatprep.subr.mxu0 0.0
    %7291 = vmatpush1.msra.mxu0 0.0
    %7292 = vmatprep.subr.mxu0 0.0
    %7293 = vmatpush1.msra.mxu0 0.0
    %7294 = vmatprep.subr.mxu0 0.0
    %7295 = vmatpush1.msra.mxu0 0.0
    %7296 = vmatprep.subr.mxu0 0.0
    %7297 = vmatpush1.msra.mxu0 0.0
    %7298 = vmatprep.subr.mxu0 0.0
    %7299 = vmatpush1.msra.mxu0 0.0
    %7300 = vmatprep.subr.mxu0 0.0
    %7301 = vmatpush1.msra.mxu0 0.0
    %7302 = vmatprep.subr.mxu0 0.0
    %7303 = vmatpush1.msra.mxu0 0.0
    %7304 = vmatprep.subr.mxu0 0.0
    %7305 = vmatpush1.msra.mxu0 0.0
    %7306 = vmatprep.subr.mxu0 0.0
    %7307 = vmatpush1.msra.mxu0 0.0
    %7308 = vmatprep.subr.mxu0 0.0
    %7309 = vmatpush1.msra.mxu0 0.0
    %7310 = vmatprep.subr.mxu0 0.0
    %7311 = vmatpush1.msra.mxu0 0.0
    %7312 = vmatprep.subr.mxu0 0.0
    %7313 = vmatpush1.msra.mxu0 0.0
    %7314 = vmatprep.subr.mxu0 0.0
    %7315 = vmatpush1.msra.mxu0 0.0
    %7316 = vmatprep.subr.mxu0 0.0
    %7317 = vmatpush1.msra.mxu0 0.0
    %7318 = vmatprep.subr.mxu0 0.0
    %7319 = vmatpush1.msra.mxu0 0.0
    %7320 = vmatprep.subr.mxu0 0.0
    %7321 = vmatpush1.msra.mxu0 0.0
    %7322 = vmatprep.mubr.f32.mxu0 0.0
    %v7323 = vand.u32 %v6802, 4294901760
    %7324 = vmatmul.mubr.f32.gmra.mrb[0].mxu0 %v7323
    %v7325 = vpop.f32.mrb[0].mxu0
    %v7326 = vadd.f32 %v7227, %v7325
    %v7327 = vpop.f32.mrb[0].mxu0
    %v7328 = vadd.f32 %v7229, %v7327
    %7329 = vmatprep.mubr.f32.mxu0 0.0
    %v7330 = vand.u32 %v6805, 4294901760
    %7331 = vmatmul.mubr.f32.gmra.mrb[0].mxu0 %v7330
    %v7332 = vpop.f32.mrb[0].mxu0
    %v7333 = vadd.f32 %v7236, %v7332
    %v7334 = vpop.f32.mrb[0].mxu0
    %v7335 = vadd.f32 %v7238, %v7334
    %7336 = vdwg.mxu0
    %v7337 = vand.u32 %v6739, 4294901760
    %7338 = vmatprep.subr.mxu0 %v7337
    %v7339 = vand.u32 %v6738, 4294901760
    %7340 = vmatpush1.msra.mxu0 %v7339
    %v7341 = vand.u32 %v6755, 4294901760
    %7342 = vmatprep.subr.mxu0 %v7341
    %v7343 = vand.u32 %v6754, 4294901760
    %7344 = vmatpush1.msra.mxu0 %v7343
    %v7345 = vand.u32 %v6812, 4294901760
    %7346 = vmatprep.subr.mxu0 %v7345
    %v7347 = vand.u32 %v6809, 4294901760
    %7348 = vmatpush1.msra.mxu0 %v7347
    %7349 = vmatprep.subr.mxu0 0.0
    %7350 = vmatpush1.msra.mxu0 0.0
    %7351 = vmatprep.subr.mxu0 0.0
    %7352 = vmatpush1.msra.mxu0 0.0
    %7353 = vmatprep.subr.mxu0 0.0
    %7354 = vmatpush1.msra.mxu0 0.0
    %7355 = vmatprep.subr.mxu0 0.0
    %7356 = vmatpush1.msra.mxu0 0.0
    %7357 = vmatprep.subr.mxu0 0.0
    %7358 = vmatpush1.msra.mxu0 0.0
    %7359 = vmatprep.subr.mxu0 0.0
    %7360 = vmatpush1.msra.mxu0 0.0
    %7361 = vmatprep.subr.mxu0 0.0
    %7362 = vmatpush1.msra.mxu0 0.0
    %7363 = vmatprep.subr.mxu0 0.0
    %7364 = vmatpush1.msra.mxu0 0.0
    %7365 = vmatprep.subr.mxu0 0.0
    %7366 = vmatpush1.msra.mxu0 0.0
    %7367 = vmatprep.subr.mxu0 0.0
    %7368 = vmatpush1.msra.mxu0 0.0
    %7369 = vmatprep.subr.mxu0 0.0
    %7370 = vmatpush1.msra.mxu0 0.0
    %7371 = vmatprep.subr.mxu0 0.0
    %7372 = vmatpush1.msra.mxu0 0.0
    %7373 = vmatprep.subr.mxu0 0.0
    %7374 = vmatpush1.msra.mxu0 0.0
    %7375 = vmatprep.subr.mxu0 0.0
    %7376 = vmatpush1.msra.mxu0 0.0
    %7377 = vmatprep.subr.mxu0 0.0
    %7378 = vmatpush1.msra.mxu0 0.0
    %7379 = vmatprep.subr.mxu0 0.0
    %7380 = vmatpush1.msra.mxu0 0.0
    %7381 = vmatprep.subr.mxu0 0.0
    %7382 = vmatpush1.msra.mxu0 0.0
    %7383 = vmatprep.subr.mxu0 0.0
    %7384 = vmatpush1.msra.mxu0 0.0
    %7385 = vmatprep.subr.mxu0 0.0
    %7386 = vmatpush1.msra.mxu0 0.0
    %7387 = vmatprep.subr.mxu0 0.0
    %7388 = vmatpush1.msra.mxu0 0.0
    %7389 = vmatprep.subr.mxu0 0.0
    %7390 = vmatpush1.msra.mxu0 0.0
    %7391 = vmatprep.subr.mxu0 0.0
    %7392 = vmatpush1.msra.mxu0 0.0
    %7393 = vmatprep.subr.mxu0 0.0
    %7394 = vmatpush1.msra.mxu0 0.0
    %7395 = vmatprep.subr.mxu0 0.0
    %7396 = vmatpush1.msra.mxu0 0.0
    %7397 = vmatprep.subr.mxu0 0.0
    %7398 = vmatpush1.msra.mxu0 0.0
    %7399 = vmatprep.subr.mxu0 0.0
    %7400 = vmatpush1.msra.mxu0 0.0
    %7401 = vmatprep.subr.mxu0 0.0
    %7402 = vmatpush1.msra.mxu0 0.0
    %7403 = vmatprep.subr.mxu0 0.0
    %7404 = vmatpush1.msra.mxu0 0.0
    %7405 = vmatprep.subr.mxu0 0.0
    %7406 = vmatpush1.msra.mxu0 0.0
    %7407 = vmatprep.mubr.f32.mxu0 0.0
    %v7408 = vand.u32 %v6802, 4294901760
    %7409 = vmatmul.mubr.f32.gmra.mrb[0].mxu0 %v7408
    %v7410 = vpop.f32.mrb[0].mxu0
    %v7411 = vadd.f32 %v7326, %v7410
    %v7412 = vpop.f32.mrb[0].mxu0
    %v7413 = vadd.f32 %v7328, %v7412
    %7414 = vmatprep.mubr.f32.mxu0 0.0
    %v7415 = vand.u32 %v6805, 4294901760
    %7416 = vmatmul.mubr.f32.gmra.mrb[0].mxu0 %v7415
    %v7417 = vpop.f32.mrb[0].mxu0
    %v7418 = vadd.f32 %v7333, %v7417
    %v7419 = vpop.f32.mrb[0].mxu0
    %v7420 = vadd.f32 %v7335, %v7419
    %7421 = vdwg.mxu0
    %v7422 = vand.u32 %v6741, 4294901760
    %7423 = vmatprep.subr.mxu0 %v7422
    %v7424 = vand.u32 %v6740, 4294901760
    %7425 = vmatpush1.msra.mxu0 %v7424
    %v7426 = vand.u32 %v6757, 4294901760
    %7427 = vmatprep.subr.mxu0 %v7426
    %v7428 = vand.u32 %v6756, 4294901760
    %7429 = vmatpush1.msra.mxu0 %v7428
    %v7430 = vand.u32 %v6818, 4294901760
    %7431 = vmatprep.subr.mxu0 %v7430
    %v7432 = vand.u32 %v6815, 4294901760
    %7433 = vmatpush1.msra.mxu0 %v7432
    %7434 = vmatprep.subr.mxu0 0.0
    %7435 = vmatpush1.msra.mxu0 0.0
    %7436 = vmatprep.subr.mxu0 0.0
    %7437 = vmatpush1.msra.mxu0 0.0
    %7438 = vmatprep.subr.mxu0 0.0
    %7439 = vmatpush1.msra.mxu0 0.0
    %7440 = vmatprep.subr.mxu0 0.0
    %7441 = vmatpush1.msra.mxu0 0.0
    %7442 = vmatprep.subr.mxu0 0.0
    %7443 = vmatpush1.msra.mxu0 0.0
    %7444 = vmatprep.subr.mxu0 0.0
    %7445 = vmatpush1.msra.mxu0 0.0
    %7446 = vmatprep.subr.mxu0 0.0
    %7447 = vmatpush1.msra.mxu0 0.0
    %7448 = vmatprep.subr.mxu0 0.0
    %7449 = vmatpush1.msra.mxu0 0.0
    %7450 = vmatprep.subr.mxu0 0.0
    %7451 = vmatpush1.msra.mxu0 0.0
    %7452 = vmatprep.subr.mxu0 0.0
    %7453 = vmatpush1.msra.mxu0 0.0
    %7454 = vmatprep.subr.mxu0 0.0
    %7455 = vmatpush1.msra.mxu0 0.0
    %7456 = vmatprep.subr.mxu0 0.0
    %7457 = vmatpush1.msra.mxu0 0.0
    %7458 = vmatprep.subr.mxu0 0.0
    %7459 = vmatpush1.msra.mxu0 0.0
    %7460 = vmatprep.subr.mxu0 0.0
    %7461 = vmatpush1.msra.mxu0 0.0
    %7462 = vmatprep.subr.mxu0 0.0
    %7463 = vmatpush1.msra.mxu0 0.0
    %7464 = vmatprep.subr.mxu0 0.0
    %7465 = vmatpush1.msra.mxu0 0.0
    %7466 = vmatprep.subr.mxu0 0.0
    %7467 = vmatpush1.msra.mxu0 0.0
    %7468 = vmatprep.subr.mxu0 0.0
    %7469 = vmatpush1.msra.mxu0 0.0
    %7470 = vmatprep.subr.mxu0 0.0
    %7471 = vmatpush1.msra.mxu0 0.0
    %7472 = vmatprep.subr.mxu0 0.0
    %7473 = vmatpush1.msra.mxu0 0.0
    %7474 = vmatprep.subr.mxu0 0.0
    %7475 = vmatpush1.msra.mxu0 0.0
    %7476 = vmatprep.subr.mxu0 0.0
    %7477 = vmatpush1.msra.mxu0 0.0
    %7478 = vmatprep.subr.mxu0 0.0
    %7479 = vmatpush1.msra.mxu0 0.0
    %7480 = vmatprep.subr.mxu0 0.0
    %7481 = vmatpush1.msra.mxu0 0.0
    %7482 = vmatprep.subr.mxu0 0.0
    %7483 = vmatpush1.msra.mxu0 0.0
    %7484 = vmatprep.subr.mxu0 0.0
    %7485 = vmatpush1.msra.mxu0 0.0
    %7486 = vmatprep.subr.mxu0 0.0
    %7487 = vmatpush1.msra.mxu0 0.0
    %7488 = vmatprep.subr.mxu0 0.0
    %7489 = vmatpush1.msra.mxu0 0.0
    %7490 = vmatprep.subr.mxu0 0.0
    %7491 = vmatpush1.msra.mxu0 0.0
    %7492 = vmatprep.mubr.f32.mxu0 0.0
    %v7493 = vand.u32 %v6802, 4294901760
    %v7494 = vsub.f32 %v6802, %v7493
    %v7495 = vand.u32 %v7494, 4294901760
    %v7496 = vsub.f32 %v7494, %v7495
    %v7497 = vand.u32 %v7496, 4294901760
    %7498 = vmatmul.mubr.f32.gmra.mrb[0].mxu0 %v7497
    %v7499 = vpop.f32.mrb[0].mxu0
    %v7500 = vadd.f32 %v6793, %v7499
    %v7501 = vpop.f32.mrb[0].mxu0
    %v7502 = vadd.f32 %v6793, %v7501
    %7503 = vmatprep.mubr.f32.mxu0 0.0
    %v7504 = vand.u32 %v6805, 4294901760
    %v7505 = vsub.f32 %v6805, %v7504
    %v7506 = vand.u32 %v7505, 4294901760
    %v7507 = vsub.f32 %v7505, %v7506
    %v7508 = vand.u32 %v7507, 4294901760
    %7509 = vmatmul.mubr.f32.gmra.mrb[0].mxu0 %v7508
    %v7510 = vpop.f32.mrb[0].mxu0
    %v7511 = vadd.f32 %v6798, %v7510
    %v7512 = vpop.f32.mrb[0].mxu0
    %v7513 = vadd.f32 %v6798, %v7512
    %7514 = vdwg.mxu0
    %v7515 = vand.u32 %v6741, 4294901760
    %v7516 = vsub.f32 %v6741, %v7515
    %v7517 = vand.u32 %v7516, 4294901760
    %v7518 = vsub.f32 %v7516, %v7517
    %v7519 = vand.u32 %v7518, 4294901760
    %7520 = vmatprep.subr.mxu0 %v7519
    %v7521 = vand.u32 %v6740, 4294901760
    %v7522 = vsub.f32 %v6740, %v7521
    %v7523 = vand.u32 %v7522, 4294901760
    %v7524 = vsub.f32 %v7522, %v7523
    %v7525 = vand.u32 %v7524, 4294901760
    %7526 = vmatpush1.msra.mxu0 %v7525
    %v7527 = vand.u32 %v6757, 4294901760
    %v7528 = vsub.f32 %v6757, %v7527
    %v7529 = vand.u32 %v7528, 4294901760
    %v7530 = vsub.f32 %v7528, %v7529
    %v7531 = vand.u32 %v7530, 4294901760
    %7532 = vmatprep.subr.mxu0 %v7531
    %v7533 = vand.u32 %v6756, 4294901760
    %v7534 = vsub.f32 %v6756, %v7533
    %v7535 = vand.u32 %v7534, 4294901760
    %v7536 = vsub.f32 %v7534, %v7535
    %v7537 = vand.u32 %v7536, 4294901760
    %7538 = vmatpush1.msra.mxu0 %v7537
    %v7539 = vand.u32 %v6818, 4294901760
    %v7540 = vsub.f32 %v6818, %v7539
    %v7541 = vand.u32 %v7540, 4294901760
    %v7542 = vsub.f32 %v7540, %v7541
    %v7543 = vand.u32 %v7542, 4294901760
    %7544 = vmatprep.subr.mxu0 %v7543
    %v7545 = vand.u32 %v6815, 4294901760
    %v7546 = vsub.f32 %v6815, %v7545
    %v7547 = vand.u32 %v7546, 4294901760
    %v7548 = vsub.f32 %v7546, %v7547
    %v7549 = vand.u32 %v7548, 4294901760
    %7550 = vmatpush1.msra.mxu0 %v7549
    %7551 = vmatprep.subr.mxu0 0.0
    %7552 = vmatpush1.msra.mxu0 0.0
    %7553 = vmatprep.subr.mxu0 0.0
    %7554 = vmatpush1.msra.mxu0 0.0
    %7555 = vmatprep.subr.mxu0 0.0
    %7556 = vmatpush1.msra.mxu0 0.0
    %7557 = vmatprep.subr.mxu0 0.0
    %7558 = vmatpush1.msra.mxu0 0.0
    %7559 = vmatprep.subr.mxu0 0.0
    %7560 = vmatpush1.msra.mxu0 0.0
    %7561 = vmatprep.subr.mxu0 0.0
    %7562 = vmatpush1.msra.mxu0 0.0
    %7563 = vmatprep.subr.mxu0 0.0
    %7564 = vmatpush1.msra.mxu0 0.0
    %7565 = vmatprep.subr.mxu0 0.0
    %7566 = vmatpush1.msra.mxu0 0.0
    %7567 = vmatprep.subr.mxu0 0.0
    %7568 = vmatpush1.msra.mxu0 0.0
    %7569 = vmatprep.subr.mxu0 0.0
    %7570 = vmatpush1.msra.mxu0 0.0
    %7571 = vmatprep.subr.mxu0 0.0
    %7572 = vmatpush1.msra.mxu0 0.0
    %7573 = vmatprep.subr.mxu0 0.0
    %7574 = vmatpush1.msra.mxu0 0.0
    %7575 = vmatprep.subr.mxu0 0.0
    %7576 = vmatpush1.msra.mxu0 0.0
    %7577 = vmatprep.subr.mxu0 0.0
    %7578 = vmatpush1.msra.mxu0 0.0
    %7579 = vmatprep.subr.mxu0 0.0
    %7580 = vmatpush1.msra.mxu0 0.0
    %7581 = vmatprep.subr.mxu0 0.0
    %7582 = vmatpush1.msra.mxu0 0.0
    %7583 = vmatprep.subr.mxu0 0.0
    %7584 = vmatpush1.msra.mxu0 0.0
    %7585 = vmatprep.subr.mxu0 0.0
    %7586 = vmatpush1.msra.mxu0 0.0
    %7587 = vmatprep.subr.mxu0 0.0
    %7588 = vmatpush1.msra.mxu0 0.0
    %7589 = vmatprep.subr.mxu0 0.0
    %7590 = vmatpush1.msra.mxu0 0.0
    %7591 = vmatprep.subr.mxu0 0.0
    %7592 = vmatpush1.msra.mxu0 0.0
    %7593 = vmatprep.subr.mxu0 0.0
    %7594 = vmatpush1.msra.mxu0 0.0
    %7595 = vmatprep.subr.mxu0 0.0
    %7596 = vmatpush1.msra.mxu0 0.0
    %7597 = vmatprep.subr.mxu0 0.0
    %7598 = vmatpush1.msra.mxu0 0.0
    %7599 = vmatprep.subr.mxu0 0.0
    %7600 = vmatpush1.msra.mxu0 0.0
    %7601 = vmatprep.subr.mxu0 0.0
    %7602 = vmatpush1.msra.mxu0 0.0
    %7603 = vmatprep.subr.mxu0 0.0
    %7604 = vmatpush1.msra.mxu0 0.0
    %7605 = vmatprep.subr.mxu0 0.0
    %7606 = vmatpush1.msra.mxu0 0.0
    %7607 = vmatprep.subr.mxu0 0.0
    %7608 = vmatpush1.msra.mxu0 0.0
    %7609 = vmatprep.mubr.f32.mxu0 0.0
    %v7610 = vand.u32 %v6802, 4294901760
    %7611 = vmatmul.mubr.f32.gmra.mrb[0].mxu0 %v7610
    %v7612 = vpop.f32.mrb[0].mxu0
    %v7613 = vadd.f32 %v7500, %v7612
    %v7614 = vpop.f32.mrb[0].mxu0
    %v7615 = vadd.f32 %v7502, %v7614
    %7616 = vmatprep.mubr.f32.mxu0 0.0
    %v7617 = vand.u32 %v6805, 4294901760
    %7618 = vmatmul.mubr.f32.gmra.mrb[0].mxu0 %v7617
    %v7619 = vpop.f32.mrb[0].mxu0
    %v7620 = vadd.f32 %v7511, %v7619
    %v7621 = vpop.f32.mrb[0].mxu0
    %v7622 = vadd.f32 %v7513, %v7621
    %7623 = vdwg.mxu0
    %v7624 = vand.u32 %v6741, 4294901760
    %v7625 = vsub.f32 %v6741, %v7624
    %7626 = vmatprep.subr.mxu0 %v7625
    %v7627 = vand.u32 %v6740, 4294901760
    %v7628 = vsub.f32 %v6740, %v7627
    %7629 = vmatpush1.msra.mxu0 %v7628
    %v7630 = vand.u32 %v6757, 4294901760
    %v7631 = vsub.f32 %v6757, %v7630
    %7632 = vmatprep.subr.mxu0 %v7631
    %v7633 = vand.u32 %v6756, 4294901760
    %v7634 = vsub.f32 %v6756, %v7633
    %7635 = vmatpush1.msra.mxu0 %v7634
    %v7636 = vand.u32 %v6818, 4294901760
    %v7637 = vsub.f32 %v6818, %v7636
    %7638 = vmatprep.subr.mxu0 %v7637
    %v7639 = vand.u32 %v6815, 4294901760
    %v7640 = vsub.f32 %v6815, %v7639
    %7641 = vmatpush1.msra.mxu0 %v7640
    %7642 = vmatprep.subr.mxu0 0.0
    %7643 = vmatpush1.msra.mxu0 0.0
    %7644 = vmatprep.subr.mxu0 0.0
    %7645 = vmatpush1.msra.mxu0 0.0
    %7646 = vmatprep.subr.mxu0 0.0
    %7647 = vmatpush1.msra.mxu0 0.0
    %7648 = vmatprep.subr.mxu0 0.0
    %7649 = vmatpush1.msra.mxu0 0.0
    %7650 = vmatprep.subr.mxu0 0.0
    %7651 = vmatpush1.msra.mxu0 0.0
    %7652 = vmatprep.subr.mxu0 0.0
    %7653 = vmatpush1.msra.mxu0 0.0
    %7654 = vmatprep.subr.mxu0 0.0
    %7655 = vmatpush1.msra.mxu0 0.0
    %7656 = vmatprep.subr.mxu0 0.0
    %7657 = vmatpush1.msra.mxu0 0.0
    %7658 = vmatprep.subr.mxu0 0.0
    %7659 = vmatpush1.msra.mxu0 0.0
    %7660 = vmatprep.subr.mxu0 0.0
    %7661 = vmatpush1.msra.mxu0 0.0
    %7662 = vmatprep.subr.mxu0 0.0
    %7663 = vmatpush1.msra.mxu0 0.0
    %7664 = vmatprep.subr.mxu0 0.0
    %7665 = vmatpush1.msra.mxu0 0.0
    %7666 = vmatprep.subr.mxu0 0.0
    %7667 = vmatpush1.msra.mxu0 0.0
    %7668 = vmatprep.subr.mxu0 0.0
    %7669 = vmatpush1.msra.mxu0 0.0
    %7670 = vmatprep.subr.mxu0 0.0
    %7671 = vmatpush1.msra.mxu0 0.0
    %7672 = vmatprep.subr.mxu0 0.0
    %7673 = vmatpush1.msra.mxu0 0.0
    %7674 = vmatprep.subr.mxu0 0.0
    %7675 = vmatpush1.msra.mxu0 0.0
    %7676 = vmatprep.subr.mxu0 0.0
    %7677 = vmatpush1.msra.mxu0 0.0
    %7678 = vmatprep.subr.mxu0 0.0
    %7679 = vmatpush1.msra.mxu0 0.0
    %7680 = vmatprep.subr.mxu0 0.0
    %7681 = vmatpush1.msra.mxu0 0.0
    %7682 = vmatprep.subr.mxu0 0.0
    %7683 = vmatpush1.msra.mxu0 0.0
    %7684 = vmatprep.subr.mxu0 0.0
    %7685 = vmatpush1.msra.mxu0 0.0
    %7686 = vmatprep.subr.mxu0 0.0
    %7687 = vmatpush1.msra.mxu0 0.0
    %7688 = vmatprep.subr.mxu0 0.0
    %7689 = vmatpush1.msra.mxu0 0.0
    %7690 = vmatprep.subr.mxu0 0.0
    %7691 = vmatpush1.msra.mxu0 0.0
    %7692 = vmatprep.subr.mxu0 0.0
    %7693 = vmatpush1.msra.mxu0 0.0
    %7694 = vmatprep.subr.mxu0 0.0
    %7695 = vmatpush1.msra.mxu0 0.0
    %7696 = vmatprep.subr.mxu0 0.0
    %7697 = vmatpush1.msra.mxu0 0.0
    %7698 = vmatprep.subr.mxu0 0.0
    %7699 = vmatpush1.msra.mxu0 0.0
    %7700 = vmatprep.mubr.f32.mxu0 0.0
    %v7701 = vand.u32 %v6802, 4294901760
    %v7702 = vsub.f32 %v6802, %v7701
    %7703 = vmatmul.mubr.f32.gmra.mrb[0].mxu0 %v7702
    %v7704 = vpop.f32.mrb[0].mxu0
    %v7705 = vadd.f32 %v7613, %v7704
    %v7706 = vpop.f32.mrb[0].mxu0
    %v7707 = vadd.f32 %v7615, %v7706
    %7708 = vmatprep.mubr.f32.mxu0 0.0
    %v7709 = vand.u32 %v6805, 4294901760
    %v7710 = vsub.f32 %v6805, %v7709
    %7711 = vmatmul.mubr.f32.gmra.mrb[0].mxu0 %v7710
    %v7712 = vpop.f32.mrb[0].mxu0
    %v7713 = vadd.f32 %v7620, %v7712
    %v7714 = vpop.f32.mrb[0].mxu0
    %v7715 = vadd.f32 %v7622, %v7714
    %7716 = vdwg.mxu0
    %v7717 = vand.u32 %v6741, 4294901760
    %7718 = vmatprep.subr.mxu0 %v7717
    %v7719 = vand.u32 %v6740, 4294901760
    %7720 = vmatpush1.msra.mxu0 %v7719
    %v7721 = vand.u32 %v6757, 4294901760
    %7722 = vmatprep.subr.mxu0 %v7721
    %v7723 = vand.u32 %v6756, 4294901760
    %7724 = vmatpush1.msra.mxu0 %v7723
    %v7725 = vand.u32 %v6818, 4294901760
    %7726 = vmatprep.subr.mxu0 %v7725
    %v7727 = vand.u32 %v6815, 4294901760
    %7728 = vmatpush1.msra.mxu0 %v7727
    %7729 = vmatprep.subr.mxu0 0.0
    %7730 = vmatpush1.msra.mxu0 0.0
    %7731 = vmatprep.subr.mxu0 0.0
    %7732 = vmatpush1.msra.mxu0 0.0
    %7733 = vmatprep.subr.mxu0 0.0
    %7734 = vmatpush1.msra.mxu0 0.0
    %7735 = vmatprep.subr.mxu0 0.0
    %7736 = vmatpush1.msra.mxu0 0.0
    %7737 = vmatprep.subr.mxu0 0.0
    %7738 = vmatpush1.msra.mxu0 0.0
    %7739 = vmatprep.subr.mxu0 0.0
    %7740 = vmatpush1.msra.mxu0 0.0
    %7741 = vmatprep.subr.mxu0 0.0
    %7742 = vmatpush1.msra.mxu0 0.0
    %7743 = vmatprep.subr.mxu0 0.0
    %7744 = vmatpush1.msra.mxu0 0.0
    %7745 = vmatprep.subr.mxu0 0.0
    %7746 = vmatpush1.msra.mxu0 0.0
    %7747 = vmatprep.subr.mxu0 0.0
    %7748 = vmatpush1.msra.mxu0 0.0
    %7749 = vmatprep.subr.mxu0 0.0
    %7750 = vmatpush1.msra.mxu0 0.0
    %7751 = vmatprep.subr.mxu0 0.0
    %7752 = vmatpush1.msra.mxu0 0.0
    %7753 = vmatprep.subr.mxu0 0.0
    %7754 = vmatpush1.msra.mxu0 0.0
    %7755 = vmatprep.subr.mxu0 0.0
    %7756 = vmatpush1.msra.mxu0 0.0
    %7757 = vmatprep.subr.mxu0 0.0
    %7758 = vmatpush1.msra.mxu0 0.0
    %7759 = vmatprep.subr.mxu0 0.0
    %7760 = vmatpush1.msra.mxu0 0.0
    %7761 = vmatprep.subr.mxu0 0.0
    %7762 = vmatpush1.msra.mxu0 0.0
    %7763 = vmatprep.subr.mxu0 0.0
    %7764 = vmatpush1.msra.mxu0 0.0
    %7765 = vmatprep.subr.mxu0 0.0
    %7766 = vmatpush1.msra.mxu0 0.0
    %7767 = vmatprep.subr.mxu0 0.0
    %7768 = vmatpush1.msra.mxu0 0.0
    %7769 = vmatprep.subr.mxu0 0.0
    %7770 = vmatpush1.msra.mxu0 0.0
    %7771 = vmatprep.subr.mxu0 0.0
    %7772 = vmatpush1.msra.mxu0 0.0
    %7773 = vmatprep.subr.mxu0 0.0
    %7774 = vmatpush1.msra.mxu0 0.0
    %7775 = vmatprep.subr.mxu0 0.0
    %7776 = vmatpush1.msra.mxu0 0.0
    %7777 = vmatprep.subr.mxu0 0.0
    %7778 = vmatpush1.msra.mxu0 0.0
    %7779 = vmatprep.subr.mxu0 0.0
    %7780 = vmatpush1.msra.mxu0 0.0
    %7781 = vmatprep.subr.mxu0 0.0
    %7782 = vmatpush1.msra.mxu0 0.0
    %7783 = vmatprep.subr.mxu0 0.0
    %7784 = vmatpush1.msra.mxu0 0.0
    %7785 = vmatprep.subr.mxu0 0.0
    %7786 = vmatpush1.msra.mxu0 0.0
    %7787 = vmatprep.mubr.f32.mxu0 0.0
    %v7788 = vand.u32 %v6802, 4294901760
    %v7789 = vsub.f32 %v6802, %v7788
    %v7790 = vand.u32 %v7789, 4294901760
    %7791 = vmatmul.mubr.f32.gmra.mrb[0].mxu0 %v7790
    %v7792 = vpop.f32.mrb[0].mxu0
    %v7793 = vadd.f32 %v7705, %v7792
    %v7794 = vpop.f32.mrb[0].mxu0
    %v7795 = vadd.f32 %v7707, %v7794
    %7796 = vmatprep.mubr.f32.mxu0 0.0
    %v7797 = vand.u32 %v6805, 4294901760
    %v7798 = vsub.f32 %v6805, %v7797
    %v7799 = vand.u32 %v7798, 4294901760
    %7800 = vmatmul.mubr.f32.gmra.mrb[0].mxu0 %v7799
    %v7801 = vpop.f32.mrb[0].mxu0
    %v7802 = vadd.f32 %v7713, %v7801
    %v7803 = vpop.f32.mrb[0].mxu0
    %v7804 = vadd.f32 %v7715, %v7803
    %7805 = vdwg.mxu0
    %v7806 = vand.u32 %v6741, 4294901760
    %v7807 = vsub.f32 %v6741, %v7806
    %v7808 = vand.u32 %v7807, 4294901760
    %7809 = vmatprep.subr.mxu0 %v7808
    %v7810 = vand.u32 %v6740, 4294901760
    %v7811 = vsub.f32 %v6740, %v7810
    %v7812 = vand.u32 %v7811, 4294901760
    %7813 = vmatpush1.msra.mxu0 %v7812
    %v7814 = vand.u32 %v6757, 4294901760
    %v7815 = vsub.f32 %v6757, %v7814
    %v7816 = vand.u32 %v7815, 4294901760
    %7817 = vmatprep.subr.mxu0 %v7816
    %v7818 = vand.u32 %v6756, 4294901760
    %v7819 = vsub.f32 %v6756, %v7818
    %v7820 = vand.u32 %v7819, 4294901760
    %7821 = vmatpush1.msra.mxu0 %v7820
    %v7822 = vand.u32 %v6818, 4294901760
    %v7823 = vsub.f32 %v6818, %v7822
    %v7824 = vand.u32 %v7823, 4294901760
    %7825 = vmatprep.subr.mxu0 %v7824
    %v7826 = vand.u32 %v6815, 4294901760
    %v7827 = vsub.f32 %v6815, %v7826
    %v7828 = vand.u32 %v7827, 4294901760
    %7829 = vmatpush1.msra.mxu0 %v7828
    %7830 = vmatprep.subr.mxu0 0.0
    %7831 = vmatpush1.msra.mxu0 0.0
    %7832 = vmatprep.subr.mxu0 0.0
    %7833 = vmatpush1.msra.mxu0 0.0
    %7834 = vmatprep.subr.mxu0 0.0
    %7835 = vmatpush1.msra.mxu0 0.0
    %7836 = vmatprep.subr.mxu0 0.0
    %7837 = vmatpush1.msra.mxu0 0.0
    %7838 = vmatprep.subr.mxu0 0.0
    %7839 = vmatpush1.msra.mxu0 0.0
    %7840 = vmatprep.subr.mxu0 0.0
    %7841 = vmatpush1.msra.mxu0 0.0
    %7842 = vmatprep.subr.mxu0 0.0
    %7843 = vmatpush1.msra.mxu0 0.0
    %7844 = vmatprep.subr.mxu0 0.0
    %7845 = vmatpush1.msra.mxu0 0.0
    %7846 = vmatprep.subr.mxu0 0.0
    %7847 = vmatpush1.msra.mxu0 0.0
    %7848 = vmatprep.subr.mxu0 0.0
    %7849 = vmatpush1.msra.mxu0 0.0
    %7850 = vmatprep.subr.mxu0 0.0
    %7851 = vmatpush1.msra.mxu0 0.0
    %7852 = vmatprep.subr.mxu0 0.0
    %7853 = vmatpush1.msra.mxu0 0.0
    %7854 = vmatprep.subr.mxu0 0.0
    %7855 = vmatpush1.msra.mxu0 0.0
    %7856 = vmatprep.subr.mxu0 0.0
    %7857 = vmatpush1.msra.mxu0 0.0
    %7858 = vmatprep.subr.mxu0 0.0
    %7859 = vmatpush1.msra.mxu0 0.0
    %7860 = vmatprep.subr.mxu0 0.0
    %7861 = vmatpush1.msra.mxu0 0.0
    %7862 = vmatprep.subr.mxu0 0.0
    %7863 = vmatpush1.msra.mxu0 0.0
    %7864 = vmatprep.subr.mxu0 0.0
    %7865 = vmatpush1.msra.mxu0 0.0
    %7866 = vmatprep.subr.mxu0 0.0
    %7867 = vmatpush1.msra.mxu0 0.0
    %7868 = vmatprep.subr.mxu0 0.0
    %7869 = vmatpush1.msra.mxu0 0.0
    %7870 = vmatprep.subr.mxu0 0.0
    %7871 = vmatpush1.msra.mxu0 0.0
    %7872 = vmatprep.subr.mxu0 0.0
    %7873 = vmatpush1.msra.mxu0 0.0
    %7874 = vmatprep.subr.mxu0 0.0
    %7875 = vmatpush1.msra.mxu0 0.0
    %7876 = vmatprep.subr.mxu0 0.0
    %7877 = vmatpush1.msra.mxu0 0.0
    %7878 = vmatprep.subr.mxu0 0.0
    %7879 = vmatpush1.msra.mxu0 0.0
    %7880 = vmatprep.subr.mxu0 0.0
    %7881 = vmatpush1.msra.mxu0 0.0
    %7882 = vmatprep.subr.mxu0 0.0
    %7883 = vmatpush1.msra.mxu0 0.0
    %7884 = vmatprep.subr.mxu0 0.0
    %7885 = vmatpush1.msra.mxu0 0.0
    %7886 = vmatprep.subr.mxu0 0.0
    %7887 = vmatpush1.msra.mxu0 0.0
    %7888 = vmatprep.mubr.f32.mxu0 0.0
    %v7889 = vand.u32 %v6802, 4294901760
    %7890 = vmatmul.mubr.f32.gmra.mrb[0].mxu0 %v7889
    %v7891 = vpop.f32.mrb[0].mxu0
    %v7892 = vadd.f32 %v7793, %v7891
    %v7893 = vpop.f32.mrb[0].mxu0
    %v7894 = vadd.f32 %v7795, %v7893
    %7895 = vmatprep.mubr.f32.mxu0 0.0
    %v7896 = vand.u32 %v6805, 4294901760
    %7897 = vmatmul.mubr.f32.gmra.mrb[0].mxu0 %v7896
    %v7898 = vpop.f32.mrb[0].mxu0
    %v7899 = vadd.f32 %v7802, %v7898
    %v7900 = vpop.f32.mrb[0].mxu0
    %v7901 = vadd.f32 %v7804, %v7900
    %7902 = vdwg.mxu0
    %v7903 = vand.u32 %v6741, 4294901760
    %7904 = vmatprep.subr.mxu0 %v7903
    %v7905 = vand.u32 %v6740, 4294901760
    %7906 = vmatpush1.msra.mxu0 %v7905
    %v7907 = vand.u32 %v6757, 4294901760
    %7908 = vmatprep.subr.mxu0 %v7907
    %v7909 = vand.u32 %v6756, 4294901760
    %7910 = vmatpush1.msra.mxu0 %v7909
    %v7911 = vand.u32 %v6818, 4294901760
    %7912 = vmatprep.subr.mxu0 %v7911
    %v7913 = vand.u32 %v6815, 4294901760
    %7914 = vmatpush1.msra.mxu0 %v7913
    %7915 = vmatprep.subr.mxu0 0.0
    %7916 = vmatpush1.msra.mxu0 0.0
    %7917 = vmatprep.subr.mxu0 0.0
    %7918 = vmatpush1.msra.mxu0 0.0
    %7919 = vmatprep.subr.mxu0 0.0
    %7920 = vmatpush1.msra.mxu0 0.0
    %7921 = vmatprep.subr.mxu0 0.0
    %7922 = vmatpush1.msra.mxu0 0.0
    %7923 = vmatprep.subr.mxu0 0.0
    %7924 = vmatpush1.msra.mxu0 0.0
    %7925 = vmatprep.subr.mxu0 0.0
    %7926 = vmatpush1.msra.mxu0 0.0
    %7927 = vmatprep.subr.mxu0 0.0
    %7928 = vmatpush1.msra.mxu0 0.0
    %7929 = vmatprep.subr.mxu0 0.0
    %7930 = vmatpush1.msra.mxu0 0.0
    %7931 = vmatprep.subr.mxu0 0.0
    %7932 = vmatpush1.msra.mxu0 0.0
    %7933 = vmatprep.subr.mxu0 0.0
    %7934 = vmatpush1.msra.mxu0 0.0
    %7935 = vmatprep.subr.mxu0 0.0
    %7936 = vmatpush1.msra.mxu0 0.0
    %7937 = vmatprep.subr.mxu0 0.0
    %7938 = vmatpush1.msra.mxu0 0.0
    %7939 = vmatprep.subr.mxu0 0.0
    %7940 = vmatpush1.msra.mxu0 0.0
    %7941 = vmatprep.subr.mxu0 0.0
    %7942 = vmatpush1.msra.mxu0 0.0
    %7943 = vmatprep.subr.mxu0 0.0
    %7944 = vmatpush1.msra.mxu0 0.0
    %7945 = vmatprep.subr.mxu0 0.0
    %7946 = vmatpush1.msra.mxu0 0.0
    %7947 = vmatprep.subr.mxu0 0.0
    %7948 = vmatpush1.msra.mxu0 0.0
    %7949 = vmatprep.subr.mxu0 0.0
    %7950 = vmatpush1.msra.mxu0 0.0
    %7951 = vmatprep.subr.mxu0 0.0
    %7952 = vmatpush1.msra.mxu0 0.0
    %7953 = vmatprep.subr.mxu0 0.0
    %7954 = vmatpush1.msra.mxu0 0.0
    %7955 = vmatprep.subr.mxu0 0.0
    %7956 = vmatpush1.msra.mxu0 0.0
    %7957 = vmatprep.subr.mxu0 0.0
    %7958 = vmatpush1.msra.mxu0 0.0
    %7959 = vmatprep.subr.mxu0 0.0
    %7960 = vmatpush1.msra.mxu0 0.0
    %7961 = vmatprep.subr.mxu0 0.0
    %7962 = vmatpush1.msra.mxu0 0.0
    %7963 = vmatprep.subr.mxu0 0.0
    %7964 = vmatpush1.msra.mxu0 0.0
    %7965 = vmatprep.subr.mxu0 0.0
    %7966 = vmatpush1.msra.mxu0 0.0
    %7967 = vmatprep.subr.mxu0 0.0
    %7968 = vmatpush1.msra.mxu0 0.0
    %7969 = vmatprep.subr.mxu0 0.0
    %7970 = vmatpush1.msra.mxu0 0.0
    %7971 = vmatprep.subr.mxu0 0.0
    %7972 = vmatpush1.msra.mxu0 0.0
    %7973 = vmatprep.mubr.f32.mxu0 0.0
    %v7974 = vand.u32 %v6802, 4294901760
    %7975 = vmatmul.mubr.f32.gmra.mrb[0].mxu0 %v7974
    %v7976 = vpop.f32.mrb[0].mxu0
    %v7977 = vadd.f32 %v7892, %v7976
    %v7978 = vpop.f32.mrb[0].mxu0
    %v7979 = vadd.f32 %v7894, %v7978
    %7980 = vmatprep.mubr.f32.mxu0 0.0
    %v7981 = vand.u32 %v6805, 4294901760
    %7982 = vmatmul.mubr.f32.gmra.mrb[0].mxu0 %v7981
    %v7983 = vpop.f32.mrb[0].mxu0
    %v7984 = vadd.f32 %v7899, %v7983
    %v7985 = vpop.f32.mrb[0].mxu0
    %v7986 = vadd.f32 %v7901, %v7985
    %7987 = vdwg.mxu0
    %v7988 = vand.u32 %v6743, 4294901760
    %7989 = vmatprep.subr.mxu0 %v7988
    %v7990 = vand.u32 %v6742, 4294901760
    %7991 = vmatpush1.msra.mxu0 %v7990
    %v7992 = vand.u32 %v6759, 4294901760
    %7993 = vmatprep.subr.mxu0 %v7992
    %v7994 = vand.u32 %v6758, 4294901760
    %7995 = vmatpush1.msra.mxu0 %v7994
    %v7996 = vand.u32 %v6824, 4294901760
    %7997 = vmatprep.subr.mxu0 %v7996
    %v7998 = vand.u32 %v6821, 4294901760
    %7999 = vmatpush1.msra.mxu0 %v7998
    %8000 = vmatprep.subr.mxu0 0.0
    %8001 = vmatpush1.msra.mxu0 0.0
    %8002 = vmatprep.subr.mxu0 0.0
    %8003 = vmatpush1.msra.mxu0 0.0
    %8004 = vmatprep.subr.mxu0 0.0
    %8005 = vmatpush1.msra.mxu0 0.0
    %8006 = vmatprep.subr.mxu0 0.0
    %8007 = vmatpush1.msra.mxu0 0.0
    %8008 = vmatprep.subr.mxu0 0.0
    %8009 = vmatpush1.msra.mxu0 0.0
    %8010 = vmatprep.subr.mxu0 0.0
    %8011 = vmatpush1.msra.mxu0 0.0
    %8012 = vmatprep.subr.mxu0 0.0
    %8013 = vmatpush1.msra.mxu0 0.0
    %8014 = vmatprep.subr.mxu0 0.0
    %8015 = vmatpush1.msra.mxu0 0.0
    %8016 = vmatprep.subr.mxu0 0.0
    %8017 = vmatpush1.msra.mxu0 0.0
    %8018 = vmatprep.subr.mxu0 0.0
    %8019 = vmatpush1.msra.mxu0 0.0
    %8020 = vmatprep.subr.mxu0 0.0
    %8021 = vmatpush1.msra.mxu0 0.0
    %8022 = vmatprep.subr.mxu0 0.0
    %8023 = vmatpush1.msra.mxu0 0.0
    %8024 = vmatprep.subr.mxu0 0.0
    %8025 = vmatpush1.msra.mxu0 0.0
    %8026 = vmatprep.subr.mxu0 0.0
    %8027 = vmatpush1.msra.mxu0 0.0
    %8028 = vmatprep.subr.mxu0 0.0
    %8029 = vmatpush1.msra.mxu0 0.0
    %8030 = vmatprep.subr.mxu0 0.0
    %8031 = vmatpush1.msra.mxu0 0.0
    %8032 = vmatprep.subr.mxu0 0.0
    %8033 = vmatpush1.msra.mxu0 0.0
    %8034 = vmatprep.subr.mxu0 0.0
    %8035 = vmatpush1.msra.mxu0 0.0
    %8036 = vmatprep.subr.mxu0 0.0
    %8037 = vmatpush1.msra.mxu0 0.0
    %8038 = vmatprep.subr.mxu0 0.0
    %8039 = vmatpush1.msra.mxu0 0.0
    %8040 = vmatprep.subr.mxu0 0.0
    %8041 = vmatpush1.msra.mxu0 0.0
    %8042 = vmatprep.subr.mxu0 0.0
    %8043 = vmatpush1.msra.mxu0 0.0
    %8044 = vmatprep.subr.mxu0 0.0
    %8045 = vmatpush1.msra.mxu0 0.0
    %8046 = vmatprep.subr.mxu0 0.0
    %8047 = vmatpush1.msra.mxu0 0.0
    %8048 = vmatprep.subr.mxu0 0.0
    %8049 = vmatpush1.msra.mxu0 0.0
    %8050 = vmatprep.subr.mxu0 0.0
    %8051 = vmatpush1.msra.mxu0 0.0
    %8052 = vmatprep.subr.mxu0 0.0
    %8053 = vmatpush1.msra.mxu0 0.0
    %8054 = vmatprep.subr.mxu0 0.0
    %8055 = vmatpush1.msra.mxu0 0.0
    %8056 = vmatprep.subr.mxu0 0.0
    %8057 = vmatpush1.msra.mxu0 0.0
    %8058 = vmatprep.mubr.f32.mxu0 0.0
    %v8059 = vand.u32 %v6802, 4294901760
    %v8060 = vsub.f32 %v6802, %v8059
    %v8061 = vand.u32 %v8060, 4294901760
    %v8062 = vsub.f32 %v8060, %v8061
    %v8063 = vand.u32 %v8062, 4294901760
    %8064 = vmatmul.mubr.f32.gmra.mrb[0].mxu0 %v8063
    %v8065 = vpop.f32.mrb[0].mxu0
    %v8066 = vadd.f32 %v6793, %v8065
    %v8067 = vpop.f32.mrb[0].mxu0
    %v8068 = vadd.f32 %v6793, %v8067
    %8069 = vmatprep.mubr.f32.mxu0 0.0
    %v8070 = vand.u32 %v6805, 4294901760
    %v8071 = vsub.f32 %v6805, %v8070
    %v8072 = vand.u32 %v8071, 4294901760
    %v8073 = vsub.f32 %v8071, %v8072
    %v8074 = vand.u32 %v8073, 4294901760
    %8075 = vmatmul.mubr.f32.gmra.mrb[0].mxu0 %v8074
    %v8076 = vpop.f32.mrb[0].mxu0
    %v8077 = vadd.f32 %v6798, %v8076
    %v8078 = vpop.f32.mrb[0].mxu0
    %v8079 = vadd.f32 %v6798, %v8078
    %8080 = vdwg.mxu0
    %v8081 = vand.u32 %v6743, 4294901760
    %v8082 = vsub.f32 %v6743, %v8081
    %v8083 = vand.u32 %v8082, 4294901760
    %v8084 = vsub.f32 %v8082, %v8083
    %v8085 = vand.u32 %v8084, 4294901760
    %8086 = vmatprep.subr.mxu0 %v8085
    %v8087 = vand.u32 %v6742, 4294901760
    %v8088 = vsub.f32 %v6742, %v8087
    %v8089 = vand.u32 %v8088, 4294901760
    %v8090 = vsub.f32 %v8088, %v8089
    %v8091 = vand.u32 %v8090, 4294901760
    %8092 = vmatpush1.msra.mxu0 %v8091
    %v8093 = vand.u32 %v6759, 4294901760
    %v8094 = vsub.f32 %v6759, %v8093
    %v8095 = vand.u32 %v8094, 4294901760
    %v8096 = vsub.f32 %v8094, %v8095
    %v8097 = vand.u32 %v8096, 4294901760
    %8098 = vmatprep.subr.mxu0 %v8097
    %v8099 = vand.u32 %v6758, 4294901760
    %v8100 = vsub.f32 %v6758, %v8099
    %v8101 = vand.u32 %v8100, 4294901760
    %v8102 = vsub.f32 %v8100, %v8101
    %v8103 = vand.u32 %v8102, 4294901760
    %8104 = vmatpush1.msra.mxu0 %v8103
    %v8105 = vand.u32 %v6824, 4294901760
    %v8106 = vsub.f32 %v6824, %v8105
    %v8107 = vand.u32 %v8106, 4294901760
    %v8108 = vsub.f32 %v8106, %v8107
    %v8109 = vand.u32 %v8108, 4294901760
    %8110 = vmatprep.subr.mxu0 %v8109
    %v8111 = vand.u32 %v6821, 4294901760
    %v8112 = vsub.f32 %v6821, %v8111
    %v8113 = vand.u32 %v8112, 4294901760
    %v8114 = vsub.f32 %v8112, %v8113
    %v8115 = vand.u32 %v8114, 4294901760
    %8116 = vmatpush1.msra.mxu0 %v8115
    %8117 = vmatprep.subr.mxu0 0.0
    %8118 = vmatpush1.msra.mxu0 0.0
    %8119 = vmatprep.subr.mxu0 0.0
    %8120 = vmatpush1.msra.mxu0 0.0
    %8121 = vmatprep.subr.mxu0 0.0
    %8122 = vmatpush1.msra.mxu0 0.0
    %8123 = vmatprep.subr.mxu0 0.0
    %8124 = vmatpush1.msra.mxu0 0.0
    %8125 = vmatprep.subr.mxu0 0.0
    %8126 = vmatpush1.msra.mxu0 0.0
    %8127 = vmatprep.subr.mxu0 0.0
    %8128 = vmatpush1.msra.mxu0 0.0
    %8129 = vmatprep.subr.mxu0 0.0
    %8130 = vmatpush1.msra.mxu0 0.0
    %8131 = vmatprep.subr.mxu0 0.0
    %8132 = vmatpush1.msra.mxu0 0.0
    %8133 = vmatprep.subr.mxu0 0.0
    %8134 = vmatpush1.msra.mxu0 0.0
    %8135 = vmatprep.subr.mxu0 0.0
    %8136 = vmatpush1.msra.mxu0 0.0
    %8137 = vmatprep.subr.mxu0 0.0
    %8138 = vmatpush1.msra.mxu0 0.0
    %8139 = vmatprep.subr.mxu0 0.0
    %8140 = vmatpush1.msra.mxu0 0.0
    %8141 = vmatprep.subr.mxu0 0.0
    %8142 = vmatpush1.msra.mxu0 0.0
    %8143 = vmatprep.subr.mxu0 0.0
    %8144 = vmatpush1.msra.mxu0 0.0
    %8145 = vmatprep.subr.mxu0 0.0
    %8146 = vmatpush1.msra.mxu0 0.0
    %8147 = vmatprep.subr.mxu0 0.0
    %8148 = vmatpush1.msra.mxu0 0.0
    %8149 = vmatprep.subr.mxu0 0.0
    %8150 = vmatpush1.msra.mxu0 0.0
    %8151 = vmatprep.subr.mxu0 0.0
    %8152 = vmatpush1.msra.mxu0 0.0
    %8153 = vmatprep.subr.mxu0 0.0
    %8154 = vmatpush1.msra.mxu0 0.0
    %8155 = vmatprep.subr.mxu0 0.0
    %8156 = vmatpush1.msra.mxu0 0.0
    %8157 = vmatprep.subr.mxu0 0.0
    %8158 = vmatpush1.msra.mxu0 0.0
    %8159 = vmatprep.subr.mxu0 0.0
    %8160 = vmatpush1.msra.mxu0 0.0
    %8161 = vmatprep.subr.mxu0 0.0
    %8162 = vmatpush1.msra.mxu0 0.0
    %8163 = vmatprep.subr.mxu0 0.0
    %8164 = vmatpush1.msra.mxu0 0.0
    %8165 = vmatprep.subr.mxu0 0.0
    %8166 = vmatpush1.msra.mxu0 0.0
    %8167 = vmatprep.subr.mxu0 0.0
    %8168 = vmatpush1.msra.mxu0 0.0
    %8169 = vmatprep.subr.mxu0 0.0
    %8170 = vmatpush1.msra.mxu0 0.0
    %8171 = vmatprep.subr.mxu0 0.0
    %8172 = vmatpush1.msra.mxu0 0.0
    %8173 = vmatprep.subr.mxu0 0.0
    %8174 = vmatpush1.msra.mxu0 0.0
    %8175 = vmatprep.mubr.f32.mxu0 0.0
    %v8176 = vand.u32 %v6802, 4294901760
    %8177 = vmatmul.mubr.f32.gmra.mrb[0].mxu0 %v8176
    %v8178 = vpop.f32.mrb[0].mxu0
    %v8179 = vadd.f32 %v8066, %v8178
    %v8180 = vpop.f32.mrb[0].mxu0
    %v8181 = vadd.f32 %v8068, %v8180
    %8182 = vmatprep.mubr.f32.mxu0 0.0
    %v8183 = vand.u32 %v6805, 4294901760
    %8184 = vmatmul.mubr.f32.gmra.mrb[0].mxu0 %v8183
    %v8185 = vpop.f32.mrb[0].mxu0
    %v8186 = vadd.f32 %v8077, %v8185
    %v8187 = vpop.f32.mrb[0].mxu0
    %v8188 = vadd.f32 %v8079, %v8187
    %8189 = vdwg.mxu0
    %v8190 = vand.u32 %v6743, 4294901760
    %v8191 = vsub.f32 %v6743, %v8190
    %8192 = vmatprep.subr.mxu0 %v8191
    %v8193 = vand.u32 %v6742, 4294901760
    %v8194 = vsub.f32 %v6742, %v8193
    %8195 = vmatpush1.msra.mxu0 %v8194
    %v8196 = vand.u32 %v6759, 4294901760
    %v8197 = vsub.f32 %v6759, %v8196
    %8198 = vmatprep.subr.mxu0 %v8197
    %v8199 = vand.u32 %v6758, 4294901760
    %v8200 = vsub.f32 %v6758, %v8199
    %8201 = vmatpush1.msra.mxu0 %v8200
    %v8202 = vand.u32 %v6824, 4294901760
    %v8203 = vsub.f32 %v6824, %v8202
    %8204 = vmatprep.subr.mxu0 %v8203
    %v8205 = vand.u32 %v6821, 4294901760
    %v8206 = vsub.f32 %v6821, %v8205
    %8207 = vmatpush1.msra.mxu0 %v8206
    %8208 = vmatprep.subr.mxu0 0.0
    %8209 = vmatpush1.msra.mxu0 0.0
    %8210 = vmatprep.subr.mxu0 0.0
    %8211 = vmatpush1.msra.mxu0 0.0
    %8212 = vmatprep.subr.mxu0 0.0
    %8213 = vmatpush1.msra.mxu0 0.0
    %8214 = vmatprep.subr.mxu0 0.0
    %8215 = vmatpush1.msra.mxu0 0.0
    %8216 = vmatprep.subr.mxu0 0.0
    %8217 = vmatpush1.msra.mxu0 0.0
    %8218 = vmatprep.subr.mxu0 0.0
    %8219 = vmatpush1.msra.mxu0 0.0
    %8220 = vmatprep.subr.mxu0 0.0
    %8221 = vmatpush1.msra.mxu0 0.0
    %8222 = vmatprep.subr.mxu0 0.0
    %8223 = vmatpush1.msra.mxu0 0.0
    %8224 = vmatprep.subr.mxu0 0.0
    %8225 = vmatpush1.msra.mxu0 0.0
    %8226 = vmatprep.subr.mxu0 0.0
    %8227 = vmatpush1.msra.mxu0 0.0
    %8228 = vmatprep.subr.mxu0 0.0
    %8229 = vmatpush1.msra.mxu0 0.0
    %8230 = vmatprep.subr.mxu0 0.0
    %8231 = vmatpush1.msra.mxu0 0.0
    %8232 = vmatprep.subr.mxu0 0.0
    %8233 = vmatpush1.msra.mxu0 0.0
    %8234 = vmatprep.subr.mxu0 0.0
    %8235 = vmatpush1.msra.mxu0 0.0
    %8236 = vmatprep.subr.mxu0 0.0
    %8237 = vmatpush1.msra.mxu0 0.0
    %8238 = vmatprep.subr.mxu0 0.0
    %8239 = vmatpush1.msra.mxu0 0.0
    %8240 = vmatprep.subr.mxu0 0.0
    %8241 = vmatpush1.msra.mxu0 0.0
    %8242 = vmatprep.subr.mxu0 0.0
    %8243 = vmatpush1.msra.mxu0 0.0
    %8244 = vmatprep.subr.mxu0 0.0
    %8245 = vmatpush1.msra.mxu0 0.0
    %8246 = vmatprep.subr.mxu0 0.0
    %8247 = vmatpush1.msra.mxu0 0.0
    %8248 = vmatprep.subr.mxu0 0.0
    %8249 = vmatpush1.msra.mxu0 0.0
    %8250 = vmatprep.subr.mxu0 0.0
    %8251 = vmatpush1.msra.mxu0 0.0
    %8252 = vmatprep.subr.mxu0 0.0
    %8253 = vmatpush1.msra.mxu0 0.0
    %8254 = vmatprep.subr.mxu0 0.0
    %8255 = vmatpush1.msra.mxu0 0.0
    %8256 = vmatprep.subr.mxu0 0.0
    %8257 = vmatpush1.msra.mxu0 0.0
    %8258 = vmatprep.subr.mxu0 0.0
    %8259 = vmatpush1.msra.mxu0 0.0
    %8260 = vmatprep.subr.mxu0 0.0
    %8261 = vmatpush1.msra.mxu0 0.0
    %8262 = vmatprep.subr.mxu0 0.0
    %8263 = vmatpush1.msra.mxu0 0.0
    %8264 = vmatprep.subr.mxu0 0.0
    %8265 = vmatpush1.msra.mxu0 0.0
    %8266 = vmatprep.mubr.f32.mxu0 0.0
    %v8267 = vand.u32 %v6802, 4294901760
    %v8268 = vsub.f32 %v6802, %v8267
    %8269 = vmatmul.mubr.f32.gmra.mrb[0].mxu0 %v8268
    %v8270 = vpop.f32.mrb[0].mxu0
    %v8271 = vadd.f32 %v8179, %v8270
    %v8272 = vpop.f32.mrb[0].mxu0
    %v8273 = vadd.f32 %v8181, %v8272
    %8274 = vmatprep.mubr.f32.mxu0 0.0
    %v8275 = vand.u32 %v6805, 4294901760
    %v8276 = vsub.f32 %v6805, %v8275
    %8277 = vmatmul.mubr.f32.gmra.mrb[0].mxu0 %v8276
    %v8278 = vpop.f32.mrb[0].mxu0
    %v8279 = vadd.f32 %v8186, %v8278
    %v8280 = vpop.f32.mrb[0].mxu0
    %v8281 = vadd.f32 %v8188, %v8280
    %8282 = vdwg.mxu0
    %v8283 = vand.u32 %v6743, 4294901760
    %8284 = vmatprep.subr.mxu0 %v8283
    %v8285 = vand.u32 %v6742, 4294901760
    %8286 = vmatpush1.msra.mxu0 %v8285
    %v8287 = vand.u32 %v6759, 4294901760
    %8288 = vmatprep.subr.mxu0 %v8287
    %v8289 = vand.u32 %v6758, 4294901760
    %8290 = vmatpush1.msra.mxu0 %v8289
    %v8291 = vand.u32 %v6824, 4294901760
    %8292 = vmatprep.subr.mxu0 %v8291
    %v8293 = vand.u32 %v6821, 4294901760
    %8294 = vmatpush1.msra.mxu0 %v8293
    %8295 = vmatprep.subr.mxu0 0.0
    %8296 = vmatpush1.msra.mxu0 0.0
    %8297 = vmatprep.subr.mxu0 0.0
    %8298 = vmatpush1.msra.mxu0 0.0
    %8299 = vmatprep.subr.mxu0 0.0
    %8300 = vmatpush1.msra.mxu0 0.0
    %8301 = vmatprep.subr.mxu0 0.0
    %8302 = vmatpush1.msra.mxu0 0.0
    %8303 = vmatprep.subr.mxu0 0.0
    %8304 = vmatpush1.msra.mxu0 0.0
    %8305 = vmatprep.subr.mxu0 0.0
    %8306 = vmatpush1.msra.mxu0 0.0
    %8307 = vmatprep.subr.mxu0 0.0
    %8308 = vmatpush1.msra.mxu0 0.0
    %8309 = vmatprep.subr.mxu0 0.0
    %8310 = vmatpush1.msra.mxu0 0.0
    %8311 = vmatprep.subr.mxu0 0.0
    %8312 = vmatpush1.msra.mxu0 0.0
    %8313 = vmatprep.subr.mxu0 0.0
    %8314 = vmatpush1.msra.mxu0 0.0
    %8315 = vmatprep.subr.mxu0 0.0
    %8316 = vmatpush1.msra.mxu0 0.0
    %8317 = vmatprep.subr.mxu0 0.0
    %8318 = vmatpush1.msra.mxu0 0.0
    %8319 = vmatprep.subr.mxu0 0.0
    %8320 = vmatpush1.msra.mxu0 0.0
    %8321 = vmatprep.subr.mxu0 0.0
    %8322 = vmatpush1.msra.mxu0 0.0
    %8323 = vmatprep.subr.mxu0 0.0
    %8324 = vmatpush1.msra.mxu0 0.0
    %8325 = vmatprep.subr.mxu0 0.0
    %8326 = vmatpush1.msra.mxu0 0.0
    %8327 = vmatprep.subr.mxu0 0.0
    %8328 = vmatpush1.msra.mxu0 0.0
    %8329 = vmatprep.subr.mxu0 0.0
    %8330 = vmatpush1.msra.mxu0 0.0
    %8331 = vmatprep.subr.mxu0 0.0
    %8332 = vmatpush1.msra.mxu0 0.0
    %8333 = vmatprep.subr.mxu0 0.0
    %8334 = vmatpush1.msra.mxu0 0.0
    %8335 = vmatprep.subr.mxu0 0.0
    %8336 = vmatpush1.msra.mxu0 0.0
    %8337 = vmatprep.subr.mxu0 0.0
    %8338 = vmatpush1.msra.mxu0 0.0
    %8339 = vmatprep.subr.mxu0 0.0
    %8340 = vmatpush1.msra.mxu0 0.0
    %8341 = vmatprep.subr.mxu0 0.0
    %8342 = vmatpush1.msra.mxu0 0.0
    %8343 = vmatprep.subr.mxu0 0.0
    %8344 = vmatpush1.msra.mxu0 0.0
    %8345 = vmatprep.subr.mxu0 0.0
    %8346 = vmatpush1.msra.mxu0 0.0
    %8347 = vmatprep.subr.mxu0 0.0
    %8348 = vmatpush1.msra.mxu0 0.0
    %8349 = vmatprep.subr.mxu0 0.0
    %8350 = vmatpush1.msra.mxu0 0.0
    %8351 = vmatprep.subr.mxu0 0.0
    %8352 = vmatpush1.msra.mxu0 0.0
    %8353 = vmatprep.mubr.f32.mxu0 0.0
    %v8354 = vand.u32 %v6802, 4294901760
    %v8355 = vsub.f32 %v6802, %v8354
    %v8356 = vand.u32 %v8355, 4294901760
    %8357 = vmatmul.mubr.f32.gmra.mrb[0].mxu0 %v8356
    %v8358 = vpop.f32.mrb[0].mxu0
    %v8359 = vadd.f32 %v8271, %v8358
    %v8360 = vpop.f32.mrb[0].mxu0
    %v8361 = vadd.f32 %v8273, %v8360
    %8362 = vmatprep.mubr.f32.mxu0 0.0
    %v8363 = vand.u32 %v6805, 4294901760
    %v8364 = vsub.f32 %v6805, %v8363
    %v8365 = vand.u32 %v8364, 4294901760
    %8366 = vmatmul.mubr.f32.gmra.mrb[0].mxu0 %v8365
    %v8367 = vpop.f32.mrb[0].mxu0
    %v8368 = vadd.f32 %v8279, %v8367
    %v8369 = vpop.f32.mrb[0].mxu0
    %v8370 = vadd.f32 %v8281, %v8369
    %8371 = vdwg.mxu0
    %v8372 = vand.u32 %v6743, 4294901760
    %v8373 = vsub.f32 %v6743, %v8372
    %v8374 = vand.u32 %v8373, 4294901760
    %8375 = vmatprep.subr.mxu0 %v8374
    %v8376 = vand.u32 %v6742, 4294901760
    %v8377 = vsub.f32 %v6742, %v8376
    %v8378 = vand.u32 %v8377, 4294901760
    %8379 = vmatpush1.msra.mxu0 %v8378
    %v8380 = vand.u32 %v6759, 4294901760
    %v8381 = vsub.f32 %v6759, %v8380
    %v8382 = vand.u32 %v8381, 4294901760
    %8383 = vmatprep.subr.mxu0 %v8382
    %v8384 = vand.u32 %v6758, 4294901760
    %v8385 = vsub.f32 %v6758, %v8384
    %v8386 = vand.u32 %v8385, 4294901760
    %8387 = vmatpush1.msra.mxu0 %v8386
    %v8388 = vand.u32 %v6824, 4294901760
    %v8389 = vsub.f32 %v6824, %v8388
    %v8390 = vand.u32 %v8389, 4294901760
    %8391 = vmatprep.subr.mxu0 %v8390
    %v8392 = vand.u32 %v6821, 4294901760
    %v8393 = vsub.f32 %v6821, %v8392
    %v8394 = vand.u32 %v8393, 4294901760
    %8395 = vmatpush1.msra.mxu0 %v8394
    %8396 = vmatprep.subr.mxu0 0.0
    %8397 = vmatpush1.msra.mxu0 0.0
    %8398 = vmatprep.subr.mxu0 0.0
    %8399 = vmatpush1.msra.mxu0 0.0
    %8400 = vmatprep.subr.mxu0 0.0
    %8401 = vmatpush1.msra.mxu0 0.0
    %8402 = vmatprep.subr.mxu0 0.0
    %8403 = vmatpush1.msra.mxu0 0.0
    %8404 = vmatprep.subr.mxu0 0.0
    %8405 = vmatpush1.msra.mxu0 0.0
    %8406 = vmatprep.subr.mxu0 0.0
    %8407 = vmatpush1.msra.mxu0 0.0
    %8408 = vmatprep.subr.mxu0 0.0
    %8409 = vmatpush1.msra.mxu0 0.0
    %8410 = vmatprep.subr.mxu0 0.0
    %8411 = vmatpush1.msra.mxu0 0.0
    %8412 = vmatprep.subr.mxu0 0.0
    %8413 = vmatpush1.msra.mxu0 0.0
    %8414 = vmatprep.subr.mxu0 0.0
    %8415 = vmatpush1.msra.mxu0 0.0
    %8416 = vmatprep.subr.mxu0 0.0
    %8417 = vmatpush1.msra.mxu0 0.0
    %8418 = vmatprep.subr.mxu0 0.0
    %8419 = vmatpush1.msra.mxu0 0.0
    %8420 = vmatprep.subr.mxu0 0.0
    %8421 = vmatpush1.msra.mxu0 0.0
    %8422 = vmatprep.subr.mxu0 0.0
    %8423 = vmatpush1.msra.mxu0 0.0
    %8424 = vmatprep.subr.mxu0 0.0
    %8425 = vmatpush1.msra.mxu0 0.0
    %8426 = vmatprep.subr.mxu0 0.0
    %8427 = vmatpush1.msra.mxu0 0.0
    %8428 = vmatprep.subr.mxu0 0.0
    %8429 = vmatpush1.msra.mxu0 0.0
    %8430 = vmatprep.subr.mxu0 0.0
    %8431 = vmatpush1.msra.mxu0 0.0
    %8432 = vmatprep.subr.mxu0 0.0
    %8433 = vmatpush1.msra.mxu0 0.0
    %8434 = vmatprep.subr.mxu0 0.0
    %8435 = vmatpush1.msra.mxu0 0.0
    %8436 = vmatprep.subr.mxu0 0.0
    %8437 = vmatpush1.msra.mxu0 0.0
    %8438 = vmatprep.subr.mxu0 0.0
    %8439 = vmatpush1.msra.mxu0 0.0
    %8440 = vmatprep.subr.mxu0 0.0
    %8441 = vmatpush1.msra.mxu0 0.0
    %8442 = vmatprep.subr.mxu0 0.0
    %8443 = vmatpush1.msra.mxu0 0.0
    %8444 = vmatprep.subr.mxu0 0.0
    %8445 = vmatpush1.msra.mxu0 0.0
    %8446 = vmatprep.subr.mxu0 0.0
    %8447 = vmatpush1.msra.mxu0 0.0
    %8448 = vmatprep.subr.mxu0 0.0
    %8449 = vmatpush1.msra.mxu0 0.0
    %8450 = vmatprep.subr.mxu0 0.0
    %8451 = vmatpush1.msra.mxu0 0.0
    %8452 = vmatprep.subr.mxu0 0.0
    %8453 = vmatpush1.msra.mxu0 0.0
    %8454 = vmatprep.mubr.f32.mxu0 0.0
    %v8455 = vand.u32 %v6802, 4294901760
    %8456 = vmatmul.mubr.f32.gmra.mrb[0].mxu0 %v8455
    %v8457 = vpop.f32.mrb[0].mxu0
    %v8458 = vadd.f32 %v8359, %v8457
    %v8459 = vpop.f32.mrb[0].mxu0
    %v8460 = vadd.f32 %v8361, %v8459
    %8461 = vmatprep.mubr.f32.mxu0 0.0
    %v8462 = vand.u32 %v6805, 4294901760
    %8463 = vmatmul.mubr.f32.gmra.mrb[0].mxu0 %v8462
    %v8464 = vpop.f32.mrb[0].mxu0
    %v8465 = vadd.f32 %v8368, %v8464
    %v8466 = vpop.f32.mrb[0].mxu0
    %v8467 = vadd.f32 %v8370, %v8466
    %8468 = vdwg.mxu0
    %v8469 = vand.u32 %v6743, 4294901760
    %8470 = vmatprep.subr.mxu0 %v8469
    %v8471 = vand.u32 %v6742, 4294901760
    %8472 = vmatpush1.msra.mxu0 %v8471
    %v8473 = vand.u32 %v6759, 4294901760
    %8474 = vmatprep.subr.mxu0 %v8473
    %v8475 = vand.u32 %v6758, 4294901760
    %8476 = vmatpush1.msra.mxu0 %v8475
    %v8477 = vand.u32 %v6824, 4294901760
    %8478 = vmatprep.subr.mxu0 %v8477
    %v8479 = vand.u32 %v6821, 4294901760
    %8480 = vmatpush1.msra.mxu0 %v8479
    %8481 = vmatprep.subr.mxu0 0.0
    %8482 = vmatpush1.msra.mxu0 0.0
    %8483 = vmatprep.subr.mxu0 0.0
    %8484 = vmatpush1.msra.mxu0 0.0
    %8485 = vmatprep.subr.mxu0 0.0
    %8486 = vmatpush1.msra.mxu0 0.0
    %8487 = vmatprep.subr.mxu0 0.0
    %8488 = vmatpush1.msra.mxu0 0.0
    %8489 = vmatprep.subr.mxu0 0.0
    %8490 = vmatpush1.msra.mxu0 0.0
    %8491 = vmatprep.subr.mxu0 0.0
    %8492 = vmatpush1.msra.mxu0 0.0
    %8493 = vmatprep.subr.mxu0 0.0
    %8494 = vmatpush1.msra.mxu0 0.0
    %8495 = vmatprep.subr.mxu0 0.0
    %8496 = vmatpush1.msra.mxu0 0.0
    %8497 = vmatprep.subr.mxu0 0.0
    %8498 = vmatpush1.msra.mxu0 0.0
    %8499 = vmatprep.subr.mxu0 0.0
    %8500 = vmatpush1.msra.mxu0 0.0
    %8501 = vmatprep.subr.mxu0 0.0
    %8502 = vmatpush1.msra.mxu0 0.0
    %8503 = vmatprep.subr.mxu0 0.0
    %8504 = vmatpush1.msra.mxu0 0.0
    %8505 = vmatprep.subr.mxu0 0.0
    %8506 = vmatpush1.msra.mxu0 0.0
    %8507 = vmatprep.subr.mxu0 0.0
    %8508 = vmatpush1.msra.mxu0 0.0
    %8509 = vmatprep.subr.mxu0 0.0
    %8510 = vmatpush1.msra.mxu0 0.0
    %8511 = vmatprep.subr.mxu0 0.0
    %8512 = vmatpush1.msra.mxu0 0.0
    %8513 = vmatprep.subr.mxu0 0.0
    %8514 = vmatpush1.msra.mxu0 0.0
    %8515 = vmatprep.subr.mxu0 0.0
    %8516 = vmatpush1.msra.mxu0 0.0
    %8517 = vmatprep.subr.mxu0 0.0
    %8518 = vmatpush1.msra.mxu0 0.0
    %8519 = vmatprep.subr.mxu0 0.0
    %8520 = vmatpush1.msra.mxu0 0.0
    %8521 = vmatprep.subr.mxu0 0.0
    %8522 = vmatpush1.msra.mxu0 0.0
    %8523 = vmatprep.subr.mxu0 0.0
    %8524 = vmatpush1.msra.mxu0 0.0
    %8525 = vmatprep.subr.mxu0 0.0
    %8526 = vmatpush1.msra.mxu0 0.0
    %8527 = vmatprep.subr.mxu0 0.0
    %8528 = vmatpush1.msra.mxu0 0.0
    %8529 = vmatprep.subr.mxu0 0.0
    %8530 = vmatpush1.msra.mxu0 0.0
    %8531 = vmatprep.subr.mxu0 0.0
    %8532 = vmatpush1.msra.mxu0 0.0
    %8533 = vmatprep.subr.mxu0 0.0
    %8534 = vmatpush1.msra.mxu0 0.0
    %8535 = vmatprep.subr.mxu0 0.0
    %8536 = vmatpush1.msra.mxu0 0.0
    %8537 = vmatprep.subr.mxu0 0.0
    %8538 = vmatpush1.msra.mxu0 0.0
    %8539 = vmatprep.mubr.f32.mxu0 0.0
    %v8540 = vand.u32 %v6802, 4294901760
    %8541 = vmatmul.mubr.f32.gmra.mrb[0].mxu0 %v8540
    %v8542 = vpop.f32.mrb[0].mxu0
    %v8543 = vadd.f32 %v8458, %v8542
    %v8544 = vpop.f32.mrb[0].mxu0
    %v8545 = vadd.f32 %v8460, %v8544
    %8546 = vmatprep.mubr.f32.mxu0 0.0
    %v8547 = vand.u32 %v6805, 4294901760
    %8548 = vmatmul.mubr.f32.gmra.mrb[0].mxu0 %v8547
    %v8549 = vpop.f32.mrb[0].mxu0
    %v8550 = vadd.f32 %v8465, %v8549
    %v8551 = vpop.f32.mrb[0].mxu0
    %v8552 = vadd.f32 %v8467, %v8551
    %8553 = vdwg.mxu0
    %v8554 = vand.u32 %v6745, 4294901760
    %8555 = vmatprep.subr.mxu0 %v8554
    %v8556 = vand.u32 %v6744, 4294901760
    %8557 = vmatpush1.msra.mxu0 %v8556
    %v8558 = vand.u32 %v6761, 4294901760
    %8559 = vmatprep.subr.mxu0 %v8558
    %v8560 = vand.u32 %v6760, 4294901760
    %8561 = vmatpush1.msra.mxu0 %v8560
    %v8562 = vand.u32 %v6830, 4294901760
    %8563 = vmatprep.subr.mxu0 %v8562
    %v8564 = vand.u32 %v6827, 4294901760
    %8565 = vmatpush1.msra.mxu0 %v8564
    %8566 = vmatprep.subr.mxu0 0.0
    %8567 = vmatpush1.msra.mxu0 0.0
    %8568 = vmatprep.subr.mxu0 0.0
    %8569 = vmatpush1.msra.mxu0 0.0
    %8570 = vmatprep.subr.mxu0 0.0
    %8571 = vmatpush1.msra.mxu0 0.0
    %8572 = vmatprep.subr.mxu0 0.0
    %8573 = vmatpush1.msra.mxu0 0.0
    %8574 = vmatprep.subr.mxu0 0.0
    %8575 = vmatpush1.msra.mxu0 0.0
    %8576 = vmatprep.subr.mxu0 0.0
    %8577 = vmatpush1.msra.mxu0 0.0
    %8578 = vmatprep.subr.mxu0 0.0
    %8579 = vmatpush1.msra.mxu0 0.0
    %8580 = vmatprep.subr.mxu0 0.0
    %8581 = vmatpush1.msra.mxu0 0.0
    %8582 = vmatprep.subr.mxu0 0.0
    %8583 = vmatpush1.msra.mxu0 0.0
    %8584 = vmatprep.subr.mxu0 0.0
    %8585 = vmatpush1.msra.mxu0 0.0
    %8586 = vmatprep.subr.mxu0 0.0
    %8587 = vmatpush1.msra.mxu0 0.0
    %8588 = vmatprep.subr.mxu0 0.0
    %8589 = vmatpush1.msra.mxu0 0.0
    %8590 = vmatprep.subr.mxu0 0.0
    %8591 = vmatpush1.msra.mxu0 0.0
    %8592 = vmatprep.subr.mxu0 0.0
    %8593 = vmatpush1.msra.mxu0 0.0
    %8594 = vmatprep.subr.mxu0 0.0
    %8595 = vmatpush1.msra.mxu0 0.0
    %8596 = vmatprep.subr.mxu0 0.0
    %8597 = vmatpush1.msra.mxu0 0.0
    %8598 = vmatprep.subr.mxu0 0.0
    %8599 = vmatpush1.msra.mxu0 0.0
    %8600 = vmatprep.subr.mxu0 0.0
    %8601 = vmatpush1.msra.mxu0 0.0
    %8602 = vmatprep.subr.mxu0 0.0
    %8603 = vmatpush1.msra.mxu0 0.0
    %8604 = vmatprep.subr.mxu0 0.0
    %8605 = vmatpush1.msra.mxu0 0.0
    %8606 = vmatprep.subr.mxu0 0.0
    %8607 = vmatpush1.msra.mxu0 0.0
    %8608 = vmatprep.subr.mxu0 0.0
    %8609 = vmatpush1.msra.mxu0 0.0
    %8610 = vmatprep.subr.mxu0 0.0
    %8611 = vmatpush1.msra.mxu0 0.0
    %8612 = vmatprep.subr.mxu0 0.0
    %8613 = vmatpush1.msra.mxu0 0.0
    %8614 = vmatprep.subr.mxu0 0.0
    %8615 = vmatpush1.msra.mxu0 0.0
    %8616 = vmatprep.subr.mxu0 0.0
    %8617 = vmatpush1.msra.mxu0 0.0
    %8618 = vmatprep.subr.mxu0 0.0
    %8619 = vmatpush1.msra.mxu0 0.0
    %8620 = vmatprep.subr.mxu0 0.0
    %8621 = vmatpush1.msra.mxu0 0.0
    %8622 = vmatprep.subr.mxu0 0.0
    %8623 = vmatpush1.msra.mxu0 0.0
    %8624 = vmatprep.mubr.f32.mxu0 0.0
    %v8625 = vand.u32 %v6802, 4294901760
    %v8626 = vsub.f32 %v6802, %v8625
    %v8627 = vand.u32 %v8626, 4294901760
    %v8628 = vsub.f32 %v8626, %v8627
    %v8629 = vand.u32 %v8628, 4294901760
    %8630 = vmatmul.mubr.f32.gmra.mrb[0].mxu0 %v8629
    %v8631 = vpop.f32.mrb[0].mxu0
    %v8632 = vadd.f32 %v6793, %v8631
    %v8633 = vpop.f32.mrb[0].mxu0
    %v8634 = vadd.f32 %v6793, %v8633
    %8635 = vmatprep.mubr.f32.mxu0 0.0
    %v8636 = vand.u32 %v6805, 4294901760
    %v8637 = vsub.f32 %v6805, %v8636
    %v8638 = vand.u32 %v8637, 4294901760
    %v8639 = vsub.f32 %v8637, %v8638
    %v8640 = vand.u32 %v8639, 4294901760
    %8641 = vmatmul.mubr.f32.gmra.mrb[0].mxu0 %v8640
    %v8642 = vpop.f32.mrb[0].mxu0
    %v8643 = vadd.f32 %v6798, %v8642
    %v8644 = vpop.f32.mrb[0].mxu0
    %v8645 = vadd.f32 %v6798, %v8644
    %8646 = vdwg.mxu0
    %v8647 = vand.u32 %v6745, 4294901760
    %v8648 = vsub.f32 %v6745, %v8647
    %v8649 = vand.u32 %v8648, 4294901760
    %v8650 = vsub.f32 %v8648, %v8649
    %v8651 = vand.u32 %v8650, 4294901760
    %8652 = vmatprep.subr.mxu0 %v8651
    %v8653 = vand.u32 %v6744, 4294901760
    %v8654 = vsub.f32 %v6744, %v8653
    %v8655 = vand.u32 %v8654, 4294901760
    %v8656 = vsub.f32 %v8654, %v8655
    %v8657 = vand.u32 %v8656, 4294901760
    %8658 = vmatpush1.msra.mxu0 %v8657
    %v8659 = vand.u32 %v6761, 4294901760
    %v8660 = vsub.f32 %v6761, %v8659
    %v8661 = vand.u32 %v8660, 4294901760
    %v8662 = vsub.f32 %v8660, %v8661
    %v8663 = vand.u32 %v8662, 4294901760
    %8664 = vmatprep.subr.mxu0 %v8663
    %v8665 = vand.u32 %v6760, 4294901760
    %v8666 = vsub.f32 %v6760, %v8665
    %v8667 = vand.u32 %v8666, 4294901760
    %v8668 = vsub.f32 %v8666, %v8667
    %v8669 = vand.u32 %v8668, 4294901760
    %8670 = vmatpush1.msra.mxu0 %v8669
    %v8671 = vand.u32 %v6830, 4294901760
    %v8672 = vsub.f32 %v6830, %v8671
    %v8673 = vand.u32 %v8672, 4294901760
    %v8674 = vsub.f32 %v8672, %v8673
    %v8675 = vand.u32 %v8674, 4294901760
    %8676 = vmatprep.subr.mxu0 %v8675
    %v8677 = vand.u32 %v6827, 4294901760
    %v8678 = vsub.f32 %v6827, %v8677
    %v8679 = vand.u32 %v8678, 4294901760
    %v8680 = vsub.f32 %v8678, %v8679
    %v8681 = vand.u32 %v8680, 4294901760
    %8682 = vmatpush1.msra.mxu0 %v8681
    %8683 = vmatprep.subr.mxu0 0.0
    %8684 = vmatpush1.msra.mxu0 0.0
    %8685 = vmatprep.subr.mxu0 0.0
    %8686 = vmatpush1.msra.mxu0 0.0
    %8687 = vmatprep.subr.mxu0 0.0
    %8688 = vmatpush1.msra.mxu0 0.0
    %8689 = vmatprep.subr.mxu0 0.0
    %8690 = vmatpush1.msra.mxu0 0.0
    %8691 = vmatprep.subr.mxu0 0.0
    %8692 = vmatpush1.msra.mxu0 0.0
    %8693 = vmatprep.subr.mxu0 0.0
    %8694 = vmatpush1.msra.mxu0 0.0
    %8695 = vmatprep.subr.mxu0 0.0
    %8696 = vmatpush1.msra.mxu0 0.0
    %8697 = vmatprep.subr.mxu0 0.0
    %8698 = vmatpush1.msra.mxu0 0.0
    %8699 = vmatprep.subr.mxu0 0.0
    %8700 = vmatpush1.msra.mxu0 0.0
    %8701 = vmatprep.subr.mxu0 0.0
    %8702 = vmatpush1.msra.mxu0 0.0
    %8703 = vmatprep.subr.mxu0 0.0
    %8704 = vmatpush1.msra.mxu0 0.0
    %8705 = vmatprep.subr.mxu0 0.0
    %8706 = vmatpush1.msra.mxu0 0.0
    %8707 = vmatprep.subr.mxu0 0.0
    %8708 = vmatpush1.msra.mxu0 0.0
    %8709 = vmatprep.subr.mxu0 0.0
    %8710 = vmatpush1.msra.mxu0 0.0
    %8711 = vmatprep.subr.mxu0 0.0
    %8712 = vmatpush1.msra.mxu0 0.0
    %8713 = vmatprep.subr.mxu0 0.0
    %8714 = vmatpush1.msra.mxu0 0.0
    %8715 = vmatprep.subr.mxu0 0.0
    %8716 = vmatpush1.msra.mxu0 0.0
    %8717 = vmatprep.subr.mxu0 0.0
    %8718 = vmatpush1.msra.mxu0 0.0
    %8719 = vmatprep.subr.mxu0 0.0
    %8720 = vmatpush1.msra.mxu0 0.0
    %8721 = vmatprep.subr.mxu0 0.0
    %8722 = vmatpush1.msra.mxu0 0.0
    %8723 = vmatprep.subr.mxu0 0.0
    %8724 = vmatpush1.msra.mxu0 0.0
    %8725 = vmatprep.subr.mxu0 0.0
    %8726 = vmatpush1.msra.mxu0 0.0
    %8727 = vmatprep.subr.mxu0 0.0
    %8728 = vmatpush1.msra.mxu0 0.0
    %8729 = vmatprep.subr.mxu0 0.0
    %8730 = vmatpush1.msra.mxu0 0.0
    %8731 = vmatprep.subr.mxu0 0.0
    %8732 = vmatpush1.msra.mxu0 0.0
    %8733 = vmatprep.subr.mxu0 0.0
    %8734 = vmatpush1.msra.mxu0 0.0
    %8735 = vmatprep.subr.mxu0 0.0
    %8736 = vmatpush1.msra.mxu0 0.0
    %8737 = vmatprep.subr.mxu0 0.0
    %8738 = vmatpush1.msra.mxu0 0.0
    %8739 = vmatprep.subr.mxu0 0.0
    %8740 = vmatpush1.msra.mxu0 0.0
    %8741 = vmatprep.mubr.f32.mxu0 0.0
    %v8742 = vand.u32 %v6802, 4294901760
    %8743 = vmatmul.mubr.f32.gmra.mrb[0].mxu0 %v8742
    %v8744 = vpop.f32.mrb[0].mxu0
    %v8745 = vadd.f32 %v8632, %v8744
    %v8746 = vpop.f32.mrb[0].mxu0
    %v8747 = vadd.f32 %v8634, %v8746
    %8748 = vmatprep.mubr.f32.mxu0 0.0
    %v8749 = vand.u32 %v6805, 4294901760
    %8750 = vmatmul.mubr.f32.gmra.mrb[0].mxu0 %v8749
    %v8751 = vpop.f32.mrb[0].mxu0
    %v8752 = vadd.f32 %v8643, %v8751
    %v8753 = vpop.f32.mrb[0].mxu0
    %v8754 = vadd.f32 %v8645, %v8753
    %8755 = vdwg.mxu0
    %v8756 = vand.u32 %v6745, 4294901760
    %v8757 = vsub.f32 %v6745, %v8756
    %8758 = vmatprep.subr.mxu0 %v8757
    %v8759 = vand.u32 %v6744, 4294901760
    %v8760 = vsub.f32 %v6744, %v8759
    %8761 = vmatpush1.msra.mxu0 %v8760
    %v8762 = vand.u32 %v6761, 4294901760
    %v8763 = vsub.f32 %v6761, %v8762
    %8764 = vmatprep.subr.mxu0 %v8763
    %v8765 = vand.u32 %v6760, 4294901760
    %v8766 = vsub.f32 %v6760, %v8765
    %8767 = vmatpush1.msra.mxu0 %v8766
    %v8768 = vand.u32 %v6830, 4294901760
    %v8769 = vsub.f32 %v6830, %v8768
    %8770 = vmatprep.subr.mxu0 %v8769
    %v8771 = vand.u32 %v6827, 4294901760
    %v8772 = vsub.f32 %v6827, %v8771
    %8773 = vmatpush1.msra.mxu0 %v8772
    %8774 = vmatprep.subr.mxu0 0.0
    %8775 = vmatpush1.msra.mxu0 0.0
    %8776 = vmatprep.subr.mxu0 0.0
    %8777 = vmatpush1.msra.mxu0 0.0
    %8778 = vmatprep.subr.mxu0 0.0
    %8779 = vmatpush1.msra.mxu0 0.0
    %8780 = vmatprep.subr.mxu0 0.0
    %8781 = vmatpush1.msra.mxu0 0.0
    %8782 = vmatprep.subr.mxu0 0.0
    %8783 = vmatpush1.msra.mxu0 0.0
    %8784 = vmatprep.subr.mxu0 0.0
    %8785 = vmatpush1.msra.mxu0 0.0
    %8786 = vmatprep.subr.mxu0 0.0
    %8787 = vmatpush1.msra.mxu0 0.0
    %8788 = vmatprep.subr.mxu0 0.0
    %8789 = vmatpush1.msra.mxu0 0.0
    %8790 = vmatprep.subr.mxu0 0.0
    %8791 = vmatpush1.msra.mxu0 0.0
    %8792 = vmatprep.subr.mxu0 0.0
    %8793 = vmatpush1.msra.mxu0 0.0
    %8794 = vmatprep.subr.mxu0 0.0
    %8795 = vmatpush1.msra.mxu0 0.0
    %8796 = vmatprep.subr.mxu0 0.0
    %8797 = vmatpush1.msra.mxu0 0.0
    %8798 = vmatprep.subr.mxu0 0.0
    %8799 = vmatpush1.msra.mxu0 0.0
    %8800 = vmatprep.subr.mxu0 0.0
    %8801 = vmatpush1.msra.mxu0 0.0
    %8802 = vmatprep.subr.mxu0 0.0
    %8803 = vmatpush1.msra.mxu0 0.0
    %8804 = vmatprep.subr.mxu0 0.0
    %8805 = vmatpush1.msra.mxu0 0.0
    %8806 = vmatprep.subr.mxu0 0.0
    %8807 = vmatpush1.msra.mxu0 0.0
    %8808 = vmatprep.subr.mxu0 0.0
    %8809 = vmatpush1.msra.mxu0 0.0
    %8810 = vmatprep.subr.mxu0 0.0
    %8811 = vmatpush1.msra.mxu0 0.0
    %8812 = vmatprep.subr.mxu0 0.0
    %8813 = vmatpush1.msra.mxu0 0.0
    %8814 = vmatprep.subr.mxu0 0.0
    %8815 = vmatpush1.msra.mxu0 0.0
    %8816 = vmatprep.subr.mxu0 0.0
    %8817 = vmatpush1.msra.mxu0 0.0
    %8818 = vmatprep.subr.mxu0 0.0
    %8819 = vmatpush1.msra.mxu0 0.0
    %8820 = vmatprep.subr.mxu0 0.0
    %8821 = vmatpush1.msra.mxu0 0.0
    %8822 = vmatprep.subr.mxu0 0.0
    %8823 = vmatpush1.msra.mxu0 0.0
    %8824 = vmatprep.subr.mxu0 0.0
    %8825 = vmatpush1.msra.mxu0 0.0
    %8826 = vmatprep.subr.mxu0 0.0
    %8827 = vmatpush1.msra.mxu0 0.0
    %8828 = vmatprep.subr.mxu0 0.0
    %8829 = vmatpush1.msra.mxu0 0.0
    %8830 = vmatprep.subr.mxu0 0.0
    %8831 = vmatpush1.msra.mxu0 0.0
    %8832 = vmatprep.mubr.f32.mxu0 0.0
    %v8833 = vand.u32 %v6802, 4294901760
    %v8834 = vsub.f32 %v6802, %v8833
    %8835 = vmatmul.mubr.f32.gmra.mrb[0].mxu0 %v8834
    %v8836 = vpop.f32.mrb[0].mxu0
    %v8837 = vadd.f32 %v8745, %v8836
    %v8838 = vpop.f32.mrb[0].mxu0
    %v8839 = vadd.f32 %v8747, %v8838
    %8840 = vmatprep.mubr.f32.mxu0 0.0
    %v8841 = vand.u32 %v6805, 4294901760
    %v8842 = vsub.f32 %v6805, %v8841
    %8843 = vmatmul.mubr.f32.gmra.mrb[0].mxu0 %v8842
    %v8844 = vpop.f32.mrb[0].mxu0
    %v8845 = vadd.f32 %v8752, %v8844
    %v8846 = vpop.f32.mrb[0].mxu0
    %v8847 = vadd.f32 %v8754, %v8846
    %8848 = vdwg.mxu0
    %v8849 = vand.u32 %v6745, 4294901760
    %8850 = vmatprep.subr.mxu0 %v8849
    %v8851 = vand.u32 %v6744, 4294901760
    %8852 = vmatpush1.msra.mxu0 %v8851
    %v8853 = vand.u32 %v6761, 4294901760
    %8854 = vmatprep.subr.mxu0 %v8853
    %v8855 = vand.u32 %v6760, 4294901760
    %8856 = vmatpush1.msra.mxu0 %v8855
    %v8857 = vand.u32 %v6830, 4294901760
    %8858 = vmatprep.subr.mxu0 %v8857
    %v8859 = vand.u32 %v6827, 4294901760
    %8860 = vmatpush1.msra.mxu0 %v8859
    %8861 = vmatprep.subr.mxu0 0.0
    %8862 = vmatpush1.msra.mxu0 0.0
    %8863 = vmatprep.subr.mxu0 0.0
    %8864 = vmatpush1.msra.mxu0 0.0
    %8865 = vmatprep.subr.mxu0 0.0
    %8866 = vmatpush1.msra.mxu0 0.0
    %8867 = vmatprep.subr.mxu0 0.0
    %8868 = vmatpush1.msra.mxu0 0.0
    %8869 = vmatprep.subr.mxu0 0.0
    %8870 = vmatpush1.msra.mxu0 0.0
    %8871 = vmatprep.subr.mxu0 0.0
    %8872 = vmatpush1.msra.mxu0 0.0
    %8873 = vmatprep.subr.mxu0 0.0
    %8874 = vmatpush1.msra.mxu0 0.0
    %8875 = vmatprep.subr.mxu0 0.0
    %8876 = vmatpush1.msra.mxu0 0.0
    %8877 = vmatprep.subr.mxu0 0.0
    %8878 = vmatpush1.msra.mxu0 0.0
    %8879 = vmatprep.subr.mxu0 0.0
    %8880 = vmatpush1.msra.mxu0 0.0
    %8881 = vmatprep.subr.mxu0 0.0
    %8882 = vmatpush1.msra.mxu0 0.0
    %8883 = vmatprep.subr.mxu0 0.0
    %8884 = vmatpush1.msra.mxu0 0.0
    %8885 = vmatprep.subr.mxu0 0.0
    %8886 = vmatpush1.msra.mxu0 0.0
    %8887 = vmatprep.subr.mxu0 0.0
    %8888 = vmatpush1.msra.mxu0 0.0
    %8889 = vmatprep.subr.mxu0 0.0
    %8890 = vmatpush1.msra.mxu0 0.0
    %8891 = vmatprep.subr.mxu0 0.0
    %8892 = vmatpush1.msra.mxu0 0.0
    %8893 = vmatprep.subr.mxu0 0.0
    %8894 = vmatpush1.msra.mxu0 0.0
    %8895 = vmatprep.subr.mxu0 0.0
    %8896 = vmatpush1.msra.mxu0 0.0
    %8897 = vmatprep.subr.mxu0 0.0
    %8898 = vmatpush1.msra.mxu0 0.0
    %8899 = vmatprep.subr.mxu0 0.0
    %8900 = vmatpush1.msra.mxu0 0.0
    %8901 = vmatprep.subr.mxu0 0.0
    %8902 = vmatpush1.msra.mxu0 0.0
    %8903 = vmatprep.subr.mxu0 0.0
    %8904 = vmatpush1.msra.mxu0 0.0
    %8905 = vmatprep.subr.mxu0 0.0
    %8906 = vmatpush1.msra.mxu0 0.0
    %8907 = vmatprep.subr.mxu0 0.0
    %8908 = vmatpush1.msra.mxu0 0.0
    %8909 = vmatprep.subr.mxu0 0.0
    %8910 = vmatpush1.msra.mxu0 0.0
    %8911 = vmatprep.subr.mxu0 0.0
    %8912 = vmatpush1.msra.mxu0 0.0
    %8913 = vmatprep.subr.mxu0 0.0
    %8914 = vmatpush1.msra.mxu0 0.0
    %8915 = vmatprep.subr.mxu0 0.0
    %8916 = vmatpush1.msra.mxu0 0.0
    %8917 = vmatprep.subr.mxu0 0.0
    %8918 = vmatpush1.msra.mxu0 0.0
    %8919 = vmatprep.mubr.f32.mxu0 0.0
    %v8920 = vand.u32 %v6802, 4294901760
    %v8921 = vsub.f32 %v6802, %v8920
    %v8922 = vand.u32 %v8921, 4294901760
    %8923 = vmatmul.mubr.f32.gmra.mrb[0].mxu0 %v8922
    %v8924 = vpop.f32.mrb[0].mxu0
    %v8925 = vadd.f32 %v8837, %v8924
    %v8926 = vpop.f32.mrb[0].mxu0
    %v8927 = vadd.f32 %v8839, %v8926
    %8928 = vmatprep.mubr.f32.mxu0 0.0
    %v8929 = vand.u32 %v6805, 4294901760
    %v8930 = vsub.f32 %v6805, %v8929
    %v8931 = vand.u32 %v8930, 4294901760
    %8932 = vmatmul.mubr.f32.gmra.mrb[0].mxu0 %v8931
    %v8933 = vpop.f32.mrb[0].mxu0
    %v8934 = vadd.f32 %v8845, %v8933
    %v8935 = vpop.f32.mrb[0].mxu0
    %v8936 = vadd.f32 %v8847, %v8935
    %8937 = vdwg.mxu0
    %v8938 = vand.u32 %v6745, 4294901760
    %v8939 = vsub.f32 %v6745, %v8938
    %v8940 = vand.u32 %v8939, 4294901760
    %8941 = vmatprep.subr.mxu0 %v8940
    %v8942 = vand.u32 %v6744, 4294901760
    %v8943 = vsub.f32 %v6744, %v8942
    %v8944 = vand.u32 %v8943, 4294901760
    %8945 = vmatpush1.msra.mxu0 %v8944
    %v8946 = vand.u32 %v6761, 4294901760
    %v8947 = vsub.f32 %v6761, %v8946
    %v8948 = vand.u32 %v8947, 4294901760
    %8949 = vmatprep.subr.mxu0 %v8948
    %v8950 = vand.u32 %v6760, 4294901760
    %v8951 = vsub.f32 %v6760, %v8950
    %v8952 = vand.u32 %v8951, 4294901760
    %8953 = vmatpush1.msra.mxu0 %v8952
    %v8954 = vand.u32 %v6830, 4294901760
    %v8955 = vsub.f32 %v6830, %v8954
    %v8956 = vand.u32 %v8955, 4294901760
    %8957 = vmatprep.subr.mxu0 %v8956
    %v8958 = vand.u32 %v6827, 4294901760
    %v8959 = vsub.f32 %v6827, %v8958
    %v8960 = vand.u32 %v8959, 4294901760
    %8961 = vmatpush1.msra.mxu0 %v8960
    %8962 = vmatprep.subr.mxu0 0.0
    %8963 = vmatpush1.msra.mxu0 0.0
    %8964 = vmatprep.subr.mxu0 0.0
    %8965 = vmatpush1.msra.mxu0 0.0
    %8966 = vmatprep.subr.mxu0 0.0
    %8967 = vmatpush1.msra.mxu0 0.0
    %8968 = vmatprep.subr.mxu0 0.0
    %8969 = vmatpush1.msra.mxu0 0.0
    %8970 = vmatprep.subr.mxu0 0.0
    %8971 = vmatpush1.msra.mxu0 0.0
    %8972 = vmatprep.subr.mxu0 0.0
    %8973 = vmatpush1.msra.mxu0 0.0
    %8974 = vmatprep.subr.mxu0 0.0
    %8975 = vmatpush1.msra.mxu0 0.0
    %8976 = vmatprep.subr.mxu0 0.0
    %8977 = vmatpush1.msra.mxu0 0.0
    %8978 = vmatprep.subr.mxu0 0.0
    %8979 = vmatpush1.msra.mxu0 0.0
    %8980 = vmatprep.subr.mxu0 0.0
    %8981 = vmatpush1.msra.mxu0 0.0
    %8982 = vmatprep.subr.mxu0 0.0
    %8983 = vmatpush1.msra.mxu0 0.0
    %8984 = vmatprep.subr.mxu0 0.0
    %8985 = vmatpush1.msra.mxu0 0.0
    %8986 = vmatprep.subr.mxu0 0.0
    %8987 = vmatpush1.msra.mxu0 0.0
    %8988 = vmatprep.subr.mxu0 0.0
    %8989 = vmatpush1.msra.mxu0 0.0
    %8990 = vmatprep.subr.mxu0 0.0
    %8991 = vmatpush1.msra.mxu0 0.0
    %8992 = vmatprep.subr.mxu0 0.0
    %8993 = vmatpush1.msra.mxu0 0.0
    %8994 = vmatprep.subr.mxu0 0.0
    %8995 = vmatpush1.msra.mxu0 0.0
    %8996 = vmatprep.subr.mxu0 0.0
    %8997 = vmatpush1.msra.mxu0 0.0
    %8998 = vmatprep.subr.mxu0 0.0
    %8999 = vmatpush1.msra.mxu0 0.0
    %9000 = vmatprep.subr.mxu0 0.0
    %9001 = vmatpush1.msra.mxu0 0.0
    %9002 = vmatprep.subr.mxu0 0.0
    %9003 = vmatpush1.msra.mxu0 0.0
    %9004 = vmatprep.subr.mxu0 0.0
    %9005 = vmatpush1.msra.mxu0 0.0
    %9006 = vmatprep.subr.mxu0 0.0
    %9007 = vmatpush1.msra.mxu0 0.0
    %9008 = vmatprep.subr.mxu0 0.0
    %9009 = vmatpush1.msra.mxu0 0.0
    %9010 = vmatprep.subr.mxu0 0.0
    %9011 = vmatpush1.msra.mxu0 0.0
    %9012 = vmatprep.subr.mxu0 0.0
    %9013 = vmatpush1.msra.mxu0 0.0
    %9014 = vmatprep.subr.mxu0 0.0
    %9015 = vmatpush1.msra.mxu0 0.0
    %9016 = vmatprep.subr.mxu0 0.0
    %9017 = vmatpush1.msra.mxu0 0.0
    %9018 = vmatprep.subr.mxu0 0.0
    %9019 = vmatpush1.msra.mxu0 0.0
    %9020 = vmatprep.mubr.f32.mxu0 0.0
    %v9021 = vand.u32 %v6802, 4294901760
    %9022 = vmatmul.mubr.f32.gmra.mrb[0].mxu0 %v9021
    %v9023 = vpop.f32.mrb[0].mxu0
    %v9024 = vadd.f32 %v8925, %v9023
    %v9025 = vpop.f32.mrb[0].mxu0
    %v9026 = vadd.f32 %v8927, %v9025
    %9027 = vmatprep.mubr.f32.mxu0 0.0
    %v9028 = vand.u32 %v6805, 4294901760
    %9029 = vmatmul.mubr.f32.gmra.mrb[0].mxu0 %v9028
    %v9030 = vpop.f32.mrb[0].mxu0
    %v9031 = vadd.f32 %v8934, %v9030
    %v9032 = vpop.f32.mrb[0].mxu0
    %v9033 = vadd.f32 %v8936, %v9032
    %9034 = vdwg.mxu0
    %v9035 = vand.u32 %v6745, 4294901760
    %9036 = vmatprep.subr.mxu0 %v9035
    %v9037 = vand.u32 %v6744, 4294901760
    %9038 = vmatpush1.msra.mxu0 %v9037
    %v9039 = vand.u32 %v6761, 4294901760
    %9040 = vmatprep.subr.mxu0 %v9039
    %v9041 = vand.u32 %v6760, 4294901760
    %9042 = vmatpush1.msra.mxu0 %v9041
    %v9043 = vand.u32 %v6830, 4294901760
    %9044 = vmatprep.subr.mxu0 %v9043
    %v9045 = vand.u32 %v6827, 4294901760
    %9046 = vmatpush1.msra.mxu0 %v9045
    %9047 = vmatprep.subr.mxu0 0.0
    %9048 = vmatpush1.msra.mxu0 0.0
    %9049 = vmatprep.subr.mxu0 0.0
    %9050 = vmatpush1.msra.mxu0 0.0
    %9051 = vmatprep.subr.mxu0 0.0
    %9052 = vmatpush1.msra.mxu0 0.0
    %9053 = vmatprep.subr.mxu0 0.0
    %9054 = vmatpush1.msra.mxu0 0.0
    %9055 = vmatprep.subr.mxu0 0.0
    %9056 = vmatpush1.msra.mxu0 0.0
    %9057 = vmatprep.subr.mxu0 0.0
    %9058 = vmatpush1.msra.mxu0 0.0
    %9059 = vmatprep.subr.mxu0 0.0
    %9060 = vmatpush1.msra.mxu0 0.0
    %9061 = vmatprep.subr.mxu0 0.0
    %9062 = vmatpush1.msra.mxu0 0.0
    %9063 = vmatprep.subr.mxu0 0.0
    %9064 = vmatpush1.msra.mxu0 0.0
    %9065 = vmatprep.subr.mxu0 0.0
    %9066 = vmatpush1.msra.mxu0 0.0
    %9067 = vmatprep.subr.mxu0 0.0
    %9068 = vmatpush1.msra.mxu0 0.0
    %9069 = vmatprep.subr.mxu0 0.0
    %9070 = vmatpush1.msra.mxu0 0.0
    %9071 = vmatprep.subr.mxu0 0.0
    %9072 = vmatpush1.msra.mxu0 0.0
    %9073 = vmatprep.subr.mxu0 0.0
    %9074 = vmatpush1.msra.mxu0 0.0
    %9075 = vmatprep.subr.mxu0 0.0
    %9076 = vmatpush1.msra.mxu0 0.0
    %9077 = vmatprep.subr.mxu0 0.0
    %9078 = vmatpush1.msra.mxu0 0.0
    %9079 = vmatprep.subr.mxu0 0.0
    %9080 = vmatpush1.msra.mxu0 0.0
    %9081 = vmatprep.subr.mxu0 0.0
    %9082 = vmatpush1.msra.mxu0 0.0
    %9083 = vmatprep.subr.mxu0 0.0
    %9084 = vmatpush1.msra.mxu0 0.0
    %9085 = vmatprep.subr.mxu0 0.0
    %9086 = vmatpush1.msra.mxu0 0.0
    %9087 = vmatprep.subr.mxu0 0.0
    %9088 = vmatpush1.msra.mxu0 0.0
    %9089 = vmatprep.subr.mxu0 0.0
    %9090 = vmatpush1.msra.mxu0 0.0
    %9091 = vmatprep.subr.mxu0 0.0
    %9092 = vmatpush1.msra.mxu0 0.0
    %9093 = vmatprep.subr.mxu0 0.0
    %9094 = vmatpush1.msra.mxu0 0.0
    %9095 = vmatprep.subr.mxu0 0.0
    %9096 = vmatpush1.msra.mxu0 0.0
    %9097 = vmatprep.subr.mxu0 0.0
    %9098 = vmatpush1.msra.mxu0 0.0
    %9099 = vmatprep.subr.mxu0 0.0
    %9100 = vmatpush1.msra.mxu0 0.0
    %9101 = vmatprep.subr.mxu0 0.0
    %9102 = vmatpush1.msra.mxu0 0.0
    %9103 = vmatprep.subr.mxu0 0.0
    %9104 = vmatpush1.msra.mxu0 0.0
    %9105 = vmatprep.mubr.f32.mxu0 0.0
    %v9106 = vand.u32 %v6802, 4294901760
    %9107 = vmatmul.mubr.f32.gmra.mrb[0].mxu0 %v9106
    %v9108 = vpop.f32.mrb[0].mxu0
    %v9109 = vadd.f32 %v9024, %v9108
    %v9110 = vpop.f32.mrb[0].mxu0
    %v9111 = vadd.f32 %v9026, %v9110
    %9112 = vmatprep.mubr.f32.mxu0 0.0
    %v9113 = vand.u32 %v6805, 4294901760
    %9114 = vmatmul.mubr.f32.gmra.mrb[0].mxu0 %v9113
    %v9115 = vpop.f32.mrb[0].mxu0
    %v9116 = vadd.f32 %v9031, %v9115
    %v9117 = vpop.f32.mrb[0].mxu0
    %v9118 = vadd.f32 %v9033, %v9117
    %9119 = vdwg.mxu0
    %v9120 = vand.u32 %v6747, 4294901760
    %9121 = vmatprep.subr.mxu0 %v9120
    %v9122 = vand.u32 %v6746, 4294901760
    %9123 = vmatpush1.msra.mxu0 %v9122
    %v9124 = vand.u32 %v6763, 4294901760
    %9125 = vmatprep.subr.mxu0 %v9124
    %v9126 = vand.u32 %v6762, 4294901760
    %9127 = vmatpush1.msra.mxu0 %v9126
    %v9128 = vand.u32 %v6836, 4294901760
    %9129 = vmatprep.subr.mxu0 %v9128
    %v9130 = vand.u32 %v6833, 4294901760
    %9131 = vmatpush1.msra.mxu0 %v9130
    %9132 = vmatprep.subr.mxu0 0.0
    %9133 = vmatpush1.msra.mxu0 0.0
    %9134 = vmatprep.subr.mxu0 0.0
    %9135 = vmatpush1.msra.mxu0 0.0
    %9136 = vmatprep.subr.mxu0 0.0
    %9137 = vmatpush1.msra.mxu0 0.0
    %9138 = vmatprep.subr.mxu0 0.0
    %9139 = vmatpush1.msra.mxu0 0.0
    %9140 = vmatprep.subr.mxu0 0.0
    %9141 = vmatpush1.msra.mxu0 0.0
    %9142 = vmatprep.subr.mxu0 0.0
    %9143 = vmatpush1.msra.mxu0 0.0
    %9144 = vmatprep.subr.mxu0 0.0
    %9145 = vmatpush1.msra.mxu0 0.0
    %9146 = vmatprep.subr.mxu0 0.0
    %9147 = vmatpush1.msra.mxu0 0.0
    %9148 = vmatprep.subr.mxu0 0.0
    %9149 = vmatpush1.msra.mxu0 0.0
    %9150 = vmatprep.subr.mxu0 0.0
    %9151 = vmatpush1.msra.mxu0 0.0
    %9152 = vmatprep.subr.mxu0 0.0
    %9153 = vmatpush1.msra.mxu0 0.0
    %9154 = vmatprep.subr.mxu0 0.0
    %9155 = vmatpush1.msra.mxu0 0.0
    %9156 = vmatprep.subr.mxu0 0.0
    %9157 = vmatpush1.msra.mxu0 0.0
    %9158 = vmatprep.subr.mxu0 0.0
    %9159 = vmatpush1.msra.mxu0 0.0
    %9160 = vmatprep.subr.mxu0 0.0
    %9161 = vmatpush1.msra.mxu0 0.0
    %9162 = vmatprep.subr.mxu0 0.0
    %9163 = vmatpush1.msra.mxu0 0.0
    %9164 = vmatprep.subr.mxu0 0.0
    %9165 = vmatpush1.msra.mxu0 0.0
    %9166 = vmatprep.subr.mxu0 0.0
    %9167 = vmatpush1.msra.mxu0 0.0
    %9168 = vmatprep.subr.mxu0 0.0
    %9169 = vmatpush1.msra.mxu0 0.0
    %9170 = vmatprep.subr.mxu0 0.0
    %9171 = vmatpush1.msra.mxu0 0.0
    %9172 = vmatprep.subr.mxu0 0.0
    %9173 = vmatpush1.msra.mxu0 0.0
    %9174 = vmatprep.subr.mxu0 0.0
    %9175 = vmatpush1.msra.mxu0 0.0
    %9176 = vmatprep.subr.mxu0 0.0
    %9177 = vmatpush1.msra.mxu0 0.0
    %9178 = vmatprep.subr.mxu0 0.0
    %9179 = vmatpush1.msra.mxu0 0.0
    %9180 = vmatprep.subr.mxu0 0.0
    %9181 = vmatpush1.msra.mxu0 0.0
    %9182 = vmatprep.subr.mxu0 0.0
    %9183 = vmatpush1.msra.mxu0 0.0
    %9184 = vmatprep.subr.mxu0 0.0
    %9185 = vmatpush1.msra.mxu0 0.0
    %9186 = vmatprep.subr.mxu0 0.0
    %9187 = vmatpush1.msra.mxu0 0.0
    %9188 = vmatprep.subr.mxu0 0.0
    %9189 = vmatpush1.msra.mxu0 0.0
    %9190 = vmatprep.mubr.f32.mxu0 0.0
    %v9191 = vand.u32 %v6802, 4294901760
    %v9192 = vsub.f32 %v6802, %v9191
    %v9193 = vand.u32 %v9192, 4294901760
    %v9194 = vsub.f32 %v9192, %v9193
    %v9195 = vand.u32 %v9194, 4294901760
    %9196 = vmatmul.mubr.f32.gmra.mrb[0].mxu0 %v9195
    %v9197 = vpop.f32.mrb[0].mxu0
    %v9198 = vadd.f32 %v6793, %v9197
    %v9199 = vpop.f32.mrb[0].mxu0
    %v9200 = vadd.f32 %v6793, %v9199
    %9201 = vmatprep.mubr.f32.mxu0 0.0
    %v9202 = vand.u32 %v6805, 4294901760
    %v9203 = vsub.f32 %v6805, %v9202
    %v9204 = vand.u32 %v9203, 4294901760
    %v9205 = vsub.f32 %v9203, %v9204
    %v9206 = vand.u32 %v9205, 4294901760
    %9207 = vmatmul.mubr.f32.gmra.mrb[0].mxu0 %v9206
    %v9208 = vpop.f32.mrb[0].mxu0
    %v9209 = vadd.f32 %v6798, %v9208
    %v9210 = vpop.f32.mrb[0].mxu0
    %v9211 = vadd.f32 %v6798, %v9210
    %9212 = vdwg.mxu0
    %v9213 = vand.u32 %v6747, 4294901760
    %v9214 = vsub.f32 %v6747, %v9213
    %v9215 = vand.u32 %v9214, 4294901760
    %v9216 = vsub.f32 %v9214, %v9215
    %v9217 = vand.u32 %v9216, 4294901760
    %9218 = vmatprep.subr.mxu0 %v9217
    %v9219 = vand.u32 %v6746, 4294901760
    %v9220 = vsub.f32 %v6746, %v9219
    %v9221 = vand.u32 %v9220, 4294901760
    %v9222 = vsub.f32 %v9220, %v9221
    %v9223 = vand.u32 %v9222, 4294901760
    %9224 = vmatpush1.msra.mxu0 %v9223
    %v9225 = vand.u32 %v6763, 4294901760
    %v9226 = vsub.f32 %v6763, %v9225
    %v9227 = vand.u32 %v9226, 4294901760
    %v9228 = vsub.f32 %v9226, %v9227
    %v9229 = vand.u32 %v9228, 4294901760
    %9230 = vmatprep.subr.mxu0 %v9229
    %v9231 = vand.u32 %v6762, 4294901760
    %v9232 = vsub.f32 %v6762, %v9231
    %v9233 = vand.u32 %v9232, 4294901760
    %v9234 = vsub.f32 %v9232, %v9233
    %v9235 = vand.u32 %v9234, 4294901760
    %9236 = vmatpush1.msra.mxu0 %v9235
    %v9237 = vand.u32 %v6836, 4294901760
    %v9238 = vsub.f32 %v6836, %v9237
    %v9239 = vand.u32 %v9238, 4294901760
    %v9240 = vsub.f32 %v9238, %v9239
    %v9241 = vand.u32 %v9240, 4294901760
    %9242 = vmatprep.subr.mxu0 %v9241
    %v9243 = vand.u32 %v6833, 4294901760
    %v9244 = vsub.f32 %v6833, %v9243
    %v9245 = vand.u32 %v9244, 4294901760
    %v9246 = vsub.f32 %v9244, %v9245
    %v9247 = vand.u32 %v9246, 4294901760
    %9248 = vmatpush1.msra.mxu0 %v9247
    %9249 = vmatprep.subr.mxu0 0.0
    %9250 = vmatpush1.msra.mxu0 0.0
    %9251 = vmatprep.subr.mxu0 0.0
    %9252 = vmatpush1.msra.mxu0 0.0
    %9253 = vmatprep.subr.mxu0 0.0
    %9254 = vmatpush1.msra.mxu0 0.0
    %9255 = vmatprep.subr.mxu0 0.0
    %9256 = vmatpush1.msra.mxu0 0.0
    %9257 = vmatprep.subr.mxu0 0.0
    %9258 = vmatpush1.msra.mxu0 0.0
    %9259 = vmatprep.subr.mxu0 0.0
    %9260 = vmatpush1.msra.mxu0 0.0
    %9261 = vmatprep.subr.mxu0 0.0
    %9262 = vmatpush1.msra.mxu0 0.0
    %9263 = vmatprep.subr.mxu0 0.0
    %9264 = vmatpush1.msra.mxu0 0.0
    %9265 = vmatprep.subr.mxu0 0.0
    %9266 = vmatpush1.msra.mxu0 0.0
    %9267 = vmatprep.subr.mxu0 0.0
    %9268 = vmatpush1.msra.mxu0 0.0
    %9269 = vmatprep.subr.mxu0 0.0
    %9270 = vmatpush1.msra.mxu0 0.0
    %9271 = vmatprep.subr.mxu0 0.0
    %9272 = vmatpush1.msra.mxu0 0.0
    %9273 = vmatprep.subr.mxu0 0.0
    %9274 = vmatpush1.msra.mxu0 0.0
    %9275 = vmatprep.subr.mxu0 0.0
    %9276 = vmatpush1.msra.mxu0 0.0
    %9277 = vmatprep.subr.mxu0 0.0
    %9278 = vmatpush1.msra.mxu0 0.0
    %9279 = vmatprep.subr.mxu0 0.0
    %9280 = vmatpush1.msra.mxu0 0.0
    %9281 = vmatprep.subr.mxu0 0.0
    %9282 = vmatpush1.msra.mxu0 0.0
    %9283 = vmatprep.subr.mxu0 0.0
    %9284 = vmatpush1.msra.mxu0 0.0
    %9285 = vmatprep.subr.mxu0 0.0
    %9286 = vmatpush1.msra.mxu0 0.0
    %9287 = vmatprep.subr.mxu0 0.0
    %9288 = vmatpush1.msra.mxu0 0.0
    %9289 = vmatprep.subr.mxu0 0.0
    %9290 = vmatpush1.msra.mxu0 0.0
    %9291 = vmatprep.subr.mxu0 0.0
    %9292 = vmatpush1.msra.mxu0 0.0
    %9293 = vmatprep.subr.mxu0 0.0
    %9294 = vmatpush1.msra.mxu0 0.0
    %9295 = vmatprep.subr.mxu0 0.0
    %9296 = vmatpush1.msra.mxu0 0.0
    %9297 = vmatprep.subr.mxu0 0.0
    %9298 = vmatpush1.msra.mxu0 0.0
    %9299 = vmatprep.subr.mxu0 0.0
    %9300 = vmatpush1.msra.mxu0 0.0
    %9301 = vmatprep.subr.mxu0 0.0
    %9302 = vmatpush1.msra.mxu0 0.0
    %9303 = vmatprep.subr.mxu0 0.0
    %9304 = vmatpush1.msra.mxu0 0.0
    %9305 = vmatprep.subr.mxu0 0.0
    %9306 = vmatpush1.msra.mxu0 0.0
    %9307 = vmatprep.mubr.f32.mxu0 0.0
    %v9308 = vand.u32 %v6802, 4294901760
    %9309 = vmatmul.mubr.f32.gmra.mrb[0].mxu0 %v9308
    %v9310 = vpop.f32.mrb[0].mxu0
    %v9311 = vadd.f32 %v9198, %v9310
    %v9312 = vpop.f32.mrb[0].mxu0
    %v9313 = vadd.f32 %v9200, %v9312
    %9314 = vmatprep.mubr.f32.mxu0 0.0
    %v9315 = vand.u32 %v6805, 4294901760
    %9316 = vmatmul.mubr.f32.gmra.mrb[0].mxu0 %v9315
    %v9317 = vpop.f32.mrb[0].mxu0
    %v9318 = vadd.f32 %v9209, %v9317
    %v9319 = vpop.f32.mrb[0].mxu0
    %v9320 = vadd.f32 %v9211, %v9319
    %9321 = vdwg.mxu0
    %v9322 = vand.u32 %v6747, 4294901760
    %v9323 = vsub.f32 %v6747, %v9322
    %9324 = vmatprep.subr.mxu0 %v9323
    %v9325 = vand.u32 %v6746, 4294901760
    %v9326 = vsub.f32 %v6746, %v9325
    %9327 = vmatpush1.msra.mxu0 %v9326
    %v9328 = vand.u32 %v6763, 4294901760
    %v9329 = vsub.f32 %v6763, %v9328
    %9330 = vmatprep.subr.mxu0 %v9329
    %v9331 = vand.u32 %v6762, 4294901760
    %v9332 = vsub.f32 %v6762, %v9331
    %9333 = vmatpush1.msra.mxu0 %v9332
    %v9334 = vand.u32 %v6836, 4294901760
    %v9335 = vsub.f32 %v6836, %v9334
    %9336 = vmatprep.subr.mxu0 %v9335
    %v9337 = vand.u32 %v6833, 4294901760
    %v9338 = vsub.f32 %v6833, %v9337
    %9339 = vmatpush1.msra.mxu0 %v9338
    %9340 = vmatprep.subr.mxu0 0.0
    %9341 = vmatpush1.msra.mxu0 0.0
    %9342 = vmatprep.subr.mxu0 0.0
    %9343 = vmatpush1.msra.mxu0 0.0
    %9344 = vmatprep.subr.mxu0 0.0
    %9345 = vmatpush1.msra.mxu0 0.0
    %9346 = vmatprep.subr.mxu0 0.0
    %9347 = vmatpush1.msra.mxu0 0.0
    %9348 = vmatprep.subr.mxu0 0.0
    %9349 = vmatpush1.msra.mxu0 0.0
    %9350 = vmatprep.subr.mxu0 0.0
    %9351 = vmatpush1.msra.mxu0 0.0
    %9352 = vmatprep.subr.mxu0 0.0
    %9353 = vmatpush1.msra.mxu0 0.0
    %9354 = vmatprep.subr.mxu0 0.0
    %9355 = vmatpush1.msra.mxu0 0.0
    %9356 = vmatprep.subr.mxu0 0.0
    %9357 = vmatpush1.msra.mxu0 0.0
    %9358 = vmatprep.subr.mxu0 0.0
    %9359 = vmatpush1.msra.mxu0 0.0
    %9360 = vmatprep.subr.mxu0 0.0
    %9361 = vmatpush1.msra.mxu0 0.0
    %9362 = vmatprep.subr.mxu0 0.0
    %9363 = vmatpush1.msra.mxu0 0.0
    %9364 = vmatprep.subr.mxu0 0.0
    %9365 = vmatpush1.msra.mxu0 0.0
    %9366 = vmatprep.subr.mxu0 0.0
    %9367 = vmatpush1.msra.mxu0 0.0
    %9368 = vmatprep.subr.mxu0 0.0
    %9369 = vmatpush1.msra.mxu0 0.0
    %9370 = vmatprep.subr.mxu0 0.0
    %9371 = vmatpush1.msra.mxu0 0.0
    %9372 = vmatprep.subr.mxu0 0.0
    %9373 = vmatpush1.msra.mxu0 0.0
    %9374 = vmatprep.subr.mxu0 0.0
    %9375 = vmatpush1.msra.mxu0 0.0
    %9376 = vmatprep.subr.mxu0 0.0
    %9377 = vmatpush1.msra.mxu0 0.0
    %9378 = vmatprep.subr.mxu0 0.0
    %9379 = vmatpush1.msra.mxu0 0.0
    %9380 = vmatprep.subr.mxu0 0.0
    %9381 = vmatpush1.msra.mxu0 0.0
    %9382 = vmatprep.subr.mxu0 0.0
    %9383 = vmatpush1.msra.mxu0 0.0
    %9384 = vmatprep.subr.mxu0 0.0
    %9385 = vmatpush1.msra.mxu0 0.0
    %9386 = vmatprep.subr.mxu0 0.0
    %9387 = vmatpush1.msra.mxu0 0.0
    %9388 = vmatprep.subr.mxu0 0.0
    %9389 = vmatpush1.msra.mxu0 0.0
    %9390 = vmatprep.subr.mxu0 0.0
    %9391 = vmatpush1.msra.mxu0 0.0
    %9392 = vmatprep.subr.mxu0 0.0
    %9393 = vmatpush1.msra.mxu0 0.0
    %9394 = vmatprep.subr.mxu0 0.0
    %9395 = vmatpush1.msra.mxu0 0.0
    %9396 = vmatprep.subr.mxu0 0.0
    %9397 = vmatpush1.msra.mxu0 0.0
    %9398 = vmatprep.mubr.f32.mxu0 0.0
    %v9399 = vand.u32 %v6802, 4294901760
    %v9400 = vsub.f32 %v6802, %v9399
    %9401 = vmatmul.mubr.f32.gmra.mrb[0].mxu0 %v9400
    %v9402 = vpop.f32.mrb[0].mxu0
    %v9403 = vadd.f32 %v9311, %v9402
    %v9404 = vpop.f32.mrb[0].mxu0
    %v9405 = vadd.f32 %v9313, %v9404
    %9406 = vmatprep.mubr.f32.mxu0 0.0
    %v9407 = vand.u32 %v6805, 4294901760
    %v9408 = vsub.f32 %v6805, %v9407
    %9409 = vmatmul.mubr.f32.gmra.mrb[0].mxu0 %v9408
    %v9410 = vpop.f32.mrb[0].mxu0
    %v9411 = vadd.f32 %v9318, %v9410
    %v9412 = vpop.f32.mrb[0].mxu0
    %v9413 = vadd.f32 %v9320, %v9412
    %9414 = vdwg.mxu0
    %v9415 = vand.u32 %v6747, 4294901760
    %9416 = vmatprep.subr.mxu0 %v9415
    %v9417 = vand.u32 %v6746, 4294901760
    %9418 = vmatpush1.msra.mxu0 %v9417
    %v9419 = vand.u32 %v6763, 4294901760
    %9420 = vmatprep.subr.mxu0 %v9419
    %v9421 = vand.u32 %v6762, 4294901760
    %9422 = vmatpush1.msra.mxu0 %v9421
    %v9423 = vand.u32 %v6836, 4294901760
    %9424 = vmatprep.subr.mxu0 %v9423
    %v9425 = vand.u32 %v6833, 4294901760
    %9426 = vmatpush1.msra.mxu0 %v9425
    %9427 = vmatprep.subr.mxu0 0.0
    %9428 = vmatpush1.msra.mxu0 0.0
    %9429 = vmatprep.subr.mxu0 0.0
    %9430 = vmatpush1.msra.mxu0 0.0
    %9431 = vmatprep.subr.mxu0 0.0
    %9432 = vmatpush1.msra.mxu0 0.0
    %9433 = vmatprep.subr.mxu0 0.0
    %9434 = vmatpush1.msra.mxu0 0.0
    %9435 = vmatprep.subr.mxu0 0.0
    %9436 = vmatpush1.msra.mxu0 0.0
    %9437 = vmatprep.subr.mxu0 0.0
    %9438 = vmatpush1.msra.mxu0 0.0
    %9439 = vmatprep.subr.mxu0 0.0
    %9440 = vmatpush1.msra.mxu0 0.0
    %9441 = vmatprep.subr.mxu0 0.0
    %9442 = vmatpush1.msra.mxu0 0.0
    %9443 = vmatprep.subr.mxu0 0.0
    %9444 = vmatpush1.msra.mxu0 0.0
    %9445 = vmatprep.subr.mxu0 0.0
    %9446 = vmatpush1.msra.mxu0 0.0
    %9447 = vmatprep.subr.mxu0 0.0
    %9448 = vmatpush1.msra.mxu0 0.0
    %9449 = vmatprep.subr.mxu0 0.0
    %9450 = vmatpush1.msra.mxu0 0.0
    %9451 = vmatprep.subr.mxu0 0.0
    %9452 = vmatpush1.msra.mxu0 0.0
    %9453 = vmatprep.subr.mxu0 0.0
    %9454 = vmatpush1.msra.mxu0 0.0
    %9455 = vmatprep.subr.mxu0 0.0
    %9456 = vmatpush1.msra.mxu0 0.0
    %9457 = vmatprep.subr.mxu0 0.0
    %9458 = vmatpush1.msra.mxu0 0.0
    %9459 = vmatprep.subr.mxu0 0.0
    %9460 = vmatpush1.msra.mxu0 0.0
    %9461 = vmatprep.subr.mxu0 0.0
    %9462 = vmatpush1.msra.mxu0 0.0
    %9463 = vmatprep.subr.mxu0 0.0
    %9464 = vmatpush1.msra.mxu0 0.0
    %9465 = vmatprep.subr.mxu0 0.0
    %9466 = vmatpush1.msra.mxu0 0.0
    %9467 = vmatprep.subr.mxu0 0.0
    %9468 = vmatpush1.msra.mxu0 0.0
    %9469 = vmatprep.subr.mxu0 0.0
    %9470 = vmatpush1.msra.mxu0 0.0
    %9471 = vmatprep.subr.mxu0 0.0
    %9472 = vmatpush1.msra.mxu0 0.0
    %9473 = vmatprep.subr.mxu0 0.0
    %9474 = vmatpush1.msra.mxu0 0.0
    %9475 = vmatprep.subr.mxu0 0.0
    %9476 = vmatpush1.msra.mxu0 0.0
    %9477 = vmatprep.subr.mxu0 0.0
    %9478 = vmatpush1.msra.mxu0 0.0
    %9479 = vmatprep.subr.mxu0 0.0
    %9480 = vmatpush1.msra.mxu0 0.0
    %9481 = vmatprep.subr.mxu0 0.0
    %9482 = vmatpush1.msra.mxu0 0.0
    %9483 = vmatprep.subr.mxu0 0.0
    %9484 = vmatpush1.msra.mxu0 0.0
    %9485 = vmatprep.mubr.f32.mxu0 0.0
    %v9486 = vand.u32 %v6802, 4294901760
    %v9487 = vsub.f32 %v6802, %v9486
    %v9488 = vand.u32 %v9487, 4294901760
    %9489 = vmatmul.mubr.f32.gmra.mrb[0].mxu0 %v9488
    %v9490 = vpop.f32.mrb[0].mxu0
    %v9491 = vadd.f32 %v9403, %v9490
    %v9492 = vpop.f32.mrb[0].mxu0
    %v9493 = vadd.f32 %v9405, %v9492
    %9494 = vmatprep.mubr.f32.mxu0 0.0
    %v9495 = vand.u32 %v6805, 4294901760
    %v9496 = vsub.f32 %v6805, %v9495
    %v9497 = vand.u32 %v9496, 4294901760
    %9498 = vmatmul.mubr.f32.gmra.mrb[0].mxu0 %v9497
    %v9499 = vpop.f32.mrb[0].mxu0
    %v9500 = vadd.f32 %v9411, %v9499
    %v9501 = vpop.f32.mrb[0].mxu0
    %v9502 = vadd.f32 %v9413, %v9501
    %9503 = vdwg.mxu0
    %v9504 = vand.u32 %v6747, 4294901760
    %v9505 = vsub.f32 %v6747, %v9504
    %v9506 = vand.u32 %v9505, 4294901760
    %9507 = vmatprep.subr.mxu0 %v9506
    %v9508 = vand.u32 %v6746, 4294901760
    %v9509 = vsub.f32 %v6746, %v9508
    %v9510 = vand.u32 %v9509, 4294901760
    %9511 = vmatpush1.msra.mxu0 %v9510
    %v9512 = vand.u32 %v6763, 4294901760
    %v9513 = vsub.f32 %v6763, %v9512
    %v9514 = vand.u32 %v9513, 4294901760
    %9515 = vmatprep.subr.mxu0 %v9514
    %v9516 = vand.u32 %v6762, 4294901760
    %v9517 = vsub.f32 %v6762, %v9516
    %v9518 = vand.u32 %v9517, 4294901760
    %9519 = vmatpush1.msra.mxu0 %v9518
    %v9520 = vand.u32 %v6836, 4294901760
    %v9521 = vsub.f32 %v6836, %v9520
    %v9522 = vand.u32 %v9521, 4294901760
    %9523 = vmatprep.subr.mxu0 %v9522
    %v9524 = vand.u32 %v6833, 4294901760
    %v9525 = vsub.f32 %v6833, %v9524
    %v9526 = vand.u32 %v9525, 4294901760
    %9527 = vmatpush1.msra.mxu0 %v9526
    %9528 = vmatprep.subr.mxu0 0.0
    %9529 = vmatpush1.msra.mxu0 0.0
    %9530 = vmatprep.subr.mxu0 0.0
    %9531 = vmatpush1.msra.mxu0 0.0
    %9532 = vmatprep.subr.mxu0 0.0
    %9533 = vmatpush1.msra.mxu0 0.0
    %9534 = vmatprep.subr.mxu0 0.0
    %9535 = vmatpush1.msra.mxu0 0.0
    %9536 = vmatprep.subr.mxu0 0.0
    %9537 = vmatpush1.msra.mxu0 0.0
    %9538 = vmatprep.subr.mxu0 0.0
    %9539 = vmatpush1.msra.mxu0 0.0
    %9540 = vmatprep.subr.mxu0 0.0
    %9541 = vmatpush1.msra.mxu0 0.0
    %9542 = vmatprep.subr.mxu0 0.0
    %9543 = vmatpush1.msra.mxu0 0.0
    %9544 = vmatprep.subr.mxu0 0.0
    %9545 = vmatpush1.msra.mxu0 0.0
    %9546 = vmatprep.subr.mxu0 0.0
    %9547 = vmatpush1.msra.mxu0 0.0
    %9548 = vmatprep.subr.mxu0 0.0
    %9549 = vmatpush1.msra.mxu0 0.0
    %9550 = vmatprep.subr.mxu0 0.0
    %9551 = vmatpush1.msra.mxu0 0.0
    %9552 = vmatprep.subr.mxu0 0.0
    %9553 = vmatpush1.msra.mxu0 0.0
    %9554 = vmatprep.subr.mxu0 0.0
    %9555 = vmatpush1.msra.mxu0 0.0
    %9556 = vmatprep.subr.mxu0 0.0
    %9557 = vmatpush1.msra.mxu0 0.0
    %9558 = vmatprep.subr.mxu0 0.0
    %9559 = vmatpush1.msra.mxu0 0.0
    %9560 = vmatprep.subr.mxu0 0.0
    %9561 = vmatpush1.msra.mxu0 0.0
    %9562 = vmatprep.subr.mxu0 0.0
    %9563 = vmatpush1.msra.mxu0 0.0
    %9564 = vmatprep.subr.mxu0 0.0
    %9565 = vmatpush1.msra.mxu0 0.0
    %9566 = vmatprep.subr.mxu0 0.0
    %9567 = vmatpush1.msra.mxu0 0.0
    %9568 = vmatprep.subr.mxu0 0.0
    %9569 = vmatpush1.msra.mxu0 0.0
    %9570 = vmatprep.subr.mxu0 0.0
    %9571 = vmatpush1.msra.mxu0 0.0
    %9572 = vmatprep.subr.mxu0 0.0
    %9573 = vmatpush1.msra.mxu0 0.0
    %9574 = vmatprep.subr.mxu0 0.0
    %9575 = vmatpush1.msra.mxu0 0.0
    %9576 = vmatprep.subr.mxu0 0.0
    %9577 = vmatpush1.msra.mxu0 0.0
    %9578 = vmatprep.subr.mxu0 0.0
    %9579 = vmatpush1.msra.mxu0 0.0
    %9580 = vmatprep.subr.mxu0 0.0
    %9581 = vmatpush1.msra.mxu0 0.0
    %9582 = vmatprep.subr.mxu0 0.0
    %9583 = vmatpush1.msra.mxu0 0.0
    %9584 = vmatprep.subr.mxu0 0.0
    %9585 = vmatpush1.msra.mxu0 0.0
    %9586 = vmatprep.mubr.f32.mxu0 0.0
    %v9587 = vand.u32 %v6802, 4294901760
    %9588 = vmatmul.mubr.f32.gmra.mrb[0].mxu0 %v9587
    %v9589 = vpop.f32.mrb[0].mxu0
    %v9590 = vadd.f32 %v9491, %v9589
    %v9591 = vpop.f32.mrb[0].mxu0
    %v9592 = vadd.f32 %v9493, %v9591
    %9593 = vmatprep.mubr.f32.mxu0 0.0
    %v9594 = vand.u32 %v6805, 4294901760
    %9595 = vmatmul.mubr.f32.gmra.mrb[0].mxu0 %v9594
    %v9596 = vpop.f32.mrb[0].mxu0
    %v9597 = vadd.f32 %v9500, %v9596
    %v9598 = vpop.f32.mrb[0].mxu0
    %v9599 = vadd.f32 %v9502, %v9598
    %9600 = vdwg.mxu0
    %v9601 = vand.u32 %v6747, 4294901760
    %9602 = vmatprep.subr.mxu0 %v9601
    %v9603 = vand.u32 %v6746, 4294901760
    %9604 = vmatpush1.msra.mxu0 %v9603
    %v9605 = vand.u32 %v6763, 4294901760
    %9606 = vmatprep.subr.mxu0 %v9605
    %v9607 = vand.u32 %v6762, 4294901760
    %9608 = vmatpush1.msra.mxu0 %v9607
    %v9609 = vand.u32 %v6836, 4294901760
    %9610 = vmatprep.subr.mxu0 %v9609
    %v9611 = vand.u32 %v6833, 4294901760
    %9612 = vmatpush1.msra.mxu0 %v9611
    %9613 = vmatprep.subr.mxu0 0.0
    %9614 = vmatpush1.msra.mxu0 0.0
    %9615 = vmatprep.subr.mxu0 0.0
    %9616 = vmatpush1.msra.mxu0 0.0
    %9617 = vmatprep.subr.mxu0 0.0
    %9618 = vmatpush1.msra.mxu0 0.0
    %9619 = vmatprep.subr.mxu0 0.0
    %9620 = vmatpush1.msra.mxu0 0.0
    %9621 = vmatprep.subr.mxu0 0.0
    %9622 = vmatpush1.msra.mxu0 0.0
    %9623 = vmatprep.subr.mxu0 0.0
    %9624 = vmatpush1.msra.mxu0 0.0
    %9625 = vmatprep.subr.mxu0 0.0
    %9626 = vmatpush1.msra.mxu0 0.0
    %9627 = vmatprep.subr.mxu0 0.0
    %9628 = vmatpush1.msra.mxu0 0.0
    %9629 = vmatprep.subr.mxu0 0.0
    %9630 = vmatpush1.msra.mxu0 0.0
    %9631 = vmatprep.subr.mxu0 0.0
    %9632 = vmatpush1.msra.mxu0 0.0
    %9633 = vmatprep.subr.mxu0 0.0
    %9634 = vmatpush1.msra.mxu0 0.0
    %9635 = vmatprep.subr.mxu0 0.0
    %9636 = vmatpush1.msra.mxu0 0.0
    %9637 = vmatprep.subr.mxu0 0.0
    %9638 = vmatpush1.msra.mxu0 0.0
    %9639 = vmatprep.subr.mxu0 0.0
    %9640 = vmatpush1.msra.mxu0 0.0
    %9641 = vmatprep.subr.mxu0 0.0
    %9642 = vmatpush1.msra.mxu0 0.0
    %9643 = vmatprep.subr.mxu0 0.0
    %9644 = vmatpush1.msra.mxu0 0.0
    %9645 = vmatprep.subr.mxu0 0.0
    %9646 = vmatpush1.msra.mxu0 0.0
    %9647 = vmatprep.subr.mxu0 0.0
    %9648 = vmatpush1.msra.mxu0 0.0
    %9649 = vmatprep.subr.mxu0 0.0
    %9650 = vmatpush1.msra.mxu0 0.0
    %9651 = vmatprep.subr.mxu0 0.0
    %9652 = vmatpush1.msra.mxu0 0.0
    %9653 = vmatprep.subr.mxu0 0.0
    %9654 = vmatpush1.msra.mxu0 0.0
    %9655 = vmatprep.subr.mxu0 0.0
    %9656 = vmatpush1.msra.mxu0 0.0
    %9657 = vmatprep.subr.mxu0 0.0
    %9658 = vmatpush1.msra.mxu0 0.0
    %9659 = vmatprep.subr.mxu0 0.0
    %9660 = vmatpush1.msra.mxu0 0.0
    %9661 = vmatprep.subr.mxu0 0.0
    %9662 = vmatpush1.msra.mxu0 0.0
    %9663 = vmatprep.subr.mxu0 0.0
    %9664 = vmatpush1.msra.mxu0 0.0
    %9665 = vmatprep.subr.mxu0 0.0
    %9666 = vmatpush1.msra.mxu0 0.0
    %9667 = vmatprep.subr.mxu0 0.0
    %9668 = vmatpush1.msra.mxu0 0.0
    %9669 = vmatprep.subr.mxu0 0.0
    %9670 = vmatpush1.msra.mxu0 0.0
    %9671 = vmatprep.mubr.f32.mxu0 0.0
    %v9672 = vand.u32 %v6802, 4294901760
    %9673 = vmatmul.mubr.f32.gmra.mrb[0].mxu0 %v9672
    %v9674 = vpop.f32.mrb[0].mxu0
    %v9675 = vadd.f32 %v9590, %v9674
    %v9676 = vpop.f32.mrb[0].mxu0
    %v9677 = vadd.f32 %v9592, %v9676
    %9678 = vmatprep.mubr.f32.mxu0 0.0
    %v9679 = vand.u32 %v6805, 4294901760
    %9680 = vmatmul.mubr.f32.gmra.mrb[0].mxu0 %v9679
    %v9681 = vpop.f32.mrb[0].mxu0
    %v9682 = vadd.f32 %v9597, %v9681
    %v9683 = vpop.f32.mrb[0].mxu0
    %v9684 = vadd.f32 %v9599, %v9683
    %9685 = vdwg.mxu0
    %v9686 = vand.u32 %v6749, 4294901760
    %9687 = vmatprep.subr.mxu0 %v9686
    %v9688 = vand.u32 %v6748, 4294901760
    %9689 = vmatpush1.msra.mxu0 %v9688
    %v9690 = vand.u32 %v6765, 4294901760
    %9691 = vmatprep.subr.mxu0 %v9690
    %v9692 = vand.u32 %v6764, 4294901760
    %9693 = vmatpush1.msra.mxu0 %v9692
    %v9694 = vand.u32 %v6842, 4294901760
    %9695 = vmatprep.subr.mxu0 %v9694
    %v9696 = vand.u32 %v6839, 4294901760
    %9697 = vmatpush1.msra.mxu0 %v9696
    %9698 = vmatprep.subr.mxu0 0.0
    %9699 = vmatpush1.msra.mxu0 0.0
    %9700 = vmatprep.subr.mxu0 0.0
    %9701 = vmatpush1.msra.mxu0 0.0
    %9702 = vmatprep.subr.mxu0 0.0
    %9703 = vmatpush1.msra.mxu0 0.0
    %9704 = vmatprep.subr.mxu0 0.0
    %9705 = vmatpush1.msra.mxu0 0.0
    %9706 = vmatprep.subr.mxu0 0.0
    %9707 = vmatpush1.msra.mxu0 0.0
    %9708 = vmatprep.subr.mxu0 0.0
    %9709 = vmatpush1.msra.mxu0 0.0
    %9710 = vmatprep.subr.mxu0 0.0
    %9711 = vmatpush1.msra.mxu0 0.0
    %9712 = vmatprep.subr.mxu0 0.0
    %9713 = vmatpush1.msra.mxu0 0.0
    %9714 = vmatprep.subr.mxu0 0.0
    %9715 = vmatpush1.msra.mxu0 0.0
    %9716 = vmatprep.subr.mxu0 0.0
    %9717 = vmatpush1.msra.mxu0 0.0
    %9718 = vmatprep.subr.mxu0 0.0
    %9719 = vmatpush1.msra.mxu0 0.0
    %9720 = vmatprep.subr.mxu0 0.0
    %9721 = vmatpush1.msra.mxu0 0.0
    %9722 = vmatprep.subr.mxu0 0.0
    %9723 = vmatpush1.msra.mxu0 0.0
    %9724 = vmatprep.subr.mxu0 0.0
    %9725 = vmatpush1.msra.mxu0 0.0
    %9726 = vmatprep.subr.mxu0 0.0
    %9727 = vmatpush1.msra.mxu0 0.0
    %9728 = vmatprep.subr.mxu0 0.0
    %9729 = vmatpush1.msra.mxu0 0.0
    %9730 = vmatprep.subr.mxu0 0.0
    %9731 = vmatpush1.msra.mxu0 0.0
    %9732 = vmatprep.subr.mxu0 0.0
    %9733 = vmatpush1.msra.mxu0 0.0
    %9734 = vmatprep.subr.mxu0 0.0
    %9735 = vmatpush1.msra.mxu0 0.0
    %9736 = vmatprep.subr.mxu0 0.0
    %9737 = vmatpush1.msra.mxu0 0.0
    %9738 = vmatprep.subr.mxu0 0.0
    %9739 = vmatpush1.msra.mxu0 0.0
    %9740 = vmatprep.subr.mxu0 0.0
    %9741 = vmatpush1.msra.mxu0 0.0
    %9742 = vmatprep.subr.mxu0 0.0
    %9743 = vmatpush1.msra.mxu0 0.0
    %9744 = vmatprep.subr.mxu0 0.0
    %9745 = vmatpush1.msra.mxu0 0.0
    %9746 = vmatprep.subr.mxu0 0.0
    %9747 = vmatpush1.msra.mxu0 0.0
    %9748 = vmatprep.subr.mxu0 0.0
    %9749 = vmatpush1.msra.mxu0 0.0
    %9750 = vmatprep.subr.mxu0 0.0
    %9751 = vmatpush1.msra.mxu0 0.0
    %9752 = vmatprep.subr.mxu0 0.0
    %9753 = vmatpush1.msra.mxu0 0.0
    %9754 = vmatprep.subr.mxu0 0.0
    %9755 = vmatpush1.msra.mxu0 0.0
    %9756 = vmatprep.mubr.f32.mxu0 0.0
    %v9757 = vand.u32 %v6802, 4294901760
    %v9758 = vsub.f32 %v6802, %v9757
    %v9759 = vand.u32 %v9758, 4294901760
    %v9760 = vsub.f32 %v9758, %v9759
    %v9761 = vand.u32 %v9760, 4294901760
    %9762 = vmatmul.mubr.f32.gmra.mrb[0].mxu0 %v9761
    %v9763 = vpop.f32.mrb[0].mxu0
    %v9764 = vadd.f32 %v6793, %v9763
    %v9765 = vpop.f32.mrb[0].mxu0
    %v9766 = vadd.f32 %v6793, %v9765
    %9767 = vmatprep.mubr.f32.mxu0 0.0
    %v9768 = vand.u32 %v6805, 4294901760
    %v9769 = vsub.f32 %v6805, %v9768
    %v9770 = vand.u32 %v9769, 4294901760
    %v9771 = vsub.f32 %v9769, %v9770
    %v9772 = vand.u32 %v9771, 4294901760
    %9773 = vmatmul.mubr.f32.gmra.mrb[0].mxu0 %v9772
    %v9774 = vpop.f32.mrb[0].mxu0
    %v9775 = vadd.f32 %v6798, %v9774
    %v9776 = vpop.f32.mrb[0].mxu0
    %v9777 = vadd.f32 %v6798, %v9776
    %9778 = vdwg.mxu0
    %v9779 = vand.u32 %v6749, 4294901760
    %v9780 = vsub.f32 %v6749, %v9779
    %v9781 = vand.u32 %v9780, 4294901760
    %v9782 = vsub.f32 %v9780, %v9781
    %v9783 = vand.u32 %v9782, 4294901760
    %9784 = vmatprep.subr.mxu0 %v9783
    %v9785 = vand.u32 %v6748, 4294901760
    %v9786 = vsub.f32 %v6748, %v9785
    %v9787 = vand.u32 %v9786, 4294901760
    %v9788 = vsub.f32 %v9786, %v9787
    %v9789 = vand.u32 %v9788, 4294901760
    %9790 = vmatpush1.msra.mxu0 %v9789
    %v9791 = vand.u32 %v6765, 4294901760
    %v9792 = vsub.f32 %v6765, %v9791
    %v9793 = vand.u32 %v9792, 4294901760
    %v9794 = vsub.f32 %v9792, %v9793
    %v9795 = vand.u32 %v9794, 4294901760
    %9796 = vmatprep.subr.mxu0 %v9795
    %v9797 = vand.u32 %v6764, 4294901760
    %v9798 = vsub.f32 %v6764, %v9797
    %v9799 = vand.u32 %v9798, 4294901760
    %v9800 = vsub.f32 %v9798, %v9799
    %v9801 = vand.u32 %v9800, 4294901760
    %9802 = vmatpush1.msra.mxu0 %v9801
    %v9803 = vand.u32 %v6842, 4294901760
    %v9804 = vsub.f32 %v6842, %v9803
    %v9805 = vand.u32 %v9804, 4294901760
    %v9806 = vsub.f32 %v9804, %v9805
    %v9807 = vand.u32 %v9806, 4294901760
    %9808 = vmatprep.subr.mxu0 %v9807
    %v9809 = vand.u32 %v6839, 4294901760
    %v9810 = vsub.f32 %v6839, %v9809
    %v9811 = vand.u32 %v9810, 4294901760
    %v9812 = vsub.f32 %v9810, %v9811
    %v9813 = vand.u32 %v9812, 4294901760
    %9814 = vmatpush1.msra.mxu0 %v9813
    %9815 = vmatprep.subr.mxu0 0.0
    %9816 = vmatpush1.msra.mxu0 0.0
    %9817 = vmatprep.subr.mxu0 0.0
    %9818 = vmatpush1.msra.mxu0 0.0
    %9819 = vmatprep.subr.mxu0 0.0
    %9820 = vmatpush1.msra.mxu0 0.0
    %9821 = vmatprep.subr.mxu0 0.0
    %9822 = vmatpush1.msra.mxu0 0.0
    %9823 = vmatprep.subr.mxu0 0.0
    %9824 = vmatpush1.msra.mxu0 0.0
    %9825 = vmatprep.subr.mxu0 0.0
    %9826 = vmatpush1.msra.mxu0 0.0
    %9827 = vmatprep.subr.mxu0 0.0
    %9828 = vmatpush1.msra.mxu0 0.0
    %9829 = vmatprep.subr.mxu0 0.0
    %9830 = vmatpush1.msra.mxu0 0.0
    %9831 = vmatprep.subr.mxu0 0.0
    %9832 = vmatpush1.msra.mxu0 0.0
    %9833 = vmatprep.subr.mxu0 0.0
    %9834 = vmatpush1.msra.mxu0 0.0
    %9835 = vmatprep.subr.mxu0 0.0
    %9836 = vmatpush1.msra.mxu0 0.0
    %9837 = vmatprep.subr.mxu0 0.0
    %9838 = vmatpush1.msra.mxu0 0.0
    %9839 = vmatprep.subr.mxu0 0.0
    %9840 = vmatpush1.msra.mxu0 0.0
    %9841 = vmatprep.subr.mxu0 0.0
    %9842 = vmatpush1.msra.mxu0 0.0
    %9843 = vmatprep.subr.mxu0 0.0
    %9844 = vmatpush1.msra.mxu0 0.0
    %9845 = vmatprep.subr.mxu0 0.0
    %9846 = vmatpush1.msra.mxu0 0.0
    %9847 = vmatprep.subr.mxu0 0.0
    %9848 = vmatpush1.msra.mxu0 0.0
    %9849 = vmatprep.subr.mxu0 0.0
    %9850 = vmatpush1.msra.mxu0 0.0
    %9851 = vmatprep.subr.mxu0 0.0
    %9852 = vmatpush1.msra.mxu0 0.0
    %9853 = vmatprep.subr.mxu0 0.0
    %9854 = vmatpush1.msra.mxu0 0.0
    %9855 = vmatprep.subr.mxu0 0.0
    %9856 = vmatpush1.msra.mxu0 0.0
    %9857 = vmatprep.subr.mxu0 0.0
    %9858 = vmatpush1.msra.mxu0 0.0
    %9859 = vmatprep.subr.mxu0 0.0
    %9860 = vmatpush1.msra.mxu0 0.0
    %9861 = vmatprep.subr.mxu0 0.0
    %9862 = vmatpush1.msra.mxu0 0.0
    %9863 = vmatprep.subr.mxu0 0.0
    %9864 = vmatpush1.msra.mxu0 0.0
    %9865 = vmatprep.subr.mxu0 0.0
    %9866 = vmatpush1.msra.mxu0 0.0
    %9867 = vmatprep.subr.mxu0 0.0
    %9868 = vmatpush1.msra.mxu0 0.0
    %9869 = vmatprep.subr.mxu0 0.0
    %9870 = vmatpush1.msra.mxu0 0.0
    %9871 = vmatprep.subr.mxu0 0.0
    %9872 = vmatpush1.msra.mxu0 0.0
    %9873 = vmatprep.mubr.f32.mxu0 0.0
    %v9874 = vand.u32 %v6802, 4294901760
    %9875 = vmatmul.mubr.f32.gmra.mrb[0].mxu0 %v9874
    %v9876 = vpop.f32.mrb[0].mxu0
    %v9877 = vadd.f32 %v9764, %v9876
    %v9878 = vpop.f32.mrb[0].mxu0
    %v9879 = vadd.f32 %v9766, %v9878
    %9880 = vmatprep.mubr.f32.mxu0 0.0
    %v9881 = vand.u32 %v6805, 4294901760
    %9882 = vmatmul.mubr.f32.gmra.mrb[0].mxu0 %v9881
    %v9883 = vpop.f32.mrb[0].mxu0
    %v9884 = vadd.f32 %v9775, %v9883
    %v9885 = vpop.f32.mrb[0].mxu0
    %v9886 = vadd.f32 %v9777, %v9885
    %9887 = vdwg.mxu0
    %v9888 = vand.u32 %v6749, 4294901760
    %v9889 = vsub.f32 %v6749, %v9888
    %9890 = vmatprep.subr.mxu0 %v9889
    %v9891 = vand.u32 %v6748, 4294901760
    %v9892 = vsub.f32 %v6748, %v9891
    %9893 = vmatpush1.msra.mxu0 %v9892
    %v9894 = vand.u32 %v6765, 4294901760
    %v9895 = vsub.f32 %v6765, %v9894
    %9896 = vmatprep.subr.mxu0 %v9895
    %v9897 = vand.u32 %v6764, 4294901760
    %v9898 = vsub.f32 %v6764, %v9897
    %9899 = vmatpush1.msra.mxu0 %v9898
    %v9900 = vand.u32 %v6842, 4294901760
    %v9901 = vsub.f32 %v6842, %v9900
    %9902 = vmatprep.subr.mxu0 %v9901
    %v9903 = vand.u32 %v6839, 4294901760
    %v9904 = vsub.f32 %v6839, %v9903
    %9905 = vmatpush1.msra.mxu0 %v9904
    %9906 = vmatprep.subr.mxu0 0.0
    %9907 = vmatpush1.msra.mxu0 0.0
    %9908 = vmatprep.subr.mxu0 0.0
    %9909 = vmatpush1.msra.mxu0 0.0
    %9910 = vmatprep.subr.mxu0 0.0
    %9911 = vmatpush1.msra.mxu0 0.0
    %9912 = vmatprep.subr.mxu0 0.0
    %9913 = vmatpush1.msra.mxu0 0.0
    %9914 = vmatprep.subr.mxu0 0.0
    %9915 = vmatpush1.msra.mxu0 0.0
    %9916 = vmatprep.subr.mxu0 0.0
    %9917 = vmatpush1.msra.mxu0 0.0
    %9918 = vmatprep.subr.mxu0 0.0
    %9919 = vmatpush1.msra.mxu0 0.0
    %9920 = vmatprep.subr.mxu0 0.0
    %9921 = vmatpush1.msra.mxu0 0.0
    %9922 = vmatprep.subr.mxu0 0.0
    %9923 = vmatpush1.msra.mxu0 0.0
    %9924 = vmatprep.subr.mxu0 0.0
    %9925 = vmatpush1.msra.mxu0 0.0
    %9926 = vmatprep.subr.mxu0 0.0
    %9927 = vmatpush1.msra.mxu0 0.0
    %9928 = vmatprep.subr.mxu0 0.0
    %9929 = vmatpush1.msra.mxu0 0.0
    %9930 = vmatprep.subr.mxu0 0.0
    %9931 = vmatpush1.msra.mxu0 0.0
    %9932 = vmatprep.subr.mxu0 0.0
    %9933 = vmatpush1.msra.mxu0 0.0
    %9934 = vmatprep.subr.mxu0 0.0
    %9935 = vmatpush1.msra.mxu0 0.0
    %9936 = vmatprep.subr.mxu0 0.0
    %9937 = vmatpush1.msra.mxu0 0.0
    %9938 = vmatprep.subr.mxu0 0.0
    %9939 = vmatpush1.msra.mxu0 0.0
    %9940 = vmatprep.subr.mxu0 0.0
    %9941 = vmatpush1.msra.mxu0 0.0
    %9942 = vmatprep.subr.mxu0 0.0
    %9943 = vmatpush1.msra.mxu0 0.0
    %9944 = vmatprep.subr.mxu0 0.0
    %9945 = vmatpush1.msra.mxu0 0.0
    %9946 = vmatprep.subr.mxu0 0.0
    %9947 = vmatpush1.msra.mxu0 0.0
    %9948 = vmatprep.subr.mxu0 0.0
    %9949 = vmatpush1.msra.mxu0 0.0
    %9950 = vmatprep.subr.mxu0 0.0
    %9951 = vmatpush1.msra.mxu0 0.0
    %9952 = vmatprep.subr.mxu0 0.0
    %9953 = vmatpush1.msra.mxu0 0.0
    %9954 = vmatprep.subr.mxu0 0.0
    %9955 = vmatpush1.msra.mxu0 0.0
    %9956 = vmatprep.subr.mxu0 0.0
    %9957 = vmatpush1.msra.mxu0 0.0
    %9958 = vmatprep.subr.mxu0 0.0
    %9959 = vmatpush1.msra.mxu0 0.0
    %9960 = vmatprep.subr.mxu0 0.0
    %9961 = vmatpush1.msra.mxu0 0.0
    %9962 = vmatprep.subr.mxu0 0.0
    %9963 = vmatpush1.msra.mxu0 0.0
    %9964 = vmatprep.mubr.f32.mxu0 0.0
    %v9965 = vand.u32 %v6802, 4294901760
    %v9966 = vsub.f32 %v6802, %v9965
    %9967 = vmatmul.mubr.f32.gmra.mrb[0].mxu0 %v9966
    %v9968 = vpop.f32.mrb[0].mxu0
    %v9969 = vadd.f32 %v9877, %v9968
    %v9970 = vpop.f32.mrb[0].mxu0
    %v9971 = vadd.f32 %v9879, %v9970
    %9972 = vmatprep.mubr.f32.mxu0 0.0
    %v9973 = vand.u32 %v6805, 4294901760
    %v9974 = vsub.f32 %v6805, %v9973
    %9975 = vmatmul.mubr.f32.gmra.mrb[0].mxu0 %v9974
    %v9976 = vpop.f32.mrb[0].mxu0
    %v9977 = vadd.f32 %v9884, %v9976
    %v9978 = vpop.f32.mrb[0].mxu0
    %v9979 = vadd.f32 %v9886, %v9978
    %9980 = vdwg.mxu0
    %v9981 = vand.u32 %v6749, 4294901760
    %9982 = vmatprep.subr.mxu0 %v9981
    %v9983 = vand.u32 %v6748, 4294901760
    %9984 = vmatpush1.msra.mxu0 %v9983
    %v9985 = vand.u32 %v6765, 4294901760
    %9986 = vmatprep.subr.mxu0 %v9985
    %v9987 = vand.u32 %v6764, 4294901760
    %9988 = vmatpush1.msra.mxu0 %v9987
    %v9989 = vand.u32 %v6842, 4294901760
    %9990 = vmatprep.subr.mxu0 %v9989
    %v9991 = vand.u32 %v6839, 4294901760
    %9992 = vmatpush1.msra.mxu0 %v9991
    %9993 = vmatprep.subr.mxu0 0.0
    %9994 = vmatpush1.msra.mxu0 0.0
    %9995 = vmatprep.subr.mxu0 0.0
    %9996 = vmatpush1.msra.mxu0 0.0
    %9997 = vmatprep.subr.mxu0 0.0
    %9998 = vmatpush1.msra.mxu0 0.0
    %9999 = vmatprep.subr.mxu0 0.0
    %10000 = vmatpush1.msra.mxu0 0.0
    %10001 = vmatprep.subr.mxu0 0.0
    %10002 = vmatpush1.msra.mxu0 0.0
    %10003 = vmatprep.subr.mxu0 0.0
    %10004 = vmatpush1.msra.mxu0 0.0
    %10005 = vmatprep.subr.mxu0 0.0
    %10006 = vmatpush1.msra.mxu0 0.0
    %10007 = vmatprep.subr.mxu0 0.0
    %10008 = vmatpush1.msra.mxu0 0.0
    %10009 = vmatprep.subr.mxu0 0.0
    %10010 = vmatpush1.msra.mxu0 0.0
    %10011 = vmatprep.subr.mxu0 0.0
    %10012 = vmatpush1.msra.mxu0 0.0
    %10013 = vmatprep.subr.mxu0 0.0
    %10014 = vmatpush1.msra.mxu0 0.0
    %10015 = vmatprep.subr.mxu0 0.0
    %10016 = vmatpush1.msra.mxu0 0.0
    %10017 = vmatprep.subr.mxu0 0.0
    %10018 = vmatpush1.msra.mxu0 0.0
    %10019 = vmatprep.subr.mxu0 0.0
    %10020 = vmatpush1.msra.mxu0 0.0
    %10021 = vmatprep.subr.mxu0 0.0
    %10022 = vmatpush1.msra.mxu0 0.0
    %10023 = vmatprep.subr.mxu0 0.0
    %10024 = vmatpush1.msra.mxu0 0.0
    %10025 = vmatprep.subr.mxu0 0.0
    %10026 = vmatpush1.msra.mxu0 0.0
    %10027 = vmatprep.subr.mxu0 0.0
    %10028 = vmatpush1.msra.mxu0 0.0
    %10029 = vmatprep.subr.mxu0 0.0
    %10030 = vmatpush1.msra.mxu0 0.0
    %10031 = vmatprep.subr.mxu0 0.0
    %10032 = vmatpush1.msra.mxu0 0.0
    %10033 = vmatprep.subr.mxu0 0.0
    %10034 = vmatpush1.msra.mxu0 0.0
    %10035 = vmatprep.subr.mxu0 0.0
    %10036 = vmatpush1.msra.mxu0 0.0
    %10037 = vmatprep.subr.mxu0 0.0
    %10038 = vmatpush1.msra.mxu0 0.0
    %10039 = vmatprep.subr.mxu0 0.0
    %10040 = vmatpush1.msra.mxu0 0.0
    %10041 = vmatprep.subr.mxu0 0.0
    %10042 = vmatpush1.msra.mxu0 0.0
    %10043 = vmatprep.subr.mxu0 0.0
    %10044 = vmatpush1.msra.mxu0 0.0
    %10045 = vmatprep.subr.mxu0 0.0
    %10046 = vmatpush1.msra.mxu0 0.0
    %10047 = vmatprep.subr.mxu0 0.0
    %10048 = vmatpush1.msra.mxu0 0.0
    %10049 = vmatprep.subr.mxu0 0.0
    %10050 = vmatpush1.msra.mxu0 0.0
    %10051 = vmatprep.mubr.f32.mxu0 0.0
    %v10052 = vand.u32 %v6802, 4294901760
    %v10053 = vsub.f32 %v6802, %v10052
    %v10054 = vand.u32 %v10053, 4294901760
    %10055 = vmatmul.mubr.f32.gmra.mrb[0].mxu0 %v10054
    %v10056 = vpop.f32.mrb[0].mxu0
    %v10057 = vadd.f32 %v9969, %v10056
    %v10058 = vpop.f32.mrb[0].mxu0
    %v10059 = vadd.f32 %v9971, %v10058
    %10060 = vmatprep.mubr.f32.mxu0 0.0
    %v10061 = vand.u32 %v6805, 4294901760
    %v10062 = vsub.f32 %v6805, %v10061
    %v10063 = vand.u32 %v10062, 4294901760
    %10064 = vmatmul.mubr.f32.gmra.mrb[0].mxu0 %v10063
    %v10065 = vpop.f32.mrb[0].mxu0
    %v10066 = vadd.f32 %v9977, %v10065
    %v10067 = vpop.f32.mrb[0].mxu0
    %v10068 = vadd.f32 %v9979, %v10067
    %10069 = vdwg.mxu0
    %v10070 = vand.u32 %v6749, 4294901760
    %v10071 = vsub.f32 %v6749, %v10070
    %v10072 = vand.u32 %v10071, 4294901760
    %10073 = vmatprep.subr.mxu0 %v10072
    %v10074 = vand.u32 %v6748, 4294901760
    %v10075 = vsub.f32 %v6748, %v10074
    %v10076 = vand.u32 %v10075, 4294901760
    %10077 = vmatpush1.msra.mxu0 %v10076
    %v10078 = vand.u32 %v6765, 4294901760
    %v10079 = vsub.f32 %v6765, %v10078
    %v10080 = vand.u32 %v10079, 4294901760
    %10081 = vmatprep.subr.mxu0 %v10080
    %v10082 = vand.u32 %v6764, 4294901760
    %v10083 = vsub.f32 %v6764, %v10082
    %v10084 = vand.u32 %v10083, 4294901760
    %10085 = vmatpush1.msra.mxu0 %v10084
    %v10086 = vand.u32 %v6842, 4294901760
    %v10087 = vsub.f32 %v6842, %v10086
    %v10088 = vand.u32 %v10087, 4294901760
    %10089 = vmatprep.subr.mxu0 %v10088
    %v10090 = vand.u32 %v6839, 4294901760
    %v10091 = vsub.f32 %v6839, %v10090
    %v10092 = vand.u32 %v10091, 4294901760
    %10093 = vmatpush1.msra.mxu0 %v10092
    %10094 = vmatprep.subr.mxu0 0.0
    %10095 = vmatpush1.msra.mxu0 0.0
    %10096 = vmatprep.subr.mxu0 0.0
    %10097 = vmatpush1.msra.mxu0 0.0
    %10098 = vmatprep.subr.mxu0 0.0
    %10099 = vmatpush1.msra.mxu0 0.0
    %10100 = vmatprep.subr.mxu0 0.0
    %10101 = vmatpush1.msra.mxu0 0.0
    %10102 = vmatprep.subr.mxu0 0.0
    %10103 = vmatpush1.msra.mxu0 0.0
    %10104 = vmatprep.subr.mxu0 0.0
    %10105 = vmatpush1.msra.mxu0 0.0
    %10106 = vmatprep.subr.mxu0 0.0
    %10107 = vmatpush1.msra.mxu0 0.0
    %10108 = vmatprep.subr.mxu0 0.0
    %10109 = vmatpush1.msra.mxu0 0.0
    %10110 = vmatprep.subr.mxu0 0.0
    %10111 = vmatpush1.msra.mxu0 0.0
    %10112 = vmatprep.subr.mxu0 0.0
    %10113 = vmatpush1.msra.mxu0 0.0
    %10114 = vmatprep.subr.mxu0 0.0
    %10115 = vmatpush1.msra.mxu0 0.0
    %10116 = vmatprep.subr.mxu0 0.0
    %10117 = vmatpush1.msra.mxu0 0.0
    %10118 = vmatprep.subr.mxu0 0.0
    %10119 = vmatpush1.msra.mxu0 0.0
    %10120 = vmatprep.subr.mxu0 0.0
    %10121 = vmatpush1.msra.mxu0 0.0
    %10122 = vmatprep.subr.mxu0 0.0
    %10123 = vmatpush1.msra.mxu0 0.0
    %10124 = vmatprep.subr.mxu0 0.0
    %10125 = vmatpush1.msra.mxu0 0.0
    %10126 = vmatprep.subr.mxu0 0.0
    %10127 = vmatpush1.msra.mxu0 0.0
    %10128 = vmatprep.subr.mxu0 0.0
    %10129 = vmatpush1.msra.mxu0 0.0
    %10130 = vmatprep.subr.mxu0 0.0
    %10131 = vmatpush1.msra.mxu0 0.0
    %10132 = vmatprep.subr.mxu0 0.0
    %10133 = vmatpush1.msra.mxu0 0.0
    %10134 = vmatprep.subr.mxu0 0.0
    %10135 = vmatpush1.msra.mxu0 0.0
    %10136 = vmatprep.subr.mxu0 0.0
    %10137 = vmatpush1.msra.mxu0 0.0
    %10138 = vmatprep.subr.mxu0 0.0
    %10139 = vmatpush1.msra.mxu0 0.0
    %10140 = vmatprep.subr.mxu0 0.0
    %10141 = vmatpush1.msra.mxu0 0.0
    %10142 = vmatprep.subr.mxu0 0.0
    %10143 = vmatpush1.msra.mxu0 0.0
    %10144 = vmatprep.subr.mxu0 0.0
    %10145 = vmatpush1.msra.mxu0 0.0
    %10146 = vmatprep.subr.mxu0 0.0
    %10147 = vmatpush1.msra.mxu0 0.0
    %10148 = vmatprep.subr.mxu0 0.0
    %10149 = vmatpush1.msra.mxu0 0.0
    %10150 = vmatprep.subr.mxu0 0.0
    %10151 = vmatpush1.msra.mxu0 0.0
    %10152 = vmatprep.mubr.f32.mxu0 0.0
    %v10153 = vand.u32 %v6802, 4294901760
    %10154 = vmatmul.mubr.f32.gmra.mrb[0].mxu0 %v10153
    %v10155 = vpop.f32.mrb[0].mxu0
    %v10156 = vadd.f32 %v10057, %v10155
    %v10157 = vpop.f32.mrb[0].mxu0
    %v10158 = vadd.f32 %v10059, %v10157
    %10159 = vmatprep.mubr.f32.mxu0 0.0
    %v10160 = vand.u32 %v6805, 4294901760
    %10161 = vmatmul.mubr.f32.gmra.mrb[0].mxu0 %v10160
    %v10162 = vpop.f32.mrb[0].mxu0
    %v10163 = vadd.f32 %v10066, %v10162
    %v10164 = vpop.f32.mrb[0].mxu0
    %v10165 = vadd.f32 %v10068, %v10164
    %10166 = vdwg.mxu0
    %v10167 = vand.u32 %v6749, 4294901760
    %10168 = vmatprep.subr.mxu0 %v10167
    %v10169 = vand.u32 %v6748, 4294901760
    %10170 = vmatpush1.msra.mxu0 %v10169
    %v10171 = vand.u32 %v6765, 4294901760
    %10172 = vmatprep.subr.mxu0 %v10171
    %v10173 = vand.u32 %v6764, 4294901760
    %10174 = vmatpush1.msra.mxu0 %v10173
    %v10175 = vand.u32 %v6842, 4294901760
    %10176 = vmatprep.subr.mxu0 %v10175
    %v10177 = vand.u32 %v6839, 4294901760
    %10178 = vmatpush1.msra.mxu0 %v10177
    %10179 = vmatprep.subr.mxu0 0.0
    %10180 = vmatpush1.msra.mxu0 0.0
    %10181 = vmatprep.subr.mxu0 0.0
    %10182 = vmatpush1.msra.mxu0 0.0
    %10183 = vmatprep.subr.mxu0 0.0
    %10184 = vmatpush1.msra.mxu0 0.0
    %10185 = vmatprep.subr.mxu0 0.0
    %10186 = vmatpush1.msra.mxu0 0.0
    %10187 = vmatprep.subr.mxu0 0.0
    %10188 = vmatpush1.msra.mxu0 0.0
    %10189 = vmatprep.subr.mxu0 0.0
    %10190 = vmatpush1.msra.mxu0 0.0
    %10191 = vmatprep.subr.mxu0 0.0
    %10192 = vmatpush1.msra.mxu0 0.0
    %10193 = vmatprep.subr.mxu0 0.0
    %10194 = vmatpush1.msra.mxu0 0.0
    %10195 = vmatprep.subr.mxu0 0.0
    %10196 = vmatpush1.msra.mxu0 0.0
    %10197 = vmatprep.subr.mxu0 0.0
    %10198 = vmatpush1.msra.mxu0 0.0
    %10199 = vmatprep.subr.mxu0 0.0
    %10200 = vmatpush1.msra.mxu0 0.0
    %10201 = vmatprep.subr.mxu0 0.0
    %10202 = vmatpush1.msra.mxu0 0.0
    %10203 = vmatprep.subr.mxu0 0.0
    %10204 = vmatpush1.msra.mxu0 0.0
    %10205 = vmatprep.subr.mxu0 0.0
    %10206 = vmatpush1.msra.mxu0 0.0
    %10207 = vmatprep.subr.mxu0 0.0
    %10208 = vmatpush1.msra.mxu0 0.0
    %10209 = vmatprep.subr.mxu0 0.0
    %10210 = vmatpush1.msra.mxu0 0.0
    %10211 = vmatprep.subr.mxu0 0.0
    %10212 = vmatpush1.msra.mxu0 0.0
    %10213 = vmatprep.subr.mxu0 0.0
    %10214 = vmatpush1.msra.mxu0 0.0
    %10215 = vmatprep.subr.mxu0 0.0
    %10216 = vmatpush1.msra.mxu0 0.0
    %10217 = vmatprep.subr.mxu0 0.0
    %10218 = vmatpush1.msra.mxu0 0.0
    %10219 = vmatprep.subr.mxu0 0.0
    %10220 = vmatpush1.msra.mxu0 0.0
    %10221 = vmatprep.subr.mxu0 0.0
    %10222 = vmatpush1.msra.mxu0 0.0
    %10223 = vmatprep.subr.mxu0 0.0
    %10224 = vmatpush1.msra.mxu0 0.0
    %10225 = vmatprep.subr.mxu0 0.0
    %10226 = vmatpush1.msra.mxu0 0.0
    %10227 = vmatprep.subr.mxu0 0.0
    %10228 = vmatpush1.msra.mxu0 0.0
    %10229 = vmatprep.subr.mxu0 0.0
    %10230 = vmatpush1.msra.mxu0 0.0
    %10231 = vmatprep.subr.mxu0 0.0
    %10232 = vmatpush1.msra.mxu0 0.0
    %10233 = vmatprep.subr.mxu0 0.0
    %10234 = vmatpush1.msra.mxu0 0.0
    %10235 = vmatprep.subr.mxu0 0.0
    %10236 = vmatpush1.msra.mxu0 0.0
    %10237 = vmatprep.mubr.f32.mxu0 0.0
    %v10238 = vand.u32 %v6802, 4294901760
    %10239 = vmatmul.mubr.f32.gmra.mrb[0].mxu0 %v10238
    %v10240 = vpop.f32.mrb[0].mxu0
    %v10241 = vadd.f32 %v10156, %v10240
    %v10242 = vpop.f32.mrb[0].mxu0
    %v10243 = vadd.f32 %v10158, %v10242
    %10244 = vmatprep.mubr.f32.mxu0 0.0
    %v10245 = vand.u32 %v6805, 4294901760
    %10246 = vmatmul.mubr.f32.gmra.mrb[0].mxu0 %v10245
    %v10247 = vpop.f32.mrb[0].mxu0
    %v10248 = vadd.f32 %v10163, %v10247
    %v10249 = vpop.f32.mrb[0].mxu0
    %v10250 = vadd.f32 %v10165, %v10249
    %10251 = vdwg.mxu0
    %v10252 = vand.u32 %v6751, 4294901760
    %10253 = vmatprep.subr.mxu0 %v10252
    %v10254 = vand.u32 %v6750, 4294901760
    %10255 = vmatpush1.msra.mxu0 %v10254
    %v10256 = vand.u32 %v6767, 4294901760
    %10257 = vmatprep.subr.mxu0 %v10256
    %v10258 = vand.u32 %v6766, 4294901760
    %10259 = vmatpush1.msra.mxu0 %v10258
    %v10260 = vand.u32 %v6848, 4294901760
    %10261 = vmatprep.subr.mxu0 %v10260
    %v10262 = vand.u32 %v6845, 4294901760
    %10263 = vmatpush1.msra.mxu0 %v10262
    %10264 = vmatprep.subr.mxu0 0.0
    %10265 = vmatpush1.msra.mxu0 0.0
    %10266 = vmatprep.subr.mxu0 0.0
    %10267 = vmatpush1.msra.mxu0 0.0
    %10268 = vmatprep.subr.mxu0 0.0
    %10269 = vmatpush1.msra.mxu0 0.0
    %10270 = vmatprep.subr.mxu0 0.0
    %10271 = vmatpush1.msra.mxu0 0.0
    %10272 = vmatprep.subr.mxu0 0.0
    %10273 = vmatpush1.msra.mxu0 0.0
    %10274 = vmatprep.subr.mxu0 0.0
    %10275 = vmatpush1.msra.mxu0 0.0
    %10276 = vmatprep.subr.mxu0 0.0
    %10277 = vmatpush1.msra.mxu0 0.0
    %10278 = vmatprep.subr.mxu0 0.0
    %10279 = vmatpush1.msra.mxu0 0.0
    %10280 = vmatprep.subr.mxu0 0.0
    %10281 = vmatpush1.msra.mxu0 0.0
    %10282 = vmatprep.subr.mxu0 0.0
    %10283 = vmatpush1.msra.mxu0 0.0
    %10284 = vmatprep.subr.mxu0 0.0
    %10285 = vmatpush1.msra.mxu0 0.0
    %10286 = vmatprep.subr.mxu0 0.0
    %10287 = vmatpush1.msra.mxu0 0.0
    %10288 = vmatprep.subr.mxu0 0.0
    %10289 = vmatpush1.msra.mxu0 0.0
    %10290 = vmatprep.subr.mxu0 0.0
    %10291 = vmatpush1.msra.mxu0 0.0
    %10292 = vmatprep.subr.mxu0 0.0
    %10293 = vmatpush1.msra.mxu0 0.0
    %10294 = vmatprep.subr.mxu0 0.0
    %10295 = vmatpush1.msra.mxu0 0.0
    %10296 = vmatprep.subr.mxu0 0.0
    %10297 = vmatpush1.msra.mxu0 0.0
    %10298 = vmatprep.subr.mxu0 0.0
    %10299 = vmatpush1.msra.mxu0 0.0
    %10300 = vmatprep.subr.mxu0 0.0
    %10301 = vmatpush1.msra.mxu0 0.0
    %10302 = vmatprep.subr.mxu0 0.0
    %10303 = vmatpush1.msra.mxu0 0.0
    %10304 = vmatprep.subr.mxu0 0.0
    %10305 = vmatpush1.msra.mxu0 0.0
    %10306 = vmatprep.subr.mxu0 0.0
    %10307 = vmatpush1.msra.mxu0 0.0
    %10308 = vmatprep.subr.mxu0 0.0
    %10309 = vmatpush1.msra.mxu0 0.0
    %10310 = vmatprep.subr.mxu0 0.0
    %10311 = vmatpush1.msra.mxu0 0.0
    %10312 = vmatprep.subr.mxu0 0.0
    %10313 = vmatpush1.msra.mxu0 0.0
    %10314 = vmatprep.subr.mxu0 0.0
    %10315 = vmatpush1.msra.mxu0 0.0
    %10316 = vmatprep.subr.mxu0 0.0
    %10317 = vmatpush1.msra.mxu0 0.0
    %10318 = vmatprep.subr.mxu0 0.0
    %10319 = vmatpush1.msra.mxu0 0.0
    %10320 = vmatprep.subr.mxu0 0.0
    %10321 = vmatpush1.msra.mxu0 0.0
    %10322 = vmatprep.mubr.f32.mxu0 0.0
    %v10323 = vand.u32 %v6802, 4294901760
    %v10324 = vsub.f32 %v6802, %v10323
    %v10325 = vand.u32 %v10324, 4294901760
    %v10326 = vsub.f32 %v10324, %v10325
    %v10327 = vand.u32 %v10326, 4294901760
    %10328 = vmatmul.mubr.f32.gmra.mrb[0].mxu0 %v10327
    %v10329 = vpop.f32.mrb[0].mxu0
    %v10330 = vadd.f32 %v6793, %v10329
    %v10331 = vpop.f32.mrb[0].mxu0
    %v10332 = vadd.f32 %v6793, %v10331
    %10333 = vmatprep.mubr.f32.mxu0 0.0
    %v10334 = vand.u32 %v6805, 4294901760
    %v10335 = vsub.f32 %v6805, %v10334
    %v10336 = vand.u32 %v10335, 4294901760
    %v10337 = vsub.f32 %v10335, %v10336
    %v10338 = vand.u32 %v10337, 4294901760
    %10339 = vmatmul.mubr.f32.gmra.mrb[0].mxu0 %v10338
    %v10340 = vpop.f32.mrb[0].mxu0
    %v10341 = vadd.f32 %v6798, %v10340
    %v10342 = vpop.f32.mrb[0].mxu0
    %v10343 = vadd.f32 %v6798, %v10342
    %10344 = vdwg.mxu0
    %v10345 = vand.u32 %v6751, 4294901760
    %v10346 = vsub.f32 %v6751, %v10345
    %v10347 = vand.u32 %v10346, 4294901760
    %v10348 = vsub.f32 %v10346, %v10347
    %v10349 = vand.u32 %v10348, 4294901760
    %10350 = vmatprep.subr.mxu0 %v10349
    %v10351 = vand.u32 %v6750, 4294901760
    %v10352 = vsub.f32 %v6750, %v10351
    %v10353 = vand.u32 %v10352, 4294901760
    %v10354 = vsub.f32 %v10352, %v10353
    %v10355 = vand.u32 %v10354, 4294901760
    %10356 = vmatpush1.msra.mxu0 %v10355
    %v10357 = vand.u32 %v6767, 4294901760
    %v10358 = vsub.f32 %v6767, %v10357
    %v10359 = vand.u32 %v10358, 4294901760
    %v10360 = vsub.f32 %v10358, %v10359
    %v10361 = vand.u32 %v10360, 4294901760
    %10362 = vmatprep.subr.mxu0 %v10361
    %v10363 = vand.u32 %v6766, 4294901760
    %v10364 = vsub.f32 %v6766, %v10363
    %v10365 = vand.u32 %v10364, 4294901760
    %v10366 = vsub.f32 %v10364, %v10365
    %v10367 = vand.u32 %v10366, 4294901760
    %10368 = vmatpush1.msra.mxu0 %v10367
    %v10369 = vand.u32 %v6848, 4294901760
    %v10370 = vsub.f32 %v6848, %v10369
    %v10371 = vand.u32 %v10370, 4294901760
    %v10372 = vsub.f32 %v10370, %v10371
    %v10373 = vand.u32 %v10372, 4294901760
    %10374 = vmatprep.subr.mxu0 %v10373
    %v10375 = vand.u32 %v6845, 4294901760
    %v10376 = vsub.f32 %v6845, %v10375
    %v10377 = vand.u32 %v10376, 4294901760
    %v10378 = vsub.f32 %v10376, %v10377
    %v10379 = vand.u32 %v10378, 4294901760
    %10380 = vmatpush1.msra.mxu0 %v10379
    %10381 = vmatprep.subr.mxu0 0.0
    %10382 = vmatpush1.msra.mxu0 0.0
    %10383 = vmatprep.subr.mxu0 0.0
    %10384 = vmatpush1.msra.mxu0 0.0
    %10385 = vmatprep.subr.mxu0 0.0
    %10386 = vmatpush1.msra.mxu0 0.0
    %10387 = vmatprep.subr.mxu0 0.0
    %10388 = vmatpush1.msra.mxu0 0.0
    %10389 = vmatprep.subr.mxu0 0.0
    %10390 = vmatpush1.msra.mxu0 0.0
    %10391 = vmatprep.subr.mxu0 0.0
    %10392 = vmatpush1.msra.mxu0 0.0
    %10393 = vmatprep.subr.mxu0 0.0
    %10394 = vmatpush1.msra.mxu0 0.0
    %10395 = vmatprep.subr.mxu0 0.0
    %10396 = vmatpush1.msra.mxu0 0.0
    %10397 = vmatprep.subr.mxu0 0.0
    %10398 = vmatpush1.msra.mxu0 0.0
    %10399 = vmatprep.subr.mxu0 0.0
    %10400 = vmatpush1.msra.mxu0 0.0
    %10401 = vmatprep.subr.mxu0 0.0
    %10402 = vmatpush1.msra.mxu0 0.0
    %10403 = vmatprep.subr.mxu0 0.0
    %10404 = vmatpush1.msra.mxu0 0.0
    %10405 = vmatprep.subr.mxu0 0.0
    %10406 = vmatpush1.msra.mxu0 0.0
    %10407 = vmatprep.subr.mxu0 0.0
    %10408 = vmatpush1.msra.mxu0 0.0
    %10409 = vmatprep.subr.mxu0 0.0
    %10410 = vmatpush1.msra.mxu0 0.0
    %10411 = vmatprep.subr.mxu0 0.0
    %10412 = vmatpush1.msra.mxu0 0.0
    %10413 = vmatprep.subr.mxu0 0.0
    %10414 = vmatpush1.msra.mxu0 0.0
    %10415 = vmatprep.subr.mxu0 0.0
    %10416 = vmatpush1.msra.mxu0 0.0
    %10417 = vmatprep.subr.mxu0 0.0
    %10418 = vmatpush1.msra.mxu0 0.0
    %10419 = vmatprep.subr.mxu0 0.0
    %10420 = vmatpush1.msra.mxu0 0.0
    %10421 = vmatprep.subr.mxu0 0.0
    %10422 = vmatpush1.msra.mxu0 0.0
    %10423 = vmatprep.subr.mxu0 0.0
    %10424 = vmatpush1.msra.mxu0 0.0
    %10425 = vmatprep.subr.mxu0 0.0
    %10426 = vmatpush1.msra.mxu0 0.0
    %10427 = vmatprep.subr.mxu0 0.0
    %10428 = vmatpush1.msra.mxu0 0.0
    %10429 = vmatprep.subr.mxu0 0.0
    %10430 = vmatpush1.msra.mxu0 0.0
    %10431 = vmatprep.subr.mxu0 0.0
    %10432 = vmatpush1.msra.mxu0 0.0
    %10433 = vmatprep.subr.mxu0 0.0
    %10434 = vmatpush1.msra.mxu0 0.0
    %10435 = vmatprep.subr.mxu0 0.0
    %10436 = vmatpush1.msra.mxu0 0.0
    %10437 = vmatprep.subr.mxu0 0.0
    %10438 = vmatpush1.msra.mxu0 0.0
    %10439 = vmatprep.mubr.f32.mxu0 0.0
    %v10440 = vand.u32 %v6802, 4294901760
    %10441 = vmatmul.mubr.f32.gmra.mrb[0].mxu0 %v10440
    %v10442 = vpop.f32.mrb[0].mxu0
    %v10443 = vadd.f32 %v10330, %v10442
    %v10444 = vpop.f32.mrb[0].mxu0
    %v10445 = vadd.f32 %v10332, %v10444
    %10446 = vmatprep.mubr.f32.mxu0 0.0
    %v10447 = vand.u32 %v6805, 4294901760
    %10448 = vmatmul.mubr.f32.gmra.mrb[0].mxu0 %v10447
    %v10449 = vpop.f32.mrb[0].mxu0
    %v10450 = vadd.f32 %v10341, %v10449
    %v10451 = vpop.f32.mrb[0].mxu0
    %v10452 = vadd.f32 %v10343, %v10451
    %10453 = vdwg.mxu0
    %v10454 = vand.u32 %v6751, 4294901760
    %v10455 = vsub.f32 %v6751, %v10454
    %10456 = vmatprep.subr.mxu0 %v10455
    %v10457 = vand.u32 %v6750, 4294901760
    %v10458 = vsub.f32 %v6750, %v10457
    %10459 = vmatpush1.msra.mxu0 %v10458
    %v10460 = vand.u32 %v6767, 4294901760
    %v10461 = vsub.f32 %v6767, %v10460
    %10462 = vmatprep.subr.mxu0 %v10461
    %v10463 = vand.u32 %v6766, 4294901760
    %v10464 = vsub.f32 %v6766, %v10463
    %10465 = vmatpush1.msra.mxu0 %v10464
    %v10466 = vand.u32 %v6848, 4294901760
    %v10467 = vsub.f32 %v6848, %v10466
    %10468 = vmatprep.subr.mxu0 %v10467
    %v10469 = vand.u32 %v6845, 4294901760
    %v10470 = vsub.f32 %v6845, %v10469
    %10471 = vmatpush1.msra.mxu0 %v10470
    %10472 = vmatprep.subr.mxu0 0.0
    %10473 = vmatpush1.msra.mxu0 0.0
    %10474 = vmatprep.subr.mxu0 0.0
    %10475 = vmatpush1.msra.mxu0 0.0
    %10476 = vmatprep.subr.mxu0 0.0
    %10477 = vmatpush1.msra.mxu0 0.0
    %10478 = vmatprep.subr.mxu0 0.0
    %10479 = vmatpush1.msra.mxu0 0.0
    %10480 = vmatprep.subr.mxu0 0.0
    %10481 = vmatpush1.msra.mxu0 0.0
    %10482 = vmatprep.subr.mxu0 0.0
    %10483 = vmatpush1.msra.mxu0 0.0
    %10484 = vmatprep.subr.mxu0 0.0
    %10485 = vmatpush1.msra.mxu0 0.0
    %10486 = vmatprep.subr.mxu0 0.0
    %10487 = vmatpush1.msra.mxu0 0.0
    %10488 = vmatprep.subr.mxu0 0.0
    %10489 = vmatpush1.msra.mxu0 0.0
    %10490 = vmatprep.subr.mxu0 0.0
    %10491 = vmatpush1.msra.mxu0 0.0
    %10492 = vmatprep.subr.mxu0 0.0
    %10493 = vmatpush1.msra.mxu0 0.0
    %10494 = vmatprep.subr.mxu0 0.0
    %10495 = vmatpush1.msra.mxu0 0.0
    %10496 = vmatprep.subr.mxu0 0.0
    %10497 = vmatpush1.msra.mxu0 0.0
    %10498 = vmatprep.subr.mxu0 0.0
    %10499 = vmatpush1.msra.mxu0 0.0
    %10500 = vmatprep.subr.mxu0 0.0
    %10501 = vmatpush1.msra.mxu0 0.0
    %10502 = vmatprep.subr.mxu0 0.0
    %10503 = vmatpush1.msra.mxu0 0.0
    %10504 = vmatprep.subr.mxu0 0.0
    %10505 = vmatpush1.msra.mxu0 0.0
    %10506 = vmatprep.subr.mxu0 0.0
    %10507 = vmatpush1.msra.mxu0 0.0
    %10508 = vmatprep.subr.mxu0 0.0
    %10509 = vmatpush1.msra.mxu0 0.0
    %10510 = vmatprep.subr.mxu0 0.0
    %10511 = vmatpush1.msra.mxu0 0.0
    %10512 = vmatprep.subr.mxu0 0.0
    %10513 = vmatpush1.msra.mxu0 0.0
    %10514 = vmatprep.subr.mxu0 0.0
    %10515 = vmatpush1.msra.mxu0 0.0
    %10516 = vmatprep.subr.mxu0 0.0
    %10517 = vmatpush1.msra.mxu0 0.0
    %10518 = vmatprep.subr.mxu0 0.0
    %10519 = vmatpush1.msra.mxu0 0.0
    %10520 = vmatprep.subr.mxu0 0.0
    %10521 = vmatpush1.msra.mxu0 0.0
    %10522 = vmatprep.subr.mxu0 0.0
    %10523 = vmatpush1.msra.mxu0 0.0
    %10524 = vmatprep.subr.mxu0 0.0
    %10525 = vmatpush1.msra.mxu0 0.0
    %10526 = vmatprep.subr.mxu0 0.0
    %10527 = vmatpush1.msra.mxu0 0.0
    %10528 = vmatprep.subr.mxu0 0.0
    %10529 = vmatpush1.msra.mxu0 0.0
    %10530 = vmatprep.mubr.f32.mxu0 0.0
    %v10531 = vand.u32 %v6802, 4294901760
    %v10532 = vsub.f32 %v6802, %v10531
    %10533 = vmatmul.mubr.f32.gmra.mrb[0].mxu0 %v10532
    %v10534 = vpop.f32.mrb[0].mxu0
    %v10535 = vadd.f32 %v10443, %v10534
    %v10536 = vpop.f32.mrb[0].mxu0
    %v10537 = vadd.f32 %v10445, %v10536
    %10538 = vmatprep.mubr.f32.mxu0 0.0
    %v10539 = vand.u32 %v6805, 4294901760
    %v10540 = vsub.f32 %v6805, %v10539
    %10541 = vmatmul.mubr.f32.gmra.mrb[0].mxu0 %v10540
    %v10542 = vpop.f32.mrb[0].mxu0
    %v10543 = vadd.f32 %v10450, %v10542
    %v10544 = vpop.f32.mrb[0].mxu0
    %v10545 = vadd.f32 %v10452, %v10544
    %10546 = vdwg.mxu0
    %v10547 = vand.u32 %v6751, 4294901760
    %10548 = vmatprep.subr.mxu0 %v10547
    %v10549 = vand.u32 %v6750, 4294901760
    %10550 = vmatpush1.msra.mxu0 %v10549
    %v10551 = vand.u32 %v6767, 4294901760
    %10552 = vmatprep.subr.mxu0 %v10551
    %v10553 = vand.u32 %v6766, 4294901760
    %10554 = vmatpush1.msra.mxu0 %v10553
    %v10555 = vand.u32 %v6848, 4294901760
    %10556 = vmatprep.subr.mxu0 %v10555
    %v10557 = vand.u32 %v6845, 4294901760
    %10558 = vmatpush1.msra.mxu0 %v10557
    %10559 = vmatprep.subr.mxu0 0.0
    %10560 = vmatpush1.msra.mxu0 0.0
    %10561 = vmatprep.subr.mxu0 0.0
    %10562 = vmatpush1.msra.mxu0 0.0
    %10563 = vmatprep.subr.mxu0 0.0
    %10564 = vmatpush1.msra.mxu0 0.0
    %10565 = vmatprep.subr.mxu0 0.0
    %10566 = vmatpush1.msra.mxu0 0.0
    %10567 = vmatprep.subr.mxu0 0.0
    %10568 = vmatpush1.msra.mxu0 0.0
    %10569 = vmatprep.subr.mxu0 0.0
    %10570 = vmatpush1.msra.mxu0 0.0
    %10571 = vmatprep.subr.mxu0 0.0
    %10572 = vmatpush1.msra.mxu0 0.0
    %10573 = vmatprep.subr.mxu0 0.0
    %10574 = vmatpush1.msra.mxu0 0.0
    %10575 = vmatprep.subr.mxu0 0.0
    %10576 = vmatpush1.msra.mxu0 0.0
    %10577 = vmatprep.subr.mxu0 0.0
    %10578 = vmatpush1.msra.mxu0 0.0
    %10579 = vmatprep.subr.mxu0 0.0
    %10580 = vmatpush1.msra.mxu0 0.0
    %10581 = vmatprep.subr.mxu0 0.0
    %10582 = vmatpush1.msra.mxu0 0.0
    %10583 = vmatprep.subr.mxu0 0.0
    %10584 = vmatpush1.msra.mxu0 0.0
    %10585 = vmatprep.subr.mxu0 0.0
    %10586 = vmatpush1.msra.mxu0 0.0
    %10587 = vmatprep.subr.mxu0 0.0
    %10588 = vmatpush1.msra.mxu0 0.0
    %10589 = vmatprep.subr.mxu0 0.0
    %10590 = vmatpush1.msra.mxu0 0.0
    %10591 = vmatprep.subr.mxu0 0.0
    %10592 = vmatpush1.msra.mxu0 0.0
    %10593 = vmatprep.subr.mxu0 0.0
    %10594 = vmatpush1.msra.mxu0 0.0
    %10595 = vmatprep.subr.mxu0 0.0
    %10596 = vmatpush1.msra.mxu0 0.0
    %10597 = vmatprep.subr.mxu0 0.0
    %10598 = vmatpush1.msra.mxu0 0.0
    %10599 = vmatprep.subr.mxu0 0.0
    %10600 = vmatpush1.msra.mxu0 0.0
    %10601 = vmatprep.subr.mxu0 0.0
    %10602 = vmatpush1.msra.mxu0 0.0
    %10603 = vmatprep.subr.mxu0 0.0
    %10604 = vmatpush1.msra.mxu0 0.0
    %10605 = vmatprep.subr.mxu0 0.0
    %10606 = vmatpush1.msra.mxu0 0.0
    %10607 = vmatprep.subr.mxu0 0.0
    %10608 = vmatpush1.msra.mxu0 0.0
    %10609 = vmatprep.subr.mxu0 0.0
    %10610 = vmatpush1.msra.mxu0 0.0
    %10611 = vmatprep.subr.mxu0 0.0
    %10612 = vmatpush1.msra.mxu0 0.0
    %10613 = vmatprep.subr.mxu0 0.0
    %10614 = vmatpush1.msra.mxu0 0.0
    %10615 = vmatprep.subr.mxu0 0.0
    %10616 = vmatpush1.msra.mxu0 0.0
    %10617 = vmatprep.mubr.f32.mxu0 0.0
    %v10618 = vand.u32 %v6802, 4294901760
    %v10619 = vsub.f32 %v6802, %v10618
    %v10620 = vand.u32 %v10619, 4294901760
    %10621 = vmatmul.mubr.f32.gmra.mrb[0].mxu0 %v10620
    %v10622 = vpop.f32.mrb[0].mxu0
    %v10623 = vadd.f32 %v10535, %v10622
    %v10624 = vpop.f32.mrb[0].mxu0
    %v10625 = vadd.f32 %v10537, %v10624
    %10626 = vmatprep.mubr.f32.mxu0 0.0
    %v10627 = vand.u32 %v6805, 4294901760
    %v10628 = vsub.f32 %v6805, %v10627
    %v10629 = vand.u32 %v10628, 4294901760
    %10630 = vmatmul.mubr.f32.gmra.mrb[0].mxu0 %v10629
    %v10631 = vpop.f32.mrb[0].mxu0
    %v10632 = vadd.f32 %v10543, %v10631
    %v10633 = vpop.f32.mrb[0].mxu0
    %v10634 = vadd.f32 %v10545, %v10633
    %10635 = vdwg.mxu0
    %v10636 = vand.u32 %v6751, 4294901760
    %v10637 = vsub.f32 %v6751, %v10636
    %v10638 = vand.u32 %v10637, 4294901760
    %10639 = vmatprep.subr.mxu0 %v10638
    %v10640 = vand.u32 %v6750, 4294901760
    %v10641 = vsub.f32 %v6750, %v10640
    %v10642 = vand.u32 %v10641, 4294901760
    %10643 = vmatpush1.msra.mxu0 %v10642
    %v10644 = vand.u32 %v6767, 4294901760
    %v10645 = vsub.f32 %v6767, %v10644
    %v10646 = vand.u32 %v10645, 4294901760
    %10647 = vmatprep.subr.mxu0 %v10646
    %v10648 = vand.u32 %v6766, 4294901760
    %v10649 = vsub.f32 %v6766, %v10648
    %v10650 = vand.u32 %v10649, 4294901760
    %10651 = vmatpush1.msra.mxu0 %v10650
    %v10652 = vand.u32 %v6848, 4294901760
    %v10653 = vsub.f32 %v6848, %v10652
    %v10654 = vand.u32 %v10653, 4294901760
    %10655 = vmatprep.subr.mxu0 %v10654
    %v10656 = vand.u32 %v6845, 4294901760
    %v10657 = vsub.f32 %v6845, %v10656
    %v10658 = vand.u32 %v10657, 4294901760
    %10659 = vmatpush1.msra.mxu0 %v10658
    %10660 = vmatprep.subr.mxu0 0.0
    %10661 = vmatpush1.msra.mxu0 0.0
    %10662 = vmatprep.subr.mxu0 0.0
    %10663 = vmatpush1.msra.mxu0 0.0
    %10664 = vmatprep.subr.mxu0 0.0
    %10665 = vmatpush1.msra.mxu0 0.0
    %10666 = vmatprep.subr.mxu0 0.0
    %10667 = vmatpush1.msra.mxu0 0.0
    %10668 = vmatprep.subr.mxu0 0.0
    %10669 = vmatpush1.msra.mxu0 0.0
    %10670 = vmatprep.subr.mxu0 0.0
    %10671 = vmatpush1.msra.mxu0 0.0
    %10672 = vmatprep.subr.mxu0 0.0
    %10673 = vmatpush1.msra.mxu0 0.0
    %10674 = vmatprep.subr.mxu0 0.0
    %10675 = vmatpush1.msra.mxu0 0.0
    %10676 = vmatprep.subr.mxu0 0.0
    %10677 = vmatpush1.msra.mxu0 0.0
    %10678 = vmatprep.subr.mxu0 0.0
    %10679 = vmatpush1.msra.mxu0 0.0
    %10680 = vmatprep.subr.mxu0 0.0
    %10681 = vmatpush1.msra.mxu0 0.0
    %10682 = vmatprep.subr.mxu0 0.0
    %10683 = vmatpush1.msra.mxu0 0.0
    %10684 = vmatprep.subr.mxu0 0.0
    %10685 = vmatpush1.msra.mxu0 0.0
    %10686 = vmatprep.subr.mxu0 0.0
    %10687 = vmatpush1.msra.mxu0 0.0
    %10688 = vmatprep.subr.mxu0 0.0
    %10689 = vmatpush1.msra.mxu0 0.0
    %10690 = vmatprep.subr.mxu0 0.0
    %10691 = vmatpush1.msra.mxu0 0.0
    %10692 = vmatprep.subr.mxu0 0.0
    %10693 = vmatpush1.msra.mxu0 0.0
    %10694 = vmatprep.subr.mxu0 0.0
    %10695 = vmatpush1.msra.mxu0 0.0
    %10696 = vmatprep.subr.mxu0 0.0
    %10697 = vmatpush1.msra.mxu0 0.0
    %10698 = vmatprep.subr.mxu0 0.0
    %10699 = vmatpush1.msra.mxu0 0.0
    %10700 = vmatprep.subr.mxu0 0.0
    %10701 = vmatpush1.msra.mxu0 0.0
    %10702 = vmatprep.subr.mxu0 0.0
    %10703 = vmatpush1.msra.mxu0 0.0
    %10704 = vmatprep.subr.mxu0 0.0
    %10705 = vmatpush1.msra.mxu0 0.0
    %10706 = vmatprep.subr.mxu0 0.0
    %10707 = vmatpush1.msra.mxu0 0.0
    %10708 = vmatprep.subr.mxu0 0.0
    %10709 = vmatpush1.msra.mxu0 0.0
    %10710 = vmatprep.subr.mxu0 0.0
    %10711 = vmatpush1.msra.mxu0 0.0
    %10712 = vmatprep.subr.mxu0 0.0
    %10713 = vmatpush1.msra.mxu0 0.0
    %10714 = vmatprep.subr.mxu0 0.0
    %10715 = vmatpush1.msra.mxu0 0.0
    %10716 = vmatprep.subr.mxu0 0.0
    %10717 = vmatpush1.msra.mxu0 0.0
    %10718 = vmatprep.mubr.f32.mxu0 0.0
    %v10719 = vand.u32 %v6802, 4294901760
    %10720 = vmatmul.mubr.f32.gmra.mrb[0].mxu0 %v10719
    %v10721 = vpop.f32.mrb[0].mxu0
    %v10722 = vadd.f32 %v10623, %v10721
    %v10723 = vpop.f32.mrb[0].mxu0
    %v10724 = vadd.f32 %v10625, %v10723
    %10725 = vmatprep.mubr.f32.mxu0 0.0
    %v10726 = vand.u32 %v6805, 4294901760
    %10727 = vmatmul.mubr.f32.gmra.mrb[0].mxu0 %v10726
    %v10728 = vpop.f32.mrb[0].mxu0
    %v10729 = vadd.f32 %v10632, %v10728
    %v10730 = vpop.f32.mrb[0].mxu0
    %v10731 = vadd.f32 %v10634, %v10730
    %10732 = vdwg.mxu0
    %v10733 = vand.u32 %v6751, 4294901760
    %10734 = vmatprep.subr.mxu0 %v10733
    %v10735 = vand.u32 %v6750, 4294901760
    %10736 = vmatpush1.msra.mxu0 %v10735
    %v10737 = vand.u32 %v6767, 4294901760
    %10738 = vmatprep.subr.mxu0 %v10737
    %v10739 = vand.u32 %v6766, 4294901760
    %10740 = vmatpush1.msra.mxu0 %v10739
    %v10741 = vand.u32 %v6848, 4294901760
    %10742 = vmatprep.subr.mxu0 %v10741
    %v10743 = vand.u32 %v6845, 4294901760
    %10744 = vmatpush1.msra.mxu0 %v10743
    %10745 = vmatprep.subr.mxu0 0.0
    %10746 = vmatpush1.msra.mxu0 0.0
    %10747 = vmatprep.subr.mxu0 0.0
    %10748 = vmatpush1.msra.mxu0 0.0
    %10749 = vmatprep.subr.mxu0 0.0
    %10750 = vmatpush1.msra.mxu0 0.0
    %10751 = vmatprep.subr.mxu0 0.0
    %10752 = vmatpush1.msra.mxu0 0.0
    %10753 = vmatprep.subr.mxu0 0.0
    %10754 = vmatpush1.msra.mxu0 0.0
    %10755 = vmatprep.subr.mxu0 0.0
    %10756 = vmatpush1.msra.mxu0 0.0
    %10757 = vmatprep.subr.mxu0 0.0
    %10758 = vmatpush1.msra.mxu0 0.0
    %10759 = vmatprep.subr.mxu0 0.0
    %10760 = vmatpush1.msra.mxu0 0.0
    %10761 = vmatprep.subr.mxu0 0.0
    %10762 = vmatpush1.msra.mxu0 0.0
    %10763 = vmatprep.subr.mxu0 0.0
    %10764 = vmatpush1.msra.mxu0 0.0
    %10765 = vmatprep.subr.mxu0 0.0
    %10766 = vmatpush1.msra.mxu0 0.0
    %10767 = vmatprep.subr.mxu0 0.0
    %10768 = vmatpush1.msra.mxu0 0.0
    %10769 = vmatprep.subr.mxu0 0.0
    %10770 = vmatpush1.msra.mxu0 0.0
    %10771 = vmatprep.subr.mxu0 0.0
    %10772 = vmatpush1.msra.mxu0 0.0
    %10773 = vmatprep.subr.mxu0 0.0
    %10774 = vmatpush1.msra.mxu0 0.0
    %10775 = vmatprep.subr.mxu0 0.0
    %10776 = vmatpush1.msra.mxu0 0.0
    %10777 = vmatprep.subr.mxu0 0.0
    %10778 = vmatpush1.msra.mxu0 0.0
    %10779 = vmatprep.subr.mxu0 0.0
    %10780 = vmatpush1.msra.mxu0 0.0
    %10781 = vmatprep.subr.mxu0 0.0
    %10782 = vmatpush1.msra.mxu0 0.0
    %10783 = vmatprep.subr.mxu0 0.0
    %10784 = vmatpush1.msra.mxu0 0.0
    %10785 = vmatprep.subr.mxu0 0.0
    %10786 = vmatpush1.msra.mxu0 0.0
    %10787 = vmatprep.subr.mxu0 0.0
    %10788 = vmatpush1.msra.mxu0 0.0
    %10789 = vmatprep.subr.mxu0 0.0
    %10790 = vmatpush1.msra.mxu0 0.0
    %10791 = vmatprep.subr.mxu0 0.0
    %10792 = vmatpush1.msra.mxu0 0.0
    %10793 = vmatprep.subr.mxu0 0.0
    %10794 = vmatpush1.msra.mxu0 0.0
    %10795 = vmatprep.subr.mxu0 0.0
    %10796 = vmatpush1.msra.mxu0 0.0
    %10797 = vmatprep.subr.mxu0 0.0
    %10798 = vmatpush1.msra.mxu0 0.0
    %10799 = vmatprep.subr.mxu0 0.0
    %10800 = vmatpush1.msra.mxu0 0.0
    %10801 = vmatprep.subr.mxu0 0.0
    %10802 = vmatpush1.msra.mxu0 0.0
    %10803 = vmatprep.mubr.f32.mxu0 0.0
    %v10804 = vand.u32 %v6802, 4294901760
    %10805 = vmatmul.mubr.f32.gmra.mrb[0].mxu0 %v10804
    %v10806 = vpop.f32.mrb[0].mxu0
    %v10807 = vadd.f32 %v10722, %v10806
    %v10808 = vpop.f32.mrb[0].mxu0
    %v10809 = vadd.f32 %v10724, %v10808
    %10810 = vmatprep.mubr.f32.mxu0 0.0
    %v10811 = vand.u32 %v6805, 4294901760
    %10812 = vmatmul.mubr.f32.gmra.mrb[0].mxu0 %v10811
    %v10813 = vpop.f32.mrb[0].mxu0
    %v10814 = vadd.f32 %v10729, %v10813
    %v10815 = vpop.f32.mrb[0].mxu0
    %v10816 = vadd.f32 %v10731, %v10815
    %10817 = vdwg.mxu0
    %v10818 = vand.u32 %v6753, 4294901760
    %10819 = vmatprep.subr.mxu0 %v10818
    %v10820 = vand.u32 %v6752, 4294901760
    %10821 = vmatpush1.msra.mxu0 %v10820
    %v10822 = vand.u32 %v6769, 4294901760
    %10823 = vmatprep.subr.mxu0 %v10822
    %v10824 = vand.u32 %v6768, 4294901760
    %10825 = vmatpush1.msra.mxu0 %v10824
    %v10826 = vand.u32 %v6854, 4294901760
    %10827 = vmatprep.subr.mxu0 %v10826
    %v10828 = vand.u32 %v6851, 4294901760
    %10829 = vmatpush1.msra.mxu0 %v10828
    %10830 = vmatprep.subr.mxu0 0.0
    %10831 = vmatpush1.msra.mxu0 0.0
    %10832 = vmatprep.subr.mxu0 0.0
    %10833 = vmatpush1.msra.mxu0 0.0
    %10834 = vmatprep.subr.mxu0 0.0
    %10835 = vmatpush1.msra.mxu0 0.0
    %10836 = vmatprep.subr.mxu0 0.0
    %10837 = vmatpush1.msra.mxu0 0.0
    %10838 = vmatprep.subr.mxu0 0.0
    %10839 = vmatpush1.msra.mxu0 0.0
    %10840 = vmatprep.subr.mxu0 0.0
    %10841 = vmatpush1.msra.mxu0 0.0
    %10842 = vmatprep.subr.mxu0 0.0
    %10843 = vmatpush1.msra.mxu0 0.0
    %10844 = vmatprep.subr.mxu0 0.0
    %10845 = vmatpush1.msra.mxu0 0.0
    %10846 = vmatprep.subr.mxu0 0.0
    %10847 = vmatpush1.msra.mxu0 0.0
    %10848 = vmatprep.subr.mxu0 0.0
    %10849 = vmatpush1.msra.mxu0 0.0
    %10850 = vmatprep.subr.mxu0 0.0
    %10851 = vmatpush1.msra.mxu0 0.0
    %10852 = vmatprep.subr.mxu0 0.0
    %10853 = vmatpush1.msra.mxu0 0.0
    %10854 = vmatprep.subr.mxu0 0.0
    %10855 = vmatpush1.msra.mxu0 0.0
    %10856 = vmatprep.subr.mxu0 0.0
    %10857 = vmatpush1.msra.mxu0 0.0
    %10858 = vmatprep.subr.mxu0 0.0
    %10859 = vmatpush1.msra.mxu0 0.0
    %10860 = vmatprep.subr.mxu0 0.0
    %10861 = vmatpush1.msra.mxu0 0.0
    %10862 = vmatprep.subr.mxu0 0.0
    %10863 = vmatpush1.msra.mxu0 0.0
    %10864 = vmatprep.subr.mxu0 0.0
    %10865 = vmatpush1.msra.mxu0 0.0
    %10866 = vmatprep.subr.mxu0 0.0
    %10867 = vmatpush1.msra.mxu0 0.0
    %10868 = vmatprep.subr.mxu0 0.0
    %10869 = vmatpush1.msra.mxu0 0.0
    %10870 = vmatprep.subr.mxu0 0.0
    %10871 = vmatpush1.msra.mxu0 0.0
    %10872 = vmatprep.subr.mxu0 0.0
    %10873 = vmatpush1.msra.mxu0 0.0
    %10874 = vmatprep.subr.mxu0 0.0
    %10875 = vmatpush1.msra.mxu0 0.0
    %10876 = vmatprep.subr.mxu0 0.0
    %10877 = vmatpush1.msra.mxu0 0.0
    %10878 = vmatprep.subr.mxu0 0.0
    %10879 = vmatpush1.msra.mxu0 0.0
    %10880 = vmatprep.subr.mxu0 0.0
    %10881 = vmatpush1.msra.mxu0 0.0
    %10882 = vmatprep.subr.mxu0 0.0
    %10883 = vmatpush1.msra.mxu0 0.0
    %10884 = vmatprep.subr.mxu0 0.0
    %10885 = vmatpush1.msra.mxu0 0.0
    %10886 = vmatprep.subr.mxu0 0.0
    %10887 = vmatpush1.msra.mxu0 0.0
    %10888 = vmatprep.mubr.f32.mxu0 0.0
    %v10889 = vand.u32 %v6802, 4294901760
    %v10890 = vsub.f32 %v6802, %v10889
    %v10891 = vand.u32 %v10890, 4294901760
    %v10892 = vsub.f32 %v10890, %v10891
    %v10893 = vand.u32 %v10892, 4294901760
    %10894 = vmatmul.mubr.f32.gmra.mrb[0].mxu0 %v10893
    %v10895 = vpop.f32.mrb[0].mxu0
    %v10896 = vadd.f32 %v6793, %v10895
    %v10897 = vpop.f32.mrb[0].mxu0
    %v10898 = vadd.f32 %v6793, %v10897
    %10899 = vmatprep.mubr.f32.mxu0 0.0
    %v10900 = vand.u32 %v6805, 4294901760
    %v10901 = vsub.f32 %v6805, %v10900
    %v10902 = vand.u32 %v10901, 4294901760
    %v10903 = vsub.f32 %v10901, %v10902
    %v10904 = vand.u32 %v10903, 4294901760
    %10905 = vmatmul.mubr.f32.gmra.mrb[0].mxu0 %v10904
    %v10906 = vpop.f32.mrb[0].mxu0
    %v10907 = vadd.f32 %v6798, %v10906
    %v10908 = vpop.f32.mrb[0].mxu0
    %v10909 = vadd.f32 %v6798, %v10908
    %10910 = vdwg.mxu0
    %v10911 = vand.u32 %v6753, 4294901760
    %v10912 = vsub.f32 %v6753, %v10911
    %v10913 = vand.u32 %v10912, 4294901760
    %v10914 = vsub.f32 %v10912, %v10913
    %v10915 = vand.u32 %v10914, 4294901760
    %10916 = vmatprep.subr.mxu0 %v10915
    %v10917 = vand.u32 %v6752, 4294901760
    %v10918 = vsub.f32 %v6752, %v10917
    %v10919 = vand.u32 %v10918, 4294901760
    %v10920 = vsub.f32 %v10918, %v10919
    %v10921 = vand.u32 %v10920, 4294901760
    %10922 = vmatpush1.msra.mxu0 %v10921
    %v10923 = vand.u32 %v6769, 4294901760
    %v10924 = vsub.f32 %v6769, %v10923
    %v10925 = vand.u32 %v10924, 4294901760
    %v10926 = vsub.f32 %v10924, %v10925
    %v10927 = vand.u32 %v10926, 4294901760
    %10928 = vmatprep.subr.mxu0 %v10927
    %v10929 = vand.u32 %v6768, 4294901760
    %v10930 = vsub.f32 %v6768, %v10929
    %v10931 = vand.u32 %v10930, 4294901760
    %v10932 = vsub.f32 %v10930, %v10931
    %v10933 = vand.u32 %v10932, 4294901760
    %10934 = vmatpush1.msra.mxu0 %v10933
    %v10935 = vand.u32 %v6854, 4294901760
    %v10936 = vsub.f32 %v6854, %v10935
    %v10937 = vand.u32 %v10936, 4294901760
    %v10938 = vsub.f32 %v10936, %v10937
    %v10939 = vand.u32 %v10938, 4294901760
    %10940 = vmatprep.subr.mxu0 %v10939
    %v10941 = vand.u32 %v6851, 4294901760
    %v10942 = vsub.f32 %v6851, %v10941
    %v10943 = vand.u32 %v10942, 4294901760
    %v10944 = vsub.f32 %v10942, %v10943
    %v10945 = vand.u32 %v10944, 4294901760
    %10946 = vmatpush1.msra.mxu0 %v10945
    %10947 = vmatprep.subr.mxu0 0.0
    %10948 = vmatpush1.msra.mxu0 0.0
    %10949 = vmatprep.subr.mxu0 0.0
    %10950 = vmatpush1.msra.mxu0 0.0
    %10951 = vmatprep.subr.mxu0 0.0
    %10952 = vmatpush1.msra.mxu0 0.0
    %10953 = vmatprep.subr.mxu0 0.0
    %10954 = vmatpush1.msra.mxu0 0.0
    %10955 = vmatprep.subr.mxu0 0.0
    %10956 = vmatpush1.msra.mxu0 0.0
    %10957 = vmatprep.subr.mxu0 0.0
    %10958 = vmatpush1.msra.mxu0 0.0
    %10959 = vmatprep.subr.mxu0 0.0
    %10960 = vmatpush1.msra.mxu0 0.0
    %10961 = vmatprep.subr.mxu0 0.0
    %10962 = vmatpush1.msra.mxu0 0.0
    %10963 = vmatprep.subr.mxu0 0.0
    %10964 = vmatpush1.msra.mxu0 0.0
    %10965 = vmatprep.subr.mxu0 0.0
    %10966 = vmatpush1.msra.mxu0 0.0
    %10967 = vmatprep.subr.mxu0 0.0
    %10968 = vmatpush1.msra.mxu0 0.0
    %10969 = vmatprep.subr.mxu0 0.0
    %10970 = vmatpush1.msra.mxu0 0.0
    %10971 = vmatprep.subr.mxu0 0.0
    %10972 = vmatpush1.msra.mxu0 0.0
    %10973 = vmatprep.subr.mxu0 0.0
    %10974 = vmatpush1.msra.mxu0 0.0
    %10975 = vmatprep.subr.mxu0 0.0
    %10976 = vmatpush1.msra.mxu0 0.0
    %10977 = vmatprep.subr.mxu0 0.0
    %10978 = vmatpush1.msra.mxu0 0.0
    %10979 = vmatprep.subr.mxu0 0.0
    %10980 = vmatpush1.msra.mxu0 0.0
    %10981 = vmatprep.subr.mxu0 0.0
    %10982 = vmatpush1.msra.mxu0 0.0
    %10983 = vmatprep.subr.mxu0 0.0
    %10984 = vmatpush1.msra.mxu0 0.0
    %10985 = vmatprep.subr.mxu0 0.0
    %10986 = vmatpush1.msra.mxu0 0.0
    %10987 = vmatprep.subr.mxu0 0.0
    %10988 = vmatpush1.msra.mxu0 0.0
    %10989 = vmatprep.subr.mxu0 0.0
    %10990 = vmatpush1.msra.mxu0 0.0
    %10991 = vmatprep.subr.mxu0 0.0
    %10992 = vmatpush1.msra.mxu0 0.0
    %10993 = vmatprep.subr.mxu0 0.0
    %10994 = vmatpush1.msra.mxu0 0.0
    %10995 = vmatprep.subr.mxu0 0.0
    %10996 = vmatpush1.msra.mxu0 0.0
    %10997 = vmatprep.subr.mxu0 0.0
    %10998 = vmatpush1.msra.mxu0 0.0
    %10999 = vmatprep.subr.mxu0 0.0
    %11000 = vmatpush1.msra.mxu0 0.0
    %11001 = vmatprep.subr.mxu0 0.0
    %11002 = vmatpush1.msra.mxu0 0.0
    %11003 = vmatprep.subr.mxu0 0.0
    %11004 = vmatpush1.msra.mxu0 0.0
    %11005 = vmatprep.mubr.f32.mxu0 0.0
    %v11006 = vand.u32 %v6802, 4294901760
    %11007 = vmatmul.mubr.f32.gmra.mrb[0].mxu0 %v11006
    %v11008 = vpop.f32.mrb[0].mxu0
    %v11009 = vadd.f32 %v10896, %v11008
    %v11010 = vpop.f32.mrb[0].mxu0
    %v11011 = vadd.f32 %v10898, %v11010
    %11012 = vmatprep.mubr.f32.mxu0 0.0
    %v11013 = vand.u32 %v6805, 4294901760
    %11014 = vmatmul.mubr.f32.gmra.mrb[0].mxu0 %v11013
    %v11015 = vpop.f32.mrb[0].mxu0
    %v11016 = vadd.f32 %v10907, %v11015
    %v11017 = vpop.f32.mrb[0].mxu0
    %v11018 = vadd.f32 %v10909, %v11017
    %11019 = vdwg.mxu0
    %v11020 = vand.u32 %v6753, 4294901760
    %v11021 = vsub.f32 %v6753, %v11020
    %11022 = vmatprep.subr.mxu0 %v11021
    %v11023 = vand.u32 %v6752, 4294901760
    %v11024 = vsub.f32 %v6752, %v11023
    %11025 = vmatpush1.msra.mxu0 %v11024
    %v11026 = vand.u32 %v6769, 4294901760
    %v11027 = vsub.f32 %v6769, %v11026
    %11028 = vmatprep.subr.mxu0 %v11027
    %v11029 = vand.u32 %v6768, 4294901760
    %v11030 = vsub.f32 %v6768, %v11029
    %11031 = vmatpush1.msra.mxu0 %v11030
    %v11032 = vand.u32 %v6854, 4294901760
    %v11033 = vsub.f32 %v6854, %v11032
    %11034 = vmatprep.subr.mxu0 %v11033
    %v11035 = vand.u32 %v6851, 4294901760
    %v11036 = vsub.f32 %v6851, %v11035
    %11037 = vmatpush1.msra.mxu0 %v11036
    %11038 = vmatprep.subr.mxu0 0.0
    %11039 = vmatpush1.msra.mxu0 0.0
    %11040 = vmatprep.subr.mxu0 0.0
    %11041 = vmatpush1.msra.mxu0 0.0
    %11042 = vmatprep.subr.mxu0 0.0
    %11043 = vmatpush1.msra.mxu0 0.0
    %11044 = vmatprep.subr.mxu0 0.0
    %11045 = vmatpush1.msra.mxu0 0.0
    %11046 = vmatprep.subr.mxu0 0.0
    %11047 = vmatpush1.msra.mxu0 0.0
    %11048 = vmatprep.subr.mxu0 0.0
    %11049 = vmatpush1.msra.mxu0 0.0
    %11050 = vmatprep.subr.mxu0 0.0
    %11051 = vmatpush1.msra.mxu0 0.0
    %11052 = vmatprep.subr.mxu0 0.0
    %11053 = vmatpush1.msra.mxu0 0.0
    %11054 = vmatprep.subr.mxu0 0.0
    %11055 = vmatpush1.msra.mxu0 0.0
    %11056 = vmatprep.subr.mxu0 0.0
    %11057 = vmatpush1.msra.mxu0 0.0
    %11058 = vmatprep.subr.mxu0 0.0
    %11059 = vmatpush1.msra.mxu0 0.0
    %11060 = vmatprep.subr.mxu0 0.0
    %11061 = vmatpush1.msra.mxu0 0.0
    %11062 = vmatprep.subr.mxu0 0.0
    %11063 = vmatpush1.msra.mxu0 0.0
    %11064 = vmatprep.subr.mxu0 0.0
    %11065 = vmatpush1.msra.mxu0 0.0
    %11066 = vmatprep.subr.mxu0 0.0
    %11067 = vmatpush1.msra.mxu0 0.0
    %11068 = vmatprep.subr.mxu0 0.0
    %11069 = vmatpush1.msra.mxu0 0.0
    %11070 = vmatprep.subr.mxu0 0.0
    %11071 = vmatpush1.msra.mxu0 0.0
    %11072 = vmatprep.subr.mxu0 0.0
    %11073 = vmatpush1.msra.mxu0 0.0
    %11074 = vmatprep.subr.mxu0 0.0
    %11075 = vmatpush1.msra.mxu0 0.0
    %11076 = vmatprep.subr.mxu0 0.0
    %11077 = vmatpush1.msra.mxu0 0.0
    %11078 = vmatprep.subr.mxu0 0.0
    %11079 = vmatpush1.msra.mxu0 0.0
    %11080 = vmatprep.subr.mxu0 0.0
    %11081 = vmatpush1.msra.mxu0 0.0
    %11082 = vmatprep.subr.mxu0 0.0
    %11083 = vmatpush1.msra.mxu0 0.0
    %11084 = vmatprep.subr.mxu0 0.0
    %11085 = vmatpush1.msra.mxu0 0.0
    %11086 = vmatprep.subr.mxu0 0.0
    %11087 = vmatpush1.msra.mxu0 0.0
    %11088 = vmatprep.subr.mxu0 0.0
    %11089 = vmatpush1.msra.mxu0 0.0
    %11090 = vmatprep.subr.mxu0 0.0
    %11091 = vmatpush1.msra.mxu0 0.0
    %11092 = vmatprep.subr.mxu0 0.0
    %11093 = vmatpush1.msra.mxu0 0.0
    %11094 = vmatprep.subr.mxu0 0.0
    %11095 = vmatpush1.msra.mxu0 0.0
    %11096 = vmatprep.mubr.f32.mxu0 0.0
    %v11097 = vand.u32 %v6802, 4294901760
    %v11098 = vsub.f32 %v6802, %v11097
    %11099 = vmatmul.mubr.f32.gmra.mrb[0].mxu0 %v11098
    %v11100 = vpop.f32.mrb[0].mxu0
    %v11101 = vadd.f32 %v11009, %v11100
    %v11102 = vpop.f32.mrb[0].mxu0
    %v11103 = vadd.f32 %v11011, %v11102
    %11104 = vmatprep.mubr.f32.mxu0 0.0
    %v11105 = vand.u32 %v6805, 4294901760
    %v11106 = vsub.f32 %v6805, %v11105
    %11107 = vmatmul.mubr.f32.gmra.mrb[0].mxu0 %v11106
    %v11108 = vpop.f32.mrb[0].mxu0
    %v11109 = vadd.f32 %v11016, %v11108
    %v11110 = vpop.f32.mrb[0].mxu0
    %v11111 = vadd.f32 %v11018, %v11110
    %11112 = vdwg.mxu0
    %v11113 = vand.u32 %v6753, 4294901760
    %11114 = vmatprep.subr.mxu0 %v11113
    %v11115 = vand.u32 %v6752, 4294901760
    %11116 = vmatpush1.msra.mxu0 %v11115
    %v11117 = vand.u32 %v6769, 4294901760
    %11118 = vmatprep.subr.mxu0 %v11117
    %v11119 = vand.u32 %v6768, 4294901760
    %11120 = vmatpush1.msra.mxu0 %v11119
    %v11121 = vand.u32 %v6854, 4294901760
    %11122 = vmatprep.subr.mxu0 %v11121
    %v11123 = vand.u32 %v6851, 4294901760
    %11124 = vmatpush1.msra.mxu0 %v11123
    %11125 = vmatprep.subr.mxu0 0.0
    %11126 = vmatpush1.msra.mxu0 0.0
    %11127 = vmatprep.subr.mxu0 0.0
    %11128 = vmatpush1.msra.mxu0 0.0
    %11129 = vmatprep.subr.mxu0 0.0
    %11130 = vmatpush1.msra.mxu0 0.0
    %11131 = vmatprep.subr.mxu0 0.0
    %11132 = vmatpush1.msra.mxu0 0.0
    %11133 = vmatprep.subr.mxu0 0.0
    %11134 = vmatpush1.msra.mxu0 0.0
    %11135 = vmatprep.subr.mxu0 0.0
    %11136 = vmatpush1.msra.mxu0 0.0
    %11137 = vmatprep.subr.mxu0 0.0
    %11138 = vmatpush1.msra.mxu0 0.0
    %11139 = vmatprep.subr.mxu0 0.0
    %11140 = vmatpush1.msra.mxu0 0.0
    %11141 = vmatprep.subr.mxu0 0.0
    %11142 = vmatpush1.msra.mxu0 0.0
    %11143 = vmatprep.subr.mxu0 0.0
    %11144 = vmatpush1.msra.mxu0 0.0
    %11145 = vmatprep.subr.mxu0 0.0
    %11146 = vmatpush1.msra.mxu0 0.0
    %11147 = vmatprep.subr.mxu0 0.0
    %11148 = vmatpush1.msra.mxu0 0.0
    %11149 = vmatprep.subr.mxu0 0.0
    %11150 = vmatpush1.msra.mxu0 0.0
    %11151 = vmatprep.subr.mxu0 0.0
    %11152 = vmatpush1.msra.mxu0 0.0
    %11153 = vmatprep.subr.mxu0 0.0
    %11154 = vmatpush1.msra.mxu0 0.0
    %11155 = vmatprep.subr.mxu0 0.0
    %11156 = vmatpush1.msra.mxu0 0.0
    %11157 = vmatprep.subr.mxu0 0.0
    %11158 = vmatpush1.msra.mxu0 0.0
    %11159 = vmatprep.subr.mxu0 0.0
    %11160 = vmatpush1.msra.mxu0 0.0
    %11161 = vmatprep.subr.mxu0 0.0
    %11162 = vmatpush1.msra.mxu0 0.0
    %11163 = vmatprep.subr.mxu0 0.0
    %11164 = vmatpush1.msra.mxu0 0.0
    %11165 = vmatprep.subr.mxu0 0.0
    %11166 = vmatpush1.msra.mxu0 0.0
    %11167 = vmatprep.subr.mxu0 0.0
    %11168 = vmatpush1.msra.mxu0 0.0
    %11169 = vmatprep.subr.mxu0 0.0
    %11170 = vmatpush1.msra.mxu0 0.0
    %11171 = vmatprep.subr.mxu0 0.0
    %11172 = vmatpush1.msra.mxu0 0.0
    %11173 = vmatprep.subr.mxu0 0.0
    %11174 = vmatpush1.msra.mxu0 0.0
    %11175 = vmatprep.subr.mxu0 0.0
    %11176 = vmatpush1.msra.mxu0 0.0
    %11177 = vmatprep.subr.mxu0 0.0
    %11178 = vmatpush1.msra.mxu0 0.0
    %11179 = vmatprep.subr.mxu0 0.0
    %11180 = vmatpush1.msra.mxu0 0.0
    %11181 = vmatprep.subr.mxu0 0.0
    %11182 = vmatpush1.msra.mxu0 0.0
    %11183 = vmatprep.mubr.f32.mxu0 0.0
    %v11184 = vand.u32 %v6802, 4294901760
    %v11185 = vsub.f32 %v6802, %v11184
    %v11186 = vand.u32 %v11185, 4294901760
    %11187 = vmatmul.mubr.f32.gmra.mrb[0].mxu0 %v11186
    %v11188 = vpop.f32.mrb[0].mxu0
    %v11189 = vadd.f32 %v11101, %v11188
    %v11190 = vpop.f32.mrb[0].mxu0
    %v11191 = vadd.f32 %v11103, %v11190
    %11192 = vmatprep.mubr.f32.mxu0 0.0
    %v11193 = vand.u32 %v6805, 4294901760
    %v11194 = vsub.f32 %v6805, %v11193
    %v11195 = vand.u32 %v11194, 4294901760
    %11196 = vmatmul.mubr.f32.gmra.mrb[0].mxu0 %v11195
    %v11197 = vpop.f32.mrb[0].mxu0
    %v11198 = vadd.f32 %v11109, %v11197
    %v11199 = vpop.f32.mrb[0].mxu0
    %v11200 = vadd.f32 %v11111, %v11199
    %11201 = vdwg.mxu0
    %v11202 = vand.u32 %v6753, 4294901760
    %v11203 = vsub.f32 %v6753, %v11202
    %v11204 = vand.u32 %v11203, 4294901760
    %11205 = vmatprep.subr.mxu0 %v11204
    %v11206 = vand.u32 %v6752, 4294901760
    %v11207 = vsub.f32 %v6752, %v11206
    %v11208 = vand.u32 %v11207, 4294901760
    %11209 = vmatpush1.msra.mxu0 %v11208
    %v11210 = vand.u32 %v6769, 4294901760
    %v11211 = vsub.f32 %v6769, %v11210
    %v11212 = vand.u32 %v11211, 4294901760
    %11213 = vmatprep.subr.mxu0 %v11212
    %v11214 = vand.u32 %v6768, 4294901760
    %v11215 = vsub.f32 %v6768, %v11214
    %v11216 = vand.u32 %v11215, 4294901760
    %11217 = vmatpush1.msra.mxu0 %v11216
    %v11218 = vand.u32 %v6854, 4294901760
    %v11219 = vsub.f32 %v6854, %v11218
    %v11220 = vand.u32 %v11219, 4294901760
    %11221 = vmatprep.subr.mxu0 %v11220
    %v11222 = vand.u32 %v6851, 4294901760
    %v11223 = vsub.f32 %v6851, %v11222
    %v11224 = vand.u32 %v11223, 4294901760
    %11225 = vmatpush1.msra.mxu0 %v11224
    %11226 = vmatprep.subr.mxu0 0.0
    %11227 = vmatpush1.msra.mxu0 0.0
    %11228 = vmatprep.subr.mxu0 0.0
    %11229 = vmatpush1.msra.mxu0 0.0
    %11230 = vmatprep.subr.mxu0 0.0
    %11231 = vmatpush1.msra.mxu0 0.0
    %11232 = vmatprep.subr.mxu0 0.0
    %11233 = vmatpush1.msra.mxu0 0.0
    %11234 = vmatprep.subr.mxu0 0.0
    %11235 = vmatpush1.msra.mxu0 0.0
    %11236 = vmatprep.subr.mxu0 0.0
    %11237 = vmatpush1.msra.mxu0 0.0
    %11238 = vmatprep.subr.mxu0 0.0
    %11239 = vmatpush1.msra.mxu0 0.0
    %11240 = vmatprep.subr.mxu0 0.0
    %11241 = vmatpush1.msra.mxu0 0.0
    %11242 = vmatprep.subr.mxu0 0.0
    %11243 = vmatpush1.msra.mxu0 0.0
    %11244 = vmatprep.subr.mxu0 0.0
    %11245 = vmatpush1.msra.mxu0 0.0
    %11246 = vmatprep.subr.mxu0 0.0
    %11247 = vmatpush1.msra.mxu0 0.0
    %11248 = vmatprep.subr.mxu0 0.0
    %11249 = vmatpush1.msra.mxu0 0.0
    %11250 = vmatprep.subr.mxu0 0.0
    %11251 = vmatpush1.msra.mxu0 0.0
    %11252 = vmatprep.subr.mxu0 0.0
    %11253 = vmatpush1.msra.mxu0 0.0
    %11254 = vmatprep.subr.mxu0 0.0
    %11255 = vmatpush1.msra.mxu0 0.0
    %11256 = vmatprep.subr.mxu0 0.0
    %11257 = vmatpush1.msra.mxu0 0.0
    %11258 = vmatprep.subr.mxu0 0.0
    %11259 = vmatpush1.msra.mxu0 0.0
    %11260 = vmatprep.subr.mxu0 0.0
    %11261 = vmatpush1.msra.mxu0 0.0
    %11262 = vmatprep.subr.mxu0 0.0
    %11263 = vmatpush1.msra.mxu0 0.0
    %11264 = vmatprep.subr.mxu0 0.0
    %11265 = vmatpush1.msra.mxu0 0.0
    %11266 = vmatprep.subr.mxu0 0.0
    %11267 = vmatpush1.msra.mxu0 0.0
    %11268 = vmatprep.subr.mxu0 0.0
    %11269 = vmatpush1.msra.mxu0 0.0
    %11270 = vmatprep.subr.mxu0 0.0
    %11271 = vmatpush1.msra.mxu0 0.0
    %11272 = vmatprep.subr.mxu0 0.0
    %11273 = vmatpush1.msra.mxu0 0.0
    %11274 = vmatprep.subr.mxu0 0.0
    %11275 = vmatpush1.msra.mxu0 0.0
    %11276 = vmatprep.subr.mxu0 0.0
    %11277 = vmatpush1.msra.mxu0 0.0
    %11278 = vmatprep.subr.mxu0 0.0
    %11279 = vmatpush1.msra.mxu0 0.0
    %11280 = vmatprep.subr.mxu0 0.0
    %11281 = vmatpush1.msra.mxu0 0.0
    %11282 = vmatprep.subr.mxu0 0.0
    %11283 = vmatpush1.msra.mxu0 0.0
    %11284 = vmatprep.mubr.f32.mxu0 0.0
    %v11285 = vand.u32 %v6802, 4294901760
    %11286 = vmatmul.mubr.f32.gmra.mrb[0].mxu0 %v11285
    %v11287 = vpop.f32.mrb[0].mxu0
    %v11288 = vadd.f32 %v11189, %v11287
    %v11289 = vpop.f32.mrb[0].mxu0
    %v11290 = vadd.f32 %v11191, %v11289
    %11291 = vmatprep.mubr.f32.mxu0 0.0
    %v11292 = vand.u32 %v6805, 4294901760
    %11293 = vmatmul.mubr.f32.gmra.mrb[0].mxu0 %v11292
    %v11294 = vpop.f32.mrb[0].mxu0
    %v11295 = vadd.f32 %v11198, %v11294
    %v11296 = vpop.f32.mrb[0].mxu0
    %v11297 = vadd.f32 %v11200, %v11296
    %11298 = vdwg.mxu0
    %v11299 = vand.u32 %v6753, 4294901760
    %11300 = vmatprep.subr.mxu0 %v11299
    %v11301 = vand.u32 %v6752, 4294901760
    %11302 = vmatpush1.msra.mxu0 %v11301
    %v11303 = vand.u32 %v6769, 4294901760
    %11304 = vmatprep.subr.mxu0 %v11303
    %v11305 = vand.u32 %v6768, 4294901760
    %11306 = vmatpush1.msra.mxu0 %v11305
    %v11307 = vand.u32 %v6854, 4294901760
    %11308 = vmatprep.subr.mxu0 %v11307
    %v11309 = vand.u32 %v6851, 4294901760
    %11310 = vmatpush1.msra.mxu0 %v11309
    %11311 = vmatprep.subr.mxu0 0.0
    %11312 = vmatpush1.msra.mxu0 0.0
    %11313 = vmatprep.subr.mxu0 0.0
    %11314 = vmatpush1.msra.mxu0 0.0
    %11315 = vmatprep.subr.mxu0 0.0
    %11316 = vmatpush1.msra.mxu0 0.0
    %11317 = vmatprep.subr.mxu0 0.0
    %11318 = vmatpush1.msra.mxu0 0.0
    %11319 = vmatprep.subr.mxu0 0.0
    %11320 = vmatpush1.msra.mxu0 0.0
    %11321 = vmatprep.subr.mxu0 0.0
    %11322 = vmatpush1.msra.mxu0 0.0
    %11323 = vmatprep.subr.mxu0 0.0
    %11324 = vmatpush1.msra.mxu0 0.0
    %11325 = vmatprep.subr.mxu0 0.0
    %11326 = vmatpush1.msra.mxu0 0.0
    %11327 = vmatprep.subr.mxu0 0.0
    %11328 = vmatpush1.msra.mxu0 0.0
    %11329 = vmatprep.subr.mxu0 0.0
    %11330 = vmatpush1.msra.mxu0 0.0
    %11331 = vmatprep.subr.mxu0 0.0
    %11332 = vmatpush1.msra.mxu0 0.0
    %11333 = vmatprep.subr.mxu0 0.0
    %11334 = vmatpush1.msra.mxu0 0.0
    %11335 = vmatprep.subr.mxu0 0.0
    %11336 = vmatpush1.msra.mxu0 0.0
    %11337 = vmatprep.subr.mxu0 0.0
    %11338 = vmatpush1.msra.mxu0 0.0
    %11339 = vmatprep.subr.mxu0 0.0
    %11340 = vmatpush1.msra.mxu0 0.0
    %11341 = vmatprep.subr.mxu0 0.0
    %11342 = vmatpush1.msra.mxu0 0.0
    %11343 = vmatprep.subr.mxu0 0.0
    %11344 = vmatpush1.msra.mxu0 0.0
    %11345 = vmatprep.subr.mxu0 0.0
    %11346 = vmatpush1.msra.mxu0 0.0
    %11347 = vmatprep.subr.mxu0 0.0
    %11348 = vmatpush1.msra.mxu0 0.0
    %11349 = vmatprep.subr.mxu0 0.0
    %11350 = vmatpush1.msra.mxu0 0.0
    %11351 = vmatprep.subr.mxu0 0.0
    %11352 = vmatpush1.msra.mxu0 0.0
    %11353 = vmatprep.subr.mxu0 0.0
    %11354 = vmatpush1.msra.mxu0 0.0
    %11355 = vmatprep.subr.mxu0 0.0
    %11356 = vmatpush1.msra.mxu0 0.0
    %11357 = vmatprep.subr.mxu0 0.0
    %11358 = vmatpush1.msra.mxu0 0.0
    %11359 = vmatprep.subr.mxu0 0.0
    %11360 = vmatpush1.msra.mxu0 0.0
    %11361 = vmatprep.subr.mxu0 0.0
    %11362 = vmatpush1.msra.mxu0 0.0
    %11363 = vmatprep.subr.mxu0 0.0
    %11364 = vmatpush1.msra.mxu0 0.0
    %11365 = vmatprep.subr.mxu0 0.0
    %11366 = vmatpush1.msra.mxu0 0.0
    %11367 = vmatprep.subr.mxu0 0.0
    %11368 = vmatpush1.msra.mxu0 0.0
    %11369 = vmatprep.mubr.f32.mxu0 0.0
    %v11370 = vand.u32 %v6802, 4294901760
    %11371 = vmatmul.mubr.f32.gmra.mrb[0].mxu0 %v11370
    %v11372 = vpop.f32.mrb[0].mxu0
    %v11373 = vadd.f32 %v11288, %v11372
    %v11374 = vpop.f32.mrb[0].mxu0
    %v11375 = vadd.f32 %v11290, %v11374
    %11376 = vmatprep.mubr.f32.mxu0 0.0
    %v11377 = vand.u32 %v6805, 4294901760
    %11378 = vmatmul.mubr.f32.gmra.mrb[0].mxu0 %v11377
    %v11379 = vpop.f32.mrb[0].mxu0
    %v11380 = vadd.f32 %v11295, %v11379
    %v11381 = vpop.f32.mrb[0].mxu0
    %v11382 = vadd.f32 %v11297, %v11381
    %11383 = vdwg.mxu0
    %v11384 = vtanh.pop %v7411
    %v11385 = vtanh.pop %v7413
    %v11386 = vtanh.pop %v7977
    %v11387 = vtanh.pop %v7979
    %v11388 = vtanh.pop %v8543
    %v11389 = vtanh.pop %v8545
    %v11390 = vtanh.pop %v9109
    %v11391 = vtanh.pop %v9111
    %v11392 = vtanh.pop %v9675
    %v11393 = vtanh.pop %v9677
    %v11394 = vtanh.pop %v10241
    %v11395 = vtanh.pop %v10243
    %v11396 = vtanh.pop %v10807
    %v11397 = vtanh.pop %v10809
    %v11398 = vtanh.pop %v11373
    %v11399 = vtanh.pop %v11375
    %v11400 = vtanh.pop %v7418
    %v11401 = vtanh.pop %v7420
    %v11402 = vtanh.pop %v7984
    %v11403 = vtanh.pop %v7986
    %v11404 = vtanh.pop %v8550
    %v11405 = vtanh.pop %v8552
    %v11406 = vtanh.pop %v9116
    %v11407 = vtanh.pop %v9118
    %v11408 = vtanh.pop %v9682
    %v11409 = vtanh.pop %v9684
    %v11410 = vtanh.pop %v10248
    %v11411 = vtanh.pop %v10250
    %v11412 = vtanh.pop %v10814
    %v11413 = vtanh.pop %v10816
    %v11414 = vtanh.pop %v11380
    %v11415 = vtanh.pop %v11382
    %v11416 = vld [vmem:[#allocation7 + $0xf8] sm:$0xff]
    %v11417 = vld [vmem:[#allocation7 + $0x100] sm:$0x3]
    %v11418 = vld [vmem:[#allocation7 + $0x108] sm:$0x1]
    %11420 = vset.pattern.permute.xlu0 0
    %11421 = vperm.xlu0 %11420, %v11416
    %v11422 = vpop.permute.xlu0 %11421
    %11425 = vset.pattern.permute.xlu0 0
    %11426 = vperm.xlu0 %11425, %v11417
    %v11427 = vpop.permute.xlu0 %11426
    %v11429 = vmul.f32 %v11422, %v11384
    %v11430 = vmul.f32 %v11422, %v11385
    %v11431 = vmul.f32 %v11422, %v11386
    %v11432 = vmul.f32 %v11422, %v11387
    %v11433 = vmul.f32 %v11422, %v11388
    %v11434 = vmul.f32 %v11422, %v11389
    %v11435 = vmul.f32 %v11422, %v11390
    %v11436 = vmul.f32 %v11422, %v11391
    %v11437 = vmul.f32 %v11422, %v11392
    %v11438 = vmul.f32 %v11422, %v11393
    %v11439 = vmul.f32 %v11422, %v11394
    %v11440 = vmul.f32 %v11422, %v11395
    %v11441 = vmul.f32 %v11422, %v11396
    %v11442 = vmul.f32 %v11422, %v11397
    %v11443 = vmul.f32 %v11422, %v11398
    %v11444 = vmul.f32 %v11422, %v11399
    %v11445 = vmul.f32 %v11427, %v11400
    %v11446 = vmul.f32 %v11427, %v11401
    %v11447 = vmul.f32 %v11427, %v11402
    %v11448 = vmul.f32 %v11427, %v11403
    %v11449 = vmul.f32 %v11427, %v11404
    %v11450 = vmul.f32 %v11427, %v11405
    %v11451 = vmul.f32 %v11427, %v11406
    %v11452 = vmul.f32 %v11427, %v11407
    %v11453 = vmul.f32 %v11427, %v11408
    %v11454 = vmul.f32 %v11427, %v11409
    %v11455 = vmul.f32 %v11427, %v11410
    %v11456 = vmul.f32 %v11427, %v11411
    %v11457 = vmul.f32 %v11427, %v11412
    %v11458 = vmul.f32 %v11427, %v11413
    %v11459 = vmul.f32 %v11427, %v11414
    %v11460 = vmul.f32 %v11427, %v11415
    %v11461 = vsel %vm937, %v11445, 0.0
    %v11462 = vadd.f32 %v11429, %v11461
    %v11463 = vrot.slane %v11462, 4
    %v11464 = vadd.f32 %v11462, %v11463
    %v11465 = vrot.slane %v11464, 2
    %v11466 = vadd.f32 %v11464, %v11465
    %v11467 = vrot.slane %v11466, 1
    %v11468 = vadd.f32 %v11466, %v11467
    %v11469 = vsel %vm937, %v11446, 0.0
    %v11470 = vadd.f32 %v11430, %v11469
    %v11471 = vrot.slane %v11470, 4
    %v11472 = vadd.f32 %v11470, %v11471
    %v11473 = vrot.slane %v11472, 2
    %v11474 = vadd.f32 %v11472, %v11473
    %v11475 = vrot.slane %v11474, 1
    %v11476 = vadd.f32 %v11474, %v11475
    %v11477 = vsel %vm937, %v11447, 0.0
    %v11478 = vadd.f32 %v11431, %v11477
    %v11479 = vrot.slane %v11478, 4
    %v11480 = vadd.f32 %v11478, %v11479
    %v11481 = vrot.slane %v11480, 2
    %v11482 = vadd.f32 %v11480, %v11481
    %v11483 = vrot.slane %v11482, 1
    %v11484 = vadd.f32 %v11482, %v11483
    %v11485 = vsel %vm937, %v11448, 0.0
    %v11486 = vadd.f32 %v11432, %v11485
    %v11487 = vrot.slane %v11486, 4
    %v11488 = vadd.f32 %v11486, %v11487
    %v11489 = vrot.slane %v11488, 2
    %v11490 = vadd.f32 %v11488, %v11489
    %v11491 = vrot.slane %v11490, 1
    %v11492 = vadd.f32 %v11490, %v11491
    %v11493 = vsel %vm937, %v11449, 0.0
    %v11494 = vadd.f32 %v11433, %v11493
    %v11495 = vrot.slane %v11494, 4
    %v11496 = vadd.f32 %v11494, %v11495
    %v11497 = vrot.slane %v11496, 2
    %v11498 = vadd.f32 %v11496, %v11497
    %v11499 = vrot.slane %v11498, 1
    %v11500 = vadd.f32 %v11498, %v11499
    %v11501 = vsel %vm937, %v11450, 0.0
    %v11502 = vadd.f32 %v11434, %v11501
    %v11503 = vrot.slane %v11502, 4
    %v11504 = vadd.f32 %v11502, %v11503
    %v11505 = vrot.slane %v11504, 2
    %v11506 = vadd.f32 %v11504, %v11505
    %v11507 = vrot.slane %v11506, 1
    %v11508 = vadd.f32 %v11506, %v11507
    %v11509 = vsel %vm937, %v11451, 0.0
    %v11510 = vadd.f32 %v11435, %v11509
    %v11511 = vrot.slane %v11510, 4
    %v11512 = vadd.f32 %v11510, %v11511
    %v11513 = vrot.slane %v11512, 2
    %v11514 = vadd.f32 %v11512, %v11513
    %v11515 = vrot.slane %v11514, 1
    %v11516 = vadd.f32 %v11514, %v11515
    %v11517 = vsel %vm937, %v11452, 0.0
    %v11518 = vadd.f32 %v11436, %v11517
    %v11519 = vrot.slane %v11518, 4
    %v11520 = vadd.f32 %v11518, %v11519
    %v11521 = vrot.slane %v11520, 2
    %v11522 = vadd.f32 %v11520, %v11521
    %v11523 = vrot.slane %v11522, 1
    %v11524 = vadd.f32 %v11522, %v11523
    %v11525 = vsel %vm937, %v11453, 0.0
    %v11526 = vadd.f32 %v11437, %v11525
    %v11527 = vrot.slane %v11526, 4
    %v11528 = vadd.f32 %v11526, %v11527
    %v11529 = vrot.slane %v11528, 2
    %v11530 = vadd.f32 %v11528, %v11529
    %v11531 = vrot.slane %v11530, 1
    %v11532 = vadd.f32 %v11530, %v11531
    %v11533 = vsel %vm937, %v11454, 0.0
    %v11534 = vadd.f32 %v11438, %v11533
    %v11535 = vrot.slane %v11534, 4
    %v11536 = vadd.f32 %v11534, %v11535
    %v11537 = vrot.slane %v11536, 2
    %v11538 = vadd.f32 %v11536, %v11537
    %v11539 = vrot.slane %v11538, 1
    %v11540 = vadd.f32 %v11538, %v11539
    %v11541 = vsel %vm937, %v11455, 0.0
    %v11542 = vadd.f32 %v11439, %v11541
    %v11543 = vrot.slane %v11542, 4
    %v11544 = vadd.f32 %v11542, %v11543
    %v11545 = vrot.slane %v11544, 2
    %v11546 = vadd.f32 %v11544, %v11545
    %v11547 = vrot.slane %v11546, 1
    %v11548 = vadd.f32 %v11546, %v11547
    %v11549 = vsel %vm937, %v11456, 0.0
    %v11550 = vadd.f32 %v11440, %v11549
    %v11551 = vrot.slane %v11550, 4
    %v11552 = vadd.f32 %v11550, %v11551
    %v11553 = vrot.slane %v11552, 2
    %v11554 = vadd.f32 %v11552, %v11553
    %v11555 = vrot.slane %v11554, 1
    %v11556 = vadd.f32 %v11554, %v11555
    %v11557 = vsel %vm937, %v11457, 0.0
    %v11558 = vadd.f32 %v11441, %v11557
    %v11559 = vrot.slane %v11558, 4
    %v11560 = vadd.f32 %v11558, %v11559
    %v11561 = vrot.slane %v11560, 2
    %v11562 = vadd.f32 %v11560, %v11561
    %v11563 = vrot.slane %v11562, 1
    %v11564 = vadd.f32 %v11562, %v11563
    %v11565 = vsel %vm937, %v11458, 0.0
    %v11566 = vadd.f32 %v11442, %v11565
    %v11567 = vrot.slane %v11566, 4
    %v11568 = vadd.f32 %v11566, %v11567
    %v11569 = vrot.slane %v11568, 2
    %v11570 = vadd.f32 %v11568, %v11569
    %v11571 = vrot.slane %v11570, 1
    %v11572 = vadd.f32 %v11570, %v11571
    %v11573 = vsel %vm937, %v11459, 0.0
    %v11574 = vadd.f32 %v11443, %v11573
    %v11575 = vrot.slane %v11574, 4
    %v11576 = vadd.f32 %v11574, %v11575
    %v11577 = vrot.slane %v11576, 2
    %v11578 = vadd.f32 %v11576, %v11577
    %v11579 = vrot.slane %v11578, 1
    %v11580 = vadd.f32 %v11578, %v11579
    %v11581 = vsel %vm937, %v11460, 0.0
    %v11582 = vadd.f32 %v11444, %v11581
    %v11583 = vrot.slane %v11582, 4
    %v11584 = vadd.f32 %v11582, %v11583
    %v11585 = vrot.slane %v11584, 2
    %v11586 = vadd.f32 %v11584, %v11585
    %v11587 = vrot.slane %v11586, 1
    %v11588 = vadd.f32 %v11586, %v11587
    %11590 = vset.pattern.permute.xlu0 0
    %11591 = vperm.xlu0 %11590, %v11418
    %v11592 = vpop.permute.xlu0 %11591
    %v11594 = vadd.f32 %v11468, %v11592
    %v11595 = vadd.f32 %v11476, %v11592
    %v11596 = vadd.f32 %v11484, %v11592
    %v11597 = vadd.f32 %v11492, %v11592
    %v11598 = vadd.f32 %v11500, %v11592
    %v11599 = vadd.f32 %v11508, %v11592
    %v11600 = vadd.f32 %v11516, %v11592
    %v11601 = vadd.f32 %v11524, %v11592
    %v11602 = vadd.f32 %v11532, %v11592
    %v11603 = vadd.f32 %v11540, %v11592
    %v11604 = vadd.f32 %v11548, %v11592
    %v11605 = vadd.f32 %v11556, %v11592
    %v11606 = vadd.f32 %v11564, %v11592
    %v11607 = vadd.f32 %v11572, %v11592
    %v11608 = vadd.f32 %v11580, %v11592
    %v11609 = vadd.f32 %v11588, %v11592
    %v11626 = vcombine.low %v11594, %v11595
    %v11627 = vcombine.low %v11596, %v11597
    %v11628 = vcombine.low %v11598, %v11599
    %v11629 = vcombine.low %v11600, %v11601
    %v11631 = vunpack.c.l.s4 1966171168
    %v11632 = vunpack.c.0.s8 %v11631
    %v11633 = vlaneseq
    %v11634 = vshrl.u32 %v11633, 7
    %v11635 = vsub.s32 %v11632, %v11634
    %v11636 = vrot.slane %v11626, %v11635
    %v11638 = vunpack.c.l.s4 1966171168
    %v11639 = vunpack.c.0.s8 %v11638
    %v11640 = vlaneseq
    %v11641 = vshrl.u32 %v11640, 7
    %v11642 = vsub.s32 %v11639, %v11641
    %v11643 = vrot.slane %v11627, %v11642
    %v11645 = vunpack.c.l.s4 1966171168
    %v11646 = vunpack.c.0.s8 %v11645
    %v11647 = vlaneseq
    %v11648 = vshrl.u32 %v11647, 7
    %v11649 = vsub.s32 %v11646, %v11648
    %v11650 = vrot.slane %v11628, %v11649
    %v11652 = vunpack.c.l.s4 1966171168
    %v11653 = vunpack.c.0.s8 %v11652
    %v11654 = vlaneseq
    %v11655 = vshrl.u32 %v11654, 7
    %v11656 = vsub.s32 %v11653, %v11655
    %v11657 = vrot.slane %v11629, %v11656
    %v11658 = vcombine.low %v11636, %v11643
    %v11659 = vcombine.low %v11650, %v11657
    %v11661 = vunpack.c.l.s4 1966171168
    %v11662 = vunpack.c.0.s8 %v11661
    %v11663 = vlaneseq
    %v11664 = vshrl.u32 %v11663, 7
    %v11665 = vsub.s32 %v11662, %v11664
    %v11666 = vrot.slane %v11658, %v11665
    %v11668 = vunpack.c.l.s4 1966171168
    %v11669 = vunpack.c.0.s8 %v11668
    %v11670 = vlaneseq
    %v11671 = vshrl.u32 %v11670, 7
    %v11672 = vsub.s32 %v11669, %v11671
    %v11673 = vrot.slane %v11659, %v11672
    %v11674 = vcombine.low %v11666, %v11673
    %v11675 = vcombine.low %v11602, %v11603
    %v11676 = vcombine.low %v11604, %v11605
    %v11677 = vcombine.low %v11606, %v11607
    %v11678 = vcombine.low %v11608, %v11609
    %v11680 = vunpack.c.l.s4 1966171168
    %v11681 = vunpack.c.0.s8 %v11680
    %v11682 = vlaneseq
    %v11683 = vshrl.u32 %v11682, 7
    %v11684 = vsub.s32 %v11681, %v11683
    %v11685 = vrot.slane %v11675, %v11684
    %v11687 = vunpack.c.l.s4 1966171168
    %v11688 = vunpack.c.0.s8 %v11687
    %v11689 = vlaneseq
    %v11690 = vshrl.u32 %v11689, 7
    %v11691 = vsub.s32 %v11688, %v11690
    %v11692 = vrot.slane %v11676, %v11691
    %v11694 = vunpack.c.l.s4 1966171168
    %v11695 = vunpack.c.0.s8 %v11694
    %v11696 = vlaneseq
    %v11697 = vshrl.u32 %v11696, 7
    %v11698 = vsub.s32 %v11695, %v11697
    %v11699 = vrot.slane %v11677, %v11698
    %v11701 = vunpack.c.l.s4 1966171168
    %v11702 = vunpack.c.0.s8 %v11701
    %v11703 = vlaneseq
    %v11704 = vshrl.u32 %v11703, 7
    %v11705 = vsub.s32 %v11702, %v11704
    %v11706 = vrot.slane %v11678, %v11705
    %v11707 = vcombine.low %v11685, %v11692
    %v11708 = vcombine.low %v11699, %v11706
    %v11710 = vunpack.c.l.s4 1966171168
    %v11711 = vunpack.c.0.s8 %v11710
    %v11712 = vlaneseq
    %v11713 = vshrl.u32 %v11712, 7
    %v11714 = vsub.s32 %v11711, %v11713
    %v11715 = vrot.slane %v11707, %v11714
    %v11717 = vunpack.c.l.s4 1966171168
    %v11718 = vunpack.c.0.s8 %v11717
    %v11719 = vlaneseq
    %v11720 = vshrl.u32 %v11719, 7
    %v11721 = vsub.s32 %v11718, %v11720
    %v11722 = vrot.slane %v11708, %v11721
    %v11723 = vcombine.low %v11715, %v11722
    %11726 = vst [vmem:[#allocation8] sm:$0xff] %v11674
    %11727 = vst [vmem:[#allocation8 + $0x8] sm:$0xff] %v11723
    // Predicated region
    $region26: #{tpu_custom_call.1} parent=1 // pred_check
      _
    $region27: #{tpu_custom_call.1} parent=1 // pred_check_branch
      %11729 = sbr.rel (0) target = $region29
    $region28: #{tpu_custom_call.1} parent=1 // pred_region
      %s11731 = ssub.s32 256, 256
      %11732 = vsyncadd [#allocation4], %s11731
      %s11734 = sshll.u32 [#allocation8], 4
      %s11735 = int_to_ptr.vmem [resolvable:$true] %s11734
      %11737 = dma.vmem_to_hbm [thread:$0]  %s11735, 256, %s3, [#allocation4]
    $region29: #{tpu_custom_call.1} parent=1 // pred_fallthru
      _
    // Predicated region
    $region30: #{tpu_custom_call.1} parent=1 // pred_check
      _
    $region31: #{tpu_custom_call.1} parent=1 // pred_check_branch
      %11739 = sbr.rel (0) target = $region33
    $region32: #{tpu_custom_call.1} parent=1 // pred_region
      %11740 = dma.done [#allocation4], 256
    $region33: #{tpu_custom_call.1} parent=1 // pred_fallthru
      _
    %11741 = vsyncpa [#allocation3], 1
    %11742 = vsyncpa [#allocation6], 1
    %11743 = vsyncpa [#allocation4], 1

</llo_original>
